<compile_context>
chip_gen: v6e
topology: v6e:2x2x1
jax: 0.10.0
libtpu: 0.0.40
codegen_flags: <defaults>
</compile_context>

<pallas_src>
import jax
import jax.numpy as jnp
from jax.experimental import pallas as pl
from jax.experimental.pallas import tpu as pltpu

BN_EPS = 1e-5


# ---------------------------------------------------------------------------
# Kernel
# ---------------------------------------------------------------------------
def _make_propagation_kernel(num_heads, head_dim, self_attn, tn):
    """One AttentionalPropagation layer for one (batch, query-tile) grid step."""
    D = num_heads * head_dim

    def body(x, src, wq_ref, bq_ref, wkv_ref, bkv_ref, wm_ref, bm_ref,
             w1x_ref, w1m_ref, b1_ref, w2_ref, b2_ref, out_ref):
        cdt = wq_ref.dtype                       # MXU operand dtype (bf16)
        xc = x.astype(cdt)                       # [TN, D]
        sc = src.astype(cdt)                     # [M,  D]

        # Head-fused projections (head-grouped output columns; 1/sqrt(d) is
        # already folded into wq/bq by the wrapper).
        q = jnp.dot(xc, wq_ref[...], preferred_element_type=jnp.float32) + bq_ref[...]
        kv = jnp.dot(sc, wkv_ref[...], preferred_element_type=jnp.float32) + bkv_ref[...]
        qc, kvc = q.astype(cdt), kv.astype(cdt)

        # Per-head attention on static lane slices of the fused projections.
        # num_heads is small (4) -> Python unroll; softmax normalisation is
        # deferred to the [TN, d] output (EUP approx reciprocal, not N*M VPU
        # multiplies).
        outs = []
        for h in range(num_heads):
            lo, hi = h * head_dim, (h + 1) * head_dim
            q_h = qc[:, lo:hi]
            k_h = kvc[:, lo:hi]
            v_h = kvc[:, D + lo:D + hi]
            s = jnp.einsum('nd,md->nm', q_h, k_h,
                           preferred_element_type=jnp.float32)        # [TN, M]
            p = jnp.exp(s - jnp.max(s, axis=-1, keepdims=True))       # in [0,1]
            o = jnp.dot(p.astype(cdt), v_h,
                        preferred_element_type=jnp.float32)           # [TN, d]
            o = o * pl.reciprocal(jnp.sum(p, axis=-1, keepdims=True), approx=True)
            outs.append(o)
        att = jnp.concatenate(outs, axis=-1)                          # [TN, D]

        # Head-fused merge projection: one full-width [TN,D]@[D,D] matmul.
        msg = (jnp.dot(att.astype(cdt), wm_ref[...],
                       preferred_element_type=jnp.float32) + bm_ref[...])

        # MLP([2D, 2D, D]); BatchNorm folded into conv1 (eval mode); the
        # [x, message] channel concat is realised as split-weight sums.
        h1 = (jnp.dot(xc, w1x_ref[...], preferred_element_type=jnp.float32)
              + jnp.dot(msg.astype(cdt), w1m_ref[...],
                        preferred_element_type=jnp.float32)
              + b1_ref[...])
        h1 = jnp.maximum(h1, 0.0)
        delta = (jnp.dot(h1.astype(cdt), w2_ref[...],
                         preferred_element_type=jnp.float32) + b2_ref[...])

        # Fused residual in f32.
        out_ref[0] = (x + delta).astype(out_ref.dtype)

    if self_attn:
        # 'self' layers: the query tile is sliced from the (grid-resident)
        # source block -> no second HBM->VMEM copy of the same descriptors.
        def kernel(src_ref, *rest):
            start = pl.multiple_of(pl.program_id(1) * tn, tn)
            x = src_ref[0, pl.ds(start, tn), :]
            body(x, src_ref[0], *rest)
    else:
        def kernel(x_ref, src_ref, *rest):
            body(x_ref[0], src_ref[0], *rest)

    return kernel


# ---------------------------------------------------------------------------
# Specs / sizing helpers
# ---------------------------------------------------------------------------
def _pick_query_tile(n):
    # Keep the [TN, M] score block bounded; TN must divide N and be a multiple
    # of 8 (or equal N) to satisfy TPU block constraints.
    for tn in (512, 256, 128):
        if n % tn == 0:
            return tn
    return n


def _weight_spec(shape, single_buffer):
    nd = len(shape)

    def idx(b, qi):
        return (0,) * nd

    if single_buffer:
        # Grid-constant blocks never need double buffering.
        return pl.BlockSpec(shape, idx, pipeline_mode=pl.Buffered(1))
    return pl.BlockSpec(shape, idx)


def _vmem_limit_bytes(tn, n, d, flat_params):
    f32 = 4
    weights = sum(int(p.size) * p.dtype.itemsize for p in flat_params)
    io = (4 * tn * d + 2 * n * d) * f32                 # x/out tiles + src block
    inter = (7 * tn * d + 2 * tn * n + 4 * tn * d) * f32  # q/kv/score/att/msg/h1
    est = 2 * (weights + io + inter)                    # 2x margin for temporaries
    # Stay below v7x's 64 MiB physical VMEM; raise above the 16/32 MiB scoped
    # defaults so production-size tiles are not rejected.
    return int(min(60 << 20, max(32 << 20, est)))


def _attentional_propagation(desc, flat_params, *, cross, num_pairs,
                             num_heads, head_dim, single_buffer_weights):
    """desc: [2B, N, D] channels-last (desc0 batches then desc1 batches)."""
    TB, N, D = desc.shape
    TN = _pick_query_tile(N)

    weight_specs = [_weight_spec(p.shape, single_buffer_weights)
                    for p in flat_params]
    out_spec = pl.BlockSpec((1, TN, D), lambda b, qi: (b, qi, 0))

    if cross:
        in_specs = ([pl.BlockSpec((1, TN, D), lambda b, qi: (b, qi, 0)),
                     pl.BlockSpec((1, N, D),
                                  lambda b, qi: ((b + num_pairs) % TB, 0, 0))]
                    + weight_specs)
        operands = (desc, desc) + tuple(flat_params)
    else:
        # 'self': single descriptor operand; kernel slices its own query tile.
        in_specs = ([pl.BlockSpec((1, N, D), lambda b, qi: (b, 0, 0))]
                    + weight_specs)
        operands = (desc,) + tuple(flat_params)

    return pl.pallas_call(
        _make_propagation_kernel(num_heads, head_dim, not cross, TN),
        out_shape=jax.ShapeDtypeStruct((TB, N, D), jnp.float32),
        grid_spec=pltpu.PrefetchScalarGridSpec(
            num_scalar_prefetch=0,
            grid=(TB, N // TN),
            in_specs=in_specs,
            out_specs=out_spec,
        ),
        compiler_params=pltpu.CompilerParams(
            dimension_semantics=("parallel", "parallel"),
            vmem_limit_bytes=_vmem_limit_bytes(TN, N, D, flat_params),
        ),
    )(*operands)


# ---------------------------------------------------------------------------
# Parameter preparation: head-permute, fuse, BN-fold, fold 1/sqrt(d), cast.
# ---------------------------------------------------------------------------
def _prepare_layer_params(p, num_heads, compute_dtype):
    D = p['wq'].shape[0]
    d = D // num_heads
    # PyTorch view(b, dim, h, n) splits channel c into (dim, head), head
    # fastest: c = dim*h + head.  Head-grouped index g = head*d + dim.
    perm = jnp.asarray([(g % d) * num_heads + (g // d) for g in range(D)],
                       jnp.int32)
    inv_sqrt_d = 1.0 / float(d) ** 0.5

    def proj(w, b, scale=1.0):
        wt = jnp.transpose(w)[:, perm] * scale      # [Cin, D] head-grouped cols
        bt = b[perm] * scale
        return wt, bt

    # 1/sqrt(head_dim) folded into the query projection.
    wq, bq = proj(p['wq'], p['bq'], inv_sqrt_d)
    wk, bk = proj(p['wk'], p['bk'])
    wv, bv = proj(p['wv'], p['bv'])
    wkv = jnp.concatenate([wk, wv], axis=1)          # [D, 2D] fused K|V
    bkv = jnp.concatenate([bk, bv], axis=0)

    # Merge conv: permute its input channels to the head-grouped order so one
    # full-width matmul consumes the concatenated per-head attention outputs.
    wm = jnp.transpose(p['wm'])[perm, :]             # [D, D]
    bm = p['bm']

    # Fold BatchNorm (eval-mode running stats) into the first MLP conv, then
    # split its input rows into the x-half and the message-half (concat-free).
    scale_bn = p['gamma'] / jnp.sqrt(p['var'] + BN_EPS)
    shift = p['beta'] - p['mean'] * scale_bn
    w1_t = jnp.transpose(p['w1']) * scale_bn[None, :]      # [2D, 2D]
    b1 = p['b1'] * scale_bn + shift
    w1x, w1m = w1_t[:D], w1_t[D:]
    w2 = jnp.transpose(p['w2'])                            # [2D, D]
    b2 = p['b2']

    cd, f32 = compute_dtype, jnp.float32
    return [wq.astype(cd), bq[None, :].astype(f32),
            wkv.astype(cd), bkv[None, :].astype(f32),
            wm.astype(cd), bm[None, :].astype(f32),
            w1x.astype(cd), w1m.astype(cd), b1[None, :].astype(f32),
            w2.astype(cd), b2[None, :].astype(f32)]


# ---------------------------------------------------------------------------
# AttentionalGNN forward
# ---------------------------------------------------------------------------
def attentional_gnn_forward(desc0, desc1, params, layer_names, *,
                            num_heads=4, compute_dtype=jnp.bfloat16,
                            single_buffer_weights=True):
    """desc0, desc1: [B, D, N] (PyTorch NCL) -> (desc0', desc1') same layout."""
    B, D, N = desc0.shape
    assert D % num_heads == 0
    head_dim = D // num_heads

    # Hoisted parameter prep: one pass over all layers, outside the layer loop.
    prepared = [_prepare_layer_params(p, num_heads, compute_dtype)
                for p in params]

    # Single layout change in/out: NCL -> channels-last tokens, stacked [2B,N,D].
    desc = jnp.concatenate(
        [jnp.transpose(desc0, (0, 2, 1)), jnp.transpose(desc1, (0, 2, 1))],
        axis=0).astype(jnp.float32)

    for flat, name in zip(prepared, layer_names):
        if name not in ('self', 'cross'):
            raise ValueError(name)
        desc = _attentional_propagation(
            desc, flat, cross=(name == 'cross'), num_pairs=B,
            num_heads=num_heads, head_dim=head_dim,
            single_buffer_weights=single_buffer_weights)

    out0 = jnp.transpose(desc[:B], (0, 2, 1))
    out1 = jnp.transpose(desc[B:], (0, 2, 1))
    return out0, out1


# ---------------------------------------------------------------------------
# Synthetic parameters + plain-JAX reference (PyTorch NCL semantics)
# ---------------------------------------------------------------------------
def init_attentional_gnn_params(key, feature_dim, layer_names, num_heads=4):
    D = feature_dim
    params = []
    for _ in layer_names:
        p = {}
        for nm, cin, cout in [('wq', D, D), ('wk', D, D), ('wv', D, D),
                              ('wm', D, D), ('w1', 2 * D, 2 * D), ('w2', 2 * D, D)]:
            key, kw, kb = jax.random.split(key, 3)
            p[nm] = jax.random.normal(kw, (cout, cin), jnp.float32) / jnp.sqrt(float(cin))
            bname = 'b' + nm[1:]
            if nm == 'w2':
                p[bname] = jnp.zeros((cout,), jnp.float32)  # nn.init.constant_(mlp[-1].bias, 0.0)
            else:
                p[bname] = 0.1 * jax.random.normal(kb, (cout,), jnp.float32)
        key, k1, k2, k3, k4 = jax.random.split(key, 5)
        p['gamma'] = 1.0 + 0.1 * jax.random.normal(k1, (2 * D,), jnp.float32)
        p['beta'] = 0.1 * jax.random.normal(k2, (2 * D,), jnp.float32)
        p['mean'] = 0.1 * jax.random.normal(k3, (2 * D,), jnp.float32)
        p['var'] = jax.random.uniform(k4, (2 * D,), jnp.float32, minval=0.5, maxval=1.5)
        params.append(p)
    return params


def reference_forward(desc0, desc1, params, layer_names, num_heads=4):
    def conv1x1(w, b, x):  # x: [B, Cin, N]
        return jnp.einsum('oc,bcn->bon', w, x) + b[None, :, None]

    def mha(p, q_in, k_in, v_in):
        b, D, n = q_in.shape
        d = D // num_heads
        q = conv1x1(p['wq'], p['bq'], q_in).reshape(b, d, num_heads, n)
        k = conv1x1(p['wk'], p['bk'], k_in).reshape(b, d, num_heads, -1)
        v = conv1x1(p['wv'], p['bv'], v_in).reshape(b, d, num_heads, -1)
        scores = jnp.einsum('bdhn,bdhm->bhnm', q, k) / (d ** 0.5)
        prob = jax.nn.softmax(scores, axis=-1)
        out = jnp.einsum('bhnm,bdhm->bdhn', prob, v).reshape(b, D, n)
        return conv1x1(p['wm'], p['bm'], out)

    def propagation(p, x, source):
        message = mha(p, x, source, source)
        y = jnp.concatenate([x, message], axis=1)
        y = conv1x1(p['w1'], p['b1'], y)
        scale = p['gamma'] / jnp.sqrt(p['var'] + BN_EPS)
        shift = p['beta'] - p['mean'] * scale
        y = jnp.maximum(y * scale[None, :, None] + shift[None, :, None], 0.0)
        return conv1x1(p['w2'], p['b2'], y)

    for p, name in zip(params, layer_names):
        if name == 'self':
            delta0, delta1 = propagation(p, desc0, desc0), propagation(p, desc1, desc1)
        elif name == 'cross':
            delta0, delta1 = propagation(p, desc0, desc1), propagation(p, desc1, desc0)
        else:
            raise ValueError(name)
        desc0, desc1 = desc0 + delta0, desc1 + delta1
    return desc0, desc1


if __name__ == "__main__":
    key = jax.random.PRNGKey(0)
    k0, k1, kp = jax.random.split(key, 3)

    B, D, N = 2, 32, 8
    num_heads = 4
    layer_names = ('self', 'cross')

    desc0 = jax.random.normal(k0, (B, D, N), jnp.float32)
    desc1 = jax.random.normal(k1, (B, D, N), jnp.float32)
    params = init_attentional_gnn_params(kp, D, layer_names, num_heads)

    def run(single_buffer):
        fwd = jax.jit(lambda d0, d1, ps: attentional_gnn_forward(
            d0, d1, ps, layer_names, num_heads=num_heads,
            single_buffer_weights=single_buffer))
        o0, o1 = fwd(desc0, desc1, params)
        return jax.block_until_ready(o0), jax.block_until_ready(o1)

    try:
        out0, out1 = run(True)
    except Exception:
        # Installed JAX rejects per-BlockSpec pipeline_mode=pl.Buffered(1);
        # fall back to default double-buffered weight blocks (same math).
        out0, out1 = run(False)

    ref0, ref1 = reference_forward(desc0, desc1, params, layer_names, num_heads)
    assert out0.shape == (B, D, N) and out1.shape == (B, D, N)
    # bf16 MXU operands + approx softmax reciprocal -> loosened tolerance.
    assert jnp.allclose(out0, ref0, atol=5e-2, rtol=5e-2), \
        float(jnp.max(jnp.abs(out0 - ref0)))
    assert jnp.allclose(out1, ref1, atol=5e-2, rtol=5e-2), \
        float(jnp.max(jnp.abs(out1 - ref1)))

    print("KERNEL_OK")
</pallas_src>

<mosaic_0001>
module attributes {stable_mosaic.version = 11 : i64} {
  func.func @kernel(%arg0: i32, %arg1: i32, %arg2: memref<1x8x32xf32, #tpu.memory_space<vmem>>, %arg3: memref<1x8x32xf32, #tpu.memory_space<vmem>>, %arg4: memref<32x32xbf16, #tpu.memory_space<vmem>>, %arg5: memref<1x32xf32, #tpu.memory_space<vmem>>, %arg6: memref<32x64xbf16, #tpu.memory_space<vmem>>, %arg7: memref<1x64xf32, #tpu.memory_space<vmem>>, %arg8: memref<32x32xbf16, #tpu.memory_space<vmem>>, %arg9: memref<1x32xf32, #tpu.memory_space<vmem>>, %arg10: memref<32x64xbf16, #tpu.memory_space<vmem>>, %arg11: memref<32x64xbf16, #tpu.memory_space<vmem>>, %arg12: memref<1x64xf32, #tpu.memory_space<vmem>>, %arg13: memref<64x32xbf16, #tpu.memory_space<vmem>>, %arg14: memref<1x32xf32, #tpu.memory_space<vmem>>, %arg15: memref<1x8x32xf32, #tpu.memory_space<vmem>>) attributes {dimension_semantics = [#tpu.dimension_semantics<parallel>, #tpu.dimension_semantics<parallel>], iteration_bounds = array<i64: 4, 1>, scalar_prefetch = 0 : i64, scratch_operands = 0 : i64, tpu.core_type = #tpu.core_type<tc>, window_params = [{transform_indices = @transform_0, window_bounds = array<i64: 1, 8, 32>}, {transform_indices = @transform_1, window_bounds = array<i64: 1, 8, 32>}, {pipeline_mode = #tpu.pipeline_mode<synchronous>, transform_indices = @transform_2, window_bounds = array<i64: 32, 32>}, {pipeline_mode = #tpu.pipeline_mode<synchronous>, transform_indices = @transform_3, window_bounds = array<i64: 1, 32>}, {pipeline_mode = #tpu.pipeline_mode<synchronous>, transform_indices = @transform_4, window_bounds = array<i64: 32, 64>}, {pipeline_mode = #tpu.pipeline_mode<synchronous>, transform_indices = @transform_5, window_bounds = array<i64: 1, 64>}, {pipeline_mode = #tpu.pipeline_mode<synchronous>, transform_indices = @transform_6, window_bounds = array<i64: 32, 32>}, {pipeline_mode = #tpu.pipeline_mode<synchronous>, transform_indices = @transform_7, window_bounds = array<i64: 1, 32>}, {pipeline_mode = #tpu.pipeline_mode<synchronous>, transform_indices = @transform_8, window_bounds = array<i64: 32, 64>}, {pipeline_mode = #tpu.pipeline_mode<synchronous>, transform_indices = @transform_9, window_bounds = array<i64: 32, 64>}, {pipeline_mode = #tpu.pipeline_mode<synchronous>, transform_indices = @transform_10, window_bounds = array<i64: 1, 64>}, {pipeline_mode = #tpu.pipeline_mode<synchronous>, transform_indices = @transform_11, window_bounds = array<i64: 64, 32>}, {pipeline_mode = #tpu.pipeline_mode<synchronous>, transform_indices = @transform_12, window_bounds = array<i64: 1, 32>}, {transform_indices = @transform_13, window_bounds = array<i64: 1, 8, 32>}]} {
    %c0 = arith.constant 0 : index
    %c0_0 = arith.constant 0 : index
    %c0_1 = arith.constant 0 : index
    %0 = vector.load %arg2[%c0, %c0_0, %c0_1] : memref<1x8x32xf32, #tpu.memory_space<vmem>>, vector<1x8x32xf32>
    %1 = vector.shape_cast %0 : vector<1x8x32xf32> to vector<8x32xf32>
    %c0_2 = arith.constant 0 : index
    %c0_3 = arith.constant 0 : index
    %c0_4 = arith.constant 0 : index
    %2 = vector.load %arg3[%c0_2, %c0_3, %c0_4] : memref<1x8x32xf32, #tpu.memory_space<vmem>>, vector<1x8x32xf32>
    %3 = vector.shape_cast %2 : vector<1x8x32xf32> to vector<8x32xf32>
    %4 = arith.truncf %1 : vector<8x32xf32> to vector<8x32xbf16>
    %5 = arith.truncf %3 : vector<8x32xf32> to vector<8x32xbf16>
    %c0_5 = arith.constant 0 : index
    %c0_6 = arith.constant 0 : index
    %6 = vector.load %arg4[%c0_5, %c0_6] : memref<32x32xbf16, #tpu.memory_space<vmem>>, vector<32x32xbf16>
    %cst = arith.constant dense<0.000000e+00> : vector<8x32xf32>
    %7 = tpu.matmul %4, %6, %cst {dimension_numbers = #tpu.dot_dimension_numbers<[1], [0], [0], [1], [0, 0, 1, 1], [], []>} : vector<8x32xbf16>, vector<32x32xbf16>, vector<8x32xf32> -> vector<8x32xf32>
    %c0_7 = arith.constant 0 : index
    %c0_8 = arith.constant 0 : index
    %8 = vector.load %arg5[%c0_7, %c0_8] : memref<1x32xf32, #tpu.memory_space<vmem>>, vector<1x32xf32>
    %9 = vector.broadcast %8 : vector<1x32xf32> to vector<8x32xf32>
    %10 = arith.addf %7, %9 : vector<8x32xf32>
    %c0_9 = arith.constant 0 : index
    %c0_10 = arith.constant 0 : index
    %11 = vector.load %arg6[%c0_9, %c0_10] : memref<32x64xbf16, #tpu.memory_space<vmem>>, vector<32x64xbf16>
    %cst_11 = arith.constant dense<0.000000e+00> : vector<8x64xf32>
    %12 = tpu.matmul %5, %11, %cst_11 {dimension_numbers = #tpu.dot_dimension_numbers<[1], [0], [0], [1], [0, 0, 1, 1], [], []>} : vector<8x32xbf16>, vector<32x64xbf16>, vector<8x64xf32> -> vector<8x64xf32>
    %c0_12 = arith.constant 0 : index
    %c0_13 = arith.constant 0 : index
    %13 = vector.load %arg7[%c0_12, %c0_13] : memref<1x64xf32, #tpu.memory_space<vmem>>, vector<1x64xf32>
    %14 = vector.broadcast %13 : vector<1x64xf32> to vector<8x64xf32>
    %15 = arith.addf %12, %14 : vector<8x64xf32>
    %16 = arith.truncf %10 : vector<8x32xf32> to vector<8x32xbf16>
    %17 = arith.truncf %15 : vector<8x64xf32> to vector<8x64xbf16>
    %18 = vector.extract_strided_slice %16 {offsets = [0, 0], sizes = [8, 8], strides = [1, 1]} : vector<8x32xbf16> to vector<8x8xbf16>
    %19 = vector.extract_strided_slice %17 {offsets = [0, 0], sizes = [8, 8], strides = [1, 1]} : vector<8x64xbf16> to vector<8x8xbf16>
    %20 = vector.extract_strided_slice %17 {offsets = [0, 32], sizes = [8, 8], strides = [1, 1]} : vector<8x64xbf16> to vector<8x8xbf16>
    "tpu.trace_start"() <{level = 10 : i32, message = "nd,md->nm"}> : () -> ()
    %cst_14 = arith.constant dense<0.000000e+00> : vector<8x8xf32>
    %21 = tpu.matmul %18, %19, %cst_14 {dimension_numbers = #tpu.dot_dimension_numbers<[1], [1], [0], [0], [0, 0, 1, 0], [], []>} : vector<8x8xbf16>, vector<8x8xbf16>, vector<8x8xf32> -> vector<8x8xf32>
    "tpu.trace_stop"() : () -> ()
    %cst_15 = arith.constant dense<0xFF800000> : vector<8xf32>
    %22 = vector.multi_reduction <maximumf>, %21, %cst_15 [1] : vector<8x8xf32> to vector<8xf32>
    %23 = vector.shape_cast %22 : vector<8xf32> to vector<8x1xf32>
    %24 = vector.broadcast %23 : vector<8x1xf32> to vector<8x8xf32>
    %25 = arith.subf %21, %24 : vector<8x8xf32>
    %26 = math.exp %25 : vector<8x8xf32>
    %27 = arith.truncf %26 : vector<8x8xf32> to vector<8x8xbf16>
    %cst_16 = arith.constant dense<0.000000e+00> : vector<8x8xf32>
    %28 = tpu.matmul %27, %20, %cst_16 {dimension_numbers = #tpu.dot_dimension_numbers<[1], [0], [0], [1], [0, 0, 1, 1], [], []>} : vector<8x8xbf16>, vector<8x8xbf16>, vector<8x8xf32> -> vector<8x8xf32>
    %cst_17 = arith.constant dense<0.000000e+00> : vector<8xf32>
    %29 = vector.multi_reduction <add>, %26, %cst_17 [1] : vector<8x8xf32> to vector<8xf32>
    %30 = vector.shape_cast %29 : vector<8xf32> to vector<8x1xf32>
    %31 = tpu.reciprocal %30 {approx = true} : vector<8x1xf32> -> vector<8x1xf32>
    %32 = vector.broadcast %31 : vector<8x1xf32> to vector<8x8xf32>
    %33 = arith.mulf %28, %32 : vector<8x8xf32>
    %34 = vector.extract_strided_slice %16 {offsets = [0, 8], sizes = [8, 8], strides = [1, 1]} : vector<8x32xbf16> to vector<8x8xbf16>
    %35 = vector.extract_strided_slice %17 {offsets = [0, 8], sizes = [8, 8], strides = [1, 1]} : vector<8x64xbf16> to vector<8x8xbf16>
    %36 = vector.extract_strided_slice %17 {offsets = [0, 40], sizes = [8, 8], strides = [1, 1]} : vector<8x64xbf16> to vector<8x8xbf16>
    "tpu.trace_start"() <{level = 10 : i32, message = "nd,md->nm"}> : () -> ()
    %cst_18 = arith.constant dense<0.000000e+00> : vector<8x8xf32>
    %37 = tpu.matmul %34, %35, %cst_18 {dimension_numbers = #tpu.dot_dimension_numbers<[1], [1], [0], [0], [0, 0, 1, 0], [], []>} : vector<8x8xbf16>, vector<8x8xbf16>, vector<8x8xf32> -> vector<8x8xf32>
    "tpu.trace_stop"() : () -> ()
    %cst_19 = arith.constant dense<0xFF800000> : vector<8xf32>
    %38 = vector.multi_reduction <maximumf>, %37, %cst_19 [1] : vector<8x8xf32> to vector<8xf32>
    %39 = vector.shape_cast %38 : vector<8xf32> to vector<8x1xf32>
    %40 = vector.broadcast %39 : vector<8x1xf32> to vector<8x8xf32>
    %41 = arith.subf %37, %40 : vector<8x8xf32>
    %42 = math.exp %41 : vector<8x8xf32>
    %43 = arith.truncf %42 : vector<8x8xf32> to vector<8x8xbf16>
    %cst_20 = arith.constant dense<0.000000e+00> : vector<8x8xf32>
    %44 = tpu.matmul %43, %36, %cst_20 {dimension_numbers = #tpu.dot_dimension_numbers<[1], [0], [0], [1], [0, 0, 1, 1], [], []>} : vector<8x8xbf16>, vector<8x8xbf16>, vector<8x8xf32> -> vector<8x8xf32>
    %cst_21 = arith.constant dense<0.000000e+00> : vector<8xf32>
    %45 = vector.multi_reduction <add>, %42, %cst_21 [1] : vector<8x8xf32> to vector<8xf32>
    %46 = vector.shape_cast %45 : vector<8xf32> to vector<8x1xf32>
    %47 = tpu.reciprocal %46 {approx = true} : vector<8x1xf32> -> vector<8x1xf32>
    %48 = vector.broadcast %47 : vector<8x1xf32> to vector<8x8xf32>
    %49 = arith.mulf %44, %48 : vector<8x8xf32>
    %50 = vector.extract_strided_slice %16 {offsets = [0, 16], sizes = [8, 8], strides = [1, 1]} : vector<8x32xbf16> to vector<8x8xbf16>
    %51 = vector.extract_strided_slice %17 {offsets = [0, 16], sizes = [8, 8], strides = [1, 1]} : vector<8x64xbf16> to vector<8x8xbf16>
    %52 = vector.extract_strided_slice %17 {offsets = [0, 48], sizes = [8, 8], strides = [1, 1]} : vector<8x64xbf16> to vector<8x8xbf16>
    "tpu.trace_start"() <{level = 10 : i32, message = "nd,md->nm"}> : () -> ()
    %cst_22 = arith.constant dense<0.000000e+00> : vector<8x8xf32>
    %53 = tpu.matmul %50, %51, %cst_22 {dimension_numbers = #tpu.dot_dimension_numbers<[1], [1], [0], [0], [0, 0, 1, 0], [], []>} : vector<8x8xbf16>, vector<8x8xbf16>, vector<8x8xf32> -> vector<8x8xf32>
    "tpu.trace_stop"() : () -> ()
    %cst_23 = arith.constant dense<0xFF800000> : vector<8xf32>
    %54 = vector.multi_reduction <maximumf>, %53, %cst_23 [1] : vector<8x8xf32> to vector<8xf32>
    %55 = vector.shape_cast %54 : vector<8xf32> to vector<8x1xf32>
    %56 = vector.broadcast %55 : vector<8x1xf32> to vector<8x8xf32>
    %57 = arith.subf %53, %56 : vector<8x8xf32>
    %58 = math.exp %57 : vector<8x8xf32>
    %59 = arith.truncf %58 : vector<8x8xf32> to vector<8x8xbf16>
    %cst_24 = arith.constant dense<0.000000e+00> : vector<8x8xf32>
    %60 = tpu.matmul %59, %52, %cst_24 {dimension_numbers = #tpu.dot_dimension_numbers<[1], [0], [0], [1], [0, 0, 1, 1], [], []>} : vector<8x8xbf16>, vector<8x8xbf16>, vector<8x8xf32> -> vector<8x8xf32>
    %cst_25 = arith.constant dense<0.000000e+00> : vector<8xf32>
    %61 = vector.multi_reduction <add>, %58, %cst_25 [1] : vector<8x8xf32> to vector<8xf32>
    %62 = vector.shape_cast %61 : vector<8xf32> to vector<8x1xf32>
    %63 = tpu.reciprocal %62 {approx = true} : vector<8x1xf32> -> vector<8x1xf32>
    %64 = vector.broadcast %63 : vector<8x1xf32> to vector<8x8xf32>
    %65 = arith.mulf %60, %64 : vector<8x8xf32>
    %66 = vector.extract_strided_slice %16 {offsets = [0, 24], sizes = [8, 8], strides = [1, 1]} : vector<8x32xbf16> to vector<8x8xbf16>
    %67 = vector.extract_strided_slice %17 {offsets = [0, 24], sizes = [8, 8], strides = [1, 1]} : vector<8x64xbf16> to vector<8x8xbf16>
    %68 = vector.extract_strided_slice %17 {offsets = [0, 56], sizes = [8, 8], strides = [1, 1]} : vector<8x64xbf16> to vector<8x8xbf16>
    "tpu.trace_start"() <{level = 10 : i32, message = "nd,md->nm"}> : () -> ()
    %cst_26 = arith.constant dense<0.000000e+00> : vector<8x8xf32>
    %69 = tpu.matmul %66, %67, %cst_26 {dimension_numbers = #tpu.dot_dimension_numbers<[1], [1], [0], [0], [0, 0, 1, 0], [], []>} : vector<8x8xbf16>, vector<8x8xbf16>, vector<8x8xf32> -> vector<8x8xf32>
    "tpu.trace_stop"() : () -> ()
    %cst_27 = arith.constant dense<0xFF800000> : vector<8xf32>
    %70 = vector.multi_reduction <maximumf>, %69, %cst_27 [1] : vector<8x8xf32> to vector<8xf32>
    %71 = vector.shape_cast %70 : vector<8xf32> to vector<8x1xf32>
    %72 = vector.broadcast %71 : vector<8x1xf32> to vector<8x8xf32>
    %73 = arith.subf %69, %72 : vector<8x8xf32>
    %74 = math.exp %73 : vector<8x8xf32>
    %75 = arith.truncf %74 : vector<8x8xf32> to vector<8x8xbf16>
    %cst_28 = arith.constant dense<0.000000e+00> : vector<8x8xf32>
    %76 = tpu.matmul %75, %68, %cst_28 {dimension_numbers = #tpu.dot_dimension_numbers<[1], [0], [0], [1], [0, 0, 1, 1], [], []>} : vector<8x8xbf16>, vector<8x8xbf16>, vector<8x8xf32> -> vector<8x8xf32>
    %cst_29 = arith.constant dense<0.000000e+00> : vector<8xf32>
    %77 = vector.multi_reduction <add>, %74, %cst_29 [1] : vector<8x8xf32> to vector<8xf32>
    %78 = vector.shape_cast %77 : vector<8xf32> to vector<8x1xf32>
    %79 = tpu.reciprocal %78 {approx = true} : vector<8x1xf32> -> vector<8x1xf32>
    %80 = vector.broadcast %79 : vector<8x1xf32> to vector<8x8xf32>
    %81 = arith.mulf %76, %80 : vector<8x8xf32>
    %82 = tpu.concatenate %33, %49, %65, %81 in 1 : vector<8x8xf32>, vector<8x8xf32>, vector<8x8xf32>, vector<8x8xf32> -> vector<8x32xf32>
    %83 = arith.truncf %82 : vector<8x32xf32> to vector<8x32xbf16>
    %c0_30 = arith.constant 0 : index
    %c0_31 = arith.constant 0 : index
    %84 = vector.load %arg8[%c0_30, %c0_31] : memref<32x32xbf16, #tpu.memory_space<vmem>>, vector<32x32xbf16>
    %cst_32 = arith.constant dense<0.000000e+00> : vector<8x32xf32>
    %85 = tpu.matmul %83, %84, %cst_32 {dimension_numbers = #tpu.dot_dimension_numbers<[1], [0], [0], [1], [0, 0, 1, 1], [], []>} : vector<8x32xbf16>, vector<32x32xbf16>, vector<8x32xf32> -> vector<8x32xf32>
    %c0_33 = arith.constant 0 : index
    %c0_34 = arith.constant 0 : index
    %86 = vector.load %arg9[%c0_33, %c0_34] : memref<1x32xf32, #tpu.memory_space<vmem>>, vector<1x32xf32>
    %87 = vector.broadcast %86 : vector<1x32xf32> to vector<8x32xf32>
    %88 = arith.addf %85, %87 : vector<8x32xf32>
    %c0_35 = arith.constant 0 : index
    %c0_36 = arith.constant 0 : index
    %89 = vector.load %arg10[%c0_35, %c0_36] : memref<32x64xbf16, #tpu.memory_space<vmem>>, vector<32x64xbf16>
    %cst_37 = arith.constant dense<0.000000e+00> : vector<8x64xf32>
    %90 = tpu.matmul %4, %89, %cst_37 {dimension_numbers = #tpu.dot_dimension_numbers<[1], [0], [0], [1], [0, 0, 1, 1], [], []>} : vector<8x32xbf16>, vector<32x64xbf16>, vector<8x64xf32> -> vector<8x64xf32>
    %91 = arith.truncf %88 : vector<8x32xf32> to vector<8x32xbf16>
    %c0_38 = arith.constant 0 : index
    %c0_39 = arith.constant 0 : index
    %92 = vector.load %arg11[%c0_38, %c0_39] : memref<32x64xbf16, #tpu.memory_space<vmem>>, vector<32x64xbf16>
    %cst_40 = arith.constant dense<0.000000e+00> : vector<8x64xf32>
    %93 = tpu.matmul %91, %92, %cst_40 {dimension_numbers = #tpu.dot_dimension_numbers<[1], [0], [0], [1], [0, 0, 1, 1], [], []>} : vector<8x32xbf16>, vector<32x64xbf16>, vector<8x64xf32> -> vector<8x64xf32>
    %94 = arith.addf %90, %93 : vector<8x64xf32>
    %c0_41 = arith.constant 0 : index
    %c0_42 = arith.constant 0 : index
    %95 = vector.load %arg12[%c0_41, %c0_42] : memref<1x64xf32, #tpu.memory_space<vmem>>, vector<1x64xf32>
    %96 = vector.broadcast %95 : vector<1x64xf32> to vector<8x64xf32>
    %97 = arith.addf %94, %96 : vector<8x64xf32>
    %cst_43 = arith.constant 0.000000e+00 : f32
    %98 = vector.broadcast %cst_43 : f32 to vector<8x64xf32>
    %99 = arith.maximumf %97, %98 : vector<8x64xf32>
    %100 = arith.truncf %99 : vector<8x64xf32> to vector<8x64xbf16>
    %c0_44 = arith.constant 0 : index
    %c0_45 = arith.constant 0 : index
    %101 = vector.load %arg13[%c0_44, %c0_45] : memref<64x32xbf16, #tpu.memory_space<vmem>>, vector<64x32xbf16>
    %cst_46 = arith.constant dense<0.000000e+00> : vector<8x32xf32>
    %102 = tpu.matmul %100, %101, %cst_46 {dimension_numbers = #tpu.dot_dimension_numbers<[1], [0], [0], [1], [0, 0, 1, 1], [], []>} : vector<8x64xbf16>, vector<64x32xbf16>, vector<8x32xf32> -> vector<8x32xf32>
    %c0_47 = arith.constant 0 : index
    %c0_48 = arith.constant 0 : index
    %103 = vector.load %arg14[%c0_47, %c0_48] : memref<1x32xf32, #tpu.memory_space<vmem>>, vector<1x32xf32>
    %104 = vector.broadcast %103 : vector<1x32xf32> to vector<8x32xf32>
    %105 = arith.addf %102, %104 : vector<8x32xf32>
    %106 = arith.addf %1, %105 : vector<8x32xf32>
    %c0_49 = arith.constant 0 : index
    %c0_50 = arith.constant 0 : index
    %c0_51 = arith.constant 0 : index
    %107 = vector.load %arg15[%c0_49, %c0_50, %c0_51] : memref<1x8x32xf32, #tpu.memory_space<vmem>>, vector<1x8x32xf32>
    %108 = vector.shape_cast %107 : vector<1x8x32xf32> to vector<8x32xf32>
    %109 = vector.shape_cast %106 : vector<8x32xf32> to vector<1x8x32xf32>
    tpu.vector_store %arg15[%c0_49, %c0_50, %c0_51], %109 {strides = array<i32>} : memref<1x8x32xf32, #tpu.memory_space<vmem>>, vector<1x8x32xf32>,
    return
  }
  func.func @transform_0(%arg0: i32, %arg1: i32) -> (i32, i32, i32) {
    %c0_i32 = arith.constant 0 : i32
    %c0_i32_0 = arith.constant 0 : i32
    return %arg0, %arg1, %c0_i32 : i32, i32, i32
  }
  func.func @transform_1(%arg0: i32, %arg1: i32) -> (i32, i32, i32) {
    %c2_i32 = arith.constant 2 : i32
    %0 = arith.addi %arg0, %c2_i32 : i32
    %c4_i32 = arith.constant 4 : i32
    %c0_i32 = arith.constant 0 : i32
    %1 = arith.cmpi eq, %c4_i32, %c0_i32 : i32
    %c1_i32 = arith.constant 1 : i32
    %2 = arith.select %1, %c1_i32, %c4_i32 : i32
    %3 = arith.remsi %0, %2 : i32
    %c0_i32_0 = arith.constant 0 : i32
    %4 = arith.cmpi ne, %3, %c0_i32_0 : i32
    %c0_i32_1 = arith.constant 0 : i32
    %5 = arith.cmpi slt, %3, %c0_i32_1 : i32
    %c0_i32_2 = arith.constant 0 : i32
    %6 = arith.cmpi slt, %2, %c0_i32_2 : i32
    %7 = arith.xori %5, %6 : i1
    %8 = arith.andi %7, %4 : i1
    %9 = arith.addi %3, %2 : i32
    %10 = arith.select %8, %9, %3 : i32
    %c0_i32_3 = arith.constant 0 : i32
    %c0_i32_4 = arith.constant 0 : i32
    %c0_i32_5 = arith.constant 0 : i32
    return %10, %c0_i32_3, %c0_i32_4 : i32, i32, i32
  }
  func.func @transform_2(%arg0: i32, %arg1: i32) -> (i32, i32) {
    %c0_i32 = arith.constant 0 : i32
    %c0_i32_0 = arith.constant 0 : i32
    %c0_i32_1 = arith.constant 0 : i32
    return %c0_i32, %c0_i32_0 : i32, i32
  }
  func.func @transform_3(%arg0: i32, %arg1: i32) -> (i32, i32) {
    %c0_i32 = arith.constant 0 : i32
    %c0_i32_0 = arith.constant 0 : i32
    %c0_i32_1 = arith.constant 0 : i32
    return %c0_i32, %c0_i32_0 : i32, i32
  }
  func.func @transform_4(%arg0: i32, %arg1: i32) -> (i32, i32) {
    %c0_i32 = arith.constant 0 : i32
    %c0_i32_0 = arith.constant 0 : i32
    %c0_i32_1 = arith.constant 0 : i32
    return %c0_i32, %c0_i32_0 : i32, i32
  }
  func.func @transform_5(%arg0: i32, %arg1: i32) -> (i32, i32) {
    %c0_i32 = arith.constant 0 : i32
    %c0_i32_0 = arith.constant 0 : i32
    %c0_i32_1 = arith.constant 0 : i32
    return %c0_i32, %c0_i32_0 : i32, i32
  }
  func.func @transform_6(%arg0: i32, %arg1: i32) -> (i32, i32) {
    %c0_i32 = arith.constant 0 : i32
    %c0_i32_0 = arith.constant 0 : i32
    %c0_i32_1 = arith.constant 0 : i32
    return %c0_i32, %c0_i32_0 : i32, i32
  }
  func.func @transform_7(%arg0: i32, %arg1: i32) -> (i32, i32) {
    %c0_i32 = arith.constant 0 : i32
    %c0_i32_0 = arith.constant 0 : i32
    %c0_i32_1 = arith.constant 0 : i32
    return %c0_i32, %c0_i32_0 : i32, i32
  }
  func.func @transform_8(%arg0: i32, %arg1: i32) -> (i32, i32) {
    %c0_i32 = arith.constant 0 : i32
    %c0_i32_0 = arith.constant 0 : i32
    %c0_i32_1 = arith.constant 0 : i32
    return %c0_i32, %c0_i32_0 : i32, i32
  }
  func.func @transform_9(%arg0: i32, %arg1: i32) -> (i32, i32) {
    %c0_i32 = arith.constant 0 : i32
    %c0_i32_0 = arith.constant 0 : i32
    %c0_i32_1 = arith.constant 0 : i32
    return %c0_i32, %c0_i32_0 : i32, i32
  }
  func.func @transform_10(%arg0: i32, %arg1: i32) -> (i32, i32) {
    %c0_i32 = arith.constant 0 : i32
    %c0_i32_0 = arith.constant 0 : i32
    %c0_i32_1 = arith.constant 0 : i32
    return %c0_i32, %c0_i32_0 : i32, i32
  }
  func.func @transform_11(%arg0: i32, %arg1: i32) -> (i32, i32) {
    %c0_i32 = arith.constant 0 : i32
    %c0_i32_0 = arith.constant 0 : i32
    %c0_i32_1 = arith.constant 0 : i32
    return %c0_i32, %c0_i32_0 : i32, i32
  }
  func.func @transform_12(%arg0: i32, %arg1: i32) -> (i32, i32) {
    %c0_i32 = arith.constant 0 : i32
    %c0_i32_0 = arith.constant 0 : i32
    %c0_i32_1 = arith.constant 0 : i32
    return %c0_i32, %c0_i32_0 : i32, i32
  }
  func.func @transform_13(%arg0: i32, %arg1: i32) -> (i32, i32, i32) {
    %c0_i32 = arith.constant 0 : i32
    %c0_i32_0 = arith.constant 0 : i32
    return %arg0, %arg1, %c0_i32 : i32, i32, i32
  }
}

module attributes {stable_mosaic.version = 11 : i64} {
  func.func @kernel(%arg0: i32, %arg1: i32, %arg2: memref<1x8x32xf32, #tpu.memory_space<vmem>>, %arg3: memref<32x32xbf16, #tpu.memory_space<vmem>>, %arg4: memref<1x32xf32, #tpu.memory_space<vmem>>, %arg5: memref<32x64xbf16, #tpu.memory_space<vmem>>, %arg6: memref<1x64xf32, #tpu.memory_space<vmem>>, %arg7: memref<32x32xbf16, #tpu.memory_space<vmem>>, %arg8: memref<1x32xf32, #tpu.memory_space<vmem>>, %arg9: memref<32x64xbf16, #tpu.memory_space<vmem>>, %arg10: memref<32x64xbf16, #tpu.memory_space<vmem>>, %arg11: memref<1x64xf32, #tpu.memory_space<vmem>>, %arg12: memref<64x32xbf16, #tpu.memory_space<vmem>>, %arg13: memref<1x32xf32, #tpu.memory_space<vmem>>, %arg14: memref<1x8x32xf32, #tpu.memory_space<vmem>>) attributes {dimension_semantics = [#tpu.dimension_semantics<parallel>, #tpu.dimension_semantics<parallel>], iteration_bounds = array<i64: 4, 1>, scalar_prefetch = 0 : i64, scratch_operands = 0 : i64, tpu.core_type = #tpu.core_type<tc>, window_params = [{transform_indices = @transform_0, window_bounds = array<i64: 1, 8, 32>}, {pipeline_mode = #tpu.pipeline_mode<synchronous>, transform_indices = @transform_1, window_bounds = array<i64: 32, 32>}, {pipeline_mode = #tpu.pipeline_mode<synchronous>, transform_indices = @transform_2, window_bounds = array<i64: 1, 32>}, {pipeline_mode = #tpu.pipeline_mode<synchronous>, transform_indices = @transform_3, window_bounds = array<i64: 32, 64>}, {pipeline_mode = #tpu.pipeline_mode<synchronous>, transform_indices = @transform_4, window_bounds = array<i64: 1, 64>}, {pipeline_mode = #tpu.pipeline_mode<synchronous>, transform_indices = @transform_5, window_bounds = array<i64: 32, 32>}, {pipeline_mode = #tpu.pipeline_mode<synchronous>, transform_indices = @transform_6, window_bounds = array<i64: 1, 32>}, {pipeline_mode = #tpu.pipeline_mode<synchronous>, transform_indices = @transform_7, window_bounds = array<i64: 32, 64>}, {pipeline_mode = #tpu.pipeline_mode<synchronous>, transform_indices = @transform_8, window_bounds = array<i64: 32, 64>}, {pipeline_mode = #tpu.pipeline_mode<synchronous>, transform_indices = @transform_9, window_bounds = array<i64: 1, 64>}, {pipeline_mode = #tpu.pipeline_mode<synchronous>, transform_indices = @transform_10, window_bounds = array<i64: 64, 32>}, {pipeline_mode = #tpu.pipeline_mode<synchronous>, transform_indices = @transform_11, window_bounds = array<i64: 1, 32>}, {transform_indices = @transform_12, window_bounds = array<i64: 1, 8, 32>}]} {
    %c8_i32 = arith.constant 8 : i32
    %0 = arith.muli %arg1, %c8_i32 : i32
    %1 = tpu.assume_multiple %0, 8 : i32
    %c0 = arith.constant 0 : index
    %2 = arith.index_cast %1 : i32 to index
    %c0_0 = arith.constant 0 : index
    %3 = vector.load %arg2[%c0, %2, %c0_0] : memref<1x8x32xf32, #tpu.memory_space<vmem>>, vector<1x8x32xf32>
    %4 = vector.shape_cast %3 : vector<1x8x32xf32> to vector<8x32xf32>
    %c0_1 = arith.constant 0 : index
    %c0_2 = arith.constant 0 : index
    %c0_3 = arith.constant 0 : index
    %5 = vector.load %arg2[%c0_1, %c0_2, %c0_3] : memref<1x8x32xf32, #tpu.memory_space<vmem>>, vector<1x8x32xf32>
    %6 = vector.shape_cast %5 : vector<1x8x32xf32> to vector<8x32xf32>
    %7 = arith.truncf %4 : vector<8x32xf32> to vector<8x32xbf16>
    %8 = arith.truncf %6 : vector<8x32xf32> to vector<8x32xbf16>
    %c0_4 = arith.constant 0 : index
    %c0_5 = arith.constant 0 : index
    %9 = vector.load %arg3[%c0_4, %c0_5] : memref<32x32xbf16, #tpu.memory_space<vmem>>, vector<32x32xbf16>
    %cst = arith.constant dense<0.000000e+00> : vector<8x32xf32>
    %10 = tpu.matmul %7, %9, %cst {dimension_numbers = #tpu.dot_dimension_numbers<[1], [0], [0], [1], [0, 0, 1, 1], [], []>} : vector<8x32xbf16>, vector<32x32xbf16>, vector<8x32xf32> -> vector<8x32xf32>
    %c0_6 = arith.constant 0 : index
    %c0_7 = arith.constant 0 : index
    %11 = vector.load %arg4[%c0_6, %c0_7] : memref<1x32xf32, #tpu.memory_space<vmem>>, vector<1x32xf32>
    %12 = vector.broadcast %11 : vector<1x32xf32> to vector<8x32xf32>
    %13 = arith.addf %10, %12 : vector<8x32xf32>
    %c0_8 = arith.constant 0 : index
    %c0_9 = arith.constant 0 : index
    %14 = vector.load %arg5[%c0_8, %c0_9] : memref<32x64xbf16, #tpu.memory_space<vmem>>, vector<32x64xbf16>
    %cst_10 = arith.constant dense<0.000000e+00> : vector<8x64xf32>
    %15 = tpu.matmul %8, %14, %cst_10 {dimension_numbers = #tpu.dot_dimension_numbers<[1], [0], [0], [1], [0, 0, 1, 1], [], []>} : vector<8x32xbf16>, vector<32x64xbf16>, vector<8x64xf32> -> vector<8x64xf32>
    %c0_11 = arith.constant 0 : index
    %c0_12 = arith.constant 0 : index
    %16 = vector.load %arg6[%c0_11, %c0_12] : memref<1x64xf32, #tpu.memory_space<vmem>>, vector<1x64xf32>
    %17 = vector.broadcast %16 : vector<1x64xf32> to vector<8x64xf32>
    %18 = arith.addf %15, %17 : vector<8x64xf32>
    %19 = arith.truncf %13 : vector<8x32xf32> to vector<8x32xbf16>
    %20 = arith.truncf %18 : vector<8x64xf32> to vector<8x64xbf16>
    %21 = vector.extract_strided_slice %19 {offsets = [0, 0], sizes = [8, 8], strides = [1, 1]} : vector<8x32xbf16> to vector<8x8xbf16>
    %22 = vector.extract_strided_slice %20 {offsets = [0, 0], sizes = [8, 8], strides = [1, 1]} : vector<8x64xbf16> to vector<8x8xbf16>
    %23 = vector.extract_strided_slice %20 {offsets = [0, 32], sizes = [8, 8], strides = [1, 1]} : vector<8x64xbf16> to vector<8x8xbf16>
    "tpu.trace_start"() <{level = 10 : i32, message = "nd,md->nm"}> : () -> ()
    %cst_13 = arith.constant dense<0.000000e+00> : vector<8x8xf32>
    %24 = tpu.matmul %21, %22, %cst_13 {dimension_numbers = #tpu.dot_dimension_numbers<[1], [1], [0], [0], [0, 0, 1, 0], [], []>} : vector<8x8xbf16>, vector<8x8xbf16>, vector<8x8xf32> -> vector<8x8xf32>
    "tpu.trace_stop"() : () -> ()
    %cst_14 = arith.constant dense<0xFF800000> : vector<8xf32>
    %25 = vector.multi_reduction <maximumf>, %24, %cst_14 [1] : vector<8x8xf32> to vector<8xf32>
    %26 = vector.shape_cast %25 : vector<8xf32> to vector<8x1xf32>
    %27 = vector.broadcast %26 : vector<8x1xf32> to vector<8x8xf32>
    %28 = arith.subf %24, %27 : vector<8x8xf32>
    %29 = math.exp %28 : vector<8x8xf32>
    %30 = arith.truncf %29 : vector<8x8xf32> to vector<8x8xbf16>
    %cst_15 = arith.constant dense<0.000000e+00> : vector<8x8xf32>
    %31 = tpu.matmul %30, %23, %cst_15 {dimension_numbers = #tpu.dot_dimension_numbers<[1], [0], [0], [1], [0, 0, 1, 1], [], []>} : vector<8x8xbf16>, vector<8x8xbf16>, vector<8x8xf32> -> vector<8x8xf32>
    %cst_16 = arith.constant dense<0.000000e+00> : vector<8xf32>
    %32 = vector.multi_reduction <add>, %29, %cst_16 [1] : vector<8x8xf32> to vector<8xf32>
    %33 = vector.shape_cast %32 : vector<8xf32> to vector<8x1xf32>
    %34 = tpu.reciprocal %33 {approx = true} : vector<8x1xf32> -> vector<8x1xf32>
    %35 = vector.broadcast %34 : vector<8x1xf32> to vector<8x8xf32>
    %36 = arith.mulf %31, %35 : vector<8x8xf32>
    %37 = vector.extract_strided_slice %19 {offsets = [0, 8], sizes = [8, 8], strides = [1, 1]} : vector<8x32xbf16> to vector<8x8xbf16>
    %38 = vector.extract_strided_slice %20 {offsets = [0, 8], sizes = [8, 8], strides = [1, 1]} : vector<8x64xbf16> to vector<8x8xbf16>
    %39 = vector.extract_strided_slice %20 {offsets = [0, 40], sizes = [8, 8], strides = [1, 1]} : vector<8x64xbf16> to vector<8x8xbf16>
    "tpu.trace_start"() <{level = 10 : i32, message = "nd,md->nm"}> : () -> ()
    %cst_17 = arith.constant dense<0.000000e+00> : vector<8x8xf32>
    %40 = tpu.matmul %37, %38, %cst_17 {dimension_numbers = #tpu.dot_dimension_numbers<[1], [1], [0], [0], [0, 0, 1, 0], [], []>} : vector<8x8xbf16>, vector<8x8xbf16>, vector<8x8xf32> -> vector<8x8xf32>
    "tpu.trace_stop"() : () -> ()
    %cst_18 = arith.constant dense<0xFF800000> : vector<8xf32>
    %41 = vector.multi_reduction <maximumf>, %40, %cst_18 [1] : vector<8x8xf32> to vector<8xf32>
    %42 = vector.shape_cast %41 : vector<8xf32> to vector<8x1xf32>
    %43 = vector.broadcast %42 : vector<8x1xf32> to vector<8x8xf32>
    %44 = arith.subf %40, %43 : vector<8x8xf32>
    %45 = math.exp %44 : vector<8x8xf32>
    %46 = arith.truncf %45 : vector<8x8xf32> to vector<8x8xbf16>
    %cst_19 = arith.constant dense<0.000000e+00> : vector<8x8xf32>
    %47 = tpu.matmul %46, %39, %cst_19 {dimension_numbers = #tpu.dot_dimension_numbers<[1], [0], [0], [1], [0, 0, 1, 1], [], []>} : vector<8x8xbf16>, vector<8x8xbf16>, vector<8x8xf32> -> vector<8x8xf32>
    %cst_20 = arith.constant dense<0.000000e+00> : vector<8xf32>
    %48 = vector.multi_reduction <add>, %45, %cst_20 [1] : vector<8x8xf32> to vector<8xf32>
    %49 = vector.shape_cast %48 : vector<8xf32> to vector<8x1xf32>
    %50 = tpu.reciprocal %49 {approx = true} : vector<8x1xf32> -> vector<8x1xf32>
    %51 = vector.broadcast %50 : vector<8x1xf32> to vector<8x8xf32>
    %52 = arith.mulf %47, %51 : vector<8x8xf32>
    %53 = vector.extract_strided_slice %19 {offsets = [0, 16], sizes = [8, 8], strides = [1, 1]} : vector<8x32xbf16> to vector<8x8xbf16>
    %54 = vector.extract_strided_slice %20 {offsets = [0, 16], sizes = [8, 8], strides = [1, 1]} : vector<8x64xbf16> to vector<8x8xbf16>
    %55 = vector.extract_strided_slice %20 {offsets = [0, 48], sizes = [8, 8], strides = [1, 1]} : vector<8x64xbf16> to vector<8x8xbf16>
    "tpu.trace_start"() <{level = 10 : i32, message = "nd,md->nm"}> : () -> ()
    %cst_21 = arith.constant dense<0.000000e+00> : vector<8x8xf32>
    %56 = tpu.matmul %53, %54, %cst_21 {dimension_numbers = #tpu.dot_dimension_numbers<[1], [1], [0], [0], [0, 0, 1, 0], [], []>} : vector<8x8xbf16>, vector<8x8xbf16>, vector<8x8xf32> -> vector<8x8xf32>
    "tpu.trace_stop"() : () -> ()
    %cst_22 = arith.constant dense<0xFF800000> : vector<8xf32>
    %57 = vector.multi_reduction <maximumf>, %56, %cst_22 [1] : vector<8x8xf32> to vector<8xf32>
    %58 = vector.shape_cast %57 : vector<8xf32> to vector<8x1xf32>
    %59 = vector.broadcast %58 : vector<8x1xf32> to vector<8x8xf32>
    %60 = arith.subf %56, %59 : vector<8x8xf32>
    %61 = math.exp %60 : vector<8x8xf32>
    %62 = arith.truncf %61 : vector<8x8xf32> to vector<8x8xbf16>
    %cst_23 = arith.constant dense<0.000000e+00> : vector<8x8xf32>
    %63 = tpu.matmul %62, %55, %cst_23 {dimension_numbers = #tpu.dot_dimension_numbers<[1], [0], [0], [1], [0, 0, 1, 1], [], []>} : vector<8x8xbf16>, vector<8x8xbf16>, vector<8x8xf32> -> vector<8x8xf32>
    %cst_24 = arith.constant dense<0.000000e+00> : vector<8xf32>
    %64 = vector.multi_reduction <add>, %61, %cst_24 [1] : vector<8x8xf32> to vector<8xf32>
    %65 = vector.shape_cast %64 : vector<8xf32> to vector<8x1xf32>
    %66 = tpu.reciprocal %65 {approx = true} : vector<8x1xf32> -> vector<8x1xf32>
    %67 = vector.broadcast %66 : vector<8x1xf32> to vector<8x8xf32>
    %68 = arith.mulf %63, %67 : vector<8x8xf32>
    %69 = vector.extract_strided_slice %19 {offsets = [0, 24], sizes = [8, 8], strides = [1, 1]} : vector<8x32xbf16> to vector<8x8xbf16>
    %70 = vector.extract_strided_slice %20 {offsets = [0, 24], sizes = [8, 8], strides = [1, 1]} : vector<8x64xbf16> to vector<8x8xbf16>
    %71 = vector.extract_strided_slice %20 {offsets = [0, 56], sizes = [8, 8], strides = [1, 1]} : vector<8x64xbf16> to vector<8x8xbf16>
    "tpu.trace_start"() <{level = 10 : i32, message = "nd,md->nm"}> : () -> ()
    %cst_25 = arith.constant dense<0.000000e+00> : vector<8x8xf32>
    %72 = tpu.matmul %69, %70, %cst_25 {dimension_numbers = #tpu.dot_dimension_numbers<[1], [1], [0], [0], [0, 0, 1, 0], [], []>} : vector<8x8xbf16>, vector<8x8xbf16>, vector<8x8xf32> -> vector<8x8xf32>
    "tpu.trace_stop"() : () -> ()
    %cst_26 = arith.constant dense<0xFF800000> : vector<8xf32>
    %73 = vector.multi_reduction <maximumf>, %72, %cst_26 [1] : vector<8x8xf32> to vector<8xf32>
    %74 = vector.shape_cast %73 : vector<8xf32> to vector<8x1xf32>
    %75 = vector.broadcast %74 : vector<8x1xf32> to vector<8x8xf32>
    %76 = arith.subf %72, %75 : vector<8x8xf32>
    %77 = math.exp %76 : vector<8x8xf32>
    %78 = arith.truncf %77 : vector<8x8xf32> to vector<8x8xbf16>
    %cst_27 = arith.constant dense<0.000000e+00> : vector<8x8xf32>
    %79 = tpu.matmul %78, %71, %cst_27 {dimension_numbers = #tpu.dot_dimension_numbers<[1], [0], [0], [1], [0, 0, 1, 1], [], []>} : vector<8x8xbf16>, vector<8x8xbf16>, vector<8x8xf32> -> vector<8x8xf32>
    %cst_28 = arith.constant dense<0.000000e+00> : vector<8xf32>
    %80 = vector.multi_reduction <add>, %77, %cst_28 [1] : vector<8x8xf32> to vector<8xf32>
    %81 = vector.shape_cast %80 : vector<8xf32> to vector<8x1xf32>
    %82 = tpu.reciprocal %81 {approx = true} : vector<8x1xf32> -> vector<8x1xf32>
    %83 = vector.broadcast %82 : vector<8x1xf32> to vector<8x8xf32>
    %84 = arith.mulf %79, %83 : vector<8x8xf32>
    %85 = tpu.concatenate %36, %52, %68, %84 in 1 : vector<8x8xf32>, vector<8x8xf32>, vector<8x8xf32>, vector<8x8xf32> -> vector<8x32xf32>
    %86 = arith.truncf %85 : vector<8x32xf32> to vector<8x32xbf16>
    %c0_29 = arith.constant 0 : index
    %c0_30 = arith.constant 0 : index
    %87 = vector.load %arg7[%c0_29, %c0_30] : memref<32x32xbf16, #tpu.memory_space<vmem>>, vector<32x32xbf16>
    %cst_31 = arith.constant dense<0.000000e+00> : vector<8x32xf32>
    %88 = tpu.matmul %86, %87, %cst_31 {dimension_numbers = #tpu.dot_dimension_numbers<[1], [0], [0], [1], [0, 0, 1, 1], [], []>} : vector<8x32xbf16>, vector<32x32xbf16>, vector<8x32xf32> -> vector<8x32xf32>
    %c0_32 = arith.constant 0 : index
    %c0_33 = arith.constant 0 : index
    %89 = vector.load %arg8[%c0_32, %c0_33] : memref<1x32xf32, #tpu.memory_space<vmem>>, vector<1x32xf32>
    %90 = vector.broadcast %89 : vector<1x32xf32> to vector<8x32xf32>
    %91 = arith.addf %88, %90 : vector<8x32xf32>
    %c0_34 = arith.constant 0 : index
    %c0_35 = arith.constant 0 : index
    %92 = vector.load %arg9[%c0_34, %c0_35] : memref<32x64xbf16, #tpu.memory_space<vmem>>, vector<32x64xbf16>
    %cst_36 = arith.constant dense<0.000000e+00> : vector<8x64xf32>
    %93 = tpu.matmul %7, %92, %cst_36 {dimension_numbers = #tpu.dot_dimension_numbers<[1], [0], [0], [1], [0, 0, 1, 1], [], []>} : vector<8x32xbf16>, vector<32x64xbf16>, vector<8x64xf32> -> vector<8x64xf32>
    %94 = arith.truncf %91 : vector<8x32xf32> to vector<8x32xbf16>
    %c0_37 = arith.constant 0 : index
    %c0_38 = arith.constant 0 : index
    %95 = vector.load %arg10[%c0_37, %c0_38] : memref<32x64xbf16, #tpu.memory_space<vmem>>, vector<32x64xbf16>
    %cst_39 = arith.constant dense<0.000000e+00> : vector<8x64xf32>
    %96 = tpu.matmul %94, %95, %cst_39 {dimension_numbers = #tpu.dot_dimension_numbers<[1], [0], [0], [1], [0, 0, 1, 1], [], []>} : vector<8x32xbf16>, vector<32x64xbf16>, vector<8x64xf32> -> vector<8x64xf32>
    %97 = arith.addf %93, %96 : vector<8x64xf32>
    %c0_40 = arith.constant 0 : index
    %c0_41 = arith.constant 0 : index
    %98 = vector.load %arg11[%c0_40, %c0_41] : memref<1x64xf32, #tpu.memory_space<vmem>>, vector<1x64xf32>
    %99 = vector.broadcast %98 : vector<1x64xf32> to vector<8x64xf32>
    %100 = arith.addf %97, %99 : vector<8x64xf32>
    %cst_42 = arith.constant 0.000000e+00 : f32
    %101 = vector.broadcast %cst_42 : f32 to vector<8x64xf32>
    %102 = arith.maximumf %100, %101 : vector<8x64xf32>
    %103 = arith.truncf %102 : vector<8x64xf32> to vector<8x64xbf16>
    %c0_43 = arith.constant 0 : index
    %c0_44 = arith.constant 0 : index
    %104 = vector.load %arg12[%c0_43, %c0_44] : memref<64x32xbf16, #tpu.memory_space<vmem>>, vector<64x32xbf16>
    %cst_45 = arith.constant dense<0.000000e+00> : vector<8x32xf32>
    %105 = tpu.matmul %103, %104, %cst_45 {dimension_numbers = #tpu.dot_dimension_numbers<[1], [0], [0], [1], [0, 0, 1, 1], [], []>} : vector<8x64xbf16>, vector<64x32xbf16>, vector<8x32xf32> -> vector<8x32xf32>
    %c0_46 = arith.constant 0 : index
    %c0_47 = arith.constant 0 : index
    %106 = vector.load %arg13[%c0_46, %c0_47] : memref<1x32xf32, #tpu.memory_space<vmem>>, vector<1x32xf32>
    %107 = vector.broadcast %106 : vector<1x32xf32> to vector<8x32xf32>
    %108 = arith.addf %105, %107 : vector<8x32xf32>
    %109 = arith.addf %4, %108 : vector<8x32xf32>
    %c0_48 = arith.constant 0 : index
    %c0_49 = arith.constant 0 : index
    %c0_50 = arith.constant 0 : index
    %110 = vector.load %arg14[%c0_48, %c0_49, %c0_50] : memref<1x8x32xf32, #tpu.memory_space<vmem>>, vector<1x8x32xf32>
    %111 = vector.shape_cast %110 : vector<1x8x32xf32> to vector<8x32xf32>
    %112 = vector.shape_cast %109 : vector<8x32xf32> to vector<1x8x32xf32>
    tpu.vector_store %arg14[%c0_48, %c0_49, %c0_50], %112 {strides = array<i32>} : memref<1x8x32xf32, #tpu.memory_space<vmem>>, vector<1x8x32xf32>,
    return
  }
  func.func @transform_0(%arg0: i32, %arg1: i32) -> (i32, i32, i32) {
    %c0_i32 = arith.constant 0 : i32
    %c0_i32_0 = arith.constant 0 : i32
    %c0_i32_1 = arith.constant 0 : i32
    return %arg0, %c0_i32, %c0_i32_0 : i32, i32, i32
  }
  func.func @transform_1(%arg0: i32, %arg1: i32) -> (i32, i32) {
    %c0_i32 = arith.constant 0 : i32
    %c0_i32_0 = arith.constant 0 : i32
    %c0_i32_1 = arith.constant 0 : i32
    return %c0_i32, %c0_i32_0 : i32, i32
  }
  func.func @transform_2(%arg0: i32, %arg1: i32) -> (i32, i32) {
    %c0_i32 = arith.constant 0 : i32
    %c0_i32_0 = arith.constant 0 : i32
    %c0_i32_1 = arith.constant 0 : i32
    return %c0_i32, %c0_i32_0 : i32, i32
  }
  func.func @transform_3(%arg0: i32, %arg1: i32) -> (i32, i32) {
    %c0_i32 = arith.constant 0 : i32
    %c0_i32_0 = arith.constant 0 : i32
    %c0_i32_1 = arith.constant 0 : i32
    return %c0_i32, %c0_i32_0 : i32, i32
  }
  func.func @transform_4(%arg0: i32, %arg1: i32) -> (i32, i32) {
    %c0_i32 = arith.constant 0 : i32
    %c0_i32_0 = arith.constant 0 : i32
    %c0_i32_1 = arith.constant 0 : i32
    return %c0_i32, %c0_i32_0 : i32, i32
  }
  func.func @transform_5(%arg0: i32, %arg1: i32) -> (i32, i32) {
    %c0_i32 = arith.constant 0 : i32
    %c0_i32_0 = arith.constant 0 : i32
    %c0_i32_1 = arith.constant 0 : i32
    return %c0_i32, %c0_i32_0 : i32, i32
  }
  func.func @transform_6(%arg0: i32, %arg1: i32) -> (i32, i32) {
    %c0_i32 = arith.constant 0 : i32
    %c0_i32_0 = arith.constant 0 : i32
    %c0_i32_1 = arith.constant 0 : i32
    return %c0_i32, %c0_i32_0 : i32, i32
  }
  func.func @transform_7(%arg0: i32, %arg1: i32) -> (i32, i32) {
    %c0_i32 = arith.constant 0 : i32
    %c0_i32_0 = arith.constant 0 : i32
    %c0_i32_1 = arith.constant 0 : i32
    return %c0_i32, %c0_i32_0 : i32, i32
  }
  func.func @transform_8(%arg0: i32, %arg1: i32) -> (i32, i32) {
    %c0_i32 = arith.constant 0 : i32
    %c0_i32_0 = arith.constant 0 : i32
    %c0_i32_1 = arith.constant 0 : i32
    return %c0_i32, %c0_i32_0 : i32, i32
  }
  func.func @transform_9(%arg0: i32, %arg1: i32) -> (i32, i32) {
    %c0_i32 = arith.constant 0 : i32
    %c0_i32_0 = arith.constant 0 : i32
    %c0_i32_1 = arith.constant 0 : i32
    return %c0_i32, %c0_i32_0 : i32, i32
  }
  func.func @transform_10(%arg0: i32, %arg1: i32) -> (i32, i32) {
    %c0_i32 = arith.constant 0 : i32
    %c0_i32_0 = arith.constant 0 : i32
    %c0_i32_1 = arith.constant 0 : i32
    return %c0_i32, %c0_i32_0 : i32, i32
  }
  func.func @transform_11(%arg0: i32, %arg1: i32) -> (i32, i32) {
    %c0_i32 = arith.constant 0 : i32
    %c0_i32_0 = arith.constant 0 : i32
    %c0_i32_1 = arith.constant 0 : i32
    return %c0_i32, %c0_i32_0 : i32, i32
  }
  func.func @transform_12(%arg0: i32, %arg1: i32) -> (i32, i32, i32) {
    %c0_i32 = arith.constant 0 : i32
    %c0_i32_0 = arith.constant 0 : i32
    return %arg0, %arg1, %c0_i32 : i32, i32, i32
  }
}

module attributes {stable_mosaic.version = 11 : i64} {
  func.func @kernel(%arg0: i32, %arg1: i32, %arg2: memref<1x8x32xf32, #tpu.memory_space<vmem>>, %arg3: memref<1x8x32xf32, #tpu.memory_space<vmem>>, %arg4: memref<32x32xbf16, #tpu.memory_space<vmem>>, %arg5: memref<1x32xf32, #tpu.memory_space<vmem>>, %arg6: memref<32x64xbf16, #tpu.memory_space<vmem>>, %arg7: memref<1x64xf32, #tpu.memory_space<vmem>>, %arg8: memref<32x32xbf16, #tpu.memory_space<vmem>>, %arg9: memref<1x32xf32, #tpu.memory_space<vmem>>, %arg10: memref<32x64xbf16, #tpu.memory_space<vmem>>, %arg11: memref<32x64xbf16, #tpu.memory_space<vmem>>, %arg12: memref<1x64xf32, #tpu.memory_space<vmem>>, %arg13: memref<64x32xbf16, #tpu.memory_space<vmem>>, %arg14: memref<1x32xf32, #tpu.memory_space<vmem>>, %arg15: memref<1x8x32xf32, #tpu.memory_space<vmem>>) attributes {dimension_semantics = [#tpu.dimension_semantics<parallel>, #tpu.dimension_semantics<parallel>], iteration_bounds = array<i64: 4, 1>, scalar_prefetch = 0 : i64, scratch_operands = 0 : i64, tpu.core_type = #tpu.core_type<tc>, window_params = [{transform_indices = @transform_0, window_bounds = array<i64: 1, 8, 32>}, {transform_indices = @transform_1, window_bounds = array<i64: 1, 8, 32>}, {pipeline_mode = #tpu.pipeline_mode<synchronous>, transform_indices = @transform_2, window_bounds = array<i64: 32, 32>}, {pipeline_mode = #tpu.pipeline_mode<synchronous>, transform_indices = @transform_3, window_bounds = array<i64: 1, 32>}, {pipeline_mode = #tpu.pipeline_mode<synchronous>, transform_indices = @transform_4, window_bounds = array<i64: 32, 64>}, {pipeline_mode = #tpu.pipeline_mode<synchronous>, transform_indices = @transform_5, window_bounds = array<i64: 1, 64>}, {pipeline_mode = #tpu.pipeline_mode<synchronous>, transform_indices = @transform_6, window_bounds = array<i64: 32, 32>}, {pipeline_mode = #tpu.pipeline_mode<synchronous>, transform_indices = @transform_7, window_bounds = array<i64: 1, 32>}, {pipeline_mode = #tpu.pipeline_mode<synchronous>, transform_indices = @transform_8, window_bounds = array<i64: 32, 64>}, {pipeline_mode = #tpu.pipeline_mode<synchronous>, transform_indices = @transform_9, window_bounds = array<i64: 32, 64>}, {pipeline_mode = #tpu.pipeline_mode<synchronous>, transform_indices = @transform_10, window_bounds = array<i64: 1, 64>}, {pipeline_mode = #tpu.pipeline_mode<synchronous>, transform_indices = @transform_11, window_bounds = array<i64: 64, 32>}, {pipeline_mode = #tpu.pipeline_mode<synchronous>, transform_indices = @transform_12, window_bounds = array<i64: 1, 32>}, {transform_indices = @transform_13, window_bounds = array<i64: 1, 8, 32>}]} {
    %c0 = arith.constant 0 : index
    %c0_0 = arith.constant 0 : index
    %c0_1 = arith.constant 0 : index
    %0 = vector.load %arg2[%c0, %c0_0, %c0_1] : memref<1x8x32xf32, #tpu.memory_space<vmem>>, vector<1x8x32xf32>
    %1 = vector.shape_cast %0 : vector<1x8x32xf32> to vector<8x32xf32>
    %c0_2 = arith.constant 0 : index
    %c0_3 = arith.constant 0 : index
    %c0_4 = arith.constant 0 : index
    %2 = vector.load %arg3[%c0_2, %c0_3, %c0_4] : memref<1x8x32xf32, #tpu.memory_space<vmem>>, vector<1x8x32xf32>
    %3 = vector.shape_cast %2 : vector<1x8x32xf32> to vector<8x32xf32>
    %4 = arith.truncf %1 : vector<8x32xf32> to vector<8x32xbf16>
    %5 = arith.truncf %3 : vector<8x32xf32> to vector<8x32xbf16>
    %c0_5 = arith.constant 0 : index
    %c0_6 = arith.constant 0 : index
    %6 = vector.load %arg4[%c0_5, %c0_6] : memref<32x32xbf16, #tpu.memory_space<vmem>>, vector<32x32xbf16>
    %cst = arith.constant dense<0.000000e+00> : vector<8x32xf32>
    %7 = tpu.matmul %4, %6, %cst {dimension_numbers = #tpu.dot_dimension_numbers<[1], [0], [0], [1], [0, 0, 1, 1], [], []>} : vector<8x32xbf16>, vector<32x32xbf16>, vector<8x32xf32> -> vector<8x32xf32>
    %c0_7 = arith.constant 0 : index
    %c0_8 = arith.constant 0 : index
    %8 = vector.load %arg5[%c0_7, %c0_8] : memref<1x32xf32, #tpu.memory_space<vmem>>, vector<1x32xf32>
    %9 = vector.broadcast %8 : vector<1x32xf32> to vector<8x32xf32>
    %10 = arith.addf %7, %9 : vector<8x32xf32>
    %c0_9 = arith.constant 0 : index
    %c0_10 = arith.constant 0 : index
    %11 = vector.load %arg6[%c0_9, %c0_10] : memref<32x64xbf16, #tpu.memory_space<vmem>>, vector<32x64xbf16>
    %cst_11 = arith.constant dense<0.000000e+00> : vector<8x64xf32>
    %12 = tpu.matmul %5, %11, %cst_11 {dimension_numbers = #tpu.dot_dimension_numbers<[1], [0], [0], [1], [0, 0, 1, 1], [], []>} : vector<8x32xbf16>, vector<32x64xbf16>, vector<8x64xf32> -> vector<8x64xf32>
    %c0_12 = arith.constant 0 : index
    %c0_13 = arith.constant 0 : index
    %13 = vector.load %arg7[%c0_12, %c0_13] : memref<1x64xf32, #tpu.memory_space<vmem>>, vector<1x64xf32>
    %14 = vector.broadcast %13 : vector<1x64xf32> to vector<8x64xf32>
    %15 = arith.addf %12, %14 : vector<8x64xf32>
    %16 = arith.truncf %10 : vector<8x32xf32> to vector<8x32xbf16>
    %17 = arith.truncf %15 : vector<8x64xf32> to vector<8x64xbf16>
    %18 = vector.extract_strided_slice %16 {offsets = [0, 0], sizes = [8, 8], strides = [1, 1]} : vector<8x32xbf16> to vector<8x8xbf16>
    %19 = vector.extract_strided_slice %17 {offsets = [0, 0], sizes = [8, 8], strides = [1, 1]} : vector<8x64xbf16> to vector<8x8xbf16>
    %20 = vector.extract_strided_slice %17 {offsets = [0, 32], sizes = [8, 8], strides = [1, 1]} : vector<8x64xbf16> to vector<8x8xbf16>
    "tpu.trace_start"() <{level = 10 : i32, message = "nd,md->nm"}> : () -> ()
    %cst_14 = arith.constant dense<0.000000e+00> : vector<8x8xf32>
    %21 = tpu.matmul %18, %19, %cst_14 {dimension_numbers = #tpu.dot_dimension_numbers<[1], [1], [0], [0], [0, 0, 1, 0], [], []>} : vector<8x8xbf16>, vector<8x8xbf16>, vector<8x8xf32> -> vector<8x8xf32>
    "tpu.trace_stop"() : () -> ()
    %cst_15 = arith.constant dense<0xFF800000> : vector<8xf32>
    %22 = vector.multi_reduction <maximumf>, %21, %cst_15 [1] : vector<8x8xf32> to vector<8xf32>
    %23 = vector.shape_cast %22 : vector<8xf32> to vector<8x1xf32>
    %24 = vector.broadcast %23 : vector<8x1xf32> to vector<8x8xf32>
    %25 = arith.subf %21, %24 : vector<8x8xf32>
    %26 = math.exp %25 : vector<8x8xf32>
    %27 = arith.truncf %26 : vector<8x8xf32> to vector<8x8xbf16>
    %cst_16 = arith.constant dense<0.000000e+00> : vector<8x8xf32>
    %28 = tpu.matmul %27, %20, %cst_16 {dimension_numbers = #tpu.dot_dimension_numbers<[1], [0], [0], [1], [0, 0, 1, 1], [], []>} : vector<8x8xbf16>, vector<8x8xbf16>, vector<8x8xf32> -> vector<8x8xf32>
    %cst_17 = arith.constant dense<0.000000e+00> : vector<8xf32>
    %29 = vector.multi_reduction <add>, %26, %cst_17 [1] : vector<8x8xf32> to vector<8xf32>
    %30 = vector.shape_cast %29 : vector<8xf32> to vector<8x1xf32>
    %31 = tpu.reciprocal %30 {approx = true} : vector<8x1xf32> -> vector<8x1xf32>
    %32 = vector.broadcast %31 : vector<8x1xf32> to vector<8x8xf32>
    %33 = arith.mulf %28, %32 : vector<8x8xf32>
    %34 = vector.extract_strided_slice %16 {offsets = [0, 8], sizes = [8, 8], strides = [1, 1]} : vector<8x32xbf16> to vector<8x8xbf16>
    %35 = vector.extract_strided_slice %17 {offsets = [0, 8], sizes = [8, 8], strides = [1, 1]} : vector<8x64xbf16> to vector<8x8xbf16>
    %36 = vector.extract_strided_slice %17 {offsets = [0, 40], sizes = [8, 8], strides = [1, 1]} : vector<8x64xbf16> to vector<8x8xbf16>
    "tpu.trace_start"() <{level = 10 : i32, message = "nd,md->nm"}> : () -> ()
    %cst_18 = arith.constant dense<0.000000e+00> : vector<8x8xf32>
    %37 = tpu.matmul %34, %35, %cst_18 {dimension_numbers = #tpu.dot_dimension_numbers<[1], [1], [0], [0], [0, 0, 1, 0], [], []>} : vector<8x8xbf16>, vector<8x8xbf16>, vector<8x8xf32> -> vector<8x8xf32>
    "tpu.trace_stop"() : () -> ()
    %cst_19 = arith.constant dense<0xFF800000> : vector<8xf32>
    %38 = vector.multi_reduction <maximumf>, %37, %cst_19 [1] : vector<8x8xf32> to vector<8xf32>
    %39 = vector.shape_cast %38 : vector<8xf32> to vector<8x1xf32>
    %40 = vector.broadcast %39 : vector<8x1xf32> to vector<8x8xf32>
    %41 = arith.subf %37, %40 : vector<8x8xf32>
    %42 = math.exp %41 : vector<8x8xf32>
    %43 = arith.truncf %42 : vector<8x8xf32> to vector<8x8xbf16>
    %cst_20 = arith.constant dense<0.000000e+00> : vector<8x8xf32>
    %44 = tpu.matmul %43, %36, %cst_20 {dimension_numbers = #tpu.dot_dimension_numbers<[1], [0], [0], [1], [0, 0, 1, 1], [], []>} : vector<8x8xbf16>, vector<8x8xbf16>, vector<8x8xf32> -> vector<8x8xf32>
    %cst_21 = arith.constant dense<0.000000e+00> : vector<8xf32>
    %45 = vector.multi_reduction <add>, %42, %cst_21 [1] : vector<8x8xf32> to vector<8xf32>
    %46 = vector.shape_cast %45 : vector<8xf32> to vector<8x1xf32>
    %47 = tpu.reciprocal %46 {approx = true} : vector<8x1xf32> -> vector<8x1xf32>
    %48 = vector.broadcast %47 : vector<8x1xf32> to vector<8x8xf32>
    %49 = arith.mulf %44, %48 : vector<8x8xf32>
    %50 = vector.extract_strided_slice %16 {offsets = [0, 16], sizes = [8, 8], strides = [1, 1]} : vector<8x32xbf16> to vector<8x8xbf16>
    %51 = vector.extract_strided_slice %17 {offsets = [0, 16], sizes = [8, 8], strides = [1, 1]} : vector<8x64xbf16> to vector<8x8xbf16>
    %52 = vector.extract_strided_slice %17 {offsets = [0, 48], sizes = [8, 8], strides = [1, 1]} : vector<8x64xbf16> to vector<8x8xbf16>
    "tpu.trace_start"() <{level = 10 : i32, message = "nd,md->nm"}> : () -> ()
    %cst_22 = arith.constant dense<0.000000e+00> : vector<8x8xf32>
    %53 = tpu.matmul %50, %51, %cst_22 {dimension_numbers = #tpu.dot_dimension_numbers<[1], [1], [0], [0], [0, 0, 1, 0], [], []>} : vector<8x8xbf16>, vector<8x8xbf16>, vector<8x8xf32> -> vector<8x8xf32>
    "tpu.trace_stop"() : () -> ()
    %cst_23 = arith.constant dense<0xFF800000> : vector<8xf32>
    %54 = vector.multi_reduction <maximumf>, %53, %cst_23 [1] : vector<8x8xf32> to vector<8xf32>
    %55 = vector.shape_cast %54 : vector<8xf32> to vector<8x1xf32>
    %56 = vector.broadcast %55 : vector<8x1xf32> to vector<8x8xf32>
    %57 = arith.subf %53, %56 : vector<8x8xf32>
    %58 = math.exp %57 : vector<8x8xf32>
    %59 = arith.truncf %58 : vector<8x8xf32> to vector<8x8xbf16>
    %cst_24 = arith.constant dense<0.000000e+00> : vector<8x8xf32>
    %60 = tpu.matmul %59, %52, %cst_24 {dimension_numbers = #tpu.dot_dimension_numbers<[1], [0], [0], [1], [0, 0, 1, 1], [], []>} : vector<8x8xbf16>, vector<8x8xbf16>, vector<8x8xf32> -> vector<8x8xf32>
    %cst_25 = arith.constant dense<0.000000e+00> : vector<8xf32>
    %61 = vector.multi_reduction <add>, %58, %cst_25 [1] : vector<8x8xf32> to vector<8xf32>
    %62 = vector.shape_cast %61 : vector<8xf32> to vector<8x1xf32>
    %63 = tpu.reciprocal %62 {approx = true} : vector<8x1xf32> -> vector<8x1xf32>
    %64 = vector.broadcast %63 : vector<8x1xf32> to vector<8x8xf32>
    %65 = arith.mulf %60, %64 : vector<8x8xf32>
    %66 = vector.extract_strided_slice %16 {offsets = [0, 24], sizes = [8, 8], strides = [1, 1]} : vector<8x32xbf16> to vector<8x8xbf16>
    %67 = vector.extract_strided_slice %17 {offsets = [0, 24], sizes = [8, 8], strides = [1, 1]} : vector<8x64xbf16> to vector<8x8xbf16>
    %68 = vector.extract_strided_slice %17 {offsets = [0, 56], sizes = [8, 8], strides = [1, 1]} : vector<8x64xbf16> to vector<8x8xbf16>
    "tpu.trace_start"() <{level = 10 : i32, message = "nd,md->nm"}> : () -> ()
    %cst_26 = arith.constant dense<0.000000e+00> : vector<8x8xf32>
    %69 = tpu.matmul %66, %67, %cst_26 {dimension_numbers = #tpu.dot_dimension_numbers<[1], [1], [0], [0], [0, 0, 1, 0], [], []>} : vector<8x8xbf16>, vector<8x8xbf16>, vector<8x8xf32> -> vector<8x8xf32>
    "tpu.trace_stop"() : () -> ()
    %cst_27 = arith.constant dense<0xFF800000> : vector<8xf32>
    %70 = vector.multi_reduction <maximumf>, %69, %cst_27 [1] : vector<8x8xf32> to vector<8xf32>
    %71 = vector.shape_cast %70 : vector<8xf32> to vector<8x1xf32>
    %72 = vector.broadcast %71 : vector<8x1xf32> to vector<8x8xf32>
    %73 = arith.subf %69, %72 : vector<8x8xf32>
    %74 = math.exp %73 : vector<8x8xf32>
    %75 = arith.truncf %74 : vector<8x8xf32> to vector<8x8xbf16>
    %cst_28 = arith.constant dense<0.000000e+00> : vector<8x8xf32>
    %76 = tpu.matmul %75, %68, %cst_28 {dimension_numbers = #tpu.dot_dimension_numbers<[1], [0], [0], [1], [0, 0, 1, 1], [], []>} : vector<8x8xbf16>, vector<8x8xbf16>, vector<8x8xf32> -> vector<8x8xf32>
    %cst_29 = arith.constant dense<0.000000e+00> : vector<8xf32>
    %77 = vector.multi_reduction <add>, %74, %cst_29 [1] : vector<8x8xf32> to vector<8xf32>
    %78 = vector.shape_cast %77 : vector<8xf32> to vector<8x1xf32>
    %79 = tpu.reciprocal %78 {approx = true} : vector<8x1xf32> -> vector<8x1xf32>
    %80 = vector.broadcast %79 : vector<8x1xf32> to vector<8x8xf32>
    %81 = arith.mulf %76, %80 : vector<8x8xf32>
    %82 = tpu.concatenate %33, %49, %65, %81 in 1 : vector<8x8xf32>, vector<8x8xf32>, vector<8x8xf32>, vector<8x8xf32> -> vector<8x32xf32>
    %83 = arith.truncf %82 : vector<8x32xf32> to vector<8x32xbf16>
    %c0_30 = arith.constant 0 : index
    %c0_31 = arith.constant 0 : index
    %84 = vector.load %arg8[%c0_30, %c0_31] : memref<32x32xbf16, #tpu.memory_space<vmem>>, vector<32x32xbf16>
    %cst_32 = arith.constant dense<0.000000e+00> : vector<8x32xf32>
    %85 = tpu.matmul %83, %84, %cst_32 {dimension_numbers = #tpu.dot_dimension_numbers<[1], [0], [0], [1], [0, 0, 1, 1], [], []>} : vector<8x32xbf16>, vector<32x32xbf16>, vector<8x32xf32> -> vector<8x32xf32>
    %c0_33 = arith.constant 0 : index
    %c0_34 = arith.constant 0 : index
    %86 = vector.load %arg9[%c0_33, %c0_34] : memref<1x32xf32, #tpu.memory_space<vmem>>, vector<1x32xf32>
    %87 = vector.broadcast %86 : vector<1x32xf32> to vector<8x32xf32>
    %88 = arith.addf %85, %87 : vector<8x32xf32>
    %c0_35 = arith.constant 0 : index
    %c0_36 = arith.constant 0 : index
    %89 = vector.load %arg10[%c0_35, %c0_36] : memref<32x64xbf16, #tpu.memory_space<vmem>>, vector<32x64xbf16>
    %cst_37 = arith.constant dense<0.000000e+00> : vector<8x64xf32>
    %90 = tpu.matmul %4, %89, %cst_37 {dimension_numbers = #tpu.dot_dimension_numbers<[1], [0], [0], [1], [0, 0, 1, 1], [], []>} : vector<8x32xbf16>, vector<32x64xbf16>, vector<8x64xf32> -> vector<8x64xf32>
    %91 = arith.truncf %88 : vector<8x32xf32> to vector<8x32xbf16>
    %c0_38 = arith.constant 0 : index
    %c0_39 = arith.constant 0 : index
    %92 = vector.load %arg11[%c0_38, %c0_39] : memref<32x64xbf16, #tpu.memory_space<vmem>>, vector<32x64xbf16>
    %cst_40 = arith.constant dense<0.000000e+00> : vector<8x64xf32>
    %93 = tpu.matmul %91, %92, %cst_40 {dimension_numbers = #tpu.dot_dimension_numbers<[1], [0], [0], [1], [0, 0, 1, 1], [], []>} : vector<8x32xbf16>, vector<32x64xbf16>, vector<8x64xf32> -> vector<8x64xf32>
    %94 = arith.addf %90, %93 : vector<8x64xf32>
    %c0_41 = arith.constant 0 : index
    %c0_42 = arith.constant 0 : index
    %95 = vector.load %arg12[%c0_41, %c0_42] : memref<1x64xf32, #tpu.memory_space<vmem>>, vector<1x64xf32>
    %96 = vector.broadcast %95 : vector<1x64xf32> to vector<8x64xf32>
    %97 = arith.addf %94, %96 : vector<8x64xf32>
    %cst_43 = arith.constant 0.000000e+00 : f32
    %98 = vector.broadcast %cst_43 : f32 to vector<8x64xf32>
    %99 = arith.maximumf %97, %98 : vector<8x64xf32>
    %100 = arith.truncf %99 : vector<8x64xf32> to vector<8x64xbf16>
    %c0_44 = arith.constant 0 : index
    %c0_45 = arith.constant 0 : index
    %101 = vector.load %arg13[%c0_44, %c0_45] : memref<64x32xbf16, #tpu.memory_space<vmem>>, vector<64x32xbf16>
    %cst_46 = arith.constant dense<0.000000e+00> : vector<8x32xf32>
    %102 = tpu.matmul %100, %101, %cst_46 {dimension_numbers = #tpu.dot_dimension_numbers<[1], [0], [0], [1], [0, 0, 1, 1], [], []>} : vector<8x64xbf16>, vector<64x32xbf16>, vector<8x32xf32> -> vector<8x32xf32>
    %c0_47 = arith.constant 0 : index
    %c0_48 = arith.constant 0 : index
    %103 = vector.load %arg14[%c0_47, %c0_48] : memref<1x32xf32, #tpu.memory_space<vmem>>, vector<1x32xf32>
    %104 = vector.broadcast %103 : vector<1x32xf32> to vector<8x32xf32>
    %105 = arith.addf %102, %104 : vector<8x32xf32>
    %106 = arith.addf %1, %105 : vector<8x32xf32>
    %c0_49 = arith.constant 0 : index
    %c0_50 = arith.constant 0 : index
    %c0_51 = arith.constant 0 : index
    %107 = vector.load %arg15[%c0_49, %c0_50, %c0_51] : memref<1x8x32xf32, #tpu.memory_space<vmem>>, vector<1x8x32xf32>
    %108 = vector.shape_cast %107 : vector<1x8x32xf32> to vector<8x32xf32>
    %109 = vector.shape_cast %106 : vector<8x32xf32> to vector<1x8x32xf32>
    tpu.vector_store %arg15[%c0_49, %c0_50, %c0_51], %109 {strides = array<i32>} : memref<1x8x32xf32, #tpu.memory_space<vmem>>, vector<1x8x32xf32>,
    return
  }
  func.func @transform_0(%arg0: i32, %arg1: i32) -> (i32, i32, i32) {
    %c0_i32 = arith.constant 0 : i32
    %c0_i32_0 = arith.constant 0 : i32
    return %arg0, %arg1, %c0_i32 : i32, i32, i32
  }
  func.func @transform_1(%arg0: i32, %arg1: i32) -> (i32, i32, i32) {
    %c2_i32 = arith.constant 2 : i32
    %0 = arith.addi %arg0, %c2_i32 : i32
    %c4_i32 = arith.constant 4 : i32
    %c0_i32 = arith.constant 0 : i32
    %1 = arith.cmpi eq, %c4_i32, %c0_i32 : i32
    %c1_i32 = arith.constant 1 : i32
    %2 = arith.select %1, %c1_i32, %c4_i32 : i32
    %3 = arith.remsi %0, %2 : i32
    %c0_i32_0 = arith.constant 0 : i32
    %4 = arith.cmpi ne, %3, %c0_i32_0 : i32
    %c0_i32_1 = arith.constant 0 : i32
    %5 = arith.cmpi slt, %3, %c0_i32_1 : i32
    %c0_i32_2 = arith.constant 0 : i32
    %6 = arith.cmpi slt, %2, %c0_i32_2 : i32
    %7 = arith.xori %5, %6 : i1
    %8 = arith.andi %7, %4 : i1
    %9 = arith.addi %3, %2 : i32
    %10 = arith.select %8, %9, %3 : i32
    %c0_i32_3 = arith.constant 0 : i32
    %c0_i32_4 = arith.constant 0 : i32
    %c0_i32_5 = arith.constant 0 : i32
    return %10, %c0_i32_3, %c0_i32_4 : i32, i32, i32
  }
  func.func @transform_2(%arg0: i32, %arg1: i32) -> (i32, i32) {
    %c0_i32 = arith.constant 0 : i32
    %c0_i32_0 = arith.constant 0 : i32
    %c0_i32_1 = arith.constant 0 : i32
    return %c0_i32, %c0_i32_0 : i32, i32
  }
  func.func @transform_3(%arg0: i32, %arg1: i32) -> (i32, i32) {
    %c0_i32 = arith.constant 0 : i32
    %c0_i32_0 = arith.constant 0 : i32
    %c0_i32_1 = arith.constant 0 : i32
    return %c0_i32, %c0_i32_0 : i32, i32
  }
  func.func @transform_4(%arg0: i32, %arg1: i32) -> (i32, i32) {
    %c0_i32 = arith.constant 0 : i32
    %c0_i32_0 = arith.constant 0 : i32
    %c0_i32_1 = arith.constant 0 : i32
    return %c0_i32, %c0_i32_0 : i32, i32
  }
  func.func @transform_5(%arg0: i32, %arg1: i32) -> (i32, i32) {
    %c0_i32 = arith.constant 0 : i32
    %c0_i32_0 = arith.constant 0 : i32
    %c0_i32_1 = arith.constant 0 : i32
    return %c0_i32, %c0_i32_0 : i32, i32
  }
  func.func @transform_6(%arg0: i32, %arg1: i32) -> (i32, i32) {
    %c0_i32 = arith.constant 0 : i32
    %c0_i32_0 = arith.constant 0 : i32
    %c0_i32_1 = arith.constant 0 : i32
    return %c0_i32, %c0_i32_0 : i32, i32
  }
  func.func @transform_7(%arg0: i32, %arg1: i32) -> (i32, i32) {
    %c0_i32 = arith.constant 0 : i32
    %c0_i32_0 = arith.constant 0 : i32
    %c0_i32_1 = arith.constant 0 : i32
    return %c0_i32, %c0_i32_0 : i32, i32
  }
  func.func @transform_8(%arg0: i32, %arg1: i32) -> (i32, i32) {
    %c0_i32 = arith.constant 0 : i32
    %c0_i32_0 = arith.constant 0 : i32
    %c0_i32_1 = arith.constant 0 : i32
    return %c0_i32, %c0_i32_0 : i32, i32
  }
  func.func @transform_9(%arg0: i32, %arg1: i32) -> (i32, i32) {
    %c0_i32 = arith.constant 0 : i32
    %c0_i32_0 = arith.constant 0 : i32
    %c0_i32_1 = arith.constant 0 : i32
    return %c0_i32, %c0_i32_0 : i32, i32
  }
  func.func @transform_10(%arg0: i32, %arg1: i32) -> (i32, i32) {
    %c0_i32 = arith.constant 0 : i32
    %c0_i32_0 = arith.constant 0 : i32
    %c0_i32_1 = arith.constant 0 : i32
    return %c0_i32, %c0_i32_0 : i32, i32
  }
  func.func @transform_11(%arg0: i32, %arg1: i32) -> (i32, i32) {
    %c0_i32 = arith.constant 0 : i32
    %c0_i32_0 = arith.constant 0 : i32
    %c0_i32_1 = arith.constant 0 : i32
    return %c0_i32, %c0_i32_0 : i32, i32
  }
  func.func @transform_12(%arg0: i32, %arg1: i32) -> (i32, i32) {
    %c0_i32 = arith.constant 0 : i32
    %c0_i32_0 = arith.constant 0 : i32
    %c0_i32_1 = arith.constant 0 : i32
    return %c0_i32, %c0_i32_0 : i32, i32
  }
  func.func @transform_13(%arg0: i32, %arg1: i32) -> (i32, i32, i32) {
    %c0_i32 = arith.constant 0 : i32
    %c0_i32_0 = arith.constant 0 : i32
    return %arg0, %arg1, %c0_i32 : i32, i32, i32
  }
}

module attributes {stable_mosaic.version = 11 : i64} {
  func.func @kernel(%arg0: i32, %arg1: i32, %arg2: memref<1x8x32xf32, #tpu.memory_space<vmem>>, %arg3: memref<32x32xbf16, #tpu.memory_space<vmem>>, %arg4: memref<1x32xf32, #tpu.memory_space<vmem>>, %arg5: memref<32x64xbf16, #tpu.memory_space<vmem>>, %arg6: memref<1x64xf32, #tpu.memory_space<vmem>>, %arg7: memref<32x32xbf16, #tpu.memory_space<vmem>>, %arg8: memref<1x32xf32, #tpu.memory_space<vmem>>, %arg9: memref<32x64xbf16, #tpu.memory_space<vmem>>, %arg10: memref<32x64xbf16, #tpu.memory_space<vmem>>, %arg11: memref<1x64xf32, #tpu.memory_space<vmem>>, %arg12: memref<64x32xbf16, #tpu.memory_space<vmem>>, %arg13: memref<1x32xf32, #tpu.memory_space<vmem>>, %arg14: memref<1x8x32xf32, #tpu.memory_space<vmem>>) attributes {dimension_semantics = [#tpu.dimension_semantics<parallel>, #tpu.dimension_semantics<parallel>], iteration_bounds = array<i64: 4, 1>, scalar_prefetch = 0 : i64, scratch_operands = 0 : i64, tpu.core_type = #tpu.core_type<tc>, window_params = [{transform_indices = @transform_0, window_bounds = array<i64: 1, 8, 32>}, {pipeline_mode = #tpu.pipeline_mode<synchronous>, transform_indices = @transform_1, window_bounds = array<i64: 32, 32>}, {pipeline_mode = #tpu.pipeline_mode<synchronous>, transform_indices = @transform_2, window_bounds = array<i64: 1, 32>}, {pipeline_mode = #tpu.pipeline_mode<synchronous>, transform_indices = @transform_3, window_bounds = array<i64: 32, 64>}, {pipeline_mode = #tpu.pipeline_mode<synchronous>, transform_indices = @transform_4, window_bounds = array<i64: 1, 64>}, {pipeline_mode = #tpu.pipeline_mode<synchronous>, transform_indices = @transform_5, window_bounds = array<i64: 32, 32>}, {pipeline_mode = #tpu.pipeline_mode<synchronous>, transform_indices = @transform_6, window_bounds = array<i64: 1, 32>}, {pipeline_mode = #tpu.pipeline_mode<synchronous>, transform_indices = @transform_7, window_bounds = array<i64: 32, 64>}, {pipeline_mode = #tpu.pipeline_mode<synchronous>, transform_indices = @transform_8, window_bounds = array<i64: 32, 64>}, {pipeline_mode = #tpu.pipeline_mode<synchronous>, transform_indices = @transform_9, window_bounds = array<i64: 1, 64>}, {pipeline_mode = #tpu.pipeline_mode<synchronous>, transform_indices = @transform_10, window_bounds = array<i64: 64, 32>}, {pipeline_mode = #tpu.pipeline_mode<synchronous>, transform_indices = @transform_11, window_bounds = array<i64: 1, 32>}, {transform_indices = @transform_12, window_bounds = array<i64: 1, 8, 32>}]} {
    %c8_i32 = arith.constant 8 : i32
    %0 = arith.muli %arg1, %c8_i32 : i32
    %1 = tpu.assume_multiple %0, 8 : i32
    %c0 = arith.constant 0 : index
    %2 = arith.index_cast %1 : i32 to index
    %c0_0 = arith.constant 0 : index
    %3 = vector.load %arg2[%c0, %2, %c0_0] : memref<1x8x32xf32, #tpu.memory_space<vmem>>, vector<1x8x32xf32>
    %4 = vector.shape_cast %3 : vector<1x8x32xf32> to vector<8x32xf32>
    %c0_1 = arith.constant 0 : index
    %c0_2 = arith.constant 0 : index
    %c0_3 = arith.constant 0 : index
    %5 = vector.load %arg2[%c0_1, %c0_2, %c0_3] : memref<1x8x32xf32, #tpu.memory_space<vmem>>, vector<1x8x32xf32>
    %6 = vector.shape_cast %5 : vector<1x8x32xf32> to vector<8x32xf32>
    %7 = arith.truncf %4 : vector<8x32xf32> to vector<8x32xbf16>
    %8 = arith.truncf %6 : vector<8x32xf32> to vector<8x32xbf16>
    %c0_4 = arith.constant 0 : index
    %c0_5 = arith.constant 0 : index
    %9 = vector.load %arg3[%c0_4, %c0_5] : memref<32x32xbf16, #tpu.memory_space<vmem>>, vector<32x32xbf16>
    %cst = arith.constant dense<0.000000e+00> : vector<8x32xf32>
    %10 = tpu.matmul %7, %9, %cst {dimension_numbers = #tpu.dot_dimension_numbers<[1], [0], [0], [1], [0, 0, 1, 1], [], []>} : vector<8x32xbf16>, vector<32x32xbf16>, vector<8x32xf32> -> vector<8x32xf32>
    %c0_6 = arith.constant 0 : index
    %c0_7 = arith.constant 0 : index
    %11 = vector.load %arg4[%c0_6, %c0_7] : memref<1x32xf32, #tpu.memory_space<vmem>>, vector<1x32xf32>
    %12 = vector.broadcast %11 : vector<1x32xf32> to vector<8x32xf32>
    %13 = arith.addf %10, %12 : vector<8x32xf32>
    %c0_8 = arith.constant 0 : index
    %c0_9 = arith.constant 0 : index
    %14 = vector.load %arg5[%c0_8, %c0_9] : memref<32x64xbf16, #tpu.memory_space<vmem>>, vector<32x64xbf16>
    %cst_10 = arith.constant dense<0.000000e+00> : vector<8x64xf32>
    %15 = tpu.matmul %8, %14, %cst_10 {dimension_numbers = #tpu.dot_dimension_numbers<[1], [0], [0], [1], [0, 0, 1, 1], [], []>} : vector<8x32xbf16>, vector<32x64xbf16>, vector<8x64xf32> -> vector<8x64xf32>
    %c0_11 = arith.constant 0 : index
    %c0_12 = arith.constant 0 : index
    %16 = vector.load %arg6[%c0_11, %c0_12] : memref<1x64xf32, #tpu.memory_space<vmem>>, vector<1x64xf32>
    %17 = vector.broadcast %16 : vector<1x64xf32> to vector<8x64xf32>
    %18 = arith.addf %15, %17 : vector<8x64xf32>
    %19 = arith.truncf %13 : vector<8x32xf32> to vector<8x32xbf16>
    %20 = arith.truncf %18 : vector<8x64xf32> to vector<8x64xbf16>
    %21 = vector.extract_strided_slice %19 {offsets = [0, 0], sizes = [8, 8], strides = [1, 1]} : vector<8x32xbf16> to vector<8x8xbf16>
    %22 = vector.extract_strided_slice %20 {offsets = [0, 0], sizes = [8, 8], strides = [1, 1]} : vector<8x64xbf16> to vector<8x8xbf16>
    %23 = vector.extract_strided_slice %20 {offsets = [0, 32], sizes = [8, 8], strides = [1, 1]} : vector<8x64xbf16> to vector<8x8xbf16>
    "tpu.trace_start"() <{level = 10 : i32, message = "nd,md->nm"}> : () -> ()
    %cst_13 = arith.constant dense<0.000000e+00> : vector<8x8xf32>
    %24 = tpu.matmul %21, %22, %cst_13 {dimension_numbers = #tpu.dot_dimension_numbers<[1], [1], [0], [0], [0, 0, 1, 0], [], []>} : vector<8x8xbf16>, vector<8x8xbf16>, vector<8x8xf32> -> vector<8x8xf32>
    "tpu.trace_stop"() : () -> ()
    %cst_14 = arith.constant dense<0xFF800000> : vector<8xf32>
    %25 = vector.multi_reduction <maximumf>, %24, %cst_14 [1] : vector<8x8xf32> to vector<8xf32>
    %26 = vector.shape_cast %25 : vector<8xf32> to vector<8x1xf32>
    %27 = vector.broadcast %26 : vector<8x1xf32> to vector<8x8xf32>
    %28 = arith.subf %24, %27 : vector<8x8xf32>
    %29 = math.exp %28 : vector<8x8xf32>
    %30 = arith.truncf %29 : vector<8x8xf32> to vector<8x8xbf16>
    %cst_15 = arith.constant dense<0.000000e+00> : vector<8x8xf32>
    %31 = tpu.matmul %30, %23, %cst_15 {dimension_numbers = #tpu.dot_dimension_numbers<[1], [0], [0], [1], [0, 0, 1, 1], [], []>} : vector<8x8xbf16>, vector<8x8xbf16>, vector<8x8xf32> -> vector<8x8xf32>
    %cst_16 = arith.constant dense<0.000000e+00> : vector<8xf32>
    %32 = vector.multi_reduction <add>, %29, %cst_16 [1] : vector<8x8xf32> to vector<8xf32>
    %33 = vector.shape_cast %32 : vector<8xf32> to vector<8x1xf32>
    %34 = tpu.reciprocal %33 {approx = true} : vector<8x1xf32> -> vector<8x1xf32>
    %35 = vector.broadcast %34 : vector<8x1xf32> to vector<8x8xf32>
    %36 = arith.mulf %31, %35 : vector<8x8xf32>
    %37 = vector.extract_strided_slice %19 {offsets = [0, 8], sizes = [8, 8], strides = [1, 1]} : vector<8x32xbf16> to vector<8x8xbf16>
    %38 = vector.extract_strided_slice %20 {offsets = [0, 8], sizes = [8, 8], strides = [1, 1]} : vector<8x64xbf16> to vector<8x8xbf16>
    %39 = vector.extract_strided_slice %20 {offsets = [0, 40], sizes = [8, 8], strides = [1, 1]} : vector<8x64xbf16> to vector<8x8xbf16>
    "tpu.trace_start"() <{level = 10 : i32, message = "nd,md->nm"}> : () -> ()
    %cst_17 = arith.constant dense<0.000000e+00> : vector<8x8xf32>
    %40 = tpu.matmul %37, %38, %cst_17 {dimension_numbers = #tpu.dot_dimension_numbers<[1], [1], [0], [0], [0, 0, 1, 0], [], []>} : vector<8x8xbf16>, vector<8x8xbf16>, vector<8x8xf32> -> vector<8x8xf32>
    "tpu.trace_stop"() : () -> ()
    %cst_18 = arith.constant dense<0xFF800000> : vector<8xf32>
    %41 = vector.multi_reduction <maximumf>, %40, %cst_18 [1] : vector<8x8xf32> to vector<8xf32>
    %42 = vector.shape_cast %41 : vector<8xf32> to vector<8x1xf32>
    %43 = vector.broadcast %42 : vector<8x1xf32> to vector<8x8xf32>
    %44 = arith.subf %40, %43 : vector<8x8xf32>
    %45 = math.exp %44 : vector<8x8xf32>
    %46 = arith.truncf %45 : vector<8x8xf32> to vector<8x8xbf16>
    %cst_19 = arith.constant dense<0.000000e+00> : vector<8x8xf32>
    %47 = tpu.matmul %46, %39, %cst_19 {dimension_numbers = #tpu.dot_dimension_numbers<[1], [0], [0], [1], [0, 0, 1, 1], [], []>} : vector<8x8xbf16>, vector<8x8xbf16>, vector<8x8xf32> -> vector<8x8xf32>
    %cst_20 = arith.constant dense<0.000000e+00> : vector<8xf32>
    %48 = vector.multi_reduction <add>, %45, %cst_20 [1] : vector<8x8xf32> to vector<8xf32>
    %49 = vector.shape_cast %48 : vector<8xf32> to vector<8x1xf32>
    %50 = tpu.reciprocal %49 {approx = true} : vector<8x1xf32> -> vector<8x1xf32>
    %51 = vector.broadcast %50 : vector<8x1xf32> to vector<8x8xf32>
    %52 = arith.mulf %47, %51 : vector<8x8xf32>
    %53 = vector.extract_strided_slice %19 {offsets = [0, 16], sizes = [8, 8], strides = [1, 1]} : vector<8x32xbf16> to vector<8x8xbf16>
    %54 = vector.extract_strided_slice %20 {offsets = [0, 16], sizes = [8, 8], strides = [1, 1]} : vector<8x64xbf16> to vector<8x8xbf16>
    %55 = vector.extract_strided_slice %20 {offsets = [0, 48], sizes = [8, 8], strides = [1, 1]} : vector<8x64xbf16> to vector<8x8xbf16>
    "tpu.trace_start"() <{level = 10 : i32, message = "nd,md->nm"}> : () -> ()
    %cst_21 = arith.constant dense<0.000000e+00> : vector<8x8xf32>
    %56 = tpu.matmul %53, %54, %cst_21 {dimension_numbers = #tpu.dot_dimension_numbers<[1], [1], [0], [0], [0, 0, 1, 0], [], []>} : vector<8x8xbf16>, vector<8x8xbf16>, vector<8x8xf32> -> vector<8x8xf32>
    "tpu.trace_stop"() : () -> ()
    %cst_22 = arith.constant dense<0xFF800000> : vector<8xf32>
    %57 = vector.multi_reduction <maximumf>, %56, %cst_22 [1] : vector<8x8xf32> to vector<8xf32>
    %58 = vector.shape_cast %57 : vector<8xf32> to vector<8x1xf32>
    %59 = vector.broadcast %58 : vector<8x1xf32> to vector<8x8xf32>
    %60 = arith.subf %56, %59 : vector<8x8xf32>
    %61 = math.exp %60 : vector<8x8xf32>
    %62 = arith.truncf %61 : vector<8x8xf32> to vector<8x8xbf16>
    %cst_23 = arith.constant dense<0.000000e+00> : vector<8x8xf32>
    %63 = tpu.matmul %62, %55, %cst_23 {dimension_numbers = #tpu.dot_dimension_numbers<[1], [0], [0], [1], [0, 0, 1, 1], [], []>} : vector<8x8xbf16>, vector<8x8xbf16>, vector<8x8xf32> -> vector<8x8xf32>
    %cst_24 = arith.constant dense<0.000000e+00> : vector<8xf32>
    %64 = vector.multi_reduction <add>, %61, %cst_24 [1] : vector<8x8xf32> to vector<8xf32>
    %65 = vector.shape_cast %64 : vector<8xf32> to vector<8x1xf32>
    %66 = tpu.reciprocal %65 {approx = true} : vector<8x1xf32> -> vector<8x1xf32>
    %67 = vector.broadcast %66 : vector<8x1xf32> to vector<8x8xf32>
    %68 = arith.mulf %63, %67 : vector<8x8xf32>
    %69 = vector.extract_strided_slice %19 {offsets = [0, 24], sizes = [8, 8], strides = [1, 1]} : vector<8x32xbf16> to vector<8x8xbf16>
    %70 = vector.extract_strided_slice %20 {offsets = [0, 24], sizes = [8, 8], strides = [1, 1]} : vector<8x64xbf16> to vector<8x8xbf16>
    %71 = vector.extract_strided_slice %20 {offsets = [0, 56], sizes = [8, 8], strides = [1, 1]} : vector<8x64xbf16> to vector<8x8xbf16>
    "tpu.trace_start"() <{level = 10 : i32, message = "nd,md->nm"}> : () -> ()
    %cst_25 = arith.constant dense<0.000000e+00> : vector<8x8xf32>
    %72 = tpu.matmul %69, %70, %cst_25 {dimension_numbers = #tpu.dot_dimension_numbers<[1], [1], [0], [0], [0, 0, 1, 0], [], []>} : vector<8x8xbf16>, vector<8x8xbf16>, vector<8x8xf32> -> vector<8x8xf32>
    "tpu.trace_stop"() : () -> ()
    %cst_26 = arith.constant dense<0xFF800000> : vector<8xf32>
    %73 = vector.multi_reduction <maximumf>, %72, %cst_26 [1] : vector<8x8xf32> to vector<8xf32>
    %74 = vector.shape_cast %73 : vector<8xf32> to vector<8x1xf32>
    %75 = vector.broadcast %74 : vector<8x1xf32> to vector<8x8xf32>
    %76 = arith.subf %72, %75 : vector<8x8xf32>
    %77 = math.exp %76 : vector<8x8xf32>
    %78 = arith.truncf %77 : vector<8x8xf32> to vector<8x8xbf16>
    %cst_27 = arith.constant dense<0.000000e+00> : vector<8x8xf32>
    %79 = tpu.matmul %78, %71, %cst_27 {dimension_numbers = #tpu.dot_dimension_numbers<[1], [0], [0], [1], [0, 0, 1, 1], [], []>} : vector<8x8xbf16>, vector<8x8xbf16>, vector<8x8xf32> -> vector<8x8xf32>
    %cst_28 = arith.constant dense<0.000000e+00> : vector<8xf32>
    %80 = vector.multi_reduction <add>, %77, %cst_28 [1] : vector<8x8xf32> to vector<8xf32>
    %81 = vector.shape_cast %80 : vector<8xf32> to vector<8x1xf32>
    %82 = tpu.reciprocal %81 {approx = true} : vector<8x1xf32> -> vector<8x1xf32>
    %83 = vector.broadcast %82 : vector<8x1xf32> to vector<8x8xf32>
    %84 = arith.mulf %79, %83 : vector<8x8xf32>
    %85 = tpu.concatenate %36, %52, %68, %84 in 1 : vector<8x8xf32>, vector<8x8xf32>, vector<8x8xf32>, vector<8x8xf32> -> vector<8x32xf32>
    %86 = arith.truncf %85 : vector<8x32xf32> to vector<8x32xbf16>
    %c0_29 = arith.constant 0 : index
    %c0_30 = arith.constant 0 : index
    %87 = vector.load %arg7[%c0_29, %c0_30] : memref<32x32xbf16, #tpu.memory_space<vmem>>, vector<32x32xbf16>
    %cst_31 = arith.constant dense<0.000000e+00> : vector<8x32xf32>
    %88 = tpu.matmul %86, %87, %cst_31 {dimension_numbers = #tpu.dot_dimension_numbers<[1], [0], [0], [1], [0, 0, 1, 1], [], []>} : vector<8x32xbf16>, vector<32x32xbf16>, vector<8x32xf32> -> vector<8x32xf32>
    %c0_32 = arith.constant 0 : index
    %c0_33 = arith.constant 0 : index
    %89 = vector.load %arg8[%c0_32, %c0_33] : memref<1x32xf32, #tpu.memory_space<vmem>>, vector<1x32xf32>
    %90 = vector.broadcast %89 : vector<1x32xf32> to vector<8x32xf32>
    %91 = arith.addf %88, %90 : vector<8x32xf32>
    %c0_34 = arith.constant 0 : index
    %c0_35 = arith.constant 0 : index
    %92 = vector.load %arg9[%c0_34, %c0_35] : memref<32x64xbf16, #tpu.memory_space<vmem>>, vector<32x64xbf16>
    %cst_36 = arith.constant dense<0.000000e+00> : vector<8x64xf32>
    %93 = tpu.matmul %7, %92, %cst_36 {dimension_numbers = #tpu.dot_dimension_numbers<[1], [0], [0], [1], [0, 0, 1, 1], [], []>} : vector<8x32xbf16>, vector<32x64xbf16>, vector<8x64xf32> -> vector<8x64xf32>
    %94 = arith.truncf %91 : vector<8x32xf32> to vector<8x32xbf16>
    %c0_37 = arith.constant 0 : index
    %c0_38 = arith.constant 0 : index
    %95 = vector.load %arg10[%c0_37, %c0_38] : memref<32x64xbf16, #tpu.memory_space<vmem>>, vector<32x64xbf16>
    %cst_39 = arith.constant dense<0.000000e+00> : vector<8x64xf32>
    %96 = tpu.matmul %94, %95, %cst_39 {dimension_numbers = #tpu.dot_dimension_numbers<[1], [0], [0], [1], [0, 0, 1, 1], [], []>} : vector<8x32xbf16>, vector<32x64xbf16>, vector<8x64xf32> -> vector<8x64xf32>
    %97 = arith.addf %93, %96 : vector<8x64xf32>
    %c0_40 = arith.constant 0 : index
    %c0_41 = arith.constant 0 : index
    %98 = vector.load %arg11[%c0_40, %c0_41] : memref<1x64xf32, #tpu.memory_space<vmem>>, vector<1x64xf32>
    %99 = vector.broadcast %98 : vector<1x64xf32> to vector<8x64xf32>
    %100 = arith.addf %97, %99 : vector<8x64xf32>
    %cst_42 = arith.constant 0.000000e+00 : f32
    %101 = vector.broadcast %cst_42 : f32 to vector<8x64xf32>
    %102 = arith.maximumf %100, %101 : vector<8x64xf32>
    %103 = arith.truncf %102 : vector<8x64xf32> to vector<8x64xbf16>
    %c0_43 = arith.constant 0 : index
    %c0_44 = arith.constant 0 : index
    %104 = vector.load %arg12[%c0_43, %c0_44] : memref<64x32xbf16, #tpu.memory_space<vmem>>, vector<64x32xbf16>
    %cst_45 = arith.constant dense<0.000000e+00> : vector<8x32xf32>
    %105 = tpu.matmul %103, %104, %cst_45 {dimension_numbers = #tpu.dot_dimension_numbers<[1], [0], [0], [1], [0, 0, 1, 1], [], []>} : vector<8x64xbf16>, vector<64x32xbf16>, vector<8x32xf32> -> vector<8x32xf32>
    %c0_46 = arith.constant 0 : index
    %c0_47 = arith.constant 0 : index
    %106 = vector.load %arg13[%c0_46, %c0_47] : memref<1x32xf32, #tpu.memory_space<vmem>>, vector<1x32xf32>
    %107 = vector.broadcast %106 : vector<1x32xf32> to vector<8x32xf32>
    %108 = arith.addf %105, %107 : vector<8x32xf32>
    %109 = arith.addf %4, %108 : vector<8x32xf32>
    %c0_48 = arith.constant 0 : index
    %c0_49 = arith.constant 0 : index
    %c0_50 = arith.constant 0 : index
    %110 = vector.load %arg14[%c0_48, %c0_49, %c0_50] : memref<1x8x32xf32, #tpu.memory_space<vmem>>, vector<1x8x32xf32>
    %111 = vector.shape_cast %110 : vector<1x8x32xf32> to vector<8x32xf32>
    %112 = vector.shape_cast %109 : vector<8x32xf32> to vector<1x8x32xf32>
    tpu.vector_store %arg14[%c0_48, %c0_49, %c0_50], %112 {strides = array<i32>} : memref<1x8x32xf32, #tpu.memory_space<vmem>>, vector<1x8x32xf32>,
    return
  }
  func.func @transform_0(%arg0: i32, %arg1: i32) -> (i32, i32, i32) {
    %c0_i32 = arith.constant 0 : i32
    %c0_i32_0 = arith.constant 0 : i32
    %c0_i32_1 = arith.constant 0 : i32
    return %arg0, %c0_i32, %c0_i32_0 : i32, i32, i32
  }
  func.func @transform_1(%arg0: i32, %arg1: i32) -> (i32, i32) {
    %c0_i32 = arith.constant 0 : i32
    %c0_i32_0 = arith.constant 0 : i32
    %c0_i32_1 = arith.constant 0 : i32
    return %c0_i32, %c0_i32_0 : i32, i32
  }
  func.func @transform_2(%arg0: i32, %arg1: i32) -> (i32, i32) {
    %c0_i32 = arith.constant 0 : i32
    %c0_i32_0 = arith.constant 0 : i32
    %c0_i32_1 = arith.constant 0 : i32
    return %c0_i32, %c0_i32_0 : i32, i32
  }
  func.func @transform_3(%arg0: i32, %arg1: i32) -> (i32, i32) {
    %c0_i32 = arith.constant 0 : i32
    %c0_i32_0 = arith.constant 0 : i32
    %c0_i32_1 = arith.constant 0 : i32
    return %c0_i32, %c0_i32_0 : i32, i32
  }
  func.func @transform_4(%arg0: i32, %arg1: i32) -> (i32, i32) {
    %c0_i32 = arith.constant 0 : i32
    %c0_i32_0 = arith.constant 0 : i32
    %c0_i32_1 = arith.constant 0 : i32
    return %c0_i32, %c0_i32_0 : i32, i32
  }
  func.func @transform_5(%arg0: i32, %arg1: i32) -> (i32, i32) {
    %c0_i32 = arith.constant 0 : i32
    %c0_i32_0 = arith.constant 0 : i32
    %c0_i32_1 = arith.constant 0 : i32
    return %c0_i32, %c0_i32_0 : i32, i32
  }
  func.func @transform_6(%arg0: i32, %arg1: i32) -> (i32, i32) {
    %c0_i32 = arith.constant 0 : i32
    %c0_i32_0 = arith.constant 0 : i32
    %c0_i32_1 = arith.constant 0 : i32
    return %c0_i32, %c0_i32_0 : i32, i32
  }
  func.func @transform_7(%arg0: i32, %arg1: i32) -> (i32, i32) {
    %c0_i32 = arith.constant 0 : i32
    %c0_i32_0 = arith.constant 0 : i32
    %c0_i32_1 = arith.constant 0 : i32
    return %c0_i32, %c0_i32_0 : i32, i32
  }
  func.func @transform_8(%arg0: i32, %arg1: i32) -> (i32, i32) {
    %c0_i32 = arith.constant 0 : i32
    %c0_i32_0 = arith.constant 0 : i32
    %c0_i32_1 = arith.constant 0 : i32
    return %c0_i32, %c0_i32_0 : i32, i32
  }
  func.func @transform_9(%arg0: i32, %arg1: i32) -> (i32, i32) {
    %c0_i32 = arith.constant 0 : i32
    %c0_i32_0 = arith.constant 0 : i32
    %c0_i32_1 = arith.constant 0 : i32
    return %c0_i32, %c0_i32_0 : i32, i32
  }
  func.func @transform_10(%arg0: i32, %arg1: i32) -> (i32, i32) {
    %c0_i32 = arith.constant 0 : i32
    %c0_i32_0 = arith.constant 0 : i32
    %c0_i32_1 = arith.constant 0 : i32
    return %c0_i32, %c0_i32_0 : i32, i32
  }
  func.func @transform_11(%arg0: i32, %arg1: i32) -> (i32, i32) {
    %c0_i32 = arith.constant 0 : i32
    %c0_i32_0 = arith.constant 0 : i32
    %c0_i32_1 = arith.constant 0 : i32
    return %c0_i32, %c0_i32_0 : i32, i32
  }
  func.func @transform_12(%arg0: i32, %arg1: i32) -> (i32, i32, i32) {
    %c0_i32 = arith.constant 0 : i32
    %c0_i32_0 = arith.constant 0 : i32
    return %arg0, %arg1, %c0_i32 : i32, i32, i32
  }
}

</mosaic_0001>

<llo_original>
// kernel: _lambda_.3
$region0: #{_lambda_.3}
  #allocation0 [shape = 'u32[]', space=smem, size = 0x4, offset = 0x4, fixed_abs, tag = 'smem constant byte address 0x4 - core index']
  #allocation1 [shape = 'u32[144,128]{1,0:T(1,128)}', space=vmem, size = 0x12000, scoped, tag = 'internal scratch']
  %s0 = inlined_call_operand.vmem [shape: f32[4,8,32], index: 0, kind: input, shape index: {}, may-alias: {0,1}]
  %s1 = inlined_call_operand.vmem [shape: f32[4,8,32], index: 1, kind: input, shape index: {}, may-alias: {0,1}]
  %s2 = inlined_call_operand.vmem [shape: bf16[32,32], index: 2, kind: input, shape index: {}]
  %s3 = inlined_call_operand.vmem [shape: f32[1,32], index: 3, kind: input, shape index: {}]
  %s4 = inlined_call_operand.vmem [shape: bf16[32,64], index: 4, kind: input, shape index: {}]
  %s5 = inlined_call_operand.vmem [shape: f32[1,64], index: 5, kind: input, shape index: {}]
  %s6 = inlined_call_operand.vmem [shape: bf16[32,32], index: 6, kind: input, shape index: {}]
  %s7 = inlined_call_operand.vmem [shape: f32[1,32], index: 7, kind: input, shape index: {}]
  %s8 = inlined_call_operand.vmem [shape: bf16[32,64], index: 8, kind: input, shape index: {}]
  %s9 = inlined_call_operand.vmem [shape: bf16[32,64], index: 9, kind: input, shape index: {}]
  %s10 = inlined_call_operand.vmem [shape: f32[1,64], index: 10, kind: input, shape index: {}]
  %s11 = inlined_call_operand.vmem [shape: bf16[64,32], index: 11, kind: input, shape index: {}]
  %s12 = inlined_call_operand.vmem [shape: f32[1,32], index: 12, kind: input, shape index: {}]
  %s13 = inlined_call_operand.vmem [shape: f32[4,8,32], index: 13, kind: output, shape index: {}]
  %s14 = sld [smem:[#allocation0]]
  $region85: #{_lambda_.3} parent=0
    _
  %s16 = ssub.s32 1, %s14
  %s17 = scalar_select 0, %s16, %s14
  loop: start=0, step=1, limit=6
  $region2: #{_lambda_.3} parent=0 // loop_pre_header
    _
  $region3: #{_lambda_.3} parent=0 // loop_header
    %s19 = sphi 0, %s23
    %p20 = scmp.ge.s32.totalorder %s19, 6
    %s26 = sphi 0, %s38
    %s27 = sphi 0, %s34
    %s28 = sphi 0, %s26
    %s29 = sphi 0, %s27
    %s30 = sphi 0, %s28
    %s31 = sphi 0, %s29
    %s43 = sphi 0, %s45
    %s46 = sphi 0, %s43
    %s47 = sphi 0, %s46
    %s63 = sphi 0, %s47
    %s95 = sphi 0, %s97
    %s98 = sphi 0, %s95
    %s99 = sphi 0, %s98
    %s115 = sphi 0, %s99
    %s119 = sphi 0, %s119
    %s121 = sphi 0, %s119
    %s122 = sphi 0, %s121
    %s136 = sphi 0, %s122
    %s140 = sphi 0, %s140
    %s142 = sphi 0, %s140
    %s143 = sphi 0, %s142
    %s157 = sphi 0, %s143
    %s161 = sphi 0, %s161
    %s163 = sphi 0, %s161
    %s164 = sphi 0, %s163
    %s178 = sphi 0, %s164
    %s182 = sphi 0, %s182
    %s184 = sphi 0, %s182
    %s185 = sphi 0, %s184
    %s199 = sphi 0, %s185
    %s203 = sphi 0, %s203
    %s205 = sphi 0, %s203
    %s206 = sphi 0, %s205
    %s220 = sphi 0, %s206
    %s224 = sphi 0, %s224
    %s226 = sphi 0, %s224
    %s227 = sphi 0, %s226
    %s241 = sphi 0, %s227
    %s245 = sphi 0, %s245
    %s247 = sphi 0, %s245
    %s248 = sphi 0, %s247
    %s262 = sphi 0, %s248
    %s266 = sphi 0, %s266
    %s268 = sphi 0, %s266
    %s269 = sphi 0, %s268
    %s283 = sphi 0, %s269
    %s287 = sphi 0, %s287
    %s289 = sphi 0, %s287
    %s290 = sphi 0, %s289
    %s304 = sphi 0, %s290
    %s308 = sphi 0, %s308
    %s310 = sphi 0, %s308
    %s311 = sphi 0, %s310
    %s325 = sphi 0, %s311
    %s329 = sphi 0, %s329
    %s331 = sphi 0, %s329
    %s332 = sphi 0, %s331
    %s346 = sphi 0, %s332
    %s354 = sphi 0, %s356
    %s357 = sphi 0, %s354
    %s358 = sphi 0, %s357
    %s374 = sphi 0, %s358
  $region4: #{_lambda_.3} parent=0 // loop_header_branch
    %22 = sbr.rel (%p20) target = $region8
  $region5: #{_lambda_.3} parent=0 // loop_body
    %s24 = ssub.s32 %s19, 1
    %s25 = ssub.s32 %s19, 2
    %s32 = sadd.s32 1, %s27
    %p33 = scmp.ge.s32.totalorder %s32, 1
    %s34 = scalar_select %p33, 0, %s32
    %s35 = sadd.s32 1, %s26
    %s36 = scalar_select %p33, %s35, %s26
    %p37 = scmp.ge.s32.totalorder %s36, 4
    %s38 = scalar_select %p37, 0, %s36
    %s39 = ssub.s32 %s26, %s38
    %s40 = ssub.s32 %s27, %s34
    %s41 = sor.u32 %s39, %s40
    %p42 = scmp.eq.s32.totalorder %s41, 0
    %s44 = sadd.s32 %s43, 1
    %s45 = scalar_select %p42, %s43, %s44
    %p48 = pneg %p42
    %p49 = scmp.eq.s32.totalorder %s19, 3
    %p50 = por %p48, %p49
    %p51 = scmp.ne.s32.totalorder %s43, %s46
    %p52 = scmp.eq.s32.totalorder %s19, 0
    %p53 = por %p51, %p52
    %p54 = scmp.ne.s32.totalorder %s43, %s46
    %p55 = scmp.eq.s32.totalorder %s24, 3
    %p56 = por %p54, %p55
    %p57 = scmp.ne.s32.totalorder %s46, %s47
    %p58 = scmp.eq.s32.totalorder %s24, 0
    %p59 = por %p57, %p58
    %p60 = scmp.ne.s32.totalorder %s46, %s47
    %p61 = scmp.eq.s32.totalorder %s25, 3
    %p62 = por %p60, %p61
    %p64 = scmp.ne.s32.totalorder %s47, %s63
    %p65 = scmp.eq.s32.totalorder %s25, 0
    %p66 = por %p64, %p65
    %s67 = sadd.s32 %s26, 2
    %p68 = scmp.lt.s32.totalorder %s67, 0
    %s69 = ssub.s32 0, %s67
    %s70 = scalar_select %p68, %s69, %s67
    %s71 = sand.u32 %s70, 3
    %s72 = ssub.s32 0, %s71
    %s73 = scalar_select %p68, %s72, %s71
    %p74 = scmp.ne.s32.totalorder %s73, 0
    %p75 = scmp.lt.s32.totalorder %s73, 0
    %p76 = pnand %p75, %p74
    %p77 = pneg %p76
    %s78 = sadd.s32 %s73, 4
    %s79 = scalar_select %p77, %s78, %s73
    %s80 = sadd.s32 %s38, 2
    %p81 = scmp.lt.s32.totalorder %s80, 0
    %s82 = ssub.s32 0, %s80
    %s83 = scalar_select %p81, %s82, %s80
    %s84 = sand.u32 %s83, 3
    %s85 = ssub.s32 0, %s84
    %s86 = scalar_select %p81, %s85, %s84
    %p87 = scmp.ne.s32.totalorder %s86, 0
    %p88 = scmp.lt.s32.totalorder %s86, 0
    %p89 = pnand %p88, %p87
    %p90 = pneg %p89
    %s91 = sadd.s32 %s86, 4
    %s92 = scalar_select %p90, %s91, %s86
    %s93 = ssub.s32 %s79, %s92
    %p94 = scmp.eq.s32.totalorder %s93, 0
    %s96 = sadd.s32 %s95, 1
    %s97 = scalar_select %p94, %s95, %s96
    %p100 = pneg %p94
    %p101 = scmp.eq.s32.totalorder %s19, 3
    %p102 = por %p100, %p101
    %p103 = scmp.ne.s32.totalorder %s95, %s98
    %p104 = scmp.eq.s32.totalorder %s19, 0
    %p105 = por %p103, %p104
    %p106 = scmp.ne.s32.totalorder %s95, %s98
    %p107 = scmp.eq.s32.totalorder %s24, 3
    %p108 = por %p106, %p107
    %p109 = scmp.ne.s32.totalorder %s98, %s99
    %p110 = scmp.eq.s32.totalorder %s24, 0
    %p111 = por %p109, %p110
    %p112 = scmp.ne.s32.totalorder %s98, %s99
    %p113 = scmp.eq.s32.totalorder %s25, 3
    %p114 = por %p112, %p113
    %p116 = scmp.ne.s32.totalorder %s99, %s115
    %p117 = scmp.eq.s32.totalorder %s25, 0
    %p118 = por %p116, %p117
    %s120 = sadd.s32 %s119, 1
    %p123 = scmp.eq.s32.totalorder %s19, 3
    %p124 = scmp.ne.s32.totalorder %s119, %s121
    %p125 = scmp.eq.s32.totalorder %s19, 0
    %p126 = por %p124, %p125
    %p127 = scmp.ne.s32.totalorder %s119, %s121
    %p128 = scmp.eq.s32.totalorder %s24, 3
    %p129 = por %p127, %p128
    %p130 = scmp.ne.s32.totalorder %s121, %s122
    %p131 = scmp.eq.s32.totalorder %s24, 0
    %p132 = por %p130, %p131
    %p133 = scmp.ne.s32.totalorder %s121, %s122
    %p134 = scmp.eq.s32.totalorder %s25, 3
    %p135 = por %p133, %p134
    %p137 = scmp.ne.s32.totalorder %s122, %s136
    %p138 = scmp.eq.s32.totalorder %s25, 0
    %p139 = por %p137, %p138
    %s141 = sadd.s32 %s140, 1
    %p144 = scmp.eq.s32.totalorder %s19, 3
    %p145 = scmp.ne.s32.totalorder %s140, %s142
    %p146 = scmp.eq.s32.totalorder %s19, 0
    %p147 = por %p145, %p146
    %p148 = scmp.ne.s32.totalorder %s140, %s142
    %p149 = scmp.eq.s32.totalorder %s24, 3
    %p150 = por %p148, %p149
    %p151 = scmp.ne.s32.totalorder %s142, %s143
    %p152 = scmp.eq.s32.totalorder %s24, 0
    %p153 = por %p151, %p152
    %p154 = scmp.ne.s32.totalorder %s142, %s143
    %p155 = scmp.eq.s32.totalorder %s25, 3
    %p156 = por %p154, %p155
    %p158 = scmp.ne.s32.totalorder %s143, %s157
    %p159 = scmp.eq.s32.totalorder %s25, 0
    %p160 = por %p158, %p159
    %s162 = sadd.s32 %s161, 1
    %p165 = scmp.eq.s32.totalorder %s19, 3
    %p166 = scmp.ne.s32.totalorder %s161, %s163
    %p167 = scmp.eq.s32.totalorder %s19, 0
    %p168 = por %p166, %p167
    %p169 = scmp.ne.s32.totalorder %s161, %s163
    %p170 = scmp.eq.s32.totalorder %s24, 3
    %p171 = por %p169, %p170
    %p172 = scmp.ne.s32.totalorder %s163, %s164
    %p173 = scmp.eq.s32.totalorder %s24, 0
    %p174 = por %p172, %p173
    %p175 = scmp.ne.s32.totalorder %s163, %s164
    %p176 = scmp.eq.s32.totalorder %s25, 3
    %p177 = por %p175, %p176
    %p179 = scmp.ne.s32.totalorder %s164, %s178
    %p180 = scmp.eq.s32.totalorder %s25, 0
    %p181 = por %p179, %p180
    %s183 = sadd.s32 %s182, 1
    %p186 = scmp.eq.s32.totalorder %s19, 3
    %p187 = scmp.ne.s32.totalorder %s182, %s184
    %p188 = scmp.eq.s32.totalorder %s19, 0
    %p189 = por %p187, %p188
    %p190 = scmp.ne.s32.totalorder %s182, %s184
    %p191 = scmp.eq.s32.totalorder %s24, 3
    %p192 = por %p190, %p191
    %p193 = scmp.ne.s32.totalorder %s184, %s185
    %p194 = scmp.eq.s32.totalorder %s24, 0
    %p195 = por %p193, %p194
    %p196 = scmp.ne.s32.totalorder %s184, %s185
    %p197 = scmp.eq.s32.totalorder %s25, 3
    %p198 = por %p196, %p197
    %p200 = scmp.ne.s32.totalorder %s185, %s199
    %p201 = scmp.eq.s32.totalorder %s25, 0
    %p202 = por %p200, %p201
    %s204 = sadd.s32 %s203, 1
    %p207 = scmp.eq.s32.totalorder %s19, 3
    %p208 = scmp.ne.s32.totalorder %s203, %s205
    %p209 = scmp.eq.s32.totalorder %s19, 0
    %p210 = por %p208, %p209
    %p211 = scmp.ne.s32.totalorder %s203, %s205
    %p212 = scmp.eq.s32.totalorder %s24, 3
    %p213 = por %p211, %p212
    %p214 = scmp.ne.s32.totalorder %s205, %s206
    %p215 = scmp.eq.s32.totalorder %s24, 0
    %p216 = por %p214, %p215
    %p217 = scmp.ne.s32.totalorder %s205, %s206
    %p218 = scmp.eq.s32.totalorder %s25, 3
    %p219 = por %p217, %p218
    %p221 = scmp.ne.s32.totalorder %s206, %s220
    %p222 = scmp.eq.s32.totalorder %s25, 0
    %p223 = por %p221, %p222
    %s225 = sadd.s32 %s224, 1
    %p228 = scmp.eq.s32.totalorder %s19, 3
    %p229 = scmp.ne.s32.totalorder %s224, %s226
    %p230 = scmp.eq.s32.totalorder %s19, 0
    %p231 = por %p229, %p230
    %p232 = scmp.ne.s32.totalorder %s224, %s226
    %p233 = scmp.eq.s32.totalorder %s24, 3
    %p234 = por %p232, %p233
    %p235 = scmp.ne.s32.totalorder %s226, %s227
    %p236 = scmp.eq.s32.totalorder %s24, 0
    %p237 = por %p235, %p236
    %p238 = scmp.ne.s32.totalorder %s226, %s227
    %p239 = scmp.eq.s32.totalorder %s25, 3
    %p240 = por %p238, %p239
    %p242 = scmp.ne.s32.totalorder %s227, %s241
    %p243 = scmp.eq.s32.totalorder %s25, 0
    %p244 = por %p242, %p243
    %s246 = sadd.s32 %s245, 1
    %p249 = scmp.eq.s32.totalorder %s19, 3
    %p250 = scmp.ne.s32.totalorder %s245, %s247
    %p251 = scmp.eq.s32.totalorder %s19, 0
    %p252 = por %p250, %p251
    %p253 = scmp.ne.s32.totalorder %s245, %s247
    %p254 = scmp.eq.s32.totalorder %s24, 3
    %p255 = por %p253, %p254
    %p256 = scmp.ne.s32.totalorder %s247, %s248
    %p257 = scmp.eq.s32.totalorder %s24, 0
    %p258 = por %p256, %p257
    %p259 = scmp.ne.s32.totalorder %s247, %s248
    %p260 = scmp.eq.s32.totalorder %s25, 3
    %p261 = por %p259, %p260
    %p263 = scmp.ne.s32.totalorder %s248, %s262
    %p264 = scmp.eq.s32.totalorder %s25, 0
    %p265 = por %p263, %p264
    %s267 = sadd.s32 %s266, 1
    %p270 = scmp.eq.s32.totalorder %s19, 3
    %p271 = scmp.ne.s32.totalorder %s266, %s268
    %p272 = scmp.eq.s32.totalorder %s19, 0
    %p273 = por %p271, %p272
    %p274 = scmp.ne.s32.totalorder %s266, %s268
    %p275 = scmp.eq.s32.totalorder %s24, 3
    %p276 = por %p274, %p275
    %p277 = scmp.ne.s32.totalorder %s268, %s269
    %p278 = scmp.eq.s32.totalorder %s24, 0
    %p279 = por %p277, %p278
    %p280 = scmp.ne.s32.totalorder %s268, %s269
    %p281 = scmp.eq.s32.totalorder %s25, 3
    %p282 = por %p280, %p281
    %p284 = scmp.ne.s32.totalorder %s269, %s283
    %p285 = scmp.eq.s32.totalorder %s25, 0
    %p286 = por %p284, %p285
    %s288 = sadd.s32 %s287, 1
    %p291 = scmp.eq.s32.totalorder %s19, 3
    %p292 = scmp.ne.s32.totalorder %s287, %s289
    %p293 = scmp.eq.s32.totalorder %s19, 0
    %p294 = por %p292, %p293
    %p295 = scmp.ne.s32.totalorder %s287, %s289
    %p296 = scmp.eq.s32.totalorder %s24, 3
    %p297 = por %p295, %p296
    %p298 = scmp.ne.s32.totalorder %s289, %s290
    %p299 = scmp.eq.s32.totalorder %s24, 0
    %p300 = por %p298, %p299
    %p301 = scmp.ne.s32.totalorder %s289, %s290
    %p302 = scmp.eq.s32.totalorder %s25, 3
    %p303 = por %p301, %p302
    %p305 = scmp.ne.s32.totalorder %s290, %s304
    %p306 = scmp.eq.s32.totalorder %s25, 0
    %p307 = por %p305, %p306
    %s309 = sadd.s32 %s308, 1
    %p312 = scmp.eq.s32.totalorder %s19, 3
    %p313 = scmp.ne.s32.totalorder %s308, %s310
    %p314 = scmp.eq.s32.totalorder %s19, 0
    %p315 = por %p313, %p314
    %p316 = scmp.ne.s32.totalorder %s308, %s310
    %p317 = scmp.eq.s32.totalorder %s24, 3
    %p318 = por %p316, %p317
    %p319 = scmp.ne.s32.totalorder %s310, %s311
    %p320 = scmp.eq.s32.totalorder %s24, 0
    %p321 = por %p319, %p320
    %p322 = scmp.ne.s32.totalorder %s310, %s311
    %p323 = scmp.eq.s32.totalorder %s25, 3
    %p324 = por %p322, %p323
    %p326 = scmp.ne.s32.totalorder %s311, %s325
    %p327 = scmp.eq.s32.totalorder %s25, 0
    %p328 = por %p326, %p327
    %s330 = sadd.s32 %s329, 1
    %p333 = scmp.eq.s32.totalorder %s19, 3
    %p334 = scmp.ne.s32.totalorder %s329, %s331
    %p335 = scmp.eq.s32.totalorder %s19, 0
    %p336 = por %p334, %p335
    %p337 = scmp.ne.s32.totalorder %s329, %s331
    %p338 = scmp.eq.s32.totalorder %s24, 3
    %p339 = por %p337, %p338
    %p340 = scmp.ne.s32.totalorder %s331, %s332
    %p341 = scmp.eq.s32.totalorder %s24, 0
    %p342 = por %p340, %p341
    %p343 = scmp.ne.s32.totalorder %s331, %s332
    %p344 = scmp.eq.s32.totalorder %s25, 3
    %p345 = por %p343, %p344
    %p347 = scmp.ne.s32.totalorder %s332, %s346
    %p348 = scmp.eq.s32.totalorder %s25, 0
    %p349 = por %p347, %p348
    %s350 = ssub.s32 %s26, %s38
    %s351 = ssub.s32 %s27, %s34
    %s352 = sor.u32 %s350, %s351
    %p353 = scmp.eq.s32.totalorder %s352, 0
    %s355 = sadd.s32 %s354, 1
    %s356 = scalar_select %p353, %s354, %s355
    %p359 = pneg %p353
    %p360 = scmp.eq.s32.totalorder %s19, 3
    %p361 = por %p359, %p360
    %p362 = scmp.ne.s32.totalorder %s354, %s357
    %p363 = scmp.eq.s32.totalorder %s19, 0
    %p364 = por %p362, %p363
    %p365 = scmp.ne.s32.totalorder %s354, %s357
    %p366 = scmp.eq.s32.totalorder %s24, 3
    %p367 = por %p365, %p366
    %p368 = scmp.ne.s32.totalorder %s357, %s358
    %p369 = scmp.eq.s32.totalorder %s24, 0
    %p370 = por %p368, %p369
    %p371 = scmp.ne.s32.totalorder %s357, %s358
    %p372 = scmp.eq.s32.totalorder %s25, 3
    %p373 = por %p371, %p372
    %p375 = scmp.ne.s32.totalorder %s358, %s374
    %p376 = scmp.eq.s32.totalorder %s25, 0
    %p377 = por %p375, %p376
    %p378 = scmp.le.s32.totalorder 1, %s19
    %p379 = scmp.lt.s32.totalorder %s19, 5
    %p380 = pnand %p378, %p379
    %p381 = pneg %p380
    // Predicated region
    $region9: #{_lambda_.3} parent=5 // pred_check
      _
    $region10: #{_lambda_.3} parent=5 // pred_check_branch
      %383 = sbr.rel (%p380) target = $region12
    $region11: #{_lambda_.3} parent=5 // pred_region
      %s384 = ssub.s32 %s19, 1
      // Predicated region
      $region13: #{_lambda_.3} parent=11 // pred_check
        %p385 = pneg %p132
      $region14: #{_lambda_.3} parent=11 // pred_check_branch
        %387 = sbr.rel (%p385) target = $region16
      $region15: #{_lambda_.3} parent=11 // pred_region
        _
      $region16: #{_lambda_.3} parent=11 // pred_fallthru
        _
      // Predicated region
      $region17: #{_lambda_.3} parent=11 // pred_check
        %p388 = pneg %p153
      $region18: #{_lambda_.3} parent=11 // pred_check_branch
        %390 = sbr.rel (%p388) target = $region20
      $region19: #{_lambda_.3} parent=11 // pred_region
        _
      $region20: #{_lambda_.3} parent=11 // pred_fallthru
        _
      // Predicated region
      $region21: #{_lambda_.3} parent=11 // pred_check
        %p391 = pneg %p174
      $region22: #{_lambda_.3} parent=11 // pred_check_branch
        %393 = sbr.rel (%p391) target = $region24
      $region23: #{_lambda_.3} parent=11 // pred_region
        _
      $region24: #{_lambda_.3} parent=11 // pred_fallthru
        _
      // Predicated region
      $region25: #{_lambda_.3} parent=11 // pred_check
        %p394 = pneg %p195
      $region26: #{_lambda_.3} parent=11 // pred_check_branch
        %396 = sbr.rel (%p394) target = $region28
      $region27: #{_lambda_.3} parent=11 // pred_region
        _
      $region28: #{_lambda_.3} parent=11 // pred_fallthru
        _
      // Predicated region
      $region29: #{_lambda_.3} parent=11 // pred_check
        %p397 = pneg %p216
      $region30: #{_lambda_.3} parent=11 // pred_check_branch
        %399 = sbr.rel (%p397) target = $region32
      $region31: #{_lambda_.3} parent=11 // pred_region
        _
      $region32: #{_lambda_.3} parent=11 // pred_fallthru
        _
      // Predicated region
      $region33: #{_lambda_.3} parent=11 // pred_check
        %p400 = pneg %p237
      $region34: #{_lambda_.3} parent=11 // pred_check_branch
        %402 = sbr.rel (%p400) target = $region36
      $region35: #{_lambda_.3} parent=11 // pred_region
        _
      $region36: #{_lambda_.3} parent=11 // pred_fallthru
        _
      // Predicated region
      $region37: #{_lambda_.3} parent=11 // pred_check
        %p403 = pneg %p258
      $region38: #{_lambda_.3} parent=11 // pred_check_branch
        %405 = sbr.rel (%p403) target = $region40
      $region39: #{_lambda_.3} parent=11 // pred_region
        _
      $region40: #{_lambda_.3} parent=11 // pred_fallthru
        _
      // Predicated region
      $region41: #{_lambda_.3} parent=11 // pred_check
        %p406 = pneg %p279
      $region42: #{_lambda_.3} parent=11 // pred_check_branch
        %408 = sbr.rel (%p406) target = $region44
      $region43: #{_lambda_.3} parent=11 // pred_region
        _
      $region44: #{_lambda_.3} parent=11 // pred_fallthru
        _
      // Predicated region
      $region45: #{_lambda_.3} parent=11 // pred_check
        %p409 = pneg %p300
      $region46: #{_lambda_.3} parent=11 // pred_check_branch
        %411 = sbr.rel (%p409) target = $region48
      $region47: #{_lambda_.3} parent=11 // pred_region
        _
      $region48: #{_lambda_.3} parent=11 // pred_fallthru
        _
      // Predicated region
      $region49: #{_lambda_.3} parent=11 // pred_check
        %p412 = pneg %p321
      $region50: #{_lambda_.3} parent=11 // pred_check_branch
        %414 = sbr.rel (%p412) target = $region52
      $region51: #{_lambda_.3} parent=11 // pred_region
        _
      $region52: #{_lambda_.3} parent=11 // pred_fallthru
        _
      // Predicated region
      $region53: #{_lambda_.3} parent=11 // pred_check
        %p415 = pneg %p342
      $region54: #{_lambda_.3} parent=11 // pred_check_branch
        %417 = sbr.rel (%p415) target = $region56
      $region55: #{_lambda_.3} parent=11 // pred_region
        _
      $region56: #{_lambda_.3} parent=11 // pred_fallthru
        _
    $region12: #{_lambda_.3} parent=5 // pred_fallthru
      _
    %p418 = scmp.lt.s32.totalorder %s19, 4
    // Predicated region
    $region57: #{_lambda_.3} parent=5 // pred_check
      %p419 = pneg %p418
    $region58: #{_lambda_.3} parent=5 // pred_check_branch
      %421 = sbr.rel (%p419) target = $region60
    $region59: #{_lambda_.3} parent=5 // pred_region
      // Predicated region
      $region61: #{_lambda_.3} parent=59 // pred_check
        %p422 = pneg %p53
      $region62: #{_lambda_.3} parent=59 // pred_check_branch
        %424 = sbr.rel (%p422) target = $region64
      $region63: #{_lambda_.3} parent=59 // pred_region
        %p425 = scmp.lt.s32.totalorder %s26, 3
        %s426 = scalar_select %p425, %s26, 3
        %p427 = scmp.lt.s32.totalorder %s27, 0
        %s428 = scalar_select %p427, %s27, 0
        %s429 = sadd.s32 %s428, %s426
        %s430 = smul.addr %s429, 8
        %s431 = scalar_lea.vmem %s0, %s430
      $region64: #{_lambda_.3} parent=59 // pred_fallthru
        _
      // Predicated region
      $region65: #{_lambda_.3} parent=59 // pred_check
        %p432 = pneg %p105
      $region66: #{_lambda_.3} parent=59 // pred_check_branch
        %434 = sbr.rel (%p432) target = $region68
      $region67: #{_lambda_.3} parent=59 // pred_region
        %s435 = sadd.s32 %s26, 2
        %p436 = scmp.lt.s32.totalorder %s435, 0
        %s437 = ssub.s32 0, %s435
        %s438 = scalar_select %p436, %s437, %s435
        %s439 = sand.u32 %s438, 3
        %s440 = ssub.s32 0, %s439
        %s441 = scalar_select %p436, %s440, %s439
        %p442 = scmp.ne.s32.totalorder %s441, 0
        %p443 = scmp.lt.s32.totalorder %s441, 0
        %p444 = pnand %p443, %p442
        %p445 = pneg %p444
        %s446 = sadd.s32 %s441, 4
        %s447 = scalar_select %p445, %s446, %s441
        %p448 = scmp.lt.s32.totalorder %s447, 3
        %s449 = scalar_select %p448, %s447, 3
        %s450 = smul.addr %s449, 8
        %s451 = scalar_lea.vmem %s1, %s450
        %s452 = sadd.s32 %s26, 2
        %p453 = scmp.lt.s32.totalorder %s452, 0
        %s454 = ssub.s32 0, %s452
        %s455 = scalar_select %p453, %s454, %s452
        %s456 = sand.u32 %s455, 3
        %s457 = ssub.s32 0, %s456
        %s458 = scalar_select %p453, %s457, %s456
        %p459 = scmp.ne.s32.totalorder %s458, 0
        %p460 = scmp.lt.s32.totalorder %s458, 0
        %p461 = pnand %p460, %p459
        %p462 = pneg %p461
        %s463 = sadd.s32 %s458, 4
        %s464 = scalar_select %p462, %s463, %s458
      $region68: #{_lambda_.3} parent=59 // pred_fallthru
        _
    $region60: #{_lambda_.3} parent=5 // pred_fallthru
      _
    %p465 = scmp.le.s32.totalorder 1, %s19
    %p466 = scmp.lt.s32.totalorder %s19, 5
    %p467 = pnand %p465, %p466
    %p468 = pneg %p467
    // Predicated region
    $region69: #{_lambda_.3} parent=5 // pred_check
      _
    $region70: #{_lambda_.3} parent=5 // pred_check_branch
      %470 = sbr.rel (%p467) target = $region72
    $region71: #{_lambda_.3} parent=5 // pred_region
      %s471 = ssub.s32 %s19, 1
      %p472 = scmp.lt.s32.totalorder %s28, 3
      %s473 = scalar_select %p472, %s28, 3
      %p474 = scmp.lt.s32.totalorder %s29, 0
      %s475 = scalar_select %p474, %s29, 0
      %s476 = sadd.s32 %s475, %s473
      %s477 = smul.addr %s476, 8
      %s478 = scalar_lea.vmem %s0, %s477
      %p479 = pneg %p59
      %p480 = pneg %p56
      %s481 = sadd.s32 %s28, 2
      %p482 = scmp.lt.s32.totalorder %s481, 0
      %s483 = ssub.s32 0, %s481
      %s484 = scalar_select %p482, %s483, %s481
      %s485 = sand.u32 %s484, 3
      %s486 = ssub.s32 0, %s485
      %s487 = scalar_select %p482, %s486, %s485
      %p488 = scmp.ne.s32.totalorder %s487, 0
      %p489 = scmp.lt.s32.totalorder %s487, 0
      %p490 = pnand %p489, %p488
      %p491 = pneg %p490
      %s492 = sadd.s32 %s487, 4
      %s493 = scalar_select %p491, %s492, %s487
      %p494 = scmp.lt.s32.totalorder %s493, 3
      %s495 = scalar_select %p494, %s493, 3
      %s496 = smul.addr %s495, 8
      %s497 = scalar_lea.vmem %s1, %s496
      %p498 = pneg %p111
      %p499 = pneg %p108
      %p500 = pneg %p132
      %p501 = pneg %p129
      %p502 = pneg %p153
      %p503 = pneg %p150
      %p504 = pneg %p174
      %p505 = pneg %p171
      %p506 = pneg %p195
      %p507 = pneg %p192
      %p508 = pneg %p216
      %p509 = pneg %p213
      %p510 = pneg %p237
      %p511 = pneg %p234
      %p512 = pneg %p258
      %p513 = pneg %p255
      %p514 = pneg %p279
      %p515 = pneg %p276
      %p516 = pneg %p300
      %p517 = pneg %p297
      %p518 = pneg %p321
      %p519 = pneg %p318
      %p520 = pneg %p342
      %p521 = pneg %p339
      %p522 = pneg %p370
      %p523 = pneg %p367
      %p524 = scmp.lt.s32.totalorder %s28, 3
      %s525 = scalar_select %p524, %s28, 3
      %p526 = scmp.lt.s32.totalorder %s29, 0
      %s527 = scalar_select %p526, %s29, 0
      %s528 = sadd.s32 %s527, %s525
      %s529 = smul.addr %s528, 8
      %s530 = scalar_lea.vmem %s13, %s529
      %p531 = scmp.lt.s32.totalorder %s28, 3
      %s532 = scalar_select %p531, %s28, 3
      %p533 = scmp.lt.s32.totalorder %s29, 0
      %s534 = scalar_select %p533, %s29, 0
      %s535 = sadd.s32 %s534, %s532
      %s536 = smul.addr %s535, 8
      %s537 = scalar_lea.vmem %s0, %s536
      %s538 = sadd.s32 %s28, 2
      %p539 = scmp.lt.s32.totalorder %s538, 0
      %s540 = ssub.s32 0, %s538
      %s541 = scalar_select %p539, %s540, %s538
      %s542 = sand.u32 %s541, 3
      %s543 = ssub.s32 0, %s542
      %s544 = scalar_select %p539, %s543, %s542
      %p545 = scmp.ne.s32.totalorder %s544, 0
      %p546 = scmp.lt.s32.totalorder %s544, 0
      %p547 = pnand %p546, %p545
      %p548 = pneg %p547
      %s549 = sadd.s32 %s544, 4
      %s550 = scalar_select %p548, %s549, %s544
      %p551 = scmp.lt.s32.totalorder %s550, 3
      %s552 = scalar_select %p551, %s550, 3
      %s553 = smul.addr %s552, 8
      %s554 = scalar_lea.vmem %s1, %s553
      %s555 = sadd.s32 %s28, 2
      %p556 = scmp.lt.s32.totalorder %s555, 0
      %s557 = ssub.s32 0, %s555
      %s558 = scalar_select %p556, %s557, %s555
      %s559 = sand.u32 %s558, 3
      %s560 = ssub.s32 0, %s559
      %s561 = scalar_select %p556, %s560, %s559
      %p562 = scmp.ne.s32.totalorder %s561, 0
      %p563 = scmp.lt.s32.totalorder %s561, 0
      %p564 = pnand %p563, %p562
      %p565 = pneg %p564
      %s566 = sadd.s32 %s561, 4
      %s567 = scalar_select %p565, %s566, %s561
      %p568 = scmp.lt.s32.totalorder %s28, 3
      %s569 = scalar_select %p568, %s28, 3
      %p570 = scmp.lt.s32.totalorder %s29, 0
      %s571 = scalar_select %p570, %s29, 0
      %s572 = sadd.s32 %s571, %s569
      %s573 = smul.addr %s572, 8
      %s574 = scalar_lea.vmem %s13, %s573
      %v576 = vld [vmem:[%s537] sm:$0xff]
      %v577 = vld [vmem:[%s554] sm:$0xff]
      %v578 = vpack.c.bf16 %v576, %v576
      %v579 = vpack.c.bf16 %v577, %v577
      %v580 = vld [vmem:[%s2] sm:$0xf]
      %v581 = vld [vmem:[%s2 + $0x4] sm:$0xf]
      %v582 = vld [vmem:[%s2 + $0x8] sm:$0xf]
      %v583 = vld [vmem:[%s2 + $0xc] sm:$0xf]
      %v584 = vld [vmem:[%s3] sm:$0x1]
      %v586 = vlaneseq
      %v587 = vshrl.u32 %v586, 7
      %v588 = vsub.s32 0, %v587
      %v589 = vrot.slane %v584, %v588
      %v595 = vunpack.c.l.b16 %v580
      %v596 = vunpack.c.l.b16 %v581
      %v597 = vunpack.c.l.b16 %v582
      %v598 = vunpack.c.l.b16 %v583
      %v599 = vpack.c.b16 %v596, %v595
      %v600 = vpack.c.b16 %v598, %v597
      %vm603 = vcmask 261120
      %v605 = vsel %vm603, %v578, 0
      %607 = vmatprep.subr.bf16.mxu0 0
      %608 = vmatpush1.bf16.msra.mxu0 0
      %609 = vmatprep.subr.bf16.mxu0 0
      %610 = vmatpush1.bf16.msra.mxu0 0
      %611 = vmatprep.subr.bf16.mxu0 0
      %612 = vmatpush1.bf16.msra.mxu0 0
      %613 = vmatprep.subr.bf16.mxu0 0
      %614 = vmatpush1.bf16.msra.mxu0 0
      %615 = vmatprep.subr.bf16.mxu0 0
      %616 = vmatpush1.bf16.msra.mxu0 0
      %617 = vmatprep.subr.bf16.mxu0 0
      %618 = vmatpush1.bf16.msra.mxu0 0
      %619 = vmatprep.subr.bf16.mxu0 0
      %620 = vmatpush1.bf16.msra.mxu0 %v600
      %621 = vmatprep.subr.bf16.mxu0 0
      %622 = vmatpush1.bf16.msra.mxu0 %v599
      %623 = vmatprep.subr.bf16.mxu0 0
      %624 = vmatpush2.bf16.msra.mxu0 0
      %625 = vmatprep.subr.bf16.mxu0 0
      %626 = vmatpush2.bf16.msra.mxu0 0
      %627 = vmatprep.subr.bf16.mxu0 0
      %628 = vmatpush2.bf16.msra.mxu0 0
      %629 = vmatprep.subr.bf16.mxu0 0
      %630 = vmatpush2.bf16.msra.mxu0 0
      %631 = vmatprep.subr.bf16.mxu0 0
      %632 = vmatpush2.bf16.msra.mxu0 0
      %633 = vmatprep.subr.bf16.mxu0 0
      %634 = vmatpush2.bf16.msra.mxu0 0
      %635 = vmatprep.subr.bf16.mxu0 0
      %636 = vmatpush2.bf16.msra.mxu0 0
      %637 = vmatprep.subr.bf16.mxu0 0
      %638 = vmatpush2.bf16.msra.mxu0 0
      %639 = vmatprep.mubr.bf16.mxu0 0
      %640 = vmatmul.mubr.bf16.gmra.mxu0 %v605
      %v641 = vpop.f32.mrf.mxu0
      %v642 = vadd.f32 %v589, %v641
      %v643 = vpop.f32.mrf.mxu0
      %v644 = vpop.f32.mrf.mxu0
      %v645 = vpop.f32.mrf.mxu0
      %646 = vdwg.mxu0
      %v647 = vld [vmem:[%s4] sm:$0xf]
      %v648 = vld [vmem:[%s4 + $0x4] sm:$0xf]
      %v649 = vld [vmem:[%s4 + $0x8] sm:$0xf]
      %v650 = vld [vmem:[%s4 + $0xc] sm:$0xf]
      %v651 = vld [vmem:[%s5] sm:$0x1]
      %v653 = vlaneseq
      %v654 = vshrl.u32 %v653, 7
      %v655 = vsub.s32 0, %v654
      %v656 = vrot.slane %v651, %v655
      %v662 = vunpack.c.l.b16 %v647
      %v663 = vunpack.c.l.b16 %v648
      %v664 = vunpack.c.l.b16 %v649
      %v665 = vunpack.c.l.b16 %v650
      %v666 = vpack.c.b16 %v663, %v662
      %v667 = vpack.c.b16 %v665, %v664
      %v671 = vsel %vm603, %v579, 0
      %673 = vmatprep.subr.bf16.mxu0 0
      %674 = vmatpush1.bf16.msra.mxu0 0
      %675 = vmatprep.subr.bf16.mxu0 0
      %676 = vmatpush1.bf16.msra.mxu0 0
      %677 = vmatprep.subr.bf16.mxu0 0
      %678 = vmatpush1.bf16.msra.mxu0 0
      %679 = vmatprep.subr.bf16.mxu0 0
      %680 = vmatpush1.bf16.msra.mxu0 0
      %681 = vmatprep.subr.bf16.mxu0 0
      %682 = vmatpush1.bf16.msra.mxu0 0
      %683 = vmatprep.subr.bf16.mxu0 0
      %684 = vmatpush1.bf16.msra.mxu0 0
      %685 = vmatprep.subr.bf16.mxu0 0
      %686 = vmatpush1.bf16.msra.mxu0 %v667
      %687 = vmatprep.subr.bf16.mxu0 0
      %688 = vmatpush1.bf16.msra.mxu0 %v666
      %689 = vmatprep.subr.bf16.mxu0 0
      %690 = vmatpush2.bf16.msra.mxu0 0
      %691 = vmatprep.subr.bf16.mxu0 0
      %692 = vmatpush2.bf16.msra.mxu0 0
      %693 = vmatprep.subr.bf16.mxu0 0
      %694 = vmatpush2.bf16.msra.mxu0 0
      %695 = vmatprep.subr.bf16.mxu0 0
      %696 = vmatpush2.bf16.msra.mxu0 0
      %697 = vmatprep.subr.bf16.mxu0 0
      %698 = vmatpush2.bf16.msra.mxu0 0
      %699 = vmatprep.subr.bf16.mxu0 0
      %700 = vmatpush2.bf16.msra.mxu0 0
      %701 = vmatprep.subr.bf16.mxu0 0
      %702 = vmatpush2.bf16.msra.mxu0 0
      %703 = vmatprep.subr.bf16.mxu0 0
      %704 = vmatpush2.bf16.msra.mxu0 0
      %705 = vmatprep.mubr.bf16.mxu0 0
      %706 = vmatmul.mubr.bf16.gmra.mxu0 %v671
      %v707 = vpop.f32.mrf.mxu0
      %v708 = vadd.f32 %v656, %v707
      %v709 = vpop.f32.mrf.mxu0
      %v710 = vpop.f32.mrf.mxu0
      %v711 = vpop.f32.mrf.mxu0
      %712 = vdwg.mxu0
      %v713 = vpack.c.bf16 %v642, %v642
      %v714 = vpack.c.bf16 %v708, %v708
      %vm715 = vcmask 64512
      %v717 = vsel %vm715, %v713, 0
      %v720 = vsel %vm715, %v714, 0
      %722 = vmatprep.subr.bf16.mxu0 0
      %723 = vmatpush1.bf16.xpose.msra.mxu0 0
      %724 = vmatprep.subr.bf16.mxu0 0
      %725 = vmatpush1.bf16.xpose.msra.mxu0 0
      %726 = vmatprep.subr.bf16.mxu0 0
      %727 = vmatpush1.bf16.xpose.msra.mxu0 0
      %728 = vmatprep.subr.bf16.mxu0 0
      %729 = vmatpush1.bf16.xpose.msra.mxu0 0
      %730 = vmatprep.subr.bf16.mxu0 0
      %731 = vmatpush1.bf16.xpose.msra.mxu0 0
      %732 = vmatprep.subr.bf16.mxu0 0
      %733 = vmatpush1.bf16.xpose.msra.mxu0 0
      %734 = vmatprep.subr.bf16.mxu0 0
      %735 = vmatpush1.bf16.xpose.msra.mxu0 0
      %736 = vmatprep.subr.bf16.mxu0 0
      %737 = vmatpush1.bf16.xpose.msra.mxu0 %v720
      %738 = vmatprep.subr.bf16.mxu0 0
      %739 = vmatpush2.bf16.xpose.msra.mxu0 0
      %740 = vmatprep.subr.bf16.mxu0 0
      %741 = vmatpush2.bf16.xpose.msra.mxu0 0
      %742 = vmatprep.subr.bf16.mxu0 0
      %743 = vmatpush2.bf16.xpose.msra.mxu0 0
      %744 = vmatprep.subr.bf16.mxu0 0
      %745 = vmatpush2.bf16.xpose.msra.mxu0 0
      %746 = vmatprep.subr.bf16.mxu0 0
      %747 = vmatpush2.bf16.xpose.msra.mxu0 0
      %748 = vmatprep.subr.bf16.mxu0 0
      %749 = vmatpush2.bf16.xpose.msra.mxu0 0
      %750 = vmatprep.subr.bf16.mxu0 0
      %751 = vmatpush2.bf16.xpose.msra.mxu0 0
      %752 = vmatprep.subr.bf16.mxu0 0
      %753 = vmatpush2.bf16.xpose.msra.mxu0 0
      %754 = vmatprep.mubr.bf16.mxu0 0
      %755 = vmatmul.mubr.bf16.gmra.mxu0 %v717
      %v756 = vpop.f32.mrf.mxu0
      %v757 = vadd.f32 0.0, %v756
      %v758 = vpop.f32.mrf.mxu0
      %v759 = vpop.f32.mrf.mxu0
      %v760 = vpop.f32.mrf.mxu0
      %761 = vdwg.mxu0
      %v762 = vsel %vm715, %v757, -inf
      %763 = vmax.xlane.f32.xlu0 %v762
      %v764 = vpop.xlane.xlu0 %763
      %v765 = vsub.f32 %v757, %v764
      %v766 = vmul.f32 %v765, 1.442695
      %v767 = vpow.pop %v766
      %v768 = vpack.c.bf16 %v767, %v767
      %770 = vrot.lane.b32.xlu0 %v714, 96
      %v771 = vpop.permute.xlu0 %770
      %v773 = vsel %vm715, %v768, 0
      %vm775 = vcmask 1043456
      %v777 = vsel %vm775, %v771, 0
      %779 = vmatprep.subr.bf16.mxu0 0
      %780 = vmatpush1.bf16.msra.mxu0 0
      %781 = vmatprep.subr.bf16.mxu0 0
      %782 = vmatpush1.bf16.msra.mxu0 0
      %783 = vmatprep.subr.bf16.mxu0 0
      %784 = vmatpush1.bf16.msra.mxu0 0
      %785 = vmatprep.subr.bf16.mxu0 0
      %786 = vmatpush1.bf16.msra.mxu0 0
      %787 = vmatprep.subr.bf16.mxu0 0
      %788 = vmatpush1.bf16.msra.mxu0 0
      %789 = vmatprep.subr.bf16.mxu0 0
      %790 = vmatpush1.bf16.msra.mxu0 0
      %791 = vmatprep.subr.bf16.mxu0 0
      %792 = vmatpush1.bf16.msra.mxu0 0
      %793 = vmatprep.subr.bf16.mxu0 0
      %794 = vmatpush1.bf16.msra.mxu0 %v777
      %795 = vmatprep.subr.bf16.mxu0 0
      %796 = vmatpush2.bf16.msra.mxu0 0
      %797 = vmatprep.subr.bf16.mxu0 0
      %798 = vmatpush2.bf16.msra.mxu0 0
      %799 = vmatprep.subr.bf16.mxu0 0
      %800 = vmatpush2.bf16.msra.mxu0 0
      %801 = vmatprep.subr.bf16.mxu0 0
      %802 = vmatpush2.bf16.msra.mxu0 0
      %803 = vmatprep.subr.bf16.mxu0 0
      %804 = vmatpush2.bf16.msra.mxu0 0
      %805 = vmatprep.subr.bf16.mxu0 0
      %806 = vmatpush2.bf16.msra.mxu0 0
      %807 = vmatprep.subr.bf16.mxu0 0
      %808 = vmatpush2.bf16.msra.mxu0 0
      %809 = vmatprep.subr.bf16.mxu0 0
      %810 = vmatpush2.bf16.msra.mxu0 0
      %811 = vmatprep.mubr.bf16.mxu0 0
      %812 = vmatmul.mubr.bf16.gmra.mxu0 %v773
      %v813 = vpop.f32.mrf.mxu0
      %v814 = vadd.f32 0.0, %v813
      %v815 = vpop.f32.mrf.mxu0
      %v816 = vpop.f32.mrf.mxu0
      %v817 = vpop.f32.mrf.mxu0
      %818 = vdwg.mxu0
      %v819 = vsel %vm715, %v767, 0.0
      %820 = vadd.xlane.f32.xlu0 %v819
      %v821 = vpop.xlane.xlu0 %820
      %v822 = vrcp.pop %v821
      %v823 = vmul.f32 %v814, %v822
      %825 = vrot.lane.b32.xlu0 %v713, 120
      %v826 = vpop.permute.xlu0 %825
      %827 = vrot.lane.b32.xlu0 %v714, 120
      %v828 = vpop.permute.xlu0 %827
      %v830 = vsel %vm715, %v826, 0
      %v833 = vsel %vm715, %v828, 0
      %835 = vmatprep.subr.bf16.mxu0 0
      %836 = vmatpush1.bf16.xpose.msra.mxu0 0
      %837 = vmatprep.subr.bf16.mxu0 0
      %838 = vmatpush1.bf16.xpose.msra.mxu0 0
      %839 = vmatprep.subr.bf16.mxu0 0
      %840 = vmatpush1.bf16.xpose.msra.mxu0 0
      %841 = vmatprep.subr.bf16.mxu0 0
      %842 = vmatpush1.bf16.xpose.msra.mxu0 0
      %843 = vmatprep.subr.bf16.mxu0 0
      %844 = vmatpush1.bf16.xpose.msra.mxu0 0
      %845 = vmatprep.subr.bf16.mxu0 0
      %846 = vmatpush1.bf16.xpose.msra.mxu0 0
      %847 = vmatprep.subr.bf16.mxu0 0
      %848 = vmatpush1.bf16.xpose.msra.mxu0 0
      %849 = vmatprep.subr.bf16.mxu0 0
      %850 = vmatpush1.bf16.xpose.msra.mxu0 %v833
      %851 = vmatprep.subr.bf16.mxu0 0
      %852 = vmatpush2.bf16.xpose.msra.mxu0 0
      %853 = vmatprep.subr.bf16.mxu0 0
      %854 = vmatpush2.bf16.xpose.msra.mxu0 0
      %855 = vmatprep.subr.bf16.mxu0 0
      %856 = vmatpush2.bf16.xpose.msra.mxu0 0
      %857 = vmatprep.subr.bf16.mxu0 0
      %858 = vmatpush2.bf16.xpose.msra.mxu0 0
      %859 = vmatprep.subr.bf16.mxu0 0
      %860 = vmatpush2.bf16.xpose.msra.mxu0 0
      %861 = vmatprep.subr.bf16.mxu0 0
      %862 = vmatpush2.bf16.xpose.msra.mxu0 0
      %863 = vmatprep.subr.bf16.mxu0 0
      %864 = vmatpush2.bf16.xpose.msra.mxu0 0
      %865 = vmatprep.subr.bf16.mxu0 0
      %866 = vmatpush2.bf16.xpose.msra.mxu0 0
      %867 = vmatprep.mubr.bf16.mxu0 0
      %868 = vmatmul.mubr.bf16.gmra.mxu0 %v830
      %v869 = vpop.f32.mrf.mxu0
      %v870 = vadd.f32 0.0, %v869
      %v871 = vpop.f32.mrf.mxu0
      %v872 = vpop.f32.mrf.mxu0
      %v873 = vpop.f32.mrf.mxu0
      %874 = vdwg.mxu0
      %v875 = vsel %vm715, %v870, -inf
      %876 = vmax.xlane.f32.xlu0 %v875
      %v877 = vpop.xlane.xlu0 %876
      %v878 = vsub.f32 %v870, %v877
      %v879 = vmul.f32 %v878, 1.442695
      %v880 = vpow.pop %v879
      %v881 = vpack.c.bf16 %v880, %v880
      %882 = vrot.lane.b32.xlu0 %v714, 88
      %v883 = vpop.permute.xlu0 %882
      %v885 = vsel %vm715, %v881, 0
      %v888 = vsel %vm775, %v883, 0
      %890 = vmatprep.subr.bf16.mxu0 0
      %891 = vmatpush1.bf16.msra.mxu0 0
      %892 = vmatprep.subr.bf16.mxu0 0
      %893 = vmatpush1.bf16.msra.mxu0 0
      %894 = vmatprep.subr.bf16.mxu0 0
      %895 = vmatpush1.bf16.msra.mxu0 0
      %896 = vmatprep.subr.bf16.mxu0 0
      %897 = vmatpush1.bf16.msra.mxu0 0
      %898 = vmatprep.subr.bf16.mxu0 0
      %899 = vmatpush1.bf16.msra.mxu0 0
      %900 = vmatprep.subr.bf16.mxu0 0
      %901 = vmatpush1.bf16.msra.mxu0 0
      %902 = vmatprep.subr.bf16.mxu0 0
      %903 = vmatpush1.bf16.msra.mxu0 0
      %904 = vmatprep.subr.bf16.mxu0 0
      %905 = vmatpush1.bf16.msra.mxu0 %v888
      %906 = vmatprep.subr.bf16.mxu0 0
      %907 = vmatpush2.bf16.msra.mxu0 0
      %908 = vmatprep.subr.bf16.mxu0 0
      %909 = vmatpush2.bf16.msra.mxu0 0
      %910 = vmatprep.subr.bf16.mxu0 0
      %911 = vmatpush2.bf16.msra.mxu0 0
      %912 = vmatprep.subr.bf16.mxu0 0
      %913 = vmatpush2.bf16.msra.mxu0 0
      %914 = vmatprep.subr.bf16.mxu0 0
      %915 = vmatpush2.bf16.msra.mxu0 0
      %916 = vmatprep.subr.bf16.mxu0 0
      %917 = vmatpush2.bf16.msra.mxu0 0
      %918 = vmatprep.subr.bf16.mxu0 0
      %919 = vmatpush2.bf16.msra.mxu0 0
      %920 = vmatprep.subr.bf16.mxu0 0
      %921 = vmatpush2.bf16.msra.mxu0 0
      %922 = vmatprep.mubr.bf16.mxu0 0
      %923 = vmatmul.mubr.bf16.gmra.mxu0 %v885
      %v924 = vpop.f32.mrf.mxu0
      %v925 = vadd.f32 0.0, %v924
      %v926 = vpop.f32.mrf.mxu0
      %v927 = vpop.f32.mrf.mxu0
      %v928 = vpop.f32.mrf.mxu0
      %929 = vdwg.mxu0
      %v930 = vsel %vm715, %v880, 0.0
      %931 = vadd.xlane.f32.xlu0 %v930
      %v932 = vpop.xlane.xlu0 %931
      %v933 = vrcp.pop %v932
      %v934 = vmul.f32 %v925, %v933
      %935 = vrot.lane.b32.xlu0 %v713, 112
      %v936 = vpop.permute.xlu0 %935
      %937 = vrot.lane.b32.xlu0 %v714, 112
      %v938 = vpop.permute.xlu0 %937
      %v940 = vsel %vm715, %v936, 0
      %v943 = vsel %vm715, %v938, 0
      %945 = vmatprep.subr.bf16.mxu0 0
      %946 = vmatpush1.bf16.xpose.msra.mxu0 0
      %947 = vmatprep.subr.bf16.mxu0 0
      %948 = vmatpush1.bf16.xpose.msra.mxu0 0
      %949 = vmatprep.subr.bf16.mxu0 0
      %950 = vmatpush1.bf16.xpose.msra.mxu0 0
      %951 = vmatprep.subr.bf16.mxu0 0
      %952 = vmatpush1.bf16.xpose.msra.mxu0 0
      %953 = vmatprep.subr.bf16.mxu0 0
      %954 = vmatpush1.bf16.xpose.msra.mxu0 0
      %955 = vmatprep.subr.bf16.mxu0 0
      %956 = vmatpush1.bf16.xpose.msra.mxu0 0
      %957 = vmatprep.subr.bf16.mxu0 0
      %958 = vmatpush1.bf16.xpose.msra.mxu0 0
      %959 = vmatprep.subr.bf16.mxu0 0
      %960 = vmatpush1.bf16.xpose.msra.mxu0 %v943
      %961 = vmatprep.subr.bf16.mxu0 0
      %962 = vmatpush2.bf16.xpose.msra.mxu0 0
      %963 = vmatprep.subr.bf16.mxu0 0
      %964 = vmatpush2.bf16.xpose.msra.mxu0 0
      %965 = vmatprep.subr.bf16.mxu0 0
      %966 = vmatpush2.bf16.xpose.msra.mxu0 0
      %967 = vmatprep.subr.bf16.mxu0 0
      %968 = vmatpush2.bf16.xpose.msra.mxu0 0
      %969 = vmatprep.subr.bf16.mxu0 0
      %970 = vmatpush2.bf16.xpose.msra.mxu0 0
      %971 = vmatprep.subr.bf16.mxu0 0
      %972 = vmatpush2.bf16.xpose.msra.mxu0 0
      %973 = vmatprep.subr.bf16.mxu0 0
      %974 = vmatpush2.bf16.xpose.msra.mxu0 0
      %975 = vmatprep.subr.bf16.mxu0 0
      %976 = vmatpush2.bf16.xpose.msra.mxu0 0
      %977 = vmatprep.mubr.bf16.mxu0 0
      %978 = vmatmul.mubr.bf16.gmra.mxu0 %v940
      %v979 = vpop.f32.mrf.mxu0
      %v980 = vadd.f32 0.0, %v979
      %v981 = vpop.f32.mrf.mxu0
      %v982 = vpop.f32.mrf.mxu0
      %v983 = vpop.f32.mrf.mxu0
      %984 = vdwg.mxu0
      %v985 = vsel %vm715, %v980, -inf
      %986 = vmax.xlane.f32.xlu0 %v985
      %v987 = vpop.xlane.xlu0 %986
      %v988 = vsub.f32 %v980, %v987
      %v989 = vmul.f32 %v988, 1.442695
      %v990 = vpow.pop %v989
      %v991 = vpack.c.bf16 %v990, %v990
      %992 = vrot.lane.b32.xlu0 %v714, 80
      %v993 = vpop.permute.xlu0 %992
      %v995 = vsel %vm715, %v991, 0
      %v998 = vsel %vm775, %v993, 0
      %1000 = vmatprep.subr.bf16.mxu0 0
      %1001 = vmatpush1.bf16.msra.mxu0 0
      %1002 = vmatprep.subr.bf16.mxu0 0
      %1003 = vmatpush1.bf16.msra.mxu0 0
      %1004 = vmatprep.subr.bf16.mxu0 0
      %1005 = vmatpush1.bf16.msra.mxu0 0
      %1006 = vmatprep.subr.bf16.mxu0 0
      %1007 = vmatpush1.bf16.msra.mxu0 0
      %1008 = vmatprep.subr.bf16.mxu0 0
      %1009 = vmatpush1.bf16.msra.mxu0 0
      %1010 = vmatprep.subr.bf16.mxu0 0
      %1011 = vmatpush1.bf16.msra.mxu0 0
      %1012 = vmatprep.subr.bf16.mxu0 0
      %1013 = vmatpush1.bf16.msra.mxu0 0
      %1014 = vmatprep.subr.bf16.mxu0 0
      %1015 = vmatpush1.bf16.msra.mxu0 %v998
      %1016 = vmatprep.subr.bf16.mxu0 0
      %1017 = vmatpush2.bf16.msra.mxu0 0
      %1018 = vmatprep.subr.bf16.mxu0 0
      %1019 = vmatpush2.bf16.msra.mxu0 0
      %1020 = vmatprep.subr.bf16.mxu0 0
      %1021 = vmatpush2.bf16.msra.mxu0 0
      %1022 = vmatprep.subr.bf16.mxu0 0
      %1023 = vmatpush2.bf16.msra.mxu0 0
      %1024 = vmatprep.subr.bf16.mxu0 0
      %1025 = vmatpush2.bf16.msra.mxu0 0
      %1026 = vmatprep.subr.bf16.mxu0 0
      %1027 = vmatpush2.bf16.msra.mxu0 0
      %1028 = vmatprep.subr.bf16.mxu0 0
      %1029 = vmatpush2.bf16.msra.mxu0 0
      %1030 = vmatprep.subr.bf16.mxu0 0
      %1031 = vmatpush2.bf16.msra.mxu0 0
      %1032 = vmatprep.mubr.bf16.mxu0 0
      %1033 = vmatmul.mubr.bf16.gmra.mxu0 %v995
      %v1034 = vpop.f32.mrf.mxu0
      %v1035 = vadd.f32 0.0, %v1034
      %v1036 = vpop.f32.mrf.mxu0
      %v1037 = vpop.f32.mrf.mxu0
      %v1038 = vpop.f32.mrf.mxu0
      %1039 = vdwg.mxu0
      %v1040 = vsel %vm715, %v990, 0.0
      %1041 = vadd.xlane.f32.xlu0 %v1040
      %v1042 = vpop.xlane.xlu0 %1041
      %v1043 = vrcp.pop %v1042
      %v1044 = vmul.f32 %v1035, %v1043
      %1045 = vrot.lane.b32.xlu0 %v713, 104
      %v1046 = vpop.permute.xlu0 %1045
      %1047 = vrot.lane.b32.xlu0 %v714, 104
      %v1048 = vpop.permute.xlu0 %1047
      %v1050 = vsel %vm715, %v1046, 0
      %v1053 = vsel %vm715, %v1048, 0
      %1055 = vmatprep.subr.bf16.mxu0 0
      %1056 = vmatpush1.bf16.xpose.msra.mxu0 0
      %1057 = vmatprep.subr.bf16.mxu0 0
      %1058 = vmatpush1.bf16.xpose.msra.mxu0 0
      %1059 = vmatprep.subr.bf16.mxu0 0
      %1060 = vmatpush1.bf16.xpose.msra.mxu0 0
      %1061 = vmatprep.subr.bf16.mxu0 0
      %1062 = vmatpush1.bf16.xpose.msra.mxu0 0
      %1063 = vmatprep.subr.bf16.mxu0 0
      %1064 = vmatpush1.bf16.xpose.msra.mxu0 0
      %1065 = vmatprep.subr.bf16.mxu0 0
      %1066 = vmatpush1.bf16.xpose.msra.mxu0 0
      %1067 = vmatprep.subr.bf16.mxu0 0
      %1068 = vmatpush1.bf16.xpose.msra.mxu0 0
      %1069 = vmatprep.subr.bf16.mxu0 0
      %1070 = vmatpush1.bf16.xpose.msra.mxu0 %v1053
      %1071 = vmatprep.subr.bf16.mxu0 0
      %1072 = vmatpush2.bf16.xpose.msra.mxu0 0
      %1073 = vmatprep.subr.bf16.mxu0 0
      %1074 = vmatpush2.bf16.xpose.msra.mxu0 0
      %1075 = vmatprep.subr.bf16.mxu0 0
      %1076 = vmatpush2.bf16.xpose.msra.mxu0 0
      %1077 = vmatprep.subr.bf16.mxu0 0
      %1078 = vmatpush2.bf16.xpose.msra.mxu0 0
      %1079 = vmatprep.subr.bf16.mxu0 0
      %1080 = vmatpush2.bf16.xpose.msra.mxu0 0
      %1081 = vmatprep.subr.bf16.mxu0 0
      %1082 = vmatpush2.bf16.xpose.msra.mxu0 0
      %1083 = vmatprep.subr.bf16.mxu0 0
      %1084 = vmatpush2.bf16.xpose.msra.mxu0 0
      %1085 = vmatprep.subr.bf16.mxu0 0
      %1086 = vmatpush2.bf16.xpose.msra.mxu0 0
      %1087 = vmatprep.mubr.bf16.mxu0 0
      %1088 = vmatmul.mubr.bf16.gmra.mxu0 %v1050
      %v1089 = vpop.f32.mrf.mxu0
      %v1090 = vadd.f32 0.0, %v1089
      %v1091 = vpop.f32.mrf.mxu0
      %v1092 = vpop.f32.mrf.mxu0
      %v1093 = vpop.f32.mrf.mxu0
      %1094 = vdwg.mxu0
      %v1095 = vsel %vm715, %v1090, -inf
      %1096 = vmax.xlane.f32.xlu0 %v1095
      %v1097 = vpop.xlane.xlu0 %1096
      %v1098 = vsub.f32 %v1090, %v1097
      %v1099 = vmul.f32 %v1098, 1.442695
      %v1100 = vpow.pop %v1099
      %v1101 = vpack.c.bf16 %v1100, %v1100
      %1102 = vrot.lane.b32.xlu0 %v714, 72
      %v1103 = vpop.permute.xlu0 %1102
      %v1105 = vsel %vm715, %v1101, 0
      %v1108 = vsel %vm775, %v1103, 0
      %1110 = vmatprep.subr.bf16.mxu0 0
      %1111 = vmatpush1.bf16.msra.mxu0 0
      %1112 = vmatprep.subr.bf16.mxu0 0
      %1113 = vmatpush1.bf16.msra.mxu0 0
      %1114 = vmatprep.subr.bf16.mxu0 0
      %1115 = vmatpush1.bf16.msra.mxu0 0
      %1116 = vmatprep.subr.bf16.mxu0 0
      %1117 = vmatpush1.bf16.msra.mxu0 0
      %1118 = vmatprep.subr.bf16.mxu0 0
      %1119 = vmatpush1.bf16.msra.mxu0 0
      %1120 = vmatprep.subr.bf16.mxu0 0
      %1121 = vmatpush1.bf16.msra.mxu0 0
      %1122 = vmatprep.subr.bf16.mxu0 0
      %1123 = vmatpush1.bf16.msra.mxu0 0
      %1124 = vmatprep.subr.bf16.mxu0 0
      %1125 = vmatpush1.bf16.msra.mxu0 %v1108
      %1126 = vmatprep.subr.bf16.mxu0 0
      %1127 = vmatpush2.bf16.msra.mxu0 0
      %1128 = vmatprep.subr.bf16.mxu0 0
      %1129 = vmatpush2.bf16.msra.mxu0 0
      %1130 = vmatprep.subr.bf16.mxu0 0
      %1131 = vmatpush2.bf16.msra.mxu0 0
      %1132 = vmatprep.subr.bf16.mxu0 0
      %1133 = vmatpush2.bf16.msra.mxu0 0
      %1134 = vmatprep.subr.bf16.mxu0 0
      %1135 = vmatpush2.bf16.msra.mxu0 0
      %1136 = vmatprep.subr.bf16.mxu0 0
      %1137 = vmatpush2.bf16.msra.mxu0 0
      %1138 = vmatprep.subr.bf16.mxu0 0
      %1139 = vmatpush2.bf16.msra.mxu0 0
      %1140 = vmatprep.subr.bf16.mxu0 0
      %1141 = vmatpush2.bf16.msra.mxu0 0
      %1142 = vmatprep.mubr.bf16.mxu0 0
      %1143 = vmatmul.mubr.bf16.gmra.mxu0 %v1105
      %v1144 = vpop.f32.mrf.mxu0
      %v1145 = vadd.f32 0.0, %v1144
      %v1146 = vpop.f32.mrf.mxu0
      %v1147 = vpop.f32.mrf.mxu0
      %v1148 = vpop.f32.mrf.mxu0
      %1149 = vdwg.mxu0
      %v1150 = vsel %vm715, %v1100, 0.0
      %1151 = vadd.xlane.f32.xlu0 %v1150
      %v1152 = vpop.xlane.xlu0 %1151
      %v1153 = vrcp.pop %v1152
      %v1154 = vmul.f32 %v1145, %v1153
      %1156 = vrot.lane.b32.xlu0 %v934, 8
      %v1157 = vpop.permute.xlu0 %1156
      %1160 = vrot.lane.b32.xlu0 %v1044, 16
      %v1161 = vpop.permute.xlu0 %1160
      %1164 = vrot.lane.b32.xlu0 %v1154, 24
      %v1165 = vpop.permute.xlu0 %1164
      %v1167 = vsel %vm715, %v823, %v1157
      %vm1168 = vcmask 130048
      %v1169 = vsel %vm1168, %v1167, %v1161
      %vm1170 = vcmask 195584
      %v1171 = vsel %vm1170, %v1169, %v1165
      %v1172 = vpack.c.bf16 %v1171, %v1171
      %v1173 = vld [vmem:[%s6] sm:$0xf]
      %v1174 = vld [vmem:[%s6 + $0x4] sm:$0xf]
      %v1175 = vld [vmem:[%s6 + $0x8] sm:$0xf]
      %v1176 = vld [vmem:[%s6 + $0xc] sm:$0xf]
      %v1177 = vld [vmem:[%s7] sm:$0x1]
      %v1179 = vlaneseq
      %v1180 = vshrl.u32 %v1179, 7
      %v1181 = vsub.s32 0, %v1180
      %v1182 = vrot.slane %v1177, %v1181
      %v1188 = vunpack.c.l.b16 %v1173
      %v1189 = vunpack.c.l.b16 %v1174
      %v1190 = vunpack.c.l.b16 %v1175
      %v1191 = vunpack.c.l.b16 %v1176
      %v1192 = vpack.c.b16 %v1189, %v1188
      %v1193 = vpack.c.b16 %v1191, %v1190
      %v1197 = vsel %vm603, %v1172, 0
      %1199 = vmatprep.subr.bf16.mxu0 0
      %1200 = vmatpush1.bf16.msra.mxu0 0
      %1201 = vmatprep.subr.bf16.mxu0 0
      %1202 = vmatpush1.bf16.msra.mxu0 0
      %1203 = vmatprep.subr.bf16.mxu0 0
      %1204 = vmatpush1.bf16.msra.mxu0 0
      %1205 = vmatprep.subr.bf16.mxu0 0
      %1206 = vmatpush1.bf16.msra.mxu0 0
      %1207 = vmatprep.subr.bf16.mxu0 0
      %1208 = vmatpush1.bf16.msra.mxu0 0
      %1209 = vmatprep.subr.bf16.mxu0 0
      %1210 = vmatpush1.bf16.msra.mxu0 0
      %1211 = vmatprep.subr.bf16.mxu0 0
      %1212 = vmatpush1.bf16.msra.mxu0 %v1193
      %1213 = vmatprep.subr.bf16.mxu0 0
      %1214 = vmatpush1.bf16.msra.mxu0 %v1192
      %1215 = vmatprep.subr.bf16.mxu0 0
      %1216 = vmatpush2.bf16.msra.mxu0 0
      %1217 = vmatprep.subr.bf16.mxu0 0
      %1218 = vmatpush2.bf16.msra.mxu0 0
      %1219 = vmatprep.subr.bf16.mxu0 0
      %1220 = vmatpush2.bf16.msra.mxu0 0
      %1221 = vmatprep.subr.bf16.mxu0 0
      %1222 = vmatpush2.bf16.msra.mxu0 0
      %1223 = vmatprep.subr.bf16.mxu0 0
      %1224 = vmatpush2.bf16.msra.mxu0 0
      %1225 = vmatprep.subr.bf16.mxu0 0
      %1226 = vmatpush2.bf16.msra.mxu0 0
      %1227 = vmatprep.subr.bf16.mxu0 0
      %1228 = vmatpush2.bf16.msra.mxu0 0
      %1229 = vmatprep.subr.bf16.mxu0 0
      %1230 = vmatpush2.bf16.msra.mxu0 0
      %1231 = vmatprep.mubr.bf16.mxu0 0
      %1232 = vmatmul.mubr.bf16.gmra.mxu0 %v1197
      %v1233 = vpop.f32.mrf.mxu0
      %v1234 = vadd.f32 %v1182, %v1233
      %v1235 = vpop.f32.mrf.mxu0
      %v1236 = vpop.f32.mrf.mxu0
      %v1237 = vpop.f32.mrf.mxu0
      %1238 = vdwg.mxu0
      %v1239 = vld [vmem:[%s8] sm:$0xf]
      %v1240 = vld [vmem:[%s8 + $0x4] sm:$0xf]
      %v1241 = vld [vmem:[%s8 + $0x8] sm:$0xf]
      %v1242 = vld [vmem:[%s8 + $0xc] sm:$0xf]
      %v1243 = vpack.c.bf16 %v1234, %v1234
      %v1244 = vld [vmem:[%s9] sm:$0xf]
      %v1245 = vld [vmem:[%s9 + $0x4] sm:$0xf]
      %v1246 = vld [vmem:[%s9 + $0x8] sm:$0xf]
      %v1247 = vld [vmem:[%s9 + $0xc] sm:$0xf]
      %v1252 = vunpack.c.l.b16 %v1244
      %v1253 = vunpack.c.l.b16 %v1245
      %v1254 = vunpack.c.l.b16 %v1246
      %v1255 = vunpack.c.l.b16 %v1247
      %v1256 = vpack.c.b16 %v1253, %v1252
      %v1257 = vpack.c.b16 %v1255, %v1254
      %v1261 = vsel %vm603, %v1243, 0
      %1263 = vmatprep.subr.bf16.mxu0 0
      %1264 = vmatpush1.bf16.msra.mxu0 0
      %1265 = vmatprep.subr.bf16.mxu0 0
      %1266 = vmatpush1.bf16.msra.mxu0 0
      %1267 = vmatprep.subr.bf16.mxu0 0
      %1268 = vmatpush1.bf16.msra.mxu0 0
      %1269 = vmatprep.subr.bf16.mxu0 0
      %1270 = vmatpush1.bf16.msra.mxu0 0
      %1271 = vmatprep.subr.bf16.mxu0 0
      %1272 = vmatpush1.bf16.msra.mxu0 0
      %1273 = vmatprep.subr.bf16.mxu0 0
      %1274 = vmatpush1.bf16.msra.mxu0 0
      %1275 = vmatprep.subr.bf16.mxu0 0
      %1276 = vmatpush1.bf16.msra.mxu0 %v1257
      %1277 = vmatprep.subr.bf16.mxu0 0
      %1278 = vmatpush1.bf16.msra.mxu0 %v1256
      %1279 = vmatprep.subr.bf16.mxu0 0
      %1280 = vmatpush2.bf16.msra.mxu0 0
      %1281 = vmatprep.subr.bf16.mxu0 0
      %1282 = vmatpush2.bf16.msra.mxu0 0
      %1283 = vmatprep.subr.bf16.mxu0 0
      %1284 = vmatpush2.bf16.msra.mxu0 0
      %1285 = vmatprep.subr.bf16.mxu0 0
      %1286 = vmatpush2.bf16.msra.mxu0 0
      %1287 = vmatprep.subr.bf16.mxu0 0
      %1288 = vmatpush2.bf16.msra.mxu0 0
      %1289 = vmatprep.subr.bf16.mxu0 0
      %1290 = vmatpush2.bf16.msra.mxu0 0
      %1291 = vmatprep.subr.bf16.mxu0 0
      %1292 = vmatpush2.bf16.msra.mxu0 0
      %1293 = vmatprep.subr.bf16.mxu0 0
      %1294 = vmatpush2.bf16.msra.mxu0 0
      %1295 = vmatprep.mubr.bf16.mxu0 0
      %1296 = vmatmul.mubr.bf16.gmra.mxu0 %v1261
      %v1297 = vpop.f32.mrf.mxu0
      %v1298 = vadd.f32 0.0, %v1297
      %v1299 = vpop.f32.mrf.mxu0
      %v1300 = vpop.f32.mrf.mxu0
      %v1301 = vpop.f32.mrf.mxu0
      %1302 = vdwg.mxu0
      %v1307 = vunpack.c.l.b16 %v1239
      %v1308 = vunpack.c.l.b16 %v1240
      %v1309 = vunpack.c.l.b16 %v1241
      %v1310 = vunpack.c.l.b16 %v1242
      %v1311 = vpack.c.b16 %v1308, %v1307
      %v1312 = vpack.c.b16 %v1310, %v1309
      %1315 = vmatprep.subr.bf16.mxu0 0
      %1316 = vmatpush1.bf16.msra.mxu0 0
      %1317 = vmatprep.subr.bf16.mxu0 0
      %1318 = vmatpush1.bf16.msra.mxu0 0
      %1319 = vmatprep.subr.bf16.mxu0 0
      %1320 = vmatpush1.bf16.msra.mxu0 0
      %1321 = vmatprep.subr.bf16.mxu0 0
      %1322 = vmatpush1.bf16.msra.mxu0 0
      %1323 = vmatprep.subr.bf16.mxu0 0
      %1324 = vmatpush1.bf16.msra.mxu0 0
      %1325 = vmatprep.subr.bf16.mxu0 0
      %1326 = vmatpush1.bf16.msra.mxu0 0
      %1327 = vmatprep.subr.bf16.mxu0 0
      %1328 = vmatpush1.bf16.msra.mxu0 %v1312
      %1329 = vmatprep.subr.bf16.mxu0 0
      %1330 = vmatpush1.bf16.msra.mxu0 %v1311
      %1331 = vmatprep.subr.bf16.mxu0 0
      %1332 = vmatpush2.bf16.msra.mxu0 0
      %1333 = vmatprep.subr.bf16.mxu0 0
      %1334 = vmatpush2.bf16.msra.mxu0 0
      %1335 = vmatprep.subr.bf16.mxu0 0
      %1336 = vmatpush2.bf16.msra.mxu0 0
      %1337 = vmatprep.subr.bf16.mxu0 0
      %1338 = vmatpush2.bf16.msra.mxu0 0
      %1339 = vmatprep.subr.bf16.mxu0 0
      %1340 = vmatpush2.bf16.msra.mxu0 0
      %1341 = vmatprep.subr.bf16.mxu0 0
      %1342 = vmatpush2.bf16.msra.mxu0 0
      %1343 = vmatprep.subr.bf16.mxu0 0
      %1344 = vmatpush2.bf16.msra.mxu0 0
      %1345 = vmatprep.subr.bf16.mxu0 0
      %1346 = vmatpush2.bf16.msra.mxu0 0
      %1347 = vmatprep.mubr.bf16.mxu0 0
      %1348 = vmatmul.mubr.bf16.gmra.mxu0 %v605
      %v1349 = vpop.f32.mrf.mxu0
      %v1350 = vadd.f32 %v1298, %v1349
      %v1351 = vpop.f32.mrf.mxu0
      %v1352 = vpop.f32.mrf.mxu0
      %v1353 = vpop.f32.mrf.mxu0
      %1354 = vdwg.mxu0
      %v1355 = vld [vmem:[%s10] sm:$0x1]
      %v1357 = vlaneseq
      %v1358 = vshrl.u32 %v1357, 7
      %v1359 = vsub.s32 0, %v1358
      %v1360 = vrot.slane %v1355, %v1359
      %v1362 = vadd.f32 %v1350, %v1360
      %v1363 = vmax.f32 %v1362, 0.0
      %v1364 = vpack.c.bf16 %v1363, %v1363
      %v1365 = vld [vmem:[%s11] sm:$0xf]
      %v1366 = vld [vmem:[%s11 + $0x4] sm:$0xf]
      %v1367 = vld [vmem:[%s11 + $0x8] sm:$0xf]
      %v1368 = vld [vmem:[%s11 + $0xc] sm:$0xf]
      %v1369 = vld [vmem:[%s11 + $0x10] sm:$0xf]
      %v1370 = vld [vmem:[%s11 + $0x14] sm:$0xf]
      %v1371 = vld [vmem:[%s11 + $0x18] sm:$0xf]
      %v1372 = vld [vmem:[%s11 + $0x1c] sm:$0xf]
      %v1373 = vld [vmem:[%s12] sm:$0x1]
      %v1375 = vlaneseq
      %v1376 = vshrl.u32 %v1375, 7
      %v1377 = vsub.s32 0, %v1376
      %v1378 = vrot.slane %v1373, %v1377
      %v1388 = vunpack.c.l.b16 %v1365
      %v1389 = vunpack.c.l.b16 %v1366
      %v1390 = vunpack.c.l.b16 %v1367
      %v1391 = vunpack.c.l.b16 %v1368
      %v1392 = vunpack.c.l.b16 %v1369
      %v1393 = vunpack.c.l.b16 %v1370
      %v1394 = vunpack.c.l.b16 %v1371
      %v1395 = vunpack.c.l.b16 %v1372
      %v1396 = vpack.c.b16 %v1389, %v1388
      %v1397 = vpack.c.b16 %v1391, %v1390
      %v1398 = vpack.c.b16 %v1393, %v1392
      %v1399 = vpack.c.b16 %v1395, %v1394
      %vm1404 = vcmask 523264
      %v1406 = vsel %vm1404, %v1364, 0
      %1408 = vmatprep.subr.bf16.mxu0 0
      %1409 = vmatpush1.bf16.msra.mxu0 0
      %1410 = vmatprep.subr.bf16.mxu0 0
      %1411 = vmatpush1.bf16.msra.mxu0 0
      %1412 = vmatprep.subr.bf16.mxu0 0
      %1413 = vmatpush1.bf16.msra.mxu0 0
      %1414 = vmatprep.subr.bf16.mxu0 0
      %1415 = vmatpush1.bf16.msra.mxu0 0
      %1416 = vmatprep.subr.bf16.mxu0 0
      %1417 = vmatpush1.bf16.msra.mxu0 %v1399
      %1418 = vmatprep.subr.bf16.mxu0 0
      %1419 = vmatpush1.bf16.msra.mxu0 %v1398
      %1420 = vmatprep.subr.bf16.mxu0 0
      %1421 = vmatpush1.bf16.msra.mxu0 %v1397
      %1422 = vmatprep.subr.bf16.mxu0 0
      %1423 = vmatpush1.bf16.msra.mxu0 %v1396
      %1424 = vmatprep.subr.bf16.mxu0 0
      %1425 = vmatpush2.bf16.msra.mxu0 0
      %1426 = vmatprep.subr.bf16.mxu0 0
      %1427 = vmatpush2.bf16.msra.mxu0 0
      %1428 = vmatprep.subr.bf16.mxu0 0
      %1429 = vmatpush2.bf16.msra.mxu0 0
      %1430 = vmatprep.subr.bf16.mxu0 0
      %1431 = vmatpush2.bf16.msra.mxu0 0
      %1432 = vmatprep.subr.bf16.mxu0 0
      %1433 = vmatpush2.bf16.msra.mxu0 0
      %1434 = vmatprep.subr.bf16.mxu0 0
      %1435 = vmatpush2.bf16.msra.mxu0 0
      %1436 = vmatprep.subr.bf16.mxu0 0
      %1437 = vmatpush2.bf16.msra.mxu0 0
      %1438 = vmatprep.subr.bf16.mxu0 0
      %1439 = vmatpush2.bf16.msra.mxu0 0
      %1440 = vmatprep.mubr.bf16.mxu0 0
      %1441 = vmatmul.mubr.bf16.gmra.mxu0 %v1406
      %v1442 = vpop.f32.mrf.mxu0
      %v1443 = vadd.f32 %v1378, %v1442
      %v1444 = vpop.f32.mrf.mxu0
      %v1445 = vpop.f32.mrf.mxu0
      %v1446 = vpop.f32.mrf.mxu0
      %1447 = vdwg.mxu0
      %v1448 = vadd.f32 %v576, %v1443
      %1449 = vst.msk [vmem:[%s574] sm:$0xff] %vm603, %v1448
      %p1450 = scmp.lt.s32.totalorder %s28, 3
      %s1451 = scalar_select %p1450, %s28, 3
      %p1452 = scmp.lt.s32.totalorder %s29, 0
      %s1453 = scalar_select %p1452, %s29, 0
      %s1454 = sadd.s32 %s1453, %s1451
      %s1455 = smul.addr %s1454, 8
      %s1456 = scalar_lea.vmem %s13, %s1455
      // Predicated region
      $region73: #{_lambda_.3} parent=71 // pred_check
        %p1457 = pneg %p367
      $region74: #{_lambda_.3} parent=71 // pred_check_branch
        %1459 = sbr.rel (%p1457) target = $region76
      $region75: #{_lambda_.3} parent=71 // pred_region
        _
      $region76: #{_lambda_.3} parent=71 // pred_fallthru
        _
    $region72: #{_lambda_.3} parent=5 // pred_fallthru
      _
    %p1460 = scmp.le.s32.totalorder 2, %s19
    // Predicated region
    $region77: #{_lambda_.3} parent=5 // pred_check
      %p1461 = pneg %p1460
    $region78: #{_lambda_.3} parent=5 // pred_check_branch
      %1463 = sbr.rel (%p1461) target = $region80
    $region79: #{_lambda_.3} parent=5 // pred_region
      %s1464 = ssub.s32 %s19, 2
      // Predicated region
      $region81: #{_lambda_.3} parent=79 // pred_check
        %p1465 = pneg %p373
      $region82: #{_lambda_.3} parent=79 // pred_check_branch
        %1467 = sbr.rel (%p1465) target = $region84
      $region83: #{_lambda_.3} parent=79 // pred_region
        %p1468 = scmp.lt.s32.totalorder %s30, 3
        %s1469 = scalar_select %p1468, %s30, 3
        %p1470 = scmp.lt.s32.totalorder %s31, 0
        %s1471 = scalar_select %p1470, %s31, 0
        %s1472 = sadd.s32 %s1471, %s1469
        %s1473 = smul.addr %s1472, 8
        %s1474 = scalar_lea.vmem %s13, %s1473
      $region84: #{_lambda_.3} parent=79 // pred_fallthru
        _
    $region80: #{_lambda_.3} parent=5 // pred_fallthru
      _
  $region6: #{_lambda_.3} parent=0 // loop_footer
    %s23 = sadd.s32 1, %s19
  $region7: #{_lambda_.3} parent=0 // loop_footer_branch
    %18 = sbr.rel target = $region3
  $region8: #{_lambda_.3} parent=0 // loop_exit
    _

// kernel: _lambda_.2
$region0: #{_lambda_.2}
  #allocation0 [shape = 'u32[]', space=smem, size = 0x4, offset = 0x4, fixed_abs, tag = 'smem constant byte address 0x4 - core index']
  #allocation1 [shape = 'u32[144,128]{1,0:T(1,128)}', space=vmem, size = 0x12000, scoped, tag = 'internal scratch']
  %s0 = inlined_call_operand.vmem [shape: f32[4,8,32], index: 0, kind: input, shape index: {}]
  %s1 = inlined_call_operand.vmem [shape: bf16[32,32], index: 1, kind: input, shape index: {}]
  %s2 = inlined_call_operand.vmem [shape: f32[1,32], index: 2, kind: input, shape index: {}]
  %s3 = inlined_call_operand.vmem [shape: bf16[32,64], index: 3, kind: input, shape index: {}]
  %s4 = inlined_call_operand.vmem [shape: f32[1,64], index: 4, kind: input, shape index: {}]
  %s5 = inlined_call_operand.vmem [shape: bf16[32,32], index: 5, kind: input, shape index: {}]
  %s6 = inlined_call_operand.vmem [shape: f32[1,32], index: 6, kind: input, shape index: {}]
  %s7 = inlined_call_operand.vmem [shape: bf16[32,64], index: 7, kind: input, shape index: {}]
  %s8 = inlined_call_operand.vmem [shape: bf16[32,64], index: 8, kind: input, shape index: {}]
  %s9 = inlined_call_operand.vmem [shape: f32[1,64], index: 9, kind: input, shape index: {}]
  %s10 = inlined_call_operand.vmem [shape: bf16[64,32], index: 10, kind: input, shape index: {}]
  %s11 = inlined_call_operand.vmem [shape: f32[1,32], index: 11, kind: input, shape index: {}]
  %s12 = inlined_call_operand.vmem [shape: f32[4,8,32], index: 12, kind: output, shape index: {}]
  %s13 = sld [smem:[#allocation0]]
  $region81: #{_lambda_.2} parent=0
    _
  %s15 = ssub.s32 1, %s13
  %s16 = scalar_select 0, %s15, %s13
  loop: start=0, step=1, limit=6
  $region2: #{_lambda_.2} parent=0 // loop_pre_header
    _
  $region3: #{_lambda_.2} parent=0 // loop_header
    %s18 = sphi 0, %s22
    %p19 = scmp.ge.s32.totalorder %s18, 6
    %s25 = sphi 0, %s37
    %s26 = sphi 0, %s33
    %s27 = sphi 0, %s25
    %s28 = sphi 0, %s26
    %s29 = sphi 0, %s27
    %s30 = sphi 0, %s28
    %s40 = sphi 0, %s42
    %s43 = sphi 0, %s40
    %s44 = sphi 0, %s43
    %s60 = sphi 0, %s44
    %s64 = sphi 0, %s64
    %s66 = sphi 0, %s64
    %s67 = sphi 0, %s66
    %s81 = sphi 0, %s67
    %s85 = sphi 0, %s85
    %s87 = sphi 0, %s85
    %s88 = sphi 0, %s87
    %s102 = sphi 0, %s88
    %s106 = sphi 0, %s106
    %s108 = sphi 0, %s106
    %s109 = sphi 0, %s108
    %s123 = sphi 0, %s109
    %s127 = sphi 0, %s127
    %s129 = sphi 0, %s127
    %s130 = sphi 0, %s129
    %s144 = sphi 0, %s130
    %s148 = sphi 0, %s148
    %s150 = sphi 0, %s148
    %s151 = sphi 0, %s150
    %s165 = sphi 0, %s151
    %s169 = sphi 0, %s169
    %s171 = sphi 0, %s169
    %s172 = sphi 0, %s171
    %s186 = sphi 0, %s172
    %s190 = sphi 0, %s190
    %s192 = sphi 0, %s190
    %s193 = sphi 0, %s192
    %s207 = sphi 0, %s193
    %s211 = sphi 0, %s211
    %s213 = sphi 0, %s211
    %s214 = sphi 0, %s213
    %s228 = sphi 0, %s214
    %s232 = sphi 0, %s232
    %s234 = sphi 0, %s232
    %s235 = sphi 0, %s234
    %s249 = sphi 0, %s235
    %s253 = sphi 0, %s253
    %s255 = sphi 0, %s253
    %s256 = sphi 0, %s255
    %s270 = sphi 0, %s256
    %s274 = sphi 0, %s274
    %s276 = sphi 0, %s274
    %s277 = sphi 0, %s276
    %s291 = sphi 0, %s277
    %s299 = sphi 0, %s301
    %s302 = sphi 0, %s299
    %s303 = sphi 0, %s302
    %s319 = sphi 0, %s303
  $region4: #{_lambda_.2} parent=0 // loop_header_branch
    %21 = sbr.rel (%p19) target = $region8
  $region5: #{_lambda_.2} parent=0 // loop_body
    %s23 = ssub.s32 %s18, 1
    %s24 = ssub.s32 %s18, 2
    %s31 = sadd.s32 1, %s26
    %p32 = scmp.ge.s32.totalorder %s31, 1
    %s33 = scalar_select %p32, 0, %s31
    %s34 = sadd.s32 1, %s25
    %s35 = scalar_select %p32, %s34, %s25
    %p36 = scmp.ge.s32.totalorder %s35, 4
    %s37 = scalar_select %p36, 0, %s35
    %s38 = ssub.s32 %s25, %s37
    %p39 = scmp.eq.s32.totalorder %s38, 0
    %s41 = sadd.s32 %s40, 1
    %s42 = scalar_select %p39, %s40, %s41
    %p45 = pneg %p39
    %p46 = scmp.eq.s32.totalorder %s18, 3
    %p47 = por %p45, %p46
    %p48 = scmp.ne.s32.totalorder %s40, %s43
    %p49 = scmp.eq.s32.totalorder %s18, 0
    %p50 = por %p48, %p49
    %p51 = scmp.ne.s32.totalorder %s40, %s43
    %p52 = scmp.eq.s32.totalorder %s23, 3
    %p53 = por %p51, %p52
    %p54 = scmp.ne.s32.totalorder %s43, %s44
    %p55 = scmp.eq.s32.totalorder %s23, 0
    %p56 = por %p54, %p55
    %p57 = scmp.ne.s32.totalorder %s43, %s44
    %p58 = scmp.eq.s32.totalorder %s24, 3
    %p59 = por %p57, %p58
    %p61 = scmp.ne.s32.totalorder %s44, %s60
    %p62 = scmp.eq.s32.totalorder %s24, 0
    %p63 = por %p61, %p62
    %s65 = sadd.s32 %s64, 1
    %p68 = scmp.eq.s32.totalorder %s18, 3
    %p69 = scmp.ne.s32.totalorder %s64, %s66
    %p70 = scmp.eq.s32.totalorder %s18, 0
    %p71 = por %p69, %p70
    %p72 = scmp.ne.s32.totalorder %s64, %s66
    %p73 = scmp.eq.s32.totalorder %s23, 3
    %p74 = por %p72, %p73
    %p75 = scmp.ne.s32.totalorder %s66, %s67
    %p76 = scmp.eq.s32.totalorder %s23, 0
    %p77 = por %p75, %p76
    %p78 = scmp.ne.s32.totalorder %s66, %s67
    %p79 = scmp.eq.s32.totalorder %s24, 3
    %p80 = por %p78, %p79
    %p82 = scmp.ne.s32.totalorder %s67, %s81
    %p83 = scmp.eq.s32.totalorder %s24, 0
    %p84 = por %p82, %p83
    %s86 = sadd.s32 %s85, 1
    %p89 = scmp.eq.s32.totalorder %s18, 3
    %p90 = scmp.ne.s32.totalorder %s85, %s87
    %p91 = scmp.eq.s32.totalorder %s18, 0
    %p92 = por %p90, %p91
    %p93 = scmp.ne.s32.totalorder %s85, %s87
    %p94 = scmp.eq.s32.totalorder %s23, 3
    %p95 = por %p93, %p94
    %p96 = scmp.ne.s32.totalorder %s87, %s88
    %p97 = scmp.eq.s32.totalorder %s23, 0
    %p98 = por %p96, %p97
    %p99 = scmp.ne.s32.totalorder %s87, %s88
    %p100 = scmp.eq.s32.totalorder %s24, 3
    %p101 = por %p99, %p100
    %p103 = scmp.ne.s32.totalorder %s88, %s102
    %p104 = scmp.eq.s32.totalorder %s24, 0
    %p105 = por %p103, %p104
    %s107 = sadd.s32 %s106, 1
    %p110 = scmp.eq.s32.totalorder %s18, 3
    %p111 = scmp.ne.s32.totalorder %s106, %s108
    %p112 = scmp.eq.s32.totalorder %s18, 0
    %p113 = por %p111, %p112
    %p114 = scmp.ne.s32.totalorder %s106, %s108
    %p115 = scmp.eq.s32.totalorder %s23, 3
    %p116 = por %p114, %p115
    %p117 = scmp.ne.s32.totalorder %s108, %s109
    %p118 = scmp.eq.s32.totalorder %s23, 0
    %p119 = por %p117, %p118
    %p120 = scmp.ne.s32.totalorder %s108, %s109
    %p121 = scmp.eq.s32.totalorder %s24, 3
    %p122 = por %p120, %p121
    %p124 = scmp.ne.s32.totalorder %s109, %s123
    %p125 = scmp.eq.s32.totalorder %s24, 0
    %p126 = por %p124, %p125
    %s128 = sadd.s32 %s127, 1
    %p131 = scmp.eq.s32.totalorder %s18, 3
    %p132 = scmp.ne.s32.totalorder %s127, %s129
    %p133 = scmp.eq.s32.totalorder %s18, 0
    %p134 = por %p132, %p133
    %p135 = scmp.ne.s32.totalorder %s127, %s129
    %p136 = scmp.eq.s32.totalorder %s23, 3
    %p137 = por %p135, %p136
    %p138 = scmp.ne.s32.totalorder %s129, %s130
    %p139 = scmp.eq.s32.totalorder %s23, 0
    %p140 = por %p138, %p139
    %p141 = scmp.ne.s32.totalorder %s129, %s130
    %p142 = scmp.eq.s32.totalorder %s24, 3
    %p143 = por %p141, %p142
    %p145 = scmp.ne.s32.totalorder %s130, %s144
    %p146 = scmp.eq.s32.totalorder %s24, 0
    %p147 = por %p145, %p146
    %s149 = sadd.s32 %s148, 1
    %p152 = scmp.eq.s32.totalorder %s18, 3
    %p153 = scmp.ne.s32.totalorder %s148, %s150
    %p154 = scmp.eq.s32.totalorder %s18, 0
    %p155 = por %p153, %p154
    %p156 = scmp.ne.s32.totalorder %s148, %s150
    %p157 = scmp.eq.s32.totalorder %s23, 3
    %p158 = por %p156, %p157
    %p159 = scmp.ne.s32.totalorder %s150, %s151
    %p160 = scmp.eq.s32.totalorder %s23, 0
    %p161 = por %p159, %p160
    %p162 = scmp.ne.s32.totalorder %s150, %s151
    %p163 = scmp.eq.s32.totalorder %s24, 3
    %p164 = por %p162, %p163
    %p166 = scmp.ne.s32.totalorder %s151, %s165
    %p167 = scmp.eq.s32.totalorder %s24, 0
    %p168 = por %p166, %p167
    %s170 = sadd.s32 %s169, 1
    %p173 = scmp.eq.s32.totalorder %s18, 3
    %p174 = scmp.ne.s32.totalorder %s169, %s171
    %p175 = scmp.eq.s32.totalorder %s18, 0
    %p176 = por %p174, %p175
    %p177 = scmp.ne.s32.totalorder %s169, %s171
    %p178 = scmp.eq.s32.totalorder %s23, 3
    %p179 = por %p177, %p178
    %p180 = scmp.ne.s32.totalorder %s171, %s172
    %p181 = scmp.eq.s32.totalorder %s23, 0
    %p182 = por %p180, %p181
    %p183 = scmp.ne.s32.totalorder %s171, %s172
    %p184 = scmp.eq.s32.totalorder %s24, 3
    %p185 = por %p183, %p184
    %p187 = scmp.ne.s32.totalorder %s172, %s186
    %p188 = scmp.eq.s32.totalorder %s24, 0
    %p189 = por %p187, %p188
    %s191 = sadd.s32 %s190, 1
    %p194 = scmp.eq.s32.totalorder %s18, 3
    %p195 = scmp.ne.s32.totalorder %s190, %s192
    %p196 = scmp.eq.s32.totalorder %s18, 0
    %p197 = por %p195, %p196
    %p198 = scmp.ne.s32.totalorder %s190, %s192
    %p199 = scmp.eq.s32.totalorder %s23, 3
    %p200 = por %p198, %p199
    %p201 = scmp.ne.s32.totalorder %s192, %s193
    %p202 = scmp.eq.s32.totalorder %s23, 0
    %p203 = por %p201, %p202
    %p204 = scmp.ne.s32.totalorder %s192, %s193
    %p205 = scmp.eq.s32.totalorder %s24, 3
    %p206 = por %p204, %p205
    %p208 = scmp.ne.s32.totalorder %s193, %s207
    %p209 = scmp.eq.s32.totalorder %s24, 0
    %p210 = por %p208, %p209
    %s212 = sadd.s32 %s211, 1
    %p215 = scmp.eq.s32.totalorder %s18, 3
    %p216 = scmp.ne.s32.totalorder %s211, %s213
    %p217 = scmp.eq.s32.totalorder %s18, 0
    %p218 = por %p216, %p217
    %p219 = scmp.ne.s32.totalorder %s211, %s213
    %p220 = scmp.eq.s32.totalorder %s23, 3
    %p221 = por %p219, %p220
    %p222 = scmp.ne.s32.totalorder %s213, %s214
    %p223 = scmp.eq.s32.totalorder %s23, 0
    %p224 = por %p222, %p223
    %p225 = scmp.ne.s32.totalorder %s213, %s214
    %p226 = scmp.eq.s32.totalorder %s24, 3
    %p227 = por %p225, %p226
    %p229 = scmp.ne.s32.totalorder %s214, %s228
    %p230 = scmp.eq.s32.totalorder %s24, 0
    %p231 = por %p229, %p230
    %s233 = sadd.s32 %s232, 1
    %p236 = scmp.eq.s32.totalorder %s18, 3
    %p237 = scmp.ne.s32.totalorder %s232, %s234
    %p238 = scmp.eq.s32.totalorder %s18, 0
    %p239 = por %p237, %p238
    %p240 = scmp.ne.s32.totalorder %s232, %s234
    %p241 = scmp.eq.s32.totalorder %s23, 3
    %p242 = por %p240, %p241
    %p243 = scmp.ne.s32.totalorder %s234, %s235
    %p244 = scmp.eq.s32.totalorder %s23, 0
    %p245 = por %p243, %p244
    %p246 = scmp.ne.s32.totalorder %s234, %s235
    %p247 = scmp.eq.s32.totalorder %s24, 3
    %p248 = por %p246, %p247
    %p250 = scmp.ne.s32.totalorder %s235, %s249
    %p251 = scmp.eq.s32.totalorder %s24, 0
    %p252 = por %p250, %p251
    %s254 = sadd.s32 %s253, 1
    %p257 = scmp.eq.s32.totalorder %s18, 3
    %p258 = scmp.ne.s32.totalorder %s253, %s255
    %p259 = scmp.eq.s32.totalorder %s18, 0
    %p260 = por %p258, %p259
    %p261 = scmp.ne.s32.totalorder %s253, %s255
    %p262 = scmp.eq.s32.totalorder %s23, 3
    %p263 = por %p261, %p262
    %p264 = scmp.ne.s32.totalorder %s255, %s256
    %p265 = scmp.eq.s32.totalorder %s23, 0
    %p266 = por %p264, %p265
    %p267 = scmp.ne.s32.totalorder %s255, %s256
    %p268 = scmp.eq.s32.totalorder %s24, 3
    %p269 = por %p267, %p268
    %p271 = scmp.ne.s32.totalorder %s256, %s270
    %p272 = scmp.eq.s32.totalorder %s24, 0
    %p273 = por %p271, %p272
    %s275 = sadd.s32 %s274, 1
    %p278 = scmp.eq.s32.totalorder %s18, 3
    %p279 = scmp.ne.s32.totalorder %s274, %s276
    %p280 = scmp.eq.s32.totalorder %s18, 0
    %p281 = por %p279, %p280
    %p282 = scmp.ne.s32.totalorder %s274, %s276
    %p283 = scmp.eq.s32.totalorder %s23, 3
    %p284 = por %p282, %p283
    %p285 = scmp.ne.s32.totalorder %s276, %s277
    %p286 = scmp.eq.s32.totalorder %s23, 0
    %p287 = por %p285, %p286
    %p288 = scmp.ne.s32.totalorder %s276, %s277
    %p289 = scmp.eq.s32.totalorder %s24, 3
    %p290 = por %p288, %p289
    %p292 = scmp.ne.s32.totalorder %s277, %s291
    %p293 = scmp.eq.s32.totalorder %s24, 0
    %p294 = por %p292, %p293
    %s295 = ssub.s32 %s25, %s37
    %s296 = ssub.s32 %s26, %s33
    %s297 = sor.u32 %s295, %s296
    %p298 = scmp.eq.s32.totalorder %s297, 0
    %s300 = sadd.s32 %s299, 1
    %s301 = scalar_select %p298, %s299, %s300
    %p304 = pneg %p298
    %p305 = scmp.eq.s32.totalorder %s18, 3
    %p306 = por %p304, %p305
    %p307 = scmp.ne.s32.totalorder %s299, %s302
    %p308 = scmp.eq.s32.totalorder %s18, 0
    %p309 = por %p307, %p308
    %p310 = scmp.ne.s32.totalorder %s299, %s302
    %p311 = scmp.eq.s32.totalorder %s23, 3
    %p312 = por %p310, %p311
    %p313 = scmp.ne.s32.totalorder %s302, %s303
    %p314 = scmp.eq.s32.totalorder %s23, 0
    %p315 = por %p313, %p314
    %p316 = scmp.ne.s32.totalorder %s302, %s303
    %p317 = scmp.eq.s32.totalorder %s24, 3
    %p318 = por %p316, %p317
    %p320 = scmp.ne.s32.totalorder %s303, %s319
    %p321 = scmp.eq.s32.totalorder %s24, 0
    %p322 = por %p320, %p321
    %p323 = scmp.le.s32.totalorder 1, %s18
    %p324 = scmp.lt.s32.totalorder %s18, 5
    %p325 = pnand %p323, %p324
    %p326 = pneg %p325
    // Predicated region
    $region9: #{_lambda_.2} parent=5 // pred_check
      _
    $region10: #{_lambda_.2} parent=5 // pred_check_branch
      %328 = sbr.rel (%p325) target = $region12
    $region11: #{_lambda_.2} parent=5 // pred_region
      %s329 = ssub.s32 %s18, 1
      // Predicated region
      $region13: #{_lambda_.2} parent=11 // pred_check
        %p330 = pneg %p77
      $region14: #{_lambda_.2} parent=11 // pred_check_branch
        %332 = sbr.rel (%p330) target = $region16
      $region15: #{_lambda_.2} parent=11 // pred_region
        _
      $region16: #{_lambda_.2} parent=11 // pred_fallthru
        _
      // Predicated region
      $region17: #{_lambda_.2} parent=11 // pred_check
        %p333 = pneg %p98
      $region18: #{_lambda_.2} parent=11 // pred_check_branch
        %335 = sbr.rel (%p333) target = $region20
      $region19: #{_lambda_.2} parent=11 // pred_region
        _
      $region20: #{_lambda_.2} parent=11 // pred_fallthru
        _
      // Predicated region
      $region21: #{_lambda_.2} parent=11 // pred_check
        %p336 = pneg %p119
      $region22: #{_lambda_.2} parent=11 // pred_check_branch
        %338 = sbr.rel (%p336) target = $region24
      $region23: #{_lambda_.2} parent=11 // pred_region
        _
      $region24: #{_lambda_.2} parent=11 // pred_fallthru
        _
      // Predicated region
      $region25: #{_lambda_.2} parent=11 // pred_check
        %p339 = pneg %p140
      $region26: #{_lambda_.2} parent=11 // pred_check_branch
        %341 = sbr.rel (%p339) target = $region28
      $region27: #{_lambda_.2} parent=11 // pred_region
        _
      $region28: #{_lambda_.2} parent=11 // pred_fallthru
        _
      // Predicated region
      $region29: #{_lambda_.2} parent=11 // pred_check
        %p342 = pneg %p161
      $region30: #{_lambda_.2} parent=11 // pred_check_branch
        %344 = sbr.rel (%p342) target = $region32
      $region31: #{_lambda_.2} parent=11 // pred_region
        _
      $region32: #{_lambda_.2} parent=11 // pred_fallthru
        _
      // Predicated region
      $region33: #{_lambda_.2} parent=11 // pred_check
        %p345 = pneg %p182
      $region34: #{_lambda_.2} parent=11 // pred_check_branch
        %347 = sbr.rel (%p345) target = $region36
      $region35: #{_lambda_.2} parent=11 // pred_region
        _
      $region36: #{_lambda_.2} parent=11 // pred_fallthru
        _
      // Predicated region
      $region37: #{_lambda_.2} parent=11 // pred_check
        %p348 = pneg %p203
      $region38: #{_lambda_.2} parent=11 // pred_check_branch
        %350 = sbr.rel (%p348) target = $region40
      $region39: #{_lambda_.2} parent=11 // pred_region
        _
      $region40: #{_lambda_.2} parent=11 // pred_fallthru
        _
      // Predicated region
      $region41: #{_lambda_.2} parent=11 // pred_check
        %p351 = pneg %p224
      $region42: #{_lambda_.2} parent=11 // pred_check_branch
        %353 = sbr.rel (%p351) target = $region44
      $region43: #{_lambda_.2} parent=11 // pred_region
        _
      $region44: #{_lambda_.2} parent=11 // pred_fallthru
        _
      // Predicated region
      $region45: #{_lambda_.2} parent=11 // pred_check
        %p354 = pneg %p245
      $region46: #{_lambda_.2} parent=11 // pred_check_branch
        %356 = sbr.rel (%p354) target = $region48
      $region47: #{_lambda_.2} parent=11 // pred_region
        _
      $region48: #{_lambda_.2} parent=11 // pred_fallthru
        _
      // Predicated region
      $region49: #{_lambda_.2} parent=11 // pred_check
        %p357 = pneg %p266
      $region50: #{_lambda_.2} parent=11 // pred_check_branch
        %359 = sbr.rel (%p357) target = $region52
      $region51: #{_lambda_.2} parent=11 // pred_region
        _
      $region52: #{_lambda_.2} parent=11 // pred_fallthru
        _
      // Predicated region
      $region53: #{_lambda_.2} parent=11 // pred_check
        %p360 = pneg %p287
      $region54: #{_lambda_.2} parent=11 // pred_check_branch
        %362 = sbr.rel (%p360) target = $region56
      $region55: #{_lambda_.2} parent=11 // pred_region
        _
      $region56: #{_lambda_.2} parent=11 // pred_fallthru
        _
    $region12: #{_lambda_.2} parent=5 // pred_fallthru
      _
    %p363 = scmp.lt.s32.totalorder %s18, 4
    // Predicated region
    $region57: #{_lambda_.2} parent=5 // pred_check
      %p364 = pneg %p363
    $region58: #{_lambda_.2} parent=5 // pred_check_branch
      %366 = sbr.rel (%p364) target = $region60
    $region59: #{_lambda_.2} parent=5 // pred_region
      // Predicated region
      $region61: #{_lambda_.2} parent=59 // pred_check
        %p367 = pneg %p50
      $region62: #{_lambda_.2} parent=59 // pred_check_branch
        %369 = sbr.rel (%p367) target = $region64
      $region63: #{_lambda_.2} parent=59 // pred_region
        %p370 = scmp.lt.s32.totalorder %s25, 3
        %s371 = scalar_select %p370, %s25, 3
        %s372 = smul.addr %s371, 8
        %s373 = scalar_lea.vmem %s0, %s372
      $region64: #{_lambda_.2} parent=59 // pred_fallthru
        _
    $region60: #{_lambda_.2} parent=5 // pred_fallthru
      _
    %p374 = scmp.le.s32.totalorder 1, %s18
    %p375 = scmp.lt.s32.totalorder %s18, 5
    %p376 = pnand %p374, %p375
    %p377 = pneg %p376
    // Predicated region
    $region65: #{_lambda_.2} parent=5 // pred_check
      _
    $region66: #{_lambda_.2} parent=5 // pred_check_branch
      %379 = sbr.rel (%p376) target = $region68
    $region67: #{_lambda_.2} parent=5 // pred_region
      %s380 = ssub.s32 %s18, 1
      %p381 = scmp.lt.s32.totalorder %s27, 3
      %s382 = scalar_select %p381, %s27, 3
      %s383 = smul.addr %s382, 8
      %s384 = scalar_lea.vmem %s0, %s383
      %p385 = pneg %p56
      %p386 = pneg %p53
      %p387 = pneg %p77
      %p388 = pneg %p74
      %p389 = pneg %p98
      %p390 = pneg %p95
      %p391 = pneg %p119
      %p392 = pneg %p116
      %p393 = pneg %p140
      %p394 = pneg %p137
      %p395 = pneg %p161
      %p396 = pneg %p158
      %p397 = pneg %p182
      %p398 = pneg %p179
      %p399 = pneg %p203
      %p400 = pneg %p200
      %p401 = pneg %p224
      %p402 = pneg %p221
      %p403 = pneg %p245
      %p404 = pneg %p242
      %p405 = pneg %p266
      %p406 = pneg %p263
      %p407 = pneg %p287
      %p408 = pneg %p284
      %p409 = pneg %p315
      %p410 = pneg %p312
      %p411 = scmp.lt.s32.totalorder %s27, 3
      %s412 = scalar_select %p411, %s27, 3
      %p413 = scmp.lt.s32.totalorder %s28, 0
      %s414 = scalar_select %p413, %s28, 0
      %s415 = sadd.s32 %s414, %s412
      %s416 = smul.addr %s415, 8
      %s417 = scalar_lea.vmem %s12, %s416
      %p418 = scmp.lt.s32.totalorder %s27, 3
      %s419 = scalar_select %p418, %s27, 3
      %s420 = smul.addr %s419, 8
      %s421 = scalar_lea.vmem %s0, %s420
      %p422 = scmp.lt.s32.totalorder %s27, 3
      %s423 = scalar_select %p422, %s27, 3
      %p424 = scmp.lt.s32.totalorder %s28, 0
      %s425 = scalar_select %p424, %s28, 0
      %s426 = sadd.s32 %s425, %s423
      %s427 = smul.addr %s426, 8
      %s428 = scalar_lea.vmem %s12, %s427
      %s430 = smul.u32 %s28, 8
      %s431 = scalar_lea.vmem %s421, %s430
      %v432 = vld [vmem:[%s431] sm:$0xff]
      %v433 = vld [vmem:[%s421] sm:$0xff]
      %v434 = vpack.c.bf16 %v432, %v432
      %v435 = vpack.c.bf16 %v433, %v433
      %v436 = vld [vmem:[%s1] sm:$0xf]
      %v437 = vld [vmem:[%s1 + $0x4] sm:$0xf]
      %v438 = vld [vmem:[%s1 + $0x8] sm:$0xf]
      %v439 = vld [vmem:[%s1 + $0xc] sm:$0xf]
      %v440 = vld [vmem:[%s2] sm:$0x1]
      %v442 = vlaneseq
      %v443 = vshrl.u32 %v442, 7
      %v444 = vsub.s32 0, %v443
      %v445 = vrot.slane %v440, %v444
      %v451 = vunpack.c.l.b16 %v436
      %v452 = vunpack.c.l.b16 %v437
      %v453 = vunpack.c.l.b16 %v438
      %v454 = vunpack.c.l.b16 %v439
      %v455 = vpack.c.b16 %v452, %v451
      %v456 = vpack.c.b16 %v454, %v453
      %vm459 = vcmask 261120
      %v461 = vsel %vm459, %v434, 0
      %463 = vmatprep.subr.bf16.mxu0 0
      %464 = vmatpush1.bf16.msra.mxu0 0
      %465 = vmatprep.subr.bf16.mxu0 0
      %466 = vmatpush1.bf16.msra.mxu0 0
      %467 = vmatprep.subr.bf16.mxu0 0
      %468 = vmatpush1.bf16.msra.mxu0 0
      %469 = vmatprep.subr.bf16.mxu0 0
      %470 = vmatpush1.bf16.msra.mxu0 0
      %471 = vmatprep.subr.bf16.mxu0 0
      %472 = vmatpush1.bf16.msra.mxu0 0
      %473 = vmatprep.subr.bf16.mxu0 0
      %474 = vmatpush1.bf16.msra.mxu0 0
      %475 = vmatprep.subr.bf16.mxu0 0
      %476 = vmatpush1.bf16.msra.mxu0 %v456
      %477 = vmatprep.subr.bf16.mxu0 0
      %478 = vmatpush1.bf16.msra.mxu0 %v455
      %479 = vmatprep.subr.bf16.mxu0 0
      %480 = vmatpush2.bf16.msra.mxu0 0
      %481 = vmatprep.subr.bf16.mxu0 0
      %482 = vmatpush2.bf16.msra.mxu0 0
      %483 = vmatprep.subr.bf16.mxu0 0
      %484 = vmatpush2.bf16.msra.mxu0 0
      %485 = vmatprep.subr.bf16.mxu0 0
      %486 = vmatpush2.bf16.msra.mxu0 0
      %487 = vmatprep.subr.bf16.mxu0 0
      %488 = vmatpush2.bf16.msra.mxu0 0
      %489 = vmatprep.subr.bf16.mxu0 0
      %490 = vmatpush2.bf16.msra.mxu0 0
      %491 = vmatprep.subr.bf16.mxu0 0
      %492 = vmatpush2.bf16.msra.mxu0 0
      %493 = vmatprep.subr.bf16.mxu0 0
      %494 = vmatpush2.bf16.msra.mxu0 0
      %495 = vmatprep.mubr.bf16.mxu0 0
      %496 = vmatmul.mubr.bf16.gmra.mxu0 %v461
      %v497 = vpop.f32.mrf.mxu0
      %v498 = vadd.f32 %v445, %v497
      %v499 = vpop.f32.mrf.mxu0
      %v500 = vpop.f32.mrf.mxu0
      %v501 = vpop.f32.mrf.mxu0
      %502 = vdwg.mxu0
      %v503 = vld [vmem:[%s3] sm:$0xf]
      %v504 = vld [vmem:[%s3 + $0x4] sm:$0xf]
      %v505 = vld [vmem:[%s3 + $0x8] sm:$0xf]
      %v506 = vld [vmem:[%s3 + $0xc] sm:$0xf]
      %v507 = vld [vmem:[%s4] sm:$0x1]
      %v509 = vlaneseq
      %v510 = vshrl.u32 %v509, 7
      %v511 = vsub.s32 0, %v510
      %v512 = vrot.slane %v507, %v511
      %v518 = vunpack.c.l.b16 %v503
      %v519 = vunpack.c.l.b16 %v504
      %v520 = vunpack.c.l.b16 %v505
      %v521 = vunpack.c.l.b16 %v506
      %v522 = vpack.c.b16 %v519, %v518
      %v523 = vpack.c.b16 %v521, %v520
      %v527 = vsel %vm459, %v435, 0
      %529 = vmatprep.subr.bf16.mxu0 0
      %530 = vmatpush1.bf16.msra.mxu0 0
      %531 = vmatprep.subr.bf16.mxu0 0
      %532 = vmatpush1.bf16.msra.mxu0 0
      %533 = vmatprep.subr.bf16.mxu0 0
      %534 = vmatpush1.bf16.msra.mxu0 0
      %535 = vmatprep.subr.bf16.mxu0 0
      %536 = vmatpush1.bf16.msra.mxu0 0
      %537 = vmatprep.subr.bf16.mxu0 0
      %538 = vmatpush1.bf16.msra.mxu0 0
      %539 = vmatprep.subr.bf16.mxu0 0
      %540 = vmatpush1.bf16.msra.mxu0 0
      %541 = vmatprep.subr.bf16.mxu0 0
      %542 = vmatpush1.bf16.msra.mxu0 %v523
      %543 = vmatprep.subr.bf16.mxu0 0
      %544 = vmatpush1.bf16.msra.mxu0 %v522
      %545 = vmatprep.subr.bf16.mxu0 0
      %546 = vmatpush2.bf16.msra.mxu0 0
      %547 = vmatprep.subr.bf16.mxu0 0
      %548 = vmatpush2.bf16.msra.mxu0 0
      %549 = vmatprep.subr.bf16.mxu0 0
      %550 = vmatpush2.bf16.msra.mxu0 0
      %551 = vmatprep.subr.bf16.mxu0 0
      %552 = vmatpush2.bf16.msra.mxu0 0
      %553 = vmatprep.subr.bf16.mxu0 0
      %554 = vmatpush2.bf16.msra.mxu0 0
      %555 = vmatprep.subr.bf16.mxu0 0
      %556 = vmatpush2.bf16.msra.mxu0 0
      %557 = vmatprep.subr.bf16.mxu0 0
      %558 = vmatpush2.bf16.msra.mxu0 0
      %559 = vmatprep.subr.bf16.mxu0 0
      %560 = vmatpush2.bf16.msra.mxu0 0
      %561 = vmatprep.mubr.bf16.mxu0 0
      %562 = vmatmul.mubr.bf16.gmra.mxu0 %v527
      %v563 = vpop.f32.mrf.mxu0
      %v564 = vadd.f32 %v512, %v563
      %v565 = vpop.f32.mrf.mxu0
      %v566 = vpop.f32.mrf.mxu0
      %v567 = vpop.f32.mrf.mxu0
      %568 = vdwg.mxu0
      %v569 = vpack.c.bf16 %v498, %v498
      %v570 = vpack.c.bf16 %v564, %v564
      %vm571 = vcmask 64512
      %v573 = vsel %vm571, %v569, 0
      %v576 = vsel %vm571, %v570, 0
      %578 = vmatprep.subr.bf16.mxu0 0
      %579 = vmatpush1.bf16.xpose.msra.mxu0 0
      %580 = vmatprep.subr.bf16.mxu0 0
      %581 = vmatpush1.bf16.xpose.msra.mxu0 0
      %582 = vmatprep.subr.bf16.mxu0 0
      %583 = vmatpush1.bf16.xpose.msra.mxu0 0
      %584 = vmatprep.subr.bf16.mxu0 0
      %585 = vmatpush1.bf16.xpose.msra.mxu0 0
      %586 = vmatprep.subr.bf16.mxu0 0
      %587 = vmatpush1.bf16.xpose.msra.mxu0 0
      %588 = vmatprep.subr.bf16.mxu0 0
      %589 = vmatpush1.bf16.xpose.msra.mxu0 0
      %590 = vmatprep.subr.bf16.mxu0 0
      %591 = vmatpush1.bf16.xpose.msra.mxu0 0
      %592 = vmatprep.subr.bf16.mxu0 0
      %593 = vmatpush1.bf16.xpose.msra.mxu0 %v576
      %594 = vmatprep.subr.bf16.mxu0 0
      %595 = vmatpush2.bf16.xpose.msra.mxu0 0
      %596 = vmatprep.subr.bf16.mxu0 0
      %597 = vmatpush2.bf16.xpose.msra.mxu0 0
      %598 = vmatprep.subr.bf16.mxu0 0
      %599 = vmatpush2.bf16.xpose.msra.mxu0 0
      %600 = vmatprep.subr.bf16.mxu0 0
      %601 = vmatpush2.bf16.xpose.msra.mxu0 0
      %602 = vmatprep.subr.bf16.mxu0 0
      %603 = vmatpush2.bf16.xpose.msra.mxu0 0
      %604 = vmatprep.subr.bf16.mxu0 0
      %605 = vmatpush2.bf16.xpose.msra.mxu0 0
      %606 = vmatprep.subr.bf16.mxu0 0
      %607 = vmatpush2.bf16.xpose.msra.mxu0 0
      %608 = vmatprep.subr.bf16.mxu0 0
      %609 = vmatpush2.bf16.xpose.msra.mxu0 0
      %610 = vmatprep.mubr.bf16.mxu0 0
      %611 = vmatmul.mubr.bf16.gmra.mxu0 %v573
      %v612 = vpop.f32.mrf.mxu0
      %v613 = vadd.f32 0.0, %v612
      %v614 = vpop.f32.mrf.mxu0
      %v615 = vpop.f32.mrf.mxu0
      %v616 = vpop.f32.mrf.mxu0
      %617 = vdwg.mxu0
      %v618 = vsel %vm571, %v613, -inf
      %619 = vmax.xlane.f32.xlu0 %v618
      %v620 = vpop.xlane.xlu0 %619
      %v621 = vsub.f32 %v613, %v620
      %v622 = vmul.f32 %v621, 1.442695
      %v623 = vpow.pop %v622
      %v624 = vpack.c.bf16 %v623, %v623
      %626 = vrot.lane.b32.xlu0 %v570, 96
      %v627 = vpop.permute.xlu0 %626
      %v629 = vsel %vm571, %v624, 0
      %vm631 = vcmask 1043456
      %v633 = vsel %vm631, %v627, 0
      %635 = vmatprep.subr.bf16.mxu0 0
      %636 = vmatpush1.bf16.msra.mxu0 0
      %637 = vmatprep.subr.bf16.mxu0 0
      %638 = vmatpush1.bf16.msra.mxu0 0
      %639 = vmatprep.subr.bf16.mxu0 0
      %640 = vmatpush1.bf16.msra.mxu0 0
      %641 = vmatprep.subr.bf16.mxu0 0
      %642 = vmatpush1.bf16.msra.mxu0 0
      %643 = vmatprep.subr.bf16.mxu0 0
      %644 = vmatpush1.bf16.msra.mxu0 0
      %645 = vmatprep.subr.bf16.mxu0 0
      %646 = vmatpush1.bf16.msra.mxu0 0
      %647 = vmatprep.subr.bf16.mxu0 0
      %648 = vmatpush1.bf16.msra.mxu0 0
      %649 = vmatprep.subr.bf16.mxu0 0
      %650 = vmatpush1.bf16.msra.mxu0 %v633
      %651 = vmatprep.subr.bf16.mxu0 0
      %652 = vmatpush2.bf16.msra.mxu0 0
      %653 = vmatprep.subr.bf16.mxu0 0
      %654 = vmatpush2.bf16.msra.mxu0 0
      %655 = vmatprep.subr.bf16.mxu0 0
      %656 = vmatpush2.bf16.msra.mxu0 0
      %657 = vmatprep.subr.bf16.mxu0 0
      %658 = vmatpush2.bf16.msra.mxu0 0
      %659 = vmatprep.subr.bf16.mxu0 0
      %660 = vmatpush2.bf16.msra.mxu0 0
      %661 = vmatprep.subr.bf16.mxu0 0
      %662 = vmatpush2.bf16.msra.mxu0 0
      %663 = vmatprep.subr.bf16.mxu0 0
      %664 = vmatpush2.bf16.msra.mxu0 0
      %665 = vmatprep.subr.bf16.mxu0 0
      %666 = vmatpush2.bf16.msra.mxu0 0
      %667 = vmatprep.mubr.bf16.mxu0 0
      %668 = vmatmul.mubr.bf16.gmra.mxu0 %v629
      %v669 = vpop.f32.mrf.mxu0
      %v670 = vadd.f32 0.0, %v669
      %v671 = vpop.f32.mrf.mxu0
      %v672 = vpop.f32.mrf.mxu0
      %v673 = vpop.f32.mrf.mxu0
      %674 = vdwg.mxu0
      %v675 = vsel %vm571, %v623, 0.0
      %676 = vadd.xlane.f32.xlu0 %v675
      %v677 = vpop.xlane.xlu0 %676
      %v678 = vrcp.pop %v677
      %v679 = vmul.f32 %v670, %v678
      %681 = vrot.lane.b32.xlu0 %v569, 120
      %v682 = vpop.permute.xlu0 %681
      %683 = vrot.lane.b32.xlu0 %v570, 120
      %v684 = vpop.permute.xlu0 %683
      %v686 = vsel %vm571, %v682, 0
      %v689 = vsel %vm571, %v684, 0
      %691 = vmatprep.subr.bf16.mxu0 0
      %692 = vmatpush1.bf16.xpose.msra.mxu0 0
      %693 = vmatprep.subr.bf16.mxu0 0
      %694 = vmatpush1.bf16.xpose.msra.mxu0 0
      %695 = vmatprep.subr.bf16.mxu0 0
      %696 = vmatpush1.bf16.xpose.msra.mxu0 0
      %697 = vmatprep.subr.bf16.mxu0 0
      %698 = vmatpush1.bf16.xpose.msra.mxu0 0
      %699 = vmatprep.subr.bf16.mxu0 0
      %700 = vmatpush1.bf16.xpose.msra.mxu0 0
      %701 = vmatprep.subr.bf16.mxu0 0
      %702 = vmatpush1.bf16.xpose.msra.mxu0 0
      %703 = vmatprep.subr.bf16.mxu0 0
      %704 = vmatpush1.bf16.xpose.msra.mxu0 0
      %705 = vmatprep.subr.bf16.mxu0 0
      %706 = vmatpush1.bf16.xpose.msra.mxu0 %v689
      %707 = vmatprep.subr.bf16.mxu0 0
      %708 = vmatpush2.bf16.xpose.msra.mxu0 0
      %709 = vmatprep.subr.bf16.mxu0 0
      %710 = vmatpush2.bf16.xpose.msra.mxu0 0
      %711 = vmatprep.subr.bf16.mxu0 0
      %712 = vmatpush2.bf16.xpose.msra.mxu0 0
      %713 = vmatprep.subr.bf16.mxu0 0
      %714 = vmatpush2.bf16.xpose.msra.mxu0 0
      %715 = vmatprep.subr.bf16.mxu0 0
      %716 = vmatpush2.bf16.xpose.msra.mxu0 0
      %717 = vmatprep.subr.bf16.mxu0 0
      %718 = vmatpush2.bf16.xpose.msra.mxu0 0
      %719 = vmatprep.subr.bf16.mxu0 0
      %720 = vmatpush2.bf16.xpose.msra.mxu0 0
      %721 = vmatprep.subr.bf16.mxu0 0
      %722 = vmatpush2.bf16.xpose.msra.mxu0 0
      %723 = vmatprep.mubr.bf16.mxu0 0
      %724 = vmatmul.mubr.bf16.gmra.mxu0 %v686
      %v725 = vpop.f32.mrf.mxu0
      %v726 = vadd.f32 0.0, %v725
      %v727 = vpop.f32.mrf.mxu0
      %v728 = vpop.f32.mrf.mxu0
      %v729 = vpop.f32.mrf.mxu0
      %730 = vdwg.mxu0
      %v731 = vsel %vm571, %v726, -inf
      %732 = vmax.xlane.f32.xlu0 %v731
      %v733 = vpop.xlane.xlu0 %732
      %v734 = vsub.f32 %v726, %v733
      %v735 = vmul.f32 %v734, 1.442695
      %v736 = vpow.pop %v735
      %v737 = vpack.c.bf16 %v736, %v736
      %738 = vrot.lane.b32.xlu0 %v570, 88
      %v739 = vpop.permute.xlu0 %738
      %v741 = vsel %vm571, %v737, 0
      %v744 = vsel %vm631, %v739, 0
      %746 = vmatprep.subr.bf16.mxu0 0
      %747 = vmatpush1.bf16.msra.mxu0 0
      %748 = vmatprep.subr.bf16.mxu0 0
      %749 = vmatpush1.bf16.msra.mxu0 0
      %750 = vmatprep.subr.bf16.mxu0 0
      %751 = vmatpush1.bf16.msra.mxu0 0
      %752 = vmatprep.subr.bf16.mxu0 0
      %753 = vmatpush1.bf16.msra.mxu0 0
      %754 = vmatprep.subr.bf16.mxu0 0
      %755 = vmatpush1.bf16.msra.mxu0 0
      %756 = vmatprep.subr.bf16.mxu0 0
      %757 = vmatpush1.bf16.msra.mxu0 0
      %758 = vmatprep.subr.bf16.mxu0 0
      %759 = vmatpush1.bf16.msra.mxu0 0
      %760 = vmatprep.subr.bf16.mxu0 0
      %761 = vmatpush1.bf16.msra.mxu0 %v744
      %762 = vmatprep.subr.bf16.mxu0 0
      %763 = vmatpush2.bf16.msra.mxu0 0
      %764 = vmatprep.subr.bf16.mxu0 0
      %765 = vmatpush2.bf16.msra.mxu0 0
      %766 = vmatprep.subr.bf16.mxu0 0
      %767 = vmatpush2.bf16.msra.mxu0 0
      %768 = vmatprep.subr.bf16.mxu0 0
      %769 = vmatpush2.bf16.msra.mxu0 0
      %770 = vmatprep.subr.bf16.mxu0 0
      %771 = vmatpush2.bf16.msra.mxu0 0
      %772 = vmatprep.subr.bf16.mxu0 0
      %773 = vmatpush2.bf16.msra.mxu0 0
      %774 = vmatprep.subr.bf16.mxu0 0
      %775 = vmatpush2.bf16.msra.mxu0 0
      %776 = vmatprep.subr.bf16.mxu0 0
      %777 = vmatpush2.bf16.msra.mxu0 0
      %778 = vmatprep.mubr.bf16.mxu0 0
      %779 = vmatmul.mubr.bf16.gmra.mxu0 %v741
      %v780 = vpop.f32.mrf.mxu0
      %v781 = vadd.f32 0.0, %v780
      %v782 = vpop.f32.mrf.mxu0
      %v783 = vpop.f32.mrf.mxu0
      %v784 = vpop.f32.mrf.mxu0
      %785 = vdwg.mxu0
      %v786 = vsel %vm571, %v736, 0.0
      %787 = vadd.xlane.f32.xlu0 %v786
      %v788 = vpop.xlane.xlu0 %787
      %v789 = vrcp.pop %v788
      %v790 = vmul.f32 %v781, %v789
      %791 = vrot.lane.b32.xlu0 %v569, 112
      %v792 = vpop.permute.xlu0 %791
      %793 = vrot.lane.b32.xlu0 %v570, 112
      %v794 = vpop.permute.xlu0 %793
      %v796 = vsel %vm571, %v792, 0
      %v799 = vsel %vm571, %v794, 0
      %801 = vmatprep.subr.bf16.mxu0 0
      %802 = vmatpush1.bf16.xpose.msra.mxu0 0
      %803 = vmatprep.subr.bf16.mxu0 0
      %804 = vmatpush1.bf16.xpose.msra.mxu0 0
      %805 = vmatprep.subr.bf16.mxu0 0
      %806 = vmatpush1.bf16.xpose.msra.mxu0 0
      %807 = vmatprep.subr.bf16.mxu0 0
      %808 = vmatpush1.bf16.xpose.msra.mxu0 0
      %809 = vmatprep.subr.bf16.mxu0 0
      %810 = vmatpush1.bf16.xpose.msra.mxu0 0
      %811 = vmatprep.subr.bf16.mxu0 0
      %812 = vmatpush1.bf16.xpose.msra.mxu0 0
      %813 = vmatprep.subr.bf16.mxu0 0
      %814 = vmatpush1.bf16.xpose.msra.mxu0 0
      %815 = vmatprep.subr.bf16.mxu0 0
      %816 = vmatpush1.bf16.xpose.msra.mxu0 %v799
      %817 = vmatprep.subr.bf16.mxu0 0
      %818 = vmatpush2.bf16.xpose.msra.mxu0 0
      %819 = vmatprep.subr.bf16.mxu0 0
      %820 = vmatpush2.bf16.xpose.msra.mxu0 0
      %821 = vmatprep.subr.bf16.mxu0 0
      %822 = vmatpush2.bf16.xpose.msra.mxu0 0
      %823 = vmatprep.subr.bf16.mxu0 0
      %824 = vmatpush2.bf16.xpose.msra.mxu0 0
      %825 = vmatprep.subr.bf16.mxu0 0
      %826 = vmatpush2.bf16.xpose.msra.mxu0 0
      %827 = vmatprep.subr.bf16.mxu0 0
      %828 = vmatpush2.bf16.xpose.msra.mxu0 0
      %829 = vmatprep.subr.bf16.mxu0 0
      %830 = vmatpush2.bf16.xpose.msra.mxu0 0
      %831 = vmatprep.subr.bf16.mxu0 0
      %832 = vmatpush2.bf16.xpose.msra.mxu0 0
      %833 = vmatprep.mubr.bf16.mxu0 0
      %834 = vmatmul.mubr.bf16.gmra.mxu0 %v796
      %v835 = vpop.f32.mrf.mxu0
      %v836 = vadd.f32 0.0, %v835
      %v837 = vpop.f32.mrf.mxu0
      %v838 = vpop.f32.mrf.mxu0
      %v839 = vpop.f32.mrf.mxu0
      %840 = vdwg.mxu0
      %v841 = vsel %vm571, %v836, -inf
      %842 = vmax.xlane.f32.xlu0 %v841
      %v843 = vpop.xlane.xlu0 %842
      %v844 = vsub.f32 %v836, %v843
      %v845 = vmul.f32 %v844, 1.442695
      %v846 = vpow.pop %v845
      %v847 = vpack.c.bf16 %v846, %v846
      %848 = vrot.lane.b32.xlu0 %v570, 80
      %v849 = vpop.permute.xlu0 %848
      %v851 = vsel %vm571, %v847, 0
      %v854 = vsel %vm631, %v849, 0
      %856 = vmatprep.subr.bf16.mxu0 0
      %857 = vmatpush1.bf16.msra.mxu0 0
      %858 = vmatprep.subr.bf16.mxu0 0
      %859 = vmatpush1.bf16.msra.mxu0 0
      %860 = vmatprep.subr.bf16.mxu0 0
      %861 = vmatpush1.bf16.msra.mxu0 0
      %862 = vmatprep.subr.bf16.mxu0 0
      %863 = vmatpush1.bf16.msra.mxu0 0
      %864 = vmatprep.subr.bf16.mxu0 0
      %865 = vmatpush1.bf16.msra.mxu0 0
      %866 = vmatprep.subr.bf16.mxu0 0
      %867 = vmatpush1.bf16.msra.mxu0 0
      %868 = vmatprep.subr.bf16.mxu0 0
      %869 = vmatpush1.bf16.msra.mxu0 0
      %870 = vmatprep.subr.bf16.mxu0 0
      %871 = vmatpush1.bf16.msra.mxu0 %v854
      %872 = vmatprep.subr.bf16.mxu0 0
      %873 = vmatpush2.bf16.msra.mxu0 0
      %874 = vmatprep.subr.bf16.mxu0 0
      %875 = vmatpush2.bf16.msra.mxu0 0
      %876 = vmatprep.subr.bf16.mxu0 0
      %877 = vmatpush2.bf16.msra.mxu0 0
      %878 = vmatprep.subr.bf16.mxu0 0
      %879 = vmatpush2.bf16.msra.mxu0 0
      %880 = vmatprep.subr.bf16.mxu0 0
      %881 = vmatpush2.bf16.msra.mxu0 0
      %882 = vmatprep.subr.bf16.mxu0 0
      %883 = vmatpush2.bf16.msra.mxu0 0
      %884 = vmatprep.subr.bf16.mxu0 0
      %885 = vmatpush2.bf16.msra.mxu0 0
      %886 = vmatprep.subr.bf16.mxu0 0
      %887 = vmatpush2.bf16.msra.mxu0 0
      %888 = vmatprep.mubr.bf16.mxu0 0
      %889 = vmatmul.mubr.bf16.gmra.mxu0 %v851
      %v890 = vpop.f32.mrf.mxu0
      %v891 = vadd.f32 0.0, %v890
      %v892 = vpop.f32.mrf.mxu0
      %v893 = vpop.f32.mrf.mxu0
      %v894 = vpop.f32.mrf.mxu0
      %895 = vdwg.mxu0
      %v896 = vsel %vm571, %v846, 0.0
      %897 = vadd.xlane.f32.xlu0 %v896
      %v898 = vpop.xlane.xlu0 %897
      %v899 = vrcp.pop %v898
      %v900 = vmul.f32 %v891, %v899
      %901 = vrot.lane.b32.xlu0 %v569, 104
      %v902 = vpop.permute.xlu0 %901
      %903 = vrot.lane.b32.xlu0 %v570, 104
      %v904 = vpop.permute.xlu0 %903
      %v906 = vsel %vm571, %v902, 0
      %v909 = vsel %vm571, %v904, 0
      %911 = vmatprep.subr.bf16.mxu0 0
      %912 = vmatpush1.bf16.xpose.msra.mxu0 0
      %913 = vmatprep.subr.bf16.mxu0 0
      %914 = vmatpush1.bf16.xpose.msra.mxu0 0
      %915 = vmatprep.subr.bf16.mxu0 0
      %916 = vmatpush1.bf16.xpose.msra.mxu0 0
      %917 = vmatprep.subr.bf16.mxu0 0
      %918 = vmatpush1.bf16.xpose.msra.mxu0 0
      %919 = vmatprep.subr.bf16.mxu0 0
      %920 = vmatpush1.bf16.xpose.msra.mxu0 0
      %921 = vmatprep.subr.bf16.mxu0 0
      %922 = vmatpush1.bf16.xpose.msra.mxu0 0
      %923 = vmatprep.subr.bf16.mxu0 0
      %924 = vmatpush1.bf16.xpose.msra.mxu0 0
      %925 = vmatprep.subr.bf16.mxu0 0
      %926 = vmatpush1.bf16.xpose.msra.mxu0 %v909
      %927 = vmatprep.subr.bf16.mxu0 0
      %928 = vmatpush2.bf16.xpose.msra.mxu0 0
      %929 = vmatprep.subr.bf16.mxu0 0
      %930 = vmatpush2.bf16.xpose.msra.mxu0 0
      %931 = vmatprep.subr.bf16.mxu0 0
      %932 = vmatpush2.bf16.xpose.msra.mxu0 0
      %933 = vmatprep.subr.bf16.mxu0 0
      %934 = vmatpush2.bf16.xpose.msra.mxu0 0
      %935 = vmatprep.subr.bf16.mxu0 0
      %936 = vmatpush2.bf16.xpose.msra.mxu0 0
      %937 = vmatprep.subr.bf16.mxu0 0
      %938 = vmatpush2.bf16.xpose.msra.mxu0 0
      %939 = vmatprep.subr.bf16.mxu0 0
      %940 = vmatpush2.bf16.xpose.msra.mxu0 0
      %941 = vmatprep.subr.bf16.mxu0 0
      %942 = vmatpush2.bf16.xpose.msra.mxu0 0
      %943 = vmatprep.mubr.bf16.mxu0 0
      %944 = vmatmul.mubr.bf16.gmra.mxu0 %v906
      %v945 = vpop.f32.mrf.mxu0
      %v946 = vadd.f32 0.0, %v945
      %v947 = vpop.f32.mrf.mxu0
      %v948 = vpop.f32.mrf.mxu0
      %v949 = vpop.f32.mrf.mxu0
      %950 = vdwg.mxu0
      %v951 = vsel %vm571, %v946, -inf
      %952 = vmax.xlane.f32.xlu0 %v951
      %v953 = vpop.xlane.xlu0 %952
      %v954 = vsub.f32 %v946, %v953
      %v955 = vmul.f32 %v954, 1.442695
      %v956 = vpow.pop %v955
      %v957 = vpack.c.bf16 %v956, %v956
      %958 = vrot.lane.b32.xlu0 %v570, 72
      %v959 = vpop.permute.xlu0 %958
      %v961 = vsel %vm571, %v957, 0
      %v964 = vsel %vm631, %v959, 0
      %966 = vmatprep.subr.bf16.mxu0 0
      %967 = vmatpush1.bf16.msra.mxu0 0
      %968 = vmatprep.subr.bf16.mxu0 0
      %969 = vmatpush1.bf16.msra.mxu0 0
      %970 = vmatprep.subr.bf16.mxu0 0
      %971 = vmatpush1.bf16.msra.mxu0 0
      %972 = vmatprep.subr.bf16.mxu0 0
      %973 = vmatpush1.bf16.msra.mxu0 0
      %974 = vmatprep.subr.bf16.mxu0 0
      %975 = vmatpush1.bf16.msra.mxu0 0
      %976 = vmatprep.subr.bf16.mxu0 0
      %977 = vmatpush1.bf16.msra.mxu0 0
      %978 = vmatprep.subr.bf16.mxu0 0
      %979 = vmatpush1.bf16.msra.mxu0 0
      %980 = vmatprep.subr.bf16.mxu0 0
      %981 = vmatpush1.bf16.msra.mxu0 %v964
      %982 = vmatprep.subr.bf16.mxu0 0
      %983 = vmatpush2.bf16.msra.mxu0 0
      %984 = vmatprep.subr.bf16.mxu0 0
      %985 = vmatpush2.bf16.msra.mxu0 0
      %986 = vmatprep.subr.bf16.mxu0 0
      %987 = vmatpush2.bf16.msra.mxu0 0
      %988 = vmatprep.subr.bf16.mxu0 0
      %989 = vmatpush2.bf16.msra.mxu0 0
      %990 = vmatprep.subr.bf16.mxu0 0
      %991 = vmatpush2.bf16.msra.mxu0 0
      %992 = vmatprep.subr.bf16.mxu0 0
      %993 = vmatpush2.bf16.msra.mxu0 0
      %994 = vmatprep.subr.bf16.mxu0 0
      %995 = vmatpush2.bf16.msra.mxu0 0
      %996 = vmatprep.subr.bf16.mxu0 0
      %997 = vmatpush2.bf16.msra.mxu0 0
      %998 = vmatprep.mubr.bf16.mxu0 0
      %999 = vmatmul.mubr.bf16.gmra.mxu0 %v961
      %v1000 = vpop.f32.mrf.mxu0
      %v1001 = vadd.f32 0.0, %v1000
      %v1002 = vpop.f32.mrf.mxu0
      %v1003 = vpop.f32.mrf.mxu0
      %v1004 = vpop.f32.mrf.mxu0
      %1005 = vdwg.mxu0
      %v1006 = vsel %vm571, %v956, 0.0
      %1007 = vadd.xlane.f32.xlu0 %v1006
      %v1008 = vpop.xlane.xlu0 %1007
      %v1009 = vrcp.pop %v1008
      %v1010 = vmul.f32 %v1001, %v1009
      %1012 = vrot.lane.b32.xlu0 %v790, 8
      %v1013 = vpop.permute.xlu0 %1012
      %1016 = vrot.lane.b32.xlu0 %v900, 16
      %v1017 = vpop.permute.xlu0 %1016
      %1020 = vrot.lane.b32.xlu0 %v1010, 24
      %v1021 = vpop.permute.xlu0 %1020
      %v1023 = vsel %vm571, %v679, %v1013
      %vm1024 = vcmask 130048
      %v1025 = vsel %vm1024, %v1023, %v1017
      %vm1026 = vcmask 195584
      %v1027 = vsel %vm1026, %v1025, %v1021
      %v1028 = vpack.c.bf16 %v1027, %v1027
      %v1029 = vld [vmem:[%s5] sm:$0xf]
      %v1030 = vld [vmem:[%s5 + $0x4] sm:$0xf]
      %v1031 = vld [vmem:[%s5 + $0x8] sm:$0xf]
      %v1032 = vld [vmem:[%s5 + $0xc] sm:$0xf]
      %v1033 = vld [vmem:[%s6] sm:$0x1]
      %v1035 = vlaneseq
      %v1036 = vshrl.u32 %v1035, 7
      %v1037 = vsub.s32 0, %v1036
      %v1038 = vrot.slane %v1033, %v1037
      %v1044 = vunpack.c.l.b16 %v1029
      %v1045 = vunpack.c.l.b16 %v1030
      %v1046 = vunpack.c.l.b16 %v1031
      %v1047 = vunpack.c.l.b16 %v1032
      %v1048 = vpack.c.b16 %v1045, %v1044
      %v1049 = vpack.c.b16 %v1047, %v1046
      %v1053 = vsel %vm459, %v1028, 0
      %1055 = vmatprep.subr.bf16.mxu0 0
      %1056 = vmatpush1.bf16.msra.mxu0 0
      %1057 = vmatprep.subr.bf16.mxu0 0
      %1058 = vmatpush1.bf16.msra.mxu0 0
      %1059 = vmatprep.subr.bf16.mxu0 0
      %1060 = vmatpush1.bf16.msra.mxu0 0
      %1061 = vmatprep.subr.bf16.mxu0 0
      %1062 = vmatpush1.bf16.msra.mxu0 0
      %1063 = vmatprep.subr.bf16.mxu0 0
      %1064 = vmatpush1.bf16.msra.mxu0 0
      %1065 = vmatprep.subr.bf16.mxu0 0
      %1066 = vmatpush1.bf16.msra.mxu0 0
      %1067 = vmatprep.subr.bf16.mxu0 0
      %1068 = vmatpush1.bf16.msra.mxu0 %v1049
      %1069 = vmatprep.subr.bf16.mxu0 0
      %1070 = vmatpush1.bf16.msra.mxu0 %v1048
      %1071 = vmatprep.subr.bf16.mxu0 0
      %1072 = vmatpush2.bf16.msra.mxu0 0
      %1073 = vmatprep.subr.bf16.mxu0 0
      %1074 = vmatpush2.bf16.msra.mxu0 0
      %1075 = vmatprep.subr.bf16.mxu0 0
      %1076 = vmatpush2.bf16.msra.mxu0 0
      %1077 = vmatprep.subr.bf16.mxu0 0
      %1078 = vmatpush2.bf16.msra.mxu0 0
      %1079 = vmatprep.subr.bf16.mxu0 0
      %1080 = vmatpush2.bf16.msra.mxu0 0
      %1081 = vmatprep.subr.bf16.mxu0 0
      %1082 = vmatpush2.bf16.msra.mxu0 0
      %1083 = vmatprep.subr.bf16.mxu0 0
      %1084 = vmatpush2.bf16.msra.mxu0 0
      %1085 = vmatprep.subr.bf16.mxu0 0
      %1086 = vmatpush2.bf16.msra.mxu0 0
      %1087 = vmatprep.mubr.bf16.mxu0 0
      %1088 = vmatmul.mubr.bf16.gmra.mxu0 %v1053
      %v1089 = vpop.f32.mrf.mxu0
      %v1090 = vadd.f32 %v1038, %v1089
      %v1091 = vpop.f32.mrf.mxu0
      %v1092 = vpop.f32.mrf.mxu0
      %v1093 = vpop.f32.mrf.mxu0
      %1094 = vdwg.mxu0
      %v1095 = vld [vmem:[%s7] sm:$0xf]
      %v1096 = vld [vmem:[%s7 + $0x4] sm:$0xf]
      %v1097 = vld [vmem:[%s7 + $0x8] sm:$0xf]
      %v1098 = vld [vmem:[%s7 + $0xc] sm:$0xf]
      %v1099 = vpack.c.bf16 %v1090, %v1090
      %v1100 = vld [vmem:[%s8] sm:$0xf]
      %v1101 = vld [vmem:[%s8 + $0x4] sm:$0xf]
      %v1102 = vld [vmem:[%s8 + $0x8] sm:$0xf]
      %v1103 = vld [vmem:[%s8 + $0xc] sm:$0xf]
      %v1108 = vunpack.c.l.b16 %v1100
      %v1109 = vunpack.c.l.b16 %v1101
      %v1110 = vunpack.c.l.b16 %v1102
      %v1111 = vunpack.c.l.b16 %v1103
      %v1112 = vpack.c.b16 %v1109, %v1108
      %v1113 = vpack.c.b16 %v1111, %v1110
      %v1117 = vsel %vm459, %v1099, 0
      %1119 = vmatprep.subr.bf16.mxu0 0
      %1120 = vmatpush1.bf16.msra.mxu0 0
      %1121 = vmatprep.subr.bf16.mxu0 0
      %1122 = vmatpush1.bf16.msra.mxu0 0
      %1123 = vmatprep.subr.bf16.mxu0 0
      %1124 = vmatpush1.bf16.msra.mxu0 0
      %1125 = vmatprep.subr.bf16.mxu0 0
      %1126 = vmatpush1.bf16.msra.mxu0 0
      %1127 = vmatprep.subr.bf16.mxu0 0
      %1128 = vmatpush1.bf16.msra.mxu0 0
      %1129 = vmatprep.subr.bf16.mxu0 0
      %1130 = vmatpush1.bf16.msra.mxu0 0
      %1131 = vmatprep.subr.bf16.mxu0 0
      %1132 = vmatpush1.bf16.msra.mxu0 %v1113
      %1133 = vmatprep.subr.bf16.mxu0 0
      %1134 = vmatpush1.bf16.msra.mxu0 %v1112
      %1135 = vmatprep.subr.bf16.mxu0 0
      %1136 = vmatpush2.bf16.msra.mxu0 0
      %1137 = vmatprep.subr.bf16.mxu0 0
      %1138 = vmatpush2.bf16.msra.mxu0 0
      %1139 = vmatprep.subr.bf16.mxu0 0
      %1140 = vmatpush2.bf16.msra.mxu0 0
      %1141 = vmatprep.subr.bf16.mxu0 0
      %1142 = vmatpush2.bf16.msra.mxu0 0
      %1143 = vmatprep.subr.bf16.mxu0 0
      %1144 = vmatpush2.bf16.msra.mxu0 0
      %1145 = vmatprep.subr.bf16.mxu0 0
      %1146 = vmatpush2.bf16.msra.mxu0 0
      %1147 = vmatprep.subr.bf16.mxu0 0
      %1148 = vmatpush2.bf16.msra.mxu0 0
      %1149 = vmatprep.subr.bf16.mxu0 0
      %1150 = vmatpush2.bf16.msra.mxu0 0
      %1151 = vmatprep.mubr.bf16.mxu0 0
      %1152 = vmatmul.mubr.bf16.gmra.mxu0 %v1117
      %v1153 = vpop.f32.mrf.mxu0
      %v1154 = vadd.f32 0.0, %v1153
      %v1155 = vpop.f32.mrf.mxu0
      %v1156 = vpop.f32.mrf.mxu0
      %v1157 = vpop.f32.mrf.mxu0
      %1158 = vdwg.mxu0
      %v1163 = vunpack.c.l.b16 %v1095
      %v1164 = vunpack.c.l.b16 %v1096
      %v1165 = vunpack.c.l.b16 %v1097
      %v1166 = vunpack.c.l.b16 %v1098
      %v1167 = vpack.c.b16 %v1164, %v1163
      %v1168 = vpack.c.b16 %v1166, %v1165
      %1171 = vmatprep.subr.bf16.mxu0 0
      %1172 = vmatpush1.bf16.msra.mxu0 0
      %1173 = vmatprep.subr.bf16.mxu0 0
      %1174 = vmatpush1.bf16.msra.mxu0 0
      %1175 = vmatprep.subr.bf16.mxu0 0
      %1176 = vmatpush1.bf16.msra.mxu0 0
      %1177 = vmatprep.subr.bf16.mxu0 0
      %1178 = vmatpush1.bf16.msra.mxu0 0
      %1179 = vmatprep.subr.bf16.mxu0 0
      %1180 = vmatpush1.bf16.msra.mxu0 0
      %1181 = vmatprep.subr.bf16.mxu0 0
      %1182 = vmatpush1.bf16.msra.mxu0 0
      %1183 = vmatprep.subr.bf16.mxu0 0
      %1184 = vmatpush1.bf16.msra.mxu0 %v1168
      %1185 = vmatprep.subr.bf16.mxu0 0
      %1186 = vmatpush1.bf16.msra.mxu0 %v1167
      %1187 = vmatprep.subr.bf16.mxu0 0
      %1188 = vmatpush2.bf16.msra.mxu0 0
      %1189 = vmatprep.subr.bf16.mxu0 0
      %1190 = vmatpush2.bf16.msra.mxu0 0
      %1191 = vmatprep.subr.bf16.mxu0 0
      %1192 = vmatpush2.bf16.msra.mxu0 0
      %1193 = vmatprep.subr.bf16.mxu0 0
      %1194 = vmatpush2.bf16.msra.mxu0 0
      %1195 = vmatprep.subr.bf16.mxu0 0
      %1196 = vmatpush2.bf16.msra.mxu0 0
      %1197 = vmatprep.subr.bf16.mxu0 0
      %1198 = vmatpush2.bf16.msra.mxu0 0
      %1199 = vmatprep.subr.bf16.mxu0 0
      %1200 = vmatpush2.bf16.msra.mxu0 0
      %1201 = vmatprep.subr.bf16.mxu0 0
      %1202 = vmatpush2.bf16.msra.mxu0 0
      %1203 = vmatprep.mubr.bf16.mxu0 0
      %1204 = vmatmul.mubr.bf16.gmra.mxu0 %v461
      %v1205 = vpop.f32.mrf.mxu0
      %v1206 = vadd.f32 %v1154, %v1205
      %v1207 = vpop.f32.mrf.mxu0
      %v1208 = vpop.f32.mrf.mxu0
      %v1209 = vpop.f32.mrf.mxu0
      %1210 = vdwg.mxu0
      %v1211 = vld [vmem:[%s9] sm:$0x1]
      %v1213 = vlaneseq
      %v1214 = vshrl.u32 %v1213, 7
      %v1215 = vsub.s32 0, %v1214
      %v1216 = vrot.slane %v1211, %v1215
      %v1218 = vadd.f32 %v1206, %v1216
      %v1219 = vmax.f32 %v1218, 0.0
      %v1220 = vpack.c.bf16 %v1219, %v1219
      %v1221 = vld [vmem:[%s10] sm:$0xf]
      %v1222 = vld [vmem:[%s10 + $0x4] sm:$0xf]
      %v1223 = vld [vmem:[%s10 + $0x8] sm:$0xf]
      %v1224 = vld [vmem:[%s10 + $0xc] sm:$0xf]
      %v1225 = vld [vmem:[%s10 + $0x10] sm:$0xf]
      %v1226 = vld [vmem:[%s10 + $0x14] sm:$0xf]
      %v1227 = vld [vmem:[%s10 + $0x18] sm:$0xf]
      %v1228 = vld [vmem:[%s10 + $0x1c] sm:$0xf]
      %v1229 = vld [vmem:[%s11] sm:$0x1]
      %v1231 = vlaneseq
      %v1232 = vshrl.u32 %v1231, 7
      %v1233 = vsub.s32 0, %v1232
      %v1234 = vrot.slane %v1229, %v1233
      %v1244 = vunpack.c.l.b16 %v1221
      %v1245 = vunpack.c.l.b16 %v1222
      %v1246 = vunpack.c.l.b16 %v1223
      %v1247 = vunpack.c.l.b16 %v1224
      %v1248 = vunpack.c.l.b16 %v1225
      %v1249 = vunpack.c.l.b16 %v1226
      %v1250 = vunpack.c.l.b16 %v1227
      %v1251 = vunpack.c.l.b16 %v1228
      %v1252 = vpack.c.b16 %v1245, %v1244
      %v1253 = vpack.c.b16 %v1247, %v1246
      %v1254 = vpack.c.b16 %v1249, %v1248
      %v1255 = vpack.c.b16 %v1251, %v1250
      %vm1260 = vcmask 523264
      %v1262 = vsel %vm1260, %v1220, 0
      %1264 = vmatprep.subr.bf16.mxu0 0
      %1265 = vmatpush1.bf16.msra.mxu0 0
      %1266 = vmatprep.subr.bf16.mxu0 0
      %1267 = vmatpush1.bf16.msra.mxu0 0
      %1268 = vmatprep.subr.bf16.mxu0 0
      %1269 = vmatpush1.bf16.msra.mxu0 0
      %1270 = vmatprep.subr.bf16.mxu0 0
      %1271 = vmatpush1.bf16.msra.mxu0 0
      %1272 = vmatprep.subr.bf16.mxu0 0
      %1273 = vmatpush1.bf16.msra.mxu0 %v1255
      %1274 = vmatprep.subr.bf16.mxu0 0
      %1275 = vmatpush1.bf16.msra.mxu0 %v1254
      %1276 = vmatprep.subr.bf16.mxu0 0
      %1277 = vmatpush1.bf16.msra.mxu0 %v1253
      %1278 = vmatprep.subr.bf16.mxu0 0
      %1279 = vmatpush1.bf16.msra.mxu0 %v1252
      %1280 = vmatprep.subr.bf16.mxu0 0
      %1281 = vmatpush2.bf16.msra.mxu0 0
      %1282 = vmatprep.subr.bf16.mxu0 0
      %1283 = vmatpush2.bf16.msra.mxu0 0
      %1284 = vmatprep.subr.bf16.mxu0 0
      %1285 = vmatpush2.bf16.msra.mxu0 0
      %1286 = vmatprep.subr.bf16.mxu0 0
      %1287 = vmatpush2.bf16.msra.mxu0 0
      %1288 = vmatprep.subr.bf16.mxu0 0
      %1289 = vmatpush2.bf16.msra.mxu0 0
      %1290 = vmatprep.subr.bf16.mxu0 0
      %1291 = vmatpush2.bf16.msra.mxu0 0
      %1292 = vmatprep.subr.bf16.mxu0 0
      %1293 = vmatpush2.bf16.msra.mxu0 0
      %1294 = vmatprep.subr.bf16.mxu0 0
      %1295 = vmatpush2.bf16.msra.mxu0 0
      %1296 = vmatprep.mubr.bf16.mxu0 0
      %1297 = vmatmul.mubr.bf16.gmra.mxu0 %v1262
      %v1298 = vpop.f32.mrf.mxu0
      %v1299 = vadd.f32 %v1234, %v1298
      %v1300 = vpop.f32.mrf.mxu0
      %v1301 = vpop.f32.mrf.mxu0
      %v1302 = vpop.f32.mrf.mxu0
      %1303 = vdwg.mxu0
      %v1304 = vadd.f32 %v432, %v1299
      %1305 = vst.msk [vmem:[%s428] sm:$0xff] %vm459, %v1304
      %p1306 = scmp.lt.s32.totalorder %s27, 3
      %s1307 = scalar_select %p1306, %s27, 3
      %p1308 = scmp.lt.s32.totalorder %s28, 0
      %s1309 = scalar_select %p1308, %s28, 0
      %s1310 = sadd.s32 %s1309, %s1307
      %s1311 = smul.addr %s1310, 8
      %s1312 = scalar_lea.vmem %s12, %s1311
      // Predicated region
      $region69: #{_lambda_.2} parent=67 // pred_check
        %p1313 = pneg %p312
      $region70: #{_lambda_.2} parent=67 // pred_check_branch
        %1315 = sbr.rel (%p1313) target = $region72
      $region71: #{_lambda_.2} parent=67 // pred_region
        _
      $region72: #{_lambda_.2} parent=67 // pred_fallthru
        _
    $region68: #{_lambda_.2} parent=5 // pred_fallthru
      _
    %p1316 = scmp.le.s32.totalorder 2, %s18
    // Predicated region
    $region73: #{_lambda_.2} parent=5 // pred_check
      %p1317 = pneg %p1316
    $region74: #{_lambda_.2} parent=5 // pred_check_branch
      %1319 = sbr.rel (%p1317) target = $region76
    $region75: #{_lambda_.2} parent=5 // pred_region
      %s1320 = ssub.s32 %s18, 2
      // Predicated region
      $region77: #{_lambda_.2} parent=75 // pred_check
        %p1321 = pneg %p318
      $region78: #{_lambda_.2} parent=75 // pred_check_branch
        %1323 = sbr.rel (%p1321) target = $region80
      $region79: #{_lambda_.2} parent=75 // pred_region
        %p1324 = scmp.lt.s32.totalorder %s29, 3
        %s1325 = scalar_select %p1324, %s29, 3
        %p1326 = scmp.lt.s32.totalorder %s30, 0
        %s1327 = scalar_select %p1326, %s30, 0
        %s1328 = sadd.s32 %s1327, %s1325
        %s1329 = smul.addr %s1328, 8
        %s1330 = scalar_lea.vmem %s12, %s1329
      $region80: #{_lambda_.2} parent=75 // pred_fallthru
        _
    $region76: #{_lambda_.2} parent=5 // pred_fallthru
      _
  $region6: #{_lambda_.2} parent=0 // loop_footer
    %s22 = sadd.s32 1, %s18
  $region7: #{_lambda_.2} parent=0 // loop_footer_branch
    %17 = sbr.rel target = $region3
  $region8: #{_lambda_.2} parent=0 // loop_exit
    _

// kernel: _lambda_.3
$region0: #{_lambda_.3}
  #allocation0 [shape = 'u32[]', space=smem, size = 0x4, offset = 0x4, fixed_abs, tag = 'smem constant byte address 0x4 - core index']
  #allocation1 [shape = 'u32[144,128]{1,0:T(1,128)}', space=vmem, size = 0x12000, scoped, tag = 'internal scratch']
  %s0 = inlined_call_operand.vmem [shape: f32[4,8,32], index: 0, kind: input, shape index: {}, may-alias: {0,1}]
  %s1 = inlined_call_operand.vmem [shape: f32[4,8,32], index: 1, kind: input, shape index: {}, may-alias: {0,1}]
  %s2 = inlined_call_operand.vmem [shape: bf16[32,32], index: 2, kind: input, shape index: {}]
  %s3 = inlined_call_operand.vmem [shape: f32[1,32], index: 3, kind: input, shape index: {}]
  %s4 = inlined_call_operand.vmem [shape: bf16[32,64], index: 4, kind: input, shape index: {}]
  %s5 = inlined_call_operand.vmem [shape: f32[1,64], index: 5, kind: input, shape index: {}]
  %s6 = inlined_call_operand.vmem [shape: bf16[32,32], index: 6, kind: input, shape index: {}]
  %s7 = inlined_call_operand.vmem [shape: f32[1,32], index: 7, kind: input, shape index: {}]
  %s8 = inlined_call_operand.vmem [shape: bf16[32,64], index: 8, kind: input, shape index: {}]
  %s9 = inlined_call_operand.vmem [shape: bf16[32,64], index: 9, kind: input, shape index: {}]
  %s10 = inlined_call_operand.vmem [shape: f32[1,64], index: 10, kind: input, shape index: {}]
  %s11 = inlined_call_operand.vmem [shape: bf16[64,32], index: 11, kind: input, shape index: {}]
  %s12 = inlined_call_operand.vmem [shape: f32[1,32], index: 12, kind: input, shape index: {}]
  %s13 = inlined_call_operand.vmem [shape: f32[4,8,32], index: 13, kind: output, shape index: {}]
  %s14 = sld [smem:[#allocation0]]
  $region85: #{_lambda_.3} parent=0
    _
  %s16 = ssub.s32 1, %s14
  %s17 = scalar_select 0, %s16, %s14
  loop: start=0, step=1, limit=6
  $region2: #{_lambda_.3} parent=0 // loop_pre_header
    _
  $region3: #{_lambda_.3} parent=0 // loop_header
    %s19 = sphi 0, %s23
    %p20 = scmp.ge.s32.totalorder %s19, 6
    %s26 = sphi 0, %s38
    %s27 = sphi 0, %s34
    %s28 = sphi 0, %s26
    %s29 = sphi 0, %s27
    %s30 = sphi 0, %s28
    %s31 = sphi 0, %s29
    %s43 = sphi 0, %s45
    %s46 = sphi 0, %s43
    %s47 = sphi 0, %s46
    %s63 = sphi 0, %s47
    %s95 = sphi 0, %s97
    %s98 = sphi 0, %s95
    %s99 = sphi 0, %s98
    %s115 = sphi 0, %s99
    %s119 = sphi 0, %s119
    %s121 = sphi 0, %s119
    %s122 = sphi 0, %s121
    %s136 = sphi 0, %s122
    %s140 = sphi 0, %s140
    %s142 = sphi 0, %s140
    %s143 = sphi 0, %s142
    %s157 = sphi 0, %s143
    %s161 = sphi 0, %s161
    %s163 = sphi 0, %s161
    %s164 = sphi 0, %s163
    %s178 = sphi 0, %s164
    %s182 = sphi 0, %s182
    %s184 = sphi 0, %s182
    %s185 = sphi 0, %s184
    %s199 = sphi 0, %s185
    %s203 = sphi 0, %s203
    %s205 = sphi 0, %s203
    %s206 = sphi 0, %s205
    %s220 = sphi 0, %s206
    %s224 = sphi 0, %s224
    %s226 = sphi 0, %s224
    %s227 = sphi 0, %s226
    %s241 = sphi 0, %s227
    %s245 = sphi 0, %s245
    %s247 = sphi 0, %s245
    %s248 = sphi 0, %s247
    %s262 = sphi 0, %s248
    %s266 = sphi 0, %s266
    %s268 = sphi 0, %s266
    %s269 = sphi 0, %s268
    %s283 = sphi 0, %s269
    %s287 = sphi 0, %s287
    %s289 = sphi 0, %s287
    %s290 = sphi 0, %s289
    %s304 = sphi 0, %s290
    %s308 = sphi 0, %s308
    %s310 = sphi 0, %s308
    %s311 = sphi 0, %s310
    %s325 = sphi 0, %s311
    %s329 = sphi 0, %s329
    %s331 = sphi 0, %s329
    %s332 = sphi 0, %s331
    %s346 = sphi 0, %s332
    %s354 = sphi 0, %s356
    %s357 = sphi 0, %s354
    %s358 = sphi 0, %s357
    %s374 = sphi 0, %s358
  $region4: #{_lambda_.3} parent=0 // loop_header_branch
    %22 = sbr.rel (%p20) target = $region8
  $region5: #{_lambda_.3} parent=0 // loop_body
    %s24 = ssub.s32 %s19, 1
    %s25 = ssub.s32 %s19, 2
    %s32 = sadd.s32 1, %s27
    %p33 = scmp.ge.s32.totalorder %s32, 1
    %s34 = scalar_select %p33, 0, %s32
    %s35 = sadd.s32 1, %s26
    %s36 = scalar_select %p33, %s35, %s26
    %p37 = scmp.ge.s32.totalorder %s36, 4
    %s38 = scalar_select %p37, 0, %s36
    %s39 = ssub.s32 %s26, %s38
    %s40 = ssub.s32 %s27, %s34
    %s41 = sor.u32 %s39, %s40
    %p42 = scmp.eq.s32.totalorder %s41, 0
    %s44 = sadd.s32 %s43, 1
    %s45 = scalar_select %p42, %s43, %s44
    %p48 = pneg %p42
    %p49 = scmp.eq.s32.totalorder %s19, 3
    %p50 = por %p48, %p49
    %p51 = scmp.ne.s32.totalorder %s43, %s46
    %p52 = scmp.eq.s32.totalorder %s19, 0
    %p53 = por %p51, %p52
    %p54 = scmp.ne.s32.totalorder %s43, %s46
    %p55 = scmp.eq.s32.totalorder %s24, 3
    %p56 = por %p54, %p55
    %p57 = scmp.ne.s32.totalorder %s46, %s47
    %p58 = scmp.eq.s32.totalorder %s24, 0
    %p59 = por %p57, %p58
    %p60 = scmp.ne.s32.totalorder %s46, %s47
    %p61 = scmp.eq.s32.totalorder %s25, 3
    %p62 = por %p60, %p61
    %p64 = scmp.ne.s32.totalorder %s47, %s63
    %p65 = scmp.eq.s32.totalorder %s25, 0
    %p66 = por %p64, %p65
    %s67 = sadd.s32 %s26, 2
    %p68 = scmp.lt.s32.totalorder %s67, 0
    %s69 = ssub.s32 0, %s67
    %s70 = scalar_select %p68, %s69, %s67
    %s71 = sand.u32 %s70, 3
    %s72 = ssub.s32 0, %s71
    %s73 = scalar_select %p68, %s72, %s71
    %p74 = scmp.ne.s32.totalorder %s73, 0
    %p75 = scmp.lt.s32.totalorder %s73, 0
    %p76 = pnand %p75, %p74
    %p77 = pneg %p76
    %s78 = sadd.s32 %s73, 4
    %s79 = scalar_select %p77, %s78, %s73
    %s80 = sadd.s32 %s38, 2
    %p81 = scmp.lt.s32.totalorder %s80, 0
    %s82 = ssub.s32 0, %s80
    %s83 = scalar_select %p81, %s82, %s80
    %s84 = sand.u32 %s83, 3
    %s85 = ssub.s32 0, %s84
    %s86 = scalar_select %p81, %s85, %s84
    %p87 = scmp.ne.s32.totalorder %s86, 0
    %p88 = scmp.lt.s32.totalorder %s86, 0
    %p89 = pnand %p88, %p87
    %p90 = pneg %p89
    %s91 = sadd.s32 %s86, 4
    %s92 = scalar_select %p90, %s91, %s86
    %s93 = ssub.s32 %s79, %s92
    %p94 = scmp.eq.s32.totalorder %s93, 0
    %s96 = sadd.s32 %s95, 1
    %s97 = scalar_select %p94, %s95, %s96
    %p100 = pneg %p94
    %p101 = scmp.eq.s32.totalorder %s19, 3
    %p102 = por %p100, %p101
    %p103 = scmp.ne.s32.totalorder %s95, %s98
    %p104 = scmp.eq.s32.totalorder %s19, 0
    %p105 = por %p103, %p104
    %p106 = scmp.ne.s32.totalorder %s95, %s98
    %p107 = scmp.eq.s32.totalorder %s24, 3
    %p108 = por %p106, %p107
    %p109 = scmp.ne.s32.totalorder %s98, %s99
    %p110 = scmp.eq.s32.totalorder %s24, 0
    %p111 = por %p109, %p110
    %p112 = scmp.ne.s32.totalorder %s98, %s99
    %p113 = scmp.eq.s32.totalorder %s25, 3
    %p114 = por %p112, %p113
    %p116 = scmp.ne.s32.totalorder %s99, %s115
    %p117 = scmp.eq.s32.totalorder %s25, 0
    %p118 = por %p116, %p117
    %s120 = sadd.s32 %s119, 1
    %p123 = scmp.eq.s32.totalorder %s19, 3
    %p124 = scmp.ne.s32.totalorder %s119, %s121
    %p125 = scmp.eq.s32.totalorder %s19, 0
    %p126 = por %p124, %p125
    %p127 = scmp.ne.s32.totalorder %s119, %s121
    %p128 = scmp.eq.s32.totalorder %s24, 3
    %p129 = por %p127, %p128
    %p130 = scmp.ne.s32.totalorder %s121, %s122
    %p131 = scmp.eq.s32.totalorder %s24, 0
    %p132 = por %p130, %p131
    %p133 = scmp.ne.s32.totalorder %s121, %s122
    %p134 = scmp.eq.s32.totalorder %s25, 3
    %p135 = por %p133, %p134
    %p137 = scmp.ne.s32.totalorder %s122, %s136
    %p138 = scmp.eq.s32.totalorder %s25, 0
    %p139 = por %p137, %p138
    %s141 = sadd.s32 %s140, 1
    %p144 = scmp.eq.s32.totalorder %s19, 3
    %p145 = scmp.ne.s32.totalorder %s140, %s142
    %p146 = scmp.eq.s32.totalorder %s19, 0
    %p147 = por %p145, %p146
    %p148 = scmp.ne.s32.totalorder %s140, %s142
    %p149 = scmp.eq.s32.totalorder %s24, 3
    %p150 = por %p148, %p149
    %p151 = scmp.ne.s32.totalorder %s142, %s143
    %p152 = scmp.eq.s32.totalorder %s24, 0
    %p153 = por %p151, %p152
    %p154 = scmp.ne.s32.totalorder %s142, %s143
    %p155 = scmp.eq.s32.totalorder %s25, 3
    %p156 = por %p154, %p155
    %p158 = scmp.ne.s32.totalorder %s143, %s157
    %p159 = scmp.eq.s32.totalorder %s25, 0
    %p160 = por %p158, %p159
    %s162 = sadd.s32 %s161, 1
    %p165 = scmp.eq.s32.totalorder %s19, 3
    %p166 = scmp.ne.s32.totalorder %s161, %s163
    %p167 = scmp.eq.s32.totalorder %s19, 0
    %p168 = por %p166, %p167
    %p169 = scmp.ne.s32.totalorder %s161, %s163
    %p170 = scmp.eq.s32.totalorder %s24, 3
    %p171 = por %p169, %p170
    %p172 = scmp.ne.s32.totalorder %s163, %s164
    %p173 = scmp.eq.s32.totalorder %s24, 0
    %p174 = por %p172, %p173
    %p175 = scmp.ne.s32.totalorder %s163, %s164
    %p176 = scmp.eq.s32.totalorder %s25, 3
    %p177 = por %p175, %p176
    %p179 = scmp.ne.s32.totalorder %s164, %s178
    %p180 = scmp.eq.s32.totalorder %s25, 0
    %p181 = por %p179, %p180
    %s183 = sadd.s32 %s182, 1
    %p186 = scmp.eq.s32.totalorder %s19, 3
    %p187 = scmp.ne.s32.totalorder %s182, %s184
    %p188 = scmp.eq.s32.totalorder %s19, 0
    %p189 = por %p187, %p188
    %p190 = scmp.ne.s32.totalorder %s182, %s184
    %p191 = scmp.eq.s32.totalorder %s24, 3
    %p192 = por %p190, %p191
    %p193 = scmp.ne.s32.totalorder %s184, %s185
    %p194 = scmp.eq.s32.totalorder %s24, 0
    %p195 = por %p193, %p194
    %p196 = scmp.ne.s32.totalorder %s184, %s185
    %p197 = scmp.eq.s32.totalorder %s25, 3
    %p198 = por %p196, %p197
    %p200 = scmp.ne.s32.totalorder %s185, %s199
    %p201 = scmp.eq.s32.totalorder %s25, 0
    %p202 = por %p200, %p201
    %s204 = sadd.s32 %s203, 1
    %p207 = scmp.eq.s32.totalorder %s19, 3
    %p208 = scmp.ne.s32.totalorder %s203, %s205
    %p209 = scmp.eq.s32.totalorder %s19, 0
    %p210 = por %p208, %p209
    %p211 = scmp.ne.s32.totalorder %s203, %s205
    %p212 = scmp.eq.s32.totalorder %s24, 3
    %p213 = por %p211, %p212
    %p214 = scmp.ne.s32.totalorder %s205, %s206
    %p215 = scmp.eq.s32.totalorder %s24, 0
    %p216 = por %p214, %p215
    %p217 = scmp.ne.s32.totalorder %s205, %s206
    %p218 = scmp.eq.s32.totalorder %s25, 3
    %p219 = por %p217, %p218
    %p221 = scmp.ne.s32.totalorder %s206, %s220
    %p222 = scmp.eq.s32.totalorder %s25, 0
    %p223 = por %p221, %p222
    %s225 = sadd.s32 %s224, 1
    %p228 = scmp.eq.s32.totalorder %s19, 3
    %p229 = scmp.ne.s32.totalorder %s224, %s226
    %p230 = scmp.eq.s32.totalorder %s19, 0
    %p231 = por %p229, %p230
    %p232 = scmp.ne.s32.totalorder %s224, %s226
    %p233 = scmp.eq.s32.totalorder %s24, 3
    %p234 = por %p232, %p233
    %p235 = scmp.ne.s32.totalorder %s226, %s227
    %p236 = scmp.eq.s32.totalorder %s24, 0
    %p237 = por %p235, %p236
    %p238 = scmp.ne.s32.totalorder %s226, %s227
    %p239 = scmp.eq.s32.totalorder %s25, 3
    %p240 = por %p238, %p239
    %p242 = scmp.ne.s32.totalorder %s227, %s241
    %p243 = scmp.eq.s32.totalorder %s25, 0
    %p244 = por %p242, %p243
    %s246 = sadd.s32 %s245, 1
    %p249 = scmp.eq.s32.totalorder %s19, 3
    %p250 = scmp.ne.s32.totalorder %s245, %s247
    %p251 = scmp.eq.s32.totalorder %s19, 0
    %p252 = por %p250, %p251
    %p253 = scmp.ne.s32.totalorder %s245, %s247
    %p254 = scmp.eq.s32.totalorder %s24, 3
    %p255 = por %p253, %p254
    %p256 = scmp.ne.s32.totalorder %s247, %s248
    %p257 = scmp.eq.s32.totalorder %s24, 0
    %p258 = por %p256, %p257
    %p259 = scmp.ne.s32.totalorder %s247, %s248
    %p260 = scmp.eq.s32.totalorder %s25, 3
    %p261 = por %p259, %p260
    %p263 = scmp.ne.s32.totalorder %s248, %s262
    %p264 = scmp.eq.s32.totalorder %s25, 0
    %p265 = por %p263, %p264
    %s267 = sadd.s32 %s266, 1
    %p270 = scmp.eq.s32.totalorder %s19, 3
    %p271 = scmp.ne.s32.totalorder %s266, %s268
    %p272 = scmp.eq.s32.totalorder %s19, 0
    %p273 = por %p271, %p272
    %p274 = scmp.ne.s32.totalorder %s266, %s268
    %p275 = scmp.eq.s32.totalorder %s24, 3
    %p276 = por %p274, %p275
    %p277 = scmp.ne.s32.totalorder %s268, %s269
    %p278 = scmp.eq.s32.totalorder %s24, 0
    %p279 = por %p277, %p278
    %p280 = scmp.ne.s32.totalorder %s268, %s269
    %p281 = scmp.eq.s32.totalorder %s25, 3
    %p282 = por %p280, %p281
    %p284 = scmp.ne.s32.totalorder %s269, %s283
    %p285 = scmp.eq.s32.totalorder %s25, 0
    %p286 = por %p284, %p285
    %s288 = sadd.s32 %s287, 1
    %p291 = scmp.eq.s32.totalorder %s19, 3
    %p292 = scmp.ne.s32.totalorder %s287, %s289
    %p293 = scmp.eq.s32.totalorder %s19, 0
    %p294 = por %p292, %p293
    %p295 = scmp.ne.s32.totalorder %s287, %s289
    %p296 = scmp.eq.s32.totalorder %s24, 3
    %p297 = por %p295, %p296
    %p298 = scmp.ne.s32.totalorder %s289, %s290
    %p299 = scmp.eq.s32.totalorder %s24, 0
    %p300 = por %p298, %p299
    %p301 = scmp.ne.s32.totalorder %s289, %s290
    %p302 = scmp.eq.s32.totalorder %s25, 3
    %p303 = por %p301, %p302
    %p305 = scmp.ne.s32.totalorder %s290, %s304
    %p306 = scmp.eq.s32.totalorder %s25, 0
    %p307 = por %p305, %p306
    %s309 = sadd.s32 %s308, 1
    %p312 = scmp.eq.s32.totalorder %s19, 3
    %p313 = scmp.ne.s32.totalorder %s308, %s310
    %p314 = scmp.eq.s32.totalorder %s19, 0
    %p315 = por %p313, %p314
    %p316 = scmp.ne.s32.totalorder %s308, %s310
    %p317 = scmp.eq.s32.totalorder %s24, 3
    %p318 = por %p316, %p317
    %p319 = scmp.ne.s32.totalorder %s310, %s311
    %p320 = scmp.eq.s32.totalorder %s24, 0
    %p321 = por %p319, %p320
    %p322 = scmp.ne.s32.totalorder %s310, %s311
    %p323 = scmp.eq.s32.totalorder %s25, 3
    %p324 = por %p322, %p323
    %p326 = scmp.ne.s32.totalorder %s311, %s325
    %p327 = scmp.eq.s32.totalorder %s25, 0
    %p328 = por %p326, %p327
    %s330 = sadd.s32 %s329, 1
    %p333 = scmp.eq.s32.totalorder %s19, 3
    %p334 = scmp.ne.s32.totalorder %s329, %s331
    %p335 = scmp.eq.s32.totalorder %s19, 0
    %p336 = por %p334, %p335
    %p337 = scmp.ne.s32.totalorder %s329, %s331
    %p338 = scmp.eq.s32.totalorder %s24, 3
    %p339 = por %p337, %p338
    %p340 = scmp.ne.s32.totalorder %s331, %s332
    %p341 = scmp.eq.s32.totalorder %s24, 0
    %p342 = por %p340, %p341
    %p343 = scmp.ne.s32.totalorder %s331, %s332
    %p344 = scmp.eq.s32.totalorder %s25, 3
    %p345 = por %p343, %p344
    %p347 = scmp.ne.s32.totalorder %s332, %s346
    %p348 = scmp.eq.s32.totalorder %s25, 0
    %p349 = por %p347, %p348
    %s350 = ssub.s32 %s26, %s38
    %s351 = ssub.s32 %s27, %s34
    %s352 = sor.u32 %s350, %s351
    %p353 = scmp.eq.s32.totalorder %s352, 0
    %s355 = sadd.s32 %s354, 1
    %s356 = scalar_select %p353, %s354, %s355
    %p359 = pneg %p353
    %p360 = scmp.eq.s32.totalorder %s19, 3
    %p361 = por %p359, %p360
    %p362 = scmp.ne.s32.totalorder %s354, %s357
    %p363 = scmp.eq.s32.totalorder %s19, 0
    %p364 = por %p362, %p363
    %p365 = scmp.ne.s32.totalorder %s354, %s357
    %p366 = scmp.eq.s32.totalorder %s24, 3
    %p367 = por %p365, %p366
    %p368 = scmp.ne.s32.totalorder %s357, %s358
    %p369 = scmp.eq.s32.totalorder %s24, 0
    %p370 = por %p368, %p369
    %p371 = scmp.ne.s32.totalorder %s357, %s358
    %p372 = scmp.eq.s32.totalorder %s25, 3
    %p373 = por %p371, %p372
    %p375 = scmp.ne.s32.totalorder %s358, %s374
    %p376 = scmp.eq.s32.totalorder %s25, 0
    %p377 = por %p375, %p376
    %p378 = scmp.le.s32.totalorder 1, %s19
    %p379 = scmp.lt.s32.totalorder %s19, 5
    %p380 = pnand %p378, %p379
    %p381 = pneg %p380
    // Predicated region
    $region9: #{_lambda_.3} parent=5 // pred_check
      _
    $region10: #{_lambda_.3} parent=5 // pred_check_branch
      %383 = sbr.rel (%p380) target = $region12
    $region11: #{_lambda_.3} parent=5 // pred_region
      %s384 = ssub.s32 %s19, 1
      // Predicated region
      $region13: #{_lambda_.3} parent=11 // pred_check
        %p385 = pneg %p132
      $region14: #{_lambda_.3} parent=11 // pred_check_branch
        %387 = sbr.rel (%p385) target = $region16
      $region15: #{_lambda_.3} parent=11 // pred_region
        _
      $region16: #{_lambda_.3} parent=11 // pred_fallthru
        _
      // Predicated region
      $region17: #{_lambda_.3} parent=11 // pred_check
        %p388 = pneg %p153
      $region18: #{_lambda_.3} parent=11 // pred_check_branch
        %390 = sbr.rel (%p388) target = $region20
      $region19: #{_lambda_.3} parent=11 // pred_region
        _
      $region20: #{_lambda_.3} parent=11 // pred_fallthru
        _
      // Predicated region
      $region21: #{_lambda_.3} parent=11 // pred_check
        %p391 = pneg %p174
      $region22: #{_lambda_.3} parent=11 // pred_check_branch
        %393 = sbr.rel (%p391) target = $region24
      $region23: #{_lambda_.3} parent=11 // pred_region
        _
      $region24: #{_lambda_.3} parent=11 // pred_fallthru
        _
      // Predicated region
      $region25: #{_lambda_.3} parent=11 // pred_check
        %p394 = pneg %p195
      $region26: #{_lambda_.3} parent=11 // pred_check_branch
        %396 = sbr.rel (%p394) target = $region28
      $region27: #{_lambda_.3} parent=11 // pred_region
        _
      $region28: #{_lambda_.3} parent=11 // pred_fallthru
        _
      // Predicated region
      $region29: #{_lambda_.3} parent=11 // pred_check
        %p397 = pneg %p216
      $region30: #{_lambda_.3} parent=11 // pred_check_branch
        %399 = sbr.rel (%p397) target = $region32
      $region31: #{_lambda_.3} parent=11 // pred_region
        _
      $region32: #{_lambda_.3} parent=11 // pred_fallthru
        _
      // Predicated region
      $region33: #{_lambda_.3} parent=11 // pred_check
        %p400 = pneg %p237
      $region34: #{_lambda_.3} parent=11 // pred_check_branch
        %402 = sbr.rel (%p400) target = $region36
      $region35: #{_lambda_.3} parent=11 // pred_region
        _
      $region36: #{_lambda_.3} parent=11 // pred_fallthru
        _
      // Predicated region
      $region37: #{_lambda_.3} parent=11 // pred_check
        %p403 = pneg %p258
      $region38: #{_lambda_.3} parent=11 // pred_check_branch
        %405 = sbr.rel (%p403) target = $region40
      $region39: #{_lambda_.3} parent=11 // pred_region
        _
      $region40: #{_lambda_.3} parent=11 // pred_fallthru
        _
      // Predicated region
      $region41: #{_lambda_.3} parent=11 // pred_check
        %p406 = pneg %p279
      $region42: #{_lambda_.3} parent=11 // pred_check_branch
        %408 = sbr.rel (%p406) target = $region44
      $region43: #{_lambda_.3} parent=11 // pred_region
        _
      $region44: #{_lambda_.3} parent=11 // pred_fallthru
        _
      // Predicated region
      $region45: #{_lambda_.3} parent=11 // pred_check
        %p409 = pneg %p300
      $region46: #{_lambda_.3} parent=11 // pred_check_branch
        %411 = sbr.rel (%p409) target = $region48
      $region47: #{_lambda_.3} parent=11 // pred_region
        _
      $region48: #{_lambda_.3} parent=11 // pred_fallthru
        _
      // Predicated region
      $region49: #{_lambda_.3} parent=11 // pred_check
        %p412 = pneg %p321
      $region50: #{_lambda_.3} parent=11 // pred_check_branch
        %414 = sbr.rel (%p412) target = $region52
      $region51: #{_lambda_.3} parent=11 // pred_region
        _
      $region52: #{_lambda_.3} parent=11 // pred_fallthru
        _
      // Predicated region
      $region53: #{_lambda_.3} parent=11 // pred_check
        %p415 = pneg %p342
      $region54: #{_lambda_.3} parent=11 // pred_check_branch
        %417 = sbr.rel (%p415) target = $region56
      $region55: #{_lambda_.3} parent=11 // pred_region
        _
      $region56: #{_lambda_.3} parent=11 // pred_fallthru
        _
    $region12: #{_lambda_.3} parent=5 // pred_fallthru
      _
    %p418 = scmp.lt.s32.totalorder %s19, 4
    // Predicated region
    $region57: #{_lambda_.3} parent=5 // pred_check
      %p419 = pneg %p418
    $region58: #{_lambda_.3} parent=5 // pred_check_branch
      %421 = sbr.rel (%p419) target = $region60
    $region59: #{_lambda_.3} parent=5 // pred_region
      // Predicated region
      $region61: #{_lambda_.3} parent=59 // pred_check
        %p422 = pneg %p53
      $region62: #{_lambda_.3} parent=59 // pred_check_branch
        %424 = sbr.rel (%p422) target = $region64
      $region63: #{_lambda_.3} parent=59 // pred_region
        %p425 = scmp.lt.s32.totalorder %s26, 3
        %s426 = scalar_select %p425, %s26, 3
        %p427 = scmp.lt.s32.totalorder %s27, 0
        %s428 = scalar_select %p427, %s27, 0
        %s429 = sadd.s32 %s428, %s426
        %s430 = smul.addr %s429, 8
        %s431 = scalar_lea.vmem %s0, %s430
      $region64: #{_lambda_.3} parent=59 // pred_fallthru
        _
      // Predicated region
      $region65: #{_lambda_.3} parent=59 // pred_check
        %p432 = pneg %p105
      $region66: #{_lambda_.3} parent=59 // pred_check_branch
        %434 = sbr.rel (%p432) target = $region68
      $region67: #{_lambda_.3} parent=59 // pred_region
        %s435 = sadd.s32 %s26, 2
        %p436 = scmp.lt.s32.totalorder %s435, 0
        %s437 = ssub.s32 0, %s435
        %s438 = scalar_select %p436, %s437, %s435
        %s439 = sand.u32 %s438, 3
        %s440 = ssub.s32 0, %s439
        %s441 = scalar_select %p436, %s440, %s439
        %p442 = scmp.ne.s32.totalorder %s441, 0
        %p443 = scmp.lt.s32.totalorder %s441, 0
        %p444 = pnand %p443, %p442
        %p445 = pneg %p444
        %s446 = sadd.s32 %s441, 4
        %s447 = scalar_select %p445, %s446, %s441
        %p448 = scmp.lt.s32.totalorder %s447, 3
        %s449 = scalar_select %p448, %s447, 3
        %s450 = smul.addr %s449, 8
        %s451 = scalar_lea.vmem %s1, %s450
        %s452 = sadd.s32 %s26, 2
        %p453 = scmp.lt.s32.totalorder %s452, 0
        %s454 = ssub.s32 0, %s452
        %s455 = scalar_select %p453, %s454, %s452
        %s456 = sand.u32 %s455, 3
        %s457 = ssub.s32 0, %s456
        %s458 = scalar_select %p453, %s457, %s456
        %p459 = scmp.ne.s32.totalorder %s458, 0
        %p460 = scmp.lt.s32.totalorder %s458, 0
        %p461 = pnand %p460, %p459
        %p462 = pneg %p461
        %s463 = sadd.s32 %s458, 4
        %s464 = scalar_select %p462, %s463, %s458
      $region68: #{_lambda_.3} parent=59 // pred_fallthru
        _
    $region60: #{_lambda_.3} parent=5 // pred_fallthru
      _
    %p465 = scmp.le.s32.totalorder 1, %s19
    %p466 = scmp.lt.s32.totalorder %s19, 5
    %p467 = pnand %p465, %p466
    %p468 = pneg %p467
    // Predicated region
    $region69: #{_lambda_.3} parent=5 // pred_check
      _
    $region70: #{_lambda_.3} parent=5 // pred_check_branch
      %470 = sbr.rel (%p467) target = $region72
    $region71: #{_lambda_.3} parent=5 // pred_region
      %s471 = ssub.s32 %s19, 1
      %p472 = scmp.lt.s32.totalorder %s28, 3
      %s473 = scalar_select %p472, %s28, 3
      %p474 = scmp.lt.s32.totalorder %s29, 0
      %s475 = scalar_select %p474, %s29, 0
      %s476 = sadd.s32 %s475, %s473
      %s477 = smul.addr %s476, 8
      %s478 = scalar_lea.vmem %s0, %s477
      %p479 = pneg %p59
      %p480 = pneg %p56
      %s481 = sadd.s32 %s28, 2
      %p482 = scmp.lt.s32.totalorder %s481, 0
      %s483 = ssub.s32 0, %s481
      %s484 = scalar_select %p482, %s483, %s481
      %s485 = sand.u32 %s484, 3
      %s486 = ssub.s32 0, %s485
      %s487 = scalar_select %p482, %s486, %s485
      %p488 = scmp.ne.s32.totalorder %s487, 0
      %p489 = scmp.lt.s32.totalorder %s487, 0
      %p490 = pnand %p489, %p488
      %p491 = pneg %p490
      %s492 = sadd.s32 %s487, 4
      %s493 = scalar_select %p491, %s492, %s487
      %p494 = scmp.lt.s32.totalorder %s493, 3
      %s495 = scalar_select %p494, %s493, 3
      %s496 = smul.addr %s495, 8
      %s497 = scalar_lea.vmem %s1, %s496
      %p498 = pneg %p111
      %p499 = pneg %p108
      %p500 = pneg %p132
      %p501 = pneg %p129
      %p502 = pneg %p153
      %p503 = pneg %p150
      %p504 = pneg %p174
      %p505 = pneg %p171
      %p506 = pneg %p195
      %p507 = pneg %p192
      %p508 = pneg %p216
      %p509 = pneg %p213
      %p510 = pneg %p237
      %p511 = pneg %p234
      %p512 = pneg %p258
      %p513 = pneg %p255
      %p514 = pneg %p279
      %p515 = pneg %p276
      %p516 = pneg %p300
      %p517 = pneg %p297
      %p518 = pneg %p321
      %p519 = pneg %p318
      %p520 = pneg %p342
      %p521 = pneg %p339
      %p522 = pneg %p370
      %p523 = pneg %p367
      %p524 = scmp.lt.s32.totalorder %s28, 3
      %s525 = scalar_select %p524, %s28, 3
      %p526 = scmp.lt.s32.totalorder %s29, 0
      %s527 = scalar_select %p526, %s29, 0
      %s528 = sadd.s32 %s527, %s525
      %s529 = smul.addr %s528, 8
      %s530 = scalar_lea.vmem %s13, %s529
      %p531 = scmp.lt.s32.totalorder %s28, 3
      %s532 = scalar_select %p531, %s28, 3
      %p533 = scmp.lt.s32.totalorder %s29, 0
      %s534 = scalar_select %p533, %s29, 0
      %s535 = sadd.s32 %s534, %s532
      %s536 = smul.addr %s535, 8
      %s537 = scalar_lea.vmem %s0, %s536
      %s538 = sadd.s32 %s28, 2
      %p539 = scmp.lt.s32.totalorder %s538, 0
      %s540 = ssub.s32 0, %s538
      %s541 = scalar_select %p539, %s540, %s538
      %s542 = sand.u32 %s541, 3
      %s543 = ssub.s32 0, %s542
      %s544 = scalar_select %p539, %s543, %s542
      %p545 = scmp.ne.s32.totalorder %s544, 0
      %p546 = scmp.lt.s32.totalorder %s544, 0
      %p547 = pnand %p546, %p545
      %p548 = pneg %p547
      %s549 = sadd.s32 %s544, 4
      %s550 = scalar_select %p548, %s549, %s544
      %p551 = scmp.lt.s32.totalorder %s550, 3
      %s552 = scalar_select %p551, %s550, 3
      %s553 = smul.addr %s552, 8
      %s554 = scalar_lea.vmem %s1, %s553
      %s555 = sadd.s32 %s28, 2
      %p556 = scmp.lt.s32.totalorder %s555, 0
      %s557 = ssub.s32 0, %s555
      %s558 = scalar_select %p556, %s557, %s555
      %s559 = sand.u32 %s558, 3
      %s560 = ssub.s32 0, %s559
      %s561 = scalar_select %p556, %s560, %s559
      %p562 = scmp.ne.s32.totalorder %s561, 0
      %p563 = scmp.lt.s32.totalorder %s561, 0
      %p564 = pnand %p563, %p562
      %p565 = pneg %p564
      %s566 = sadd.s32 %s561, 4
      %s567 = scalar_select %p565, %s566, %s561
      %p568 = scmp.lt.s32.totalorder %s28, 3
      %s569 = scalar_select %p568, %s28, 3
      %p570 = scmp.lt.s32.totalorder %s29, 0
      %s571 = scalar_select %p570, %s29, 0
      %s572 = sadd.s32 %s571, %s569
      %s573 = smul.addr %s572, 8
      %s574 = scalar_lea.vmem %s13, %s573
      %v576 = vld [vmem:[%s537] sm:$0xff]
      %v577 = vld [vmem:[%s554] sm:$0xff]
      %v578 = vpack.c.bf16 %v576, %v576
      %v579 = vpack.c.bf16 %v577, %v577
      %v580 = vld [vmem:[%s2] sm:$0xf]
      %v581 = vld [vmem:[%s2 + $0x4] sm:$0xf]
      %v582 = vld [vmem:[%s2 + $0x8] sm:$0xf]
      %v583 = vld [vmem:[%s2 + $0xc] sm:$0xf]
      %v584 = vld [vmem:[%s3] sm:$0x1]
      %v586 = vlaneseq
      %v587 = vshrl.u32 %v586, 7
      %v588 = vsub.s32 0, %v587
      %v589 = vrot.slane %v584, %v588
      %v595 = vunpack.c.l.b16 %v580
      %v596 = vunpack.c.l.b16 %v581
      %v597 = vunpack.c.l.b16 %v582
      %v598 = vunpack.c.l.b16 %v583
      %v599 = vpack.c.b16 %v596, %v595
      %v600 = vpack.c.b16 %v598, %v597
      %vm603 = vcmask 261120
      %v605 = vsel %vm603, %v578, 0
      %607 = vmatprep.subr.bf16.mxu0 0
      %608 = vmatpush1.bf16.msra.mxu0 0
      %609 = vmatprep.subr.bf16.mxu0 0
      %610 = vmatpush1.bf16.msra.mxu0 0
      %611 = vmatprep.subr.bf16.mxu0 0
      %612 = vmatpush1.bf16.msra.mxu0 0
      %613 = vmatprep.subr.bf16.mxu0 0
      %614 = vmatpush1.bf16.msra.mxu0 0
      %615 = vmatprep.subr.bf16.mxu0 0
      %616 = vmatpush1.bf16.msra.mxu0 0
      %617 = vmatprep.subr.bf16.mxu0 0
      %618 = vmatpush1.bf16.msra.mxu0 0
      %619 = vmatprep.subr.bf16.mxu0 0
      %620 = vmatpush1.bf16.msra.mxu0 %v600
      %621 = vmatprep.subr.bf16.mxu0 0
      %622 = vmatpush1.bf16.msra.mxu0 %v599
      %623 = vmatprep.subr.bf16.mxu0 0
      %624 = vmatpush2.bf16.msra.mxu0 0
      %625 = vmatprep.subr.bf16.mxu0 0
      %626 = vmatpush2.bf16.msra.mxu0 0
      %627 = vmatprep.subr.bf16.mxu0 0
      %628 = vmatpush2.bf16.msra.mxu0 0
      %629 = vmatprep.subr.bf16.mxu0 0
      %630 = vmatpush2.bf16.msra.mxu0 0
      %631 = vmatprep.subr.bf16.mxu0 0
      %632 = vmatpush2.bf16.msra.mxu0 0
      %633 = vmatprep.subr.bf16.mxu0 0
      %634 = vmatpush2.bf16.msra.mxu0 0
      %635 = vmatprep.subr.bf16.mxu0 0
      %636 = vmatpush2.bf16.msra.mxu0 0
      %637 = vmatprep.subr.bf16.mxu0 0
      %638 = vmatpush2.bf16.msra.mxu0 0
      %639 = vmatprep.mubr.bf16.mxu0 0
      %640 = vmatmul.mubr.bf16.gmra.mxu0 %v605
      %v641 = vpop.f32.mrf.mxu0
      %v642 = vadd.f32 %v589, %v641
      %v643 = vpop.f32.mrf.mxu0
      %v644 = vpop.f32.mrf.mxu0
      %v645 = vpop.f32.mrf.mxu0
      %646 = vdwg.mxu0
      %v647 = vld [vmem:[%s4] sm:$0xf]
      %v648 = vld [vmem:[%s4 + $0x4] sm:$0xf]
      %v649 = vld [vmem:[%s4 + $0x8] sm:$0xf]
      %v650 = vld [vmem:[%s4 + $0xc] sm:$0xf]
      %v651 = vld [vmem:[%s5] sm:$0x1]
      %v653 = vlaneseq
      %v654 = vshrl.u32 %v653, 7
      %v655 = vsub.s32 0, %v654
      %v656 = vrot.slane %v651, %v655
      %v662 = vunpack.c.l.b16 %v647
      %v663 = vunpack.c.l.b16 %v648
      %v664 = vunpack.c.l.b16 %v649
      %v665 = vunpack.c.l.b16 %v650
      %v666 = vpack.c.b16 %v663, %v662
      %v667 = vpack.c.b16 %v665, %v664
      %v671 = vsel %vm603, %v579, 0
      %673 = vmatprep.subr.bf16.mxu0 0
      %674 = vmatpush1.bf16.msra.mxu0 0
      %675 = vmatprep.subr.bf16.mxu0 0
      %676 = vmatpush1.bf16.msra.mxu0 0
      %677 = vmatprep.subr.bf16.mxu0 0
      %678 = vmatpush1.bf16.msra.mxu0 0
      %679 = vmatprep.subr.bf16.mxu0 0
      %680 = vmatpush1.bf16.msra.mxu0 0
      %681 = vmatprep.subr.bf16.mxu0 0
      %682 = vmatpush1.bf16.msra.mxu0 0
      %683 = vmatprep.subr.bf16.mxu0 0
      %684 = vmatpush1.bf16.msra.mxu0 0
      %685 = vmatprep.subr.bf16.mxu0 0
      %686 = vmatpush1.bf16.msra.mxu0 %v667
      %687 = vmatprep.subr.bf16.mxu0 0
      %688 = vmatpush1.bf16.msra.mxu0 %v666
      %689 = vmatprep.subr.bf16.mxu0 0
      %690 = vmatpush2.bf16.msra.mxu0 0
      %691 = vmatprep.subr.bf16.mxu0 0
      %692 = vmatpush2.bf16.msra.mxu0 0
      %693 = vmatprep.subr.bf16.mxu0 0
      %694 = vmatpush2.bf16.msra.mxu0 0
      %695 = vmatprep.subr.bf16.mxu0 0
      %696 = vmatpush2.bf16.msra.mxu0 0
      %697 = vmatprep.subr.bf16.mxu0 0
      %698 = vmatpush2.bf16.msra.mxu0 0
      %699 = vmatprep.subr.bf16.mxu0 0
      %700 = vmatpush2.bf16.msra.mxu0 0
      %701 = vmatprep.subr.bf16.mxu0 0
      %702 = vmatpush2.bf16.msra.mxu0 0
      %703 = vmatprep.subr.bf16.mxu0 0
      %704 = vmatpush2.bf16.msra.mxu0 0
      %705 = vmatprep.mubr.bf16.mxu0 0
      %706 = vmatmul.mubr.bf16.gmra.mxu0 %v671
      %v707 = vpop.f32.mrf.mxu0
      %v708 = vadd.f32 %v656, %v707
      %v709 = vpop.f32.mrf.mxu0
      %v710 = vpop.f32.mrf.mxu0
      %v711 = vpop.f32.mrf.mxu0
      %712 = vdwg.mxu0
      %v713 = vpack.c.bf16 %v642, %v642
      %v714 = vpack.c.bf16 %v708, %v708
      %vm715 = vcmask 64512
      %v717 = vsel %vm715, %v713, 0
      %v720 = vsel %vm715, %v714, 0
      %722 = vmatprep.subr.bf16.mxu0 0
      %723 = vmatpush1.bf16.xpose.msra.mxu0 0
      %724 = vmatprep.subr.bf16.mxu0 0
      %725 = vmatpush1.bf16.xpose.msra.mxu0 0
      %726 = vmatprep.subr.bf16.mxu0 0
      %727 = vmatpush1.bf16.xpose.msra.mxu0 0
      %728 = vmatprep.subr.bf16.mxu0 0
      %729 = vmatpush1.bf16.xpose.msra.mxu0 0
      %730 = vmatprep.subr.bf16.mxu0 0
      %731 = vmatpush1.bf16.xpose.msra.mxu0 0
      %732 = vmatprep.subr.bf16.mxu0 0
      %733 = vmatpush1.bf16.xpose.msra.mxu0 0
      %734 = vmatprep.subr.bf16.mxu0 0
      %735 = vmatpush1.bf16.xpose.msra.mxu0 0
      %736 = vmatprep.subr.bf16.mxu0 0
      %737 = vmatpush1.bf16.xpose.msra.mxu0 %v720
      %738 = vmatprep.subr.bf16.mxu0 0
      %739 = vmatpush2.bf16.xpose.msra.mxu0 0
      %740 = vmatprep.subr.bf16.mxu0 0
      %741 = vmatpush2.bf16.xpose.msra.mxu0 0
      %742 = vmatprep.subr.bf16.mxu0 0
      %743 = vmatpush2.bf16.xpose.msra.mxu0 0
      %744 = vmatprep.subr.bf16.mxu0 0
      %745 = vmatpush2.bf16.xpose.msra.mxu0 0
      %746 = vmatprep.subr.bf16.mxu0 0
      %747 = vmatpush2.bf16.xpose.msra.mxu0 0
      %748 = vmatprep.subr.bf16.mxu0 0
      %749 = vmatpush2.bf16.xpose.msra.mxu0 0
      %750 = vmatprep.subr.bf16.mxu0 0
      %751 = vmatpush2.bf16.xpose.msra.mxu0 0
      %752 = vmatprep.subr.bf16.mxu0 0
      %753 = vmatpush2.bf16.xpose.msra.mxu0 0
      %754 = vmatprep.mubr.bf16.mxu0 0
      %755 = vmatmul.mubr.bf16.gmra.mxu0 %v717
      %v756 = vpop.f32.mrf.mxu0
      %v757 = vadd.f32 0.0, %v756
      %v758 = vpop.f32.mrf.mxu0
      %v759 = vpop.f32.mrf.mxu0
      %v760 = vpop.f32.mrf.mxu0
      %761 = vdwg.mxu0
      %v762 = vsel %vm715, %v757, -inf
      %763 = vmax.xlane.f32.xlu0 %v762
      %v764 = vpop.xlane.xlu0 %763
      %v765 = vsub.f32 %v757, %v764
      %v766 = vmul.f32 %v765, 1.442695
      %v767 = vpow.pop %v766
      %v768 = vpack.c.bf16 %v767, %v767
      %770 = vrot.lane.b32.xlu0 %v714, 96
      %v771 = vpop.permute.xlu0 %770
      %v773 = vsel %vm715, %v768, 0
      %vm775 = vcmask 1043456
      %v777 = vsel %vm775, %v771, 0
      %779 = vmatprep.subr.bf16.mxu0 0
      %780 = vmatpush1.bf16.msra.mxu0 0
      %781 = vmatprep.subr.bf16.mxu0 0
      %782 = vmatpush1.bf16.msra.mxu0 0
      %783 = vmatprep.subr.bf16.mxu0 0
      %784 = vmatpush1.bf16.msra.mxu0 0
      %785 = vmatprep.subr.bf16.mxu0 0
      %786 = vmatpush1.bf16.msra.mxu0 0
      %787 = vmatprep.subr.bf16.mxu0 0
      %788 = vmatpush1.bf16.msra.mxu0 0
      %789 = vmatprep.subr.bf16.mxu0 0
      %790 = vmatpush1.bf16.msra.mxu0 0
      %791 = vmatprep.subr.bf16.mxu0 0
      %792 = vmatpush1.bf16.msra.mxu0 0
      %793 = vmatprep.subr.bf16.mxu0 0
      %794 = vmatpush1.bf16.msra.mxu0 %v777
      %795 = vmatprep.subr.bf16.mxu0 0
      %796 = vmatpush2.bf16.msra.mxu0 0
      %797 = vmatprep.subr.bf16.mxu0 0
      %798 = vmatpush2.bf16.msra.mxu0 0
      %799 = vmatprep.subr.bf16.mxu0 0
      %800 = vmatpush2.bf16.msra.mxu0 0
      %801 = vmatprep.subr.bf16.mxu0 0
      %802 = vmatpush2.bf16.msra.mxu0 0
      %803 = vmatprep.subr.bf16.mxu0 0
      %804 = vmatpush2.bf16.msra.mxu0 0
      %805 = vmatprep.subr.bf16.mxu0 0
      %806 = vmatpush2.bf16.msra.mxu0 0
      %807 = vmatprep.subr.bf16.mxu0 0
      %808 = vmatpush2.bf16.msra.mxu0 0
      %809 = vmatprep.subr.bf16.mxu0 0
      %810 = vmatpush2.bf16.msra.mxu0 0
      %811 = vmatprep.mubr.bf16.mxu0 0
      %812 = vmatmul.mubr.bf16.gmra.mxu0 %v773
      %v813 = vpop.f32.mrf.mxu0
      %v814 = vadd.f32 0.0, %v813
      %v815 = vpop.f32.mrf.mxu0
      %v816 = vpop.f32.mrf.mxu0
      %v817 = vpop.f32.mrf.mxu0
      %818 = vdwg.mxu0
      %v819 = vsel %vm715, %v767, 0.0
      %820 = vadd.xlane.f32.xlu0 %v819
      %v821 = vpop.xlane.xlu0 %820
      %v822 = vrcp.pop %v821
      %v823 = vmul.f32 %v814, %v822
      %825 = vrot.lane.b32.xlu0 %v713, 120
      %v826 = vpop.permute.xlu0 %825
      %827 = vrot.lane.b32.xlu0 %v714, 120
      %v828 = vpop.permute.xlu0 %827
      %v830 = vsel %vm715, %v826, 0
      %v833 = vsel %vm715, %v828, 0
      %835 = vmatprep.subr.bf16.mxu0 0
      %836 = vmatpush1.bf16.xpose.msra.mxu0 0
      %837 = vmatprep.subr.bf16.mxu0 0
      %838 = vmatpush1.bf16.xpose.msra.mxu0 0
      %839 = vmatprep.subr.bf16.mxu0 0
      %840 = vmatpush1.bf16.xpose.msra.mxu0 0
      %841 = vmatprep.subr.bf16.mxu0 0
      %842 = vmatpush1.bf16.xpose.msra.mxu0 0
      %843 = vmatprep.subr.bf16.mxu0 0
      %844 = vmatpush1.bf16.xpose.msra.mxu0 0
      %845 = vmatprep.subr.bf16.mxu0 0
      %846 = vmatpush1.bf16.xpose.msra.mxu0 0
      %847 = vmatprep.subr.bf16.mxu0 0
      %848 = vmatpush1.bf16.xpose.msra.mxu0 0
      %849 = vmatprep.subr.bf16.mxu0 0
      %850 = vmatpush1.bf16.xpose.msra.mxu0 %v833
      %851 = vmatprep.subr.bf16.mxu0 0
      %852 = vmatpush2.bf16.xpose.msra.mxu0 0
      %853 = vmatprep.subr.bf16.mxu0 0
      %854 = vmatpush2.bf16.xpose.msra.mxu0 0
      %855 = vmatprep.subr.bf16.mxu0 0
      %856 = vmatpush2.bf16.xpose.msra.mxu0 0
      %857 = vmatprep.subr.bf16.mxu0 0
      %858 = vmatpush2.bf16.xpose.msra.mxu0 0
      %859 = vmatprep.subr.bf16.mxu0 0
      %860 = vmatpush2.bf16.xpose.msra.mxu0 0
      %861 = vmatprep.subr.bf16.mxu0 0
      %862 = vmatpush2.bf16.xpose.msra.mxu0 0
      %863 = vmatprep.subr.bf16.mxu0 0
      %864 = vmatpush2.bf16.xpose.msra.mxu0 0
      %865 = vmatprep.subr.bf16.mxu0 0
      %866 = vmatpush2.bf16.xpose.msra.mxu0 0
      %867 = vmatprep.mubr.bf16.mxu0 0
      %868 = vmatmul.mubr.bf16.gmra.mxu0 %v830
      %v869 = vpop.f32.mrf.mxu0
      %v870 = vadd.f32 0.0, %v869
      %v871 = vpop.f32.mrf.mxu0
      %v872 = vpop.f32.mrf.mxu0
      %v873 = vpop.f32.mrf.mxu0
      %874 = vdwg.mxu0
      %v875 = vsel %vm715, %v870, -inf
      %876 = vmax.xlane.f32.xlu0 %v875
      %v877 = vpop.xlane.xlu0 %876
      %v878 = vsub.f32 %v870, %v877
      %v879 = vmul.f32 %v878, 1.442695
      %v880 = vpow.pop %v879
      %v881 = vpack.c.bf16 %v880, %v880
      %882 = vrot.lane.b32.xlu0 %v714, 88
      %v883 = vpop.permute.xlu0 %882
      %v885 = vsel %vm715, %v881, 0
      %v888 = vsel %vm775, %v883, 0
      %890 = vmatprep.subr.bf16.mxu0 0
      %891 = vmatpush1.bf16.msra.mxu0 0
      %892 = vmatprep.subr.bf16.mxu0 0
      %893 = vmatpush1.bf16.msra.mxu0 0
      %894 = vmatprep.subr.bf16.mxu0 0
      %895 = vmatpush1.bf16.msra.mxu0 0
      %896 = vmatprep.subr.bf16.mxu0 0
      %897 = vmatpush1.bf16.msra.mxu0 0
      %898 = vmatprep.subr.bf16.mxu0 0
      %899 = vmatpush1.bf16.msra.mxu0 0
      %900 = vmatprep.subr.bf16.mxu0 0
      %901 = vmatpush1.bf16.msra.mxu0 0
      %902 = vmatprep.subr.bf16.mxu0 0
      %903 = vmatpush1.bf16.msra.mxu0 0
      %904 = vmatprep.subr.bf16.mxu0 0
      %905 = vmatpush1.bf16.msra.mxu0 %v888
      %906 = vmatprep.subr.bf16.mxu0 0
      %907 = vmatpush2.bf16.msra.mxu0 0
      %908 = vmatprep.subr.bf16.mxu0 0
      %909 = vmatpush2.bf16.msra.mxu0 0
      %910 = vmatprep.subr.bf16.mxu0 0
      %911 = vmatpush2.bf16.msra.mxu0 0
      %912 = vmatprep.subr.bf16.mxu0 0
      %913 = vmatpush2.bf16.msra.mxu0 0
      %914 = vmatprep.subr.bf16.mxu0 0
      %915 = vmatpush2.bf16.msra.mxu0 0
      %916 = vmatprep.subr.bf16.mxu0 0
      %917 = vmatpush2.bf16.msra.mxu0 0
      %918 = vmatprep.subr.bf16.mxu0 0
      %919 = vmatpush2.bf16.msra.mxu0 0
      %920 = vmatprep.subr.bf16.mxu0 0
      %921 = vmatpush2.bf16.msra.mxu0 0
      %922 = vmatprep.mubr.bf16.mxu0 0
      %923 = vmatmul.mubr.bf16.gmra.mxu0 %v885
      %v924 = vpop.f32.mrf.mxu0
      %v925 = vadd.f32 0.0, %v924
      %v926 = vpop.f32.mrf.mxu0
      %v927 = vpop.f32.mrf.mxu0
      %v928 = vpop.f32.mrf.mxu0
      %929 = vdwg.mxu0
      %v930 = vsel %vm715, %v880, 0.0
      %931 = vadd.xlane.f32.xlu0 %v930
      %v932 = vpop.xlane.xlu0 %931
      %v933 = vrcp.pop %v932
      %v934 = vmul.f32 %v925, %v933
      %935 = vrot.lane.b32.xlu0 %v713, 112
      %v936 = vpop.permute.xlu0 %935
      %937 = vrot.lane.b32.xlu0 %v714, 112
      %v938 = vpop.permute.xlu0 %937
      %v940 = vsel %vm715, %v936, 0
      %v943 = vsel %vm715, %v938, 0
      %945 = vmatprep.subr.bf16.mxu0 0
      %946 = vmatpush1.bf16.xpose.msra.mxu0 0
      %947 = vmatprep.subr.bf16.mxu0 0
      %948 = vmatpush1.bf16.xpose.msra.mxu0 0
      %949 = vmatprep.subr.bf16.mxu0 0
      %950 = vmatpush1.bf16.xpose.msra.mxu0 0
      %951 = vmatprep.subr.bf16.mxu0 0
      %952 = vmatpush1.bf16.xpose.msra.mxu0 0
      %953 = vmatprep.subr.bf16.mxu0 0
      %954 = vmatpush1.bf16.xpose.msra.mxu0 0
      %955 = vmatprep.subr.bf16.mxu0 0
      %956 = vmatpush1.bf16.xpose.msra.mxu0 0
      %957 = vmatprep.subr.bf16.mxu0 0
      %958 = vmatpush1.bf16.xpose.msra.mxu0 0
      %959 = vmatprep.subr.bf16.mxu0 0
      %960 = vmatpush1.bf16.xpose.msra.mxu0 %v943
      %961 = vmatprep.subr.bf16.mxu0 0
      %962 = vmatpush2.bf16.xpose.msra.mxu0 0
      %963 = vmatprep.subr.bf16.mxu0 0
      %964 = vmatpush2.bf16.xpose.msra.mxu0 0
      %965 = vmatprep.subr.bf16.mxu0 0
      %966 = vmatpush2.bf16.xpose.msra.mxu0 0
      %967 = vmatprep.subr.bf16.mxu0 0
      %968 = vmatpush2.bf16.xpose.msra.mxu0 0
      %969 = vmatprep.subr.bf16.mxu0 0
      %970 = vmatpush2.bf16.xpose.msra.mxu0 0
      %971 = vmatprep.subr.bf16.mxu0 0
      %972 = vmatpush2.bf16.xpose.msra.mxu0 0
      %973 = vmatprep.subr.bf16.mxu0 0
      %974 = vmatpush2.bf16.xpose.msra.mxu0 0
      %975 = vmatprep.subr.bf16.mxu0 0
      %976 = vmatpush2.bf16.xpose.msra.mxu0 0
      %977 = vmatprep.mubr.bf16.mxu0 0
      %978 = vmatmul.mubr.bf16.gmra.mxu0 %v940
      %v979 = vpop.f32.mrf.mxu0
      %v980 = vadd.f32 0.0, %v979
      %v981 = vpop.f32.mrf.mxu0
      %v982 = vpop.f32.mrf.mxu0
      %v983 = vpop.f32.mrf.mxu0
      %984 = vdwg.mxu0
      %v985 = vsel %vm715, %v980, -inf
      %986 = vmax.xlane.f32.xlu0 %v985
      %v987 = vpop.xlane.xlu0 %986
      %v988 = vsub.f32 %v980, %v987
      %v989 = vmul.f32 %v988, 1.442695
      %v990 = vpow.pop %v989
      %v991 = vpack.c.bf16 %v990, %v990
      %992 = vrot.lane.b32.xlu0 %v714, 80
      %v993 = vpop.permute.xlu0 %992
      %v995 = vsel %vm715, %v991, 0
      %v998 = vsel %vm775, %v993, 0
      %1000 = vmatprep.subr.bf16.mxu0 0
      %1001 = vmatpush1.bf16.msra.mxu0 0
      %1002 = vmatprep.subr.bf16.mxu0 0
      %1003 = vmatpush1.bf16.msra.mxu0 0
      %1004 = vmatprep.subr.bf16.mxu0 0
      %1005 = vmatpush1.bf16.msra.mxu0 0
      %1006 = vmatprep.subr.bf16.mxu0 0
      %1007 = vmatpush1.bf16.msra.mxu0 0
      %1008 = vmatprep.subr.bf16.mxu0 0
      %1009 = vmatpush1.bf16.msra.mxu0 0
      %1010 = vmatprep.subr.bf16.mxu0 0
      %1011 = vmatpush1.bf16.msra.mxu0 0
      %1012 = vmatprep.subr.bf16.mxu0 0
      %1013 = vmatpush1.bf16.msra.mxu0 0
      %1014 = vmatprep.subr.bf16.mxu0 0
      %1015 = vmatpush1.bf16.msra.mxu0 %v998
      %1016 = vmatprep.subr.bf16.mxu0 0
      %1017 = vmatpush2.bf16.msra.mxu0 0
      %1018 = vmatprep.subr.bf16.mxu0 0
      %1019 = vmatpush2.bf16.msra.mxu0 0
      %1020 = vmatprep.subr.bf16.mxu0 0
      %1021 = vmatpush2.bf16.msra.mxu0 0
      %1022 = vmatprep.subr.bf16.mxu0 0
      %1023 = vmatpush2.bf16.msra.mxu0 0
      %1024 = vmatprep.subr.bf16.mxu0 0
      %1025 = vmatpush2.bf16.msra.mxu0 0
      %1026 = vmatprep.subr.bf16.mxu0 0
      %1027 = vmatpush2.bf16.msra.mxu0 0
      %1028 = vmatprep.subr.bf16.mxu0 0
      %1029 = vmatpush2.bf16.msra.mxu0 0
      %1030 = vmatprep.subr.bf16.mxu0 0
      %1031 = vmatpush2.bf16.msra.mxu0 0
      %1032 = vmatprep.mubr.bf16.mxu0 0
      %1033 = vmatmul.mubr.bf16.gmra.mxu0 %v995
      %v1034 = vpop.f32.mrf.mxu0
      %v1035 = vadd.f32 0.0, %v1034
      %v1036 = vpop.f32.mrf.mxu0
      %v1037 = vpop.f32.mrf.mxu0
      %v1038 = vpop.f32.mrf.mxu0
      %1039 = vdwg.mxu0
      %v1040 = vsel %vm715, %v990, 0.0
      %1041 = vadd.xlane.f32.xlu0 %v1040
      %v1042 = vpop.xlane.xlu0 %1041
      %v1043 = vrcp.pop %v1042
      %v1044 = vmul.f32 %v1035, %v1043
      %1045 = vrot.lane.b32.xlu0 %v713, 104
      %v1046 = vpop.permute.xlu0 %1045
      %1047 = vrot.lane.b32.xlu0 %v714, 104
      %v1048 = vpop.permute.xlu0 %1047
      %v1050 = vsel %vm715, %v1046, 0
      %v1053 = vsel %vm715, %v1048, 0
      %1055 = vmatprep.subr.bf16.mxu0 0
      %1056 = vmatpush1.bf16.xpose.msra.mxu0 0
      %1057 = vmatprep.subr.bf16.mxu0 0
      %1058 = vmatpush1.bf16.xpose.msra.mxu0 0
      %1059 = vmatprep.subr.bf16.mxu0 0
      %1060 = vmatpush1.bf16.xpose.msra.mxu0 0
      %1061 = vmatprep.subr.bf16.mxu0 0
      %1062 = vmatpush1.bf16.xpose.msra.mxu0 0
      %1063 = vmatprep.subr.bf16.mxu0 0
      %1064 = vmatpush1.bf16.xpose.msra.mxu0 0
      %1065 = vmatprep.subr.bf16.mxu0 0
      %1066 = vmatpush1.bf16.xpose.msra.mxu0 0
      %1067 = vmatprep.subr.bf16.mxu0 0
      %1068 = vmatpush1.bf16.xpose.msra.mxu0 0
      %1069 = vmatprep.subr.bf16.mxu0 0
      %1070 = vmatpush1.bf16.xpose.msra.mxu0 %v1053
      %1071 = vmatprep.subr.bf16.mxu0 0
      %1072 = vmatpush2.bf16.xpose.msra.mxu0 0
      %1073 = vmatprep.subr.bf16.mxu0 0
      %1074 = vmatpush2.bf16.xpose.msra.mxu0 0
      %1075 = vmatprep.subr.bf16.mxu0 0
      %1076 = vmatpush2.bf16.xpose.msra.mxu0 0
      %1077 = vmatprep.subr.bf16.mxu0 0
      %1078 = vmatpush2.bf16.xpose.msra.mxu0 0
      %1079 = vmatprep.subr.bf16.mxu0 0
      %1080 = vmatpush2.bf16.xpose.msra.mxu0 0
      %1081 = vmatprep.subr.bf16.mxu0 0
      %1082 = vmatpush2.bf16.xpose.msra.mxu0 0
      %1083 = vmatprep.subr.bf16.mxu0 0
      %1084 = vmatpush2.bf16.xpose.msra.mxu0 0
      %1085 = vmatprep.subr.bf16.mxu0 0
      %1086 = vmatpush2.bf16.xpose.msra.mxu0 0
      %1087 = vmatprep.mubr.bf16.mxu0 0
      %1088 = vmatmul.mubr.bf16.gmra.mxu0 %v1050
      %v1089 = vpop.f32.mrf.mxu0
      %v1090 = vadd.f32 0.0, %v1089
      %v1091 = vpop.f32.mrf.mxu0
      %v1092 = vpop.f32.mrf.mxu0
      %v1093 = vpop.f32.mrf.mxu0
      %1094 = vdwg.mxu0
      %v1095 = vsel %vm715, %v1090, -inf
      %1096 = vmax.xlane.f32.xlu0 %v1095
      %v1097 = vpop.xlane.xlu0 %1096
      %v1098 = vsub.f32 %v1090, %v1097
      %v1099 = vmul.f32 %v1098, 1.442695
      %v1100 = vpow.pop %v1099
      %v1101 = vpack.c.bf16 %v1100, %v1100
      %1102 = vrot.lane.b32.xlu0 %v714, 72
      %v1103 = vpop.permute.xlu0 %1102
      %v1105 = vsel %vm715, %v1101, 0
      %v1108 = vsel %vm775, %v1103, 0
      %1110 = vmatprep.subr.bf16.mxu0 0
      %1111 = vmatpush1.bf16.msra.mxu0 0
      %1112 = vmatprep.subr.bf16.mxu0 0
      %1113 = vmatpush1.bf16.msra.mxu0 0
      %1114 = vmatprep.subr.bf16.mxu0 0
      %1115 = vmatpush1.bf16.msra.mxu0 0
      %1116 = vmatprep.subr.bf16.mxu0 0
      %1117 = vmatpush1.bf16.msra.mxu0 0
      %1118 = vmatprep.subr.bf16.mxu0 0
      %1119 = vmatpush1.bf16.msra.mxu0 0
      %1120 = vmatprep.subr.bf16.mxu0 0
      %1121 = vmatpush1.bf16.msra.mxu0 0
      %1122 = vmatprep.subr.bf16.mxu0 0
      %1123 = vmatpush1.bf16.msra.mxu0 0
      %1124 = vmatprep.subr.bf16.mxu0 0
      %1125 = vmatpush1.bf16.msra.mxu0 %v1108
      %1126 = vmatprep.subr.bf16.mxu0 0
      %1127 = vmatpush2.bf16.msra.mxu0 0
      %1128 = vmatprep.subr.bf16.mxu0 0
      %1129 = vmatpush2.bf16.msra.mxu0 0
      %1130 = vmatprep.subr.bf16.mxu0 0
      %1131 = vmatpush2.bf16.msra.mxu0 0
      %1132 = vmatprep.subr.bf16.mxu0 0
      %1133 = vmatpush2.bf16.msra.mxu0 0
      %1134 = vmatprep.subr.bf16.mxu0 0
      %1135 = vmatpush2.bf16.msra.mxu0 0
      %1136 = vmatprep.subr.bf16.mxu0 0
      %1137 = vmatpush2.bf16.msra.mxu0 0
      %1138 = vmatprep.subr.bf16.mxu0 0
      %1139 = vmatpush2.bf16.msra.mxu0 0
      %1140 = vmatprep.subr.bf16.mxu0 0
      %1141 = vmatpush2.bf16.msra.mxu0 0
      %1142 = vmatprep.mubr.bf16.mxu0 0
      %1143 = vmatmul.mubr.bf16.gmra.mxu0 %v1105
      %v1144 = vpop.f32.mrf.mxu0
      %v1145 = vadd.f32 0.0, %v1144
      %v1146 = vpop.f32.mrf.mxu0
      %v1147 = vpop.f32.mrf.mxu0
      %v1148 = vpop.f32.mrf.mxu0
      %1149 = vdwg.mxu0
      %v1150 = vsel %vm715, %v1100, 0.0
      %1151 = vadd.xlane.f32.xlu0 %v1150
      %v1152 = vpop.xlane.xlu0 %1151
      %v1153 = vrcp.pop %v1152
      %v1154 = vmul.f32 %v1145, %v1153
      %1156 = vrot.lane.b32.xlu0 %v934, 8
      %v1157 = vpop.permute.xlu0 %1156
      %1160 = vrot.lane.b32.xlu0 %v1044, 16
      %v1161 = vpop.permute.xlu0 %1160
      %1164 = vrot.lane.b32.xlu0 %v1154, 24
      %v1165 = vpop.permute.xlu0 %1164
      %v1167 = vsel %vm715, %v823, %v1157
      %vm1168 = vcmask 130048
      %v1169 = vsel %vm1168, %v1167, %v1161
      %vm1170 = vcmask 195584
      %v1171 = vsel %vm1170, %v1169, %v1165
      %v1172 = vpack.c.bf16 %v1171, %v1171
      %v1173 = vld [vmem:[%s6] sm:$0xf]
      %v1174 = vld [vmem:[%s6 + $0x4] sm:$0xf]
      %v1175 = vld [vmem:[%s6 + $0x8] sm:$0xf]
      %v1176 = vld [vmem:[%s6 + $0xc] sm:$0xf]
      %v1177 = vld [vmem:[%s7] sm:$0x1]
      %v1179 = vlaneseq
      %v1180 = vshrl.u32 %v1179, 7
      %v1181 = vsub.s32 0, %v1180
      %v1182 = vrot.slane %v1177, %v1181
      %v1188 = vunpack.c.l.b16 %v1173
      %v1189 = vunpack.c.l.b16 %v1174
      %v1190 = vunpack.c.l.b16 %v1175
      %v1191 = vunpack.c.l.b16 %v1176
      %v1192 = vpack.c.b16 %v1189, %v1188
      %v1193 = vpack.c.b16 %v1191, %v1190
      %v1197 = vsel %vm603, %v1172, 0
      %1199 = vmatprep.subr.bf16.mxu0 0
      %1200 = vmatpush1.bf16.msra.mxu0 0
      %1201 = vmatprep.subr.bf16.mxu0 0
      %1202 = vmatpush1.bf16.msra.mxu0 0
      %1203 = vmatprep.subr.bf16.mxu0 0
      %1204 = vmatpush1.bf16.msra.mxu0 0
      %1205 = vmatprep.subr.bf16.mxu0 0
      %1206 = vmatpush1.bf16.msra.mxu0 0
      %1207 = vmatprep.subr.bf16.mxu0 0
      %1208 = vmatpush1.bf16.msra.mxu0 0
      %1209 = vmatprep.subr.bf16.mxu0 0
      %1210 = vmatpush1.bf16.msra.mxu0 0
      %1211 = vmatprep.subr.bf16.mxu0 0
      %1212 = vmatpush1.bf16.msra.mxu0 %v1193
      %1213 = vmatprep.subr.bf16.mxu0 0
      %1214 = vmatpush1.bf16.msra.mxu0 %v1192
      %1215 = vmatprep.subr.bf16.mxu0 0
      %1216 = vmatpush2.bf16.msra.mxu0 0
      %1217 = vmatprep.subr.bf16.mxu0 0
      %1218 = vmatpush2.bf16.msra.mxu0 0
      %1219 = vmatprep.subr.bf16.mxu0 0
      %1220 = vmatpush2.bf16.msra.mxu0 0
      %1221 = vmatprep.subr.bf16.mxu0 0
      %1222 = vmatpush2.bf16.msra.mxu0 0
      %1223 = vmatprep.subr.bf16.mxu0 0
      %1224 = vmatpush2.bf16.msra.mxu0 0
      %1225 = vmatprep.subr.bf16.mxu0 0
      %1226 = vmatpush2.bf16.msra.mxu0 0
      %1227 = vmatprep.subr.bf16.mxu0 0
      %1228 = vmatpush2.bf16.msra.mxu0 0
      %1229 = vmatprep.subr.bf16.mxu0 0
      %1230 = vmatpush2.bf16.msra.mxu0 0
      %1231 = vmatprep.mubr.bf16.mxu0 0
      %1232 = vmatmul.mubr.bf16.gmra.mxu0 %v1197
      %v1233 = vpop.f32.mrf.mxu0
      %v1234 = vadd.f32 %v1182, %v1233
      %v1235 = vpop.f32.mrf.mxu0
      %v1236 = vpop.f32.mrf.mxu0
      %v1237 = vpop.f32.mrf.mxu0
      %1238 = vdwg.mxu0
      %v1239 = vld [vmem:[%s8] sm:$0xf]
      %v1240 = vld [vmem:[%s8 + $0x4] sm:$0xf]
      %v1241 = vld [vmem:[%s8 + $0x8] sm:$0xf]
      %v1242 = vld [vmem:[%s8 + $0xc] sm:$0xf]
      %v1243 = vpack.c.bf16 %v1234, %v1234
      %v1244 = vld [vmem:[%s9] sm:$0xf]
      %v1245 = vld [vmem:[%s9 + $0x4] sm:$0xf]
      %v1246 = vld [vmem:[%s9 + $0x8] sm:$0xf]
      %v1247 = vld [vmem:[%s9 + $0xc] sm:$0xf]
      %v1252 = vunpack.c.l.b16 %v1244
      %v1253 = vunpack.c.l.b16 %v1245
      %v1254 = vunpack.c.l.b16 %v1246
      %v1255 = vunpack.c.l.b16 %v1247
      %v1256 = vpack.c.b16 %v1253, %v1252
      %v1257 = vpack.c.b16 %v1255, %v1254
      %v1261 = vsel %vm603, %v1243, 0
      %1263 = vmatprep.subr.bf16.mxu0 0
      %1264 = vmatpush1.bf16.msra.mxu0 0
      %1265 = vmatprep.subr.bf16.mxu0 0
      %1266 = vmatpush1.bf16.msra.mxu0 0
      %1267 = vmatprep.subr.bf16.mxu0 0
      %1268 = vmatpush1.bf16.msra.mxu0 0
      %1269 = vmatprep.subr.bf16.mxu0 0
      %1270 = vmatpush1.bf16.msra.mxu0 0
      %1271 = vmatprep.subr.bf16.mxu0 0
      %1272 = vmatpush1.bf16.msra.mxu0 0
      %1273 = vmatprep.subr.bf16.mxu0 0
      %1274 = vmatpush1.bf16.msra.mxu0 0
      %1275 = vmatprep.subr.bf16.mxu0 0
      %1276 = vmatpush1.bf16.msra.mxu0 %v1257
      %1277 = vmatprep.subr.bf16.mxu0 0
      %1278 = vmatpush1.bf16.msra.mxu0 %v1256
      %1279 = vmatprep.subr.bf16.mxu0 0
      %1280 = vmatpush2.bf16.msra.mxu0 0
      %1281 = vmatprep.subr.bf16.mxu0 0
      %1282 = vmatpush2.bf16.msra.mxu0 0
      %1283 = vmatprep.subr.bf16.mxu0 0
      %1284 = vmatpush2.bf16.msra.mxu0 0
      %1285 = vmatprep.subr.bf16.mxu0 0
      %1286 = vmatpush2.bf16.msra.mxu0 0
      %1287 = vmatprep.subr.bf16.mxu0 0
      %1288 = vmatpush2.bf16.msra.mxu0 0
      %1289 = vmatprep.subr.bf16.mxu0 0
      %1290 = vmatpush2.bf16.msra.mxu0 0
      %1291 = vmatprep.subr.bf16.mxu0 0
      %1292 = vmatpush2.bf16.msra.mxu0 0
      %1293 = vmatprep.subr.bf16.mxu0 0
      %1294 = vmatpush2.bf16.msra.mxu0 0
      %1295 = vmatprep.mubr.bf16.mxu0 0
      %1296 = vmatmul.mubr.bf16.gmra.mxu0 %v1261
      %v1297 = vpop.f32.mrf.mxu0
      %v1298 = vadd.f32 0.0, %v1297
      %v1299 = vpop.f32.mrf.mxu0
      %v1300 = vpop.f32.mrf.mxu0
      %v1301 = vpop.f32.mrf.mxu0
      %1302 = vdwg.mxu0
      %v1307 = vunpack.c.l.b16 %v1239
      %v1308 = vunpack.c.l.b16 %v1240
      %v1309 = vunpack.c.l.b16 %v1241
      %v1310 = vunpack.c.l.b16 %v1242
      %v1311 = vpack.c.b16 %v1308, %v1307
      %v1312 = vpack.c.b16 %v1310, %v1309
      %1315 = vmatprep.subr.bf16.mxu0 0
      %1316 = vmatpush1.bf16.msra.mxu0 0
      %1317 = vmatprep.subr.bf16.mxu0 0
      %1318 = vmatpush1.bf16.msra.mxu0 0
      %1319 = vmatprep.subr.bf16.mxu0 0
      %1320 = vmatpush1.bf16.msra.mxu0 0
      %1321 = vmatprep.subr.bf16.mxu0 0
      %1322 = vmatpush1.bf16.msra.mxu0 0
      %1323 = vmatprep.subr.bf16.mxu0 0
      %1324 = vmatpush1.bf16.msra.mxu0 0
      %1325 = vmatprep.subr.bf16.mxu0 0
      %1326 = vmatpush1.bf16.msra.mxu0 0
      %1327 = vmatprep.subr.bf16.mxu0 0
      %1328 = vmatpush1.bf16.msra.mxu0 %v1312
      %1329 = vmatprep.subr.bf16.mxu0 0
      %1330 = vmatpush1.bf16.msra.mxu0 %v1311
      %1331 = vmatprep.subr.bf16.mxu0 0
      %1332 = vmatpush2.bf16.msra.mxu0 0
      %1333 = vmatprep.subr.bf16.mxu0 0
      %1334 = vmatpush2.bf16.msra.mxu0 0
      %1335 = vmatprep.subr.bf16.mxu0 0
      %1336 = vmatpush2.bf16.msra.mxu0 0
      %1337 = vmatprep.subr.bf16.mxu0 0
      %1338 = vmatpush2.bf16.msra.mxu0 0
      %1339 = vmatprep.subr.bf16.mxu0 0
      %1340 = vmatpush2.bf16.msra.mxu0 0
      %1341 = vmatprep.subr.bf16.mxu0 0
      %1342 = vmatpush2.bf16.msra.mxu0 0
      %1343 = vmatprep.subr.bf16.mxu0 0
      %1344 = vmatpush2.bf16.msra.mxu0 0
      %1345 = vmatprep.subr.bf16.mxu0 0
      %1346 = vmatpush2.bf16.msra.mxu0 0
      %1347 = vmatprep.mubr.bf16.mxu0 0
      %1348 = vmatmul.mubr.bf16.gmra.mxu0 %v605
      %v1349 = vpop.f32.mrf.mxu0
      %v1350 = vadd.f32 %v1298, %v1349
      %v1351 = vpop.f32.mrf.mxu0
      %v1352 = vpop.f32.mrf.mxu0
      %v1353 = vpop.f32.mrf.mxu0
      %1354 = vdwg.mxu0
      %v1355 = vld [vmem:[%s10] sm:$0x1]
      %v1357 = vlaneseq
      %v1358 = vshrl.u32 %v1357, 7
      %v1359 = vsub.s32 0, %v1358
      %v1360 = vrot.slane %v1355, %v1359
      %v1362 = vadd.f32 %v1350, %v1360
      %v1363 = vmax.f32 %v1362, 0.0
      %v1364 = vpack.c.bf16 %v1363, %v1363
      %v1365 = vld [vmem:[%s11] sm:$0xf]
      %v1366 = vld [vmem:[%s11 + $0x4] sm:$0xf]
      %v1367 = vld [vmem:[%s11 + $0x8] sm:$0xf]
      %v1368 = vld [vmem:[%s11 + $0xc] sm:$0xf]
      %v1369 = vld [vmem:[%s11 + $0x10] sm:$0xf]
      %v1370 = vld [vmem:[%s11 + $0x14] sm:$0xf]
      %v1371 = vld [vmem:[%s11 + $0x18] sm:$0xf]
      %v1372 = vld [vmem:[%s11 + $0x1c] sm:$0xf]
      %v1373 = vld [vmem:[%s12] sm:$0x1]
      %v1375 = vlaneseq
      %v1376 = vshrl.u32 %v1375, 7
      %v1377 = vsub.s32 0, %v1376
      %v1378 = vrot.slane %v1373, %v1377
      %v1388 = vunpack.c.l.b16 %v1365
      %v1389 = vunpack.c.l.b16 %v1366
      %v1390 = vunpack.c.l.b16 %v1367
      %v1391 = vunpack.c.l.b16 %v1368
      %v1392 = vunpack.c.l.b16 %v1369
      %v1393 = vunpack.c.l.b16 %v1370
      %v1394 = vunpack.c.l.b16 %v1371
      %v1395 = vunpack.c.l.b16 %v1372
      %v1396 = vpack.c.b16 %v1389, %v1388
      %v1397 = vpack.c.b16 %v1391, %v1390
      %v1398 = vpack.c.b16 %v1393, %v1392
      %v1399 = vpack.c.b16 %v1395, %v1394
      %vm1404 = vcmask 523264
      %v1406 = vsel %vm1404, %v1364, 0
      %1408 = vmatprep.subr.bf16.mxu0 0
      %1409 = vmatpush1.bf16.msra.mxu0 0
      %1410 = vmatprep.subr.bf16.mxu0 0
      %1411 = vmatpush1.bf16.msra.mxu0 0
      %1412 = vmatprep.subr.bf16.mxu0 0
      %1413 = vmatpush1.bf16.msra.mxu0 0
      %1414 = vmatprep.subr.bf16.mxu0 0
      %1415 = vmatpush1.bf16.msra.mxu0 0
      %1416 = vmatprep.subr.bf16.mxu0 0
      %1417 = vmatpush1.bf16.msra.mxu0 %v1399
      %1418 = vmatprep.subr.bf16.mxu0 0
      %1419 = vmatpush1.bf16.msra.mxu0 %v1398
      %1420 = vmatprep.subr.bf16.mxu0 0
      %1421 = vmatpush1.bf16.msra.mxu0 %v1397
      %1422 = vmatprep.subr.bf16.mxu0 0
      %1423 = vmatpush1.bf16.msra.mxu0 %v1396
      %1424 = vmatprep.subr.bf16.mxu0 0
      %1425 = vmatpush2.bf16.msra.mxu0 0
      %1426 = vmatprep.subr.bf16.mxu0 0
      %1427 = vmatpush2.bf16.msra.mxu0 0
      %1428 = vmatprep.subr.bf16.mxu0 0
      %1429 = vmatpush2.bf16.msra.mxu0 0
      %1430 = vmatprep.subr.bf16.mxu0 0
      %1431 = vmatpush2.bf16.msra.mxu0 0
      %1432 = vmatprep.subr.bf16.mxu0 0
      %1433 = vmatpush2.bf16.msra.mxu0 0
      %1434 = vmatprep.subr.bf16.mxu0 0
      %1435 = vmatpush2.bf16.msra.mxu0 0
      %1436 = vmatprep.subr.bf16.mxu0 0
      %1437 = vmatpush2.bf16.msra.mxu0 0
      %1438 = vmatprep.subr.bf16.mxu0 0
      %1439 = vmatpush2.bf16.msra.mxu0 0
      %1440 = vmatprep.mubr.bf16.mxu0 0
      %1441 = vmatmul.mubr.bf16.gmra.mxu0 %v1406
      %v1442 = vpop.f32.mrf.mxu0
      %v1443 = vadd.f32 %v1378, %v1442
      %v1444 = vpop.f32.mrf.mxu0
      %v1445 = vpop.f32.mrf.mxu0
      %v1446 = vpop.f32.mrf.mxu0
      %1447 = vdwg.mxu0
      %v1448 = vadd.f32 %v576, %v1443
      %1449 = vst.msk [vmem:[%s574] sm:$0xff] %vm603, %v1448
      %p1450 = scmp.lt.s32.totalorder %s28, 3
      %s1451 = scalar_select %p1450, %s28, 3
      %p1452 = scmp.lt.s32.totalorder %s29, 0
      %s1453 = scalar_select %p1452, %s29, 0
      %s1454 = sadd.s32 %s1453, %s1451
      %s1455 = smul.addr %s1454, 8
      %s1456 = scalar_lea.vmem %s13, %s1455
      // Predicated region
      $region73: #{_lambda_.3} parent=71 // pred_check
        %p1457 = pneg %p367
      $region74: #{_lambda_.3} parent=71 // pred_check_branch
        %1459 = sbr.rel (%p1457) target = $region76
      $region75: #{_lambda_.3} parent=71 // pred_region
        _
      $region76: #{_lambda_.3} parent=71 // pred_fallthru
        _
    $region72: #{_lambda_.3} parent=5 // pred_fallthru
      _
    %p1460 = scmp.le.s32.totalorder 2, %s19
    // Predicated region
    $region77: #{_lambda_.3} parent=5 // pred_check
      %p1461 = pneg %p1460
    $region78: #{_lambda_.3} parent=5 // pred_check_branch
      %1463 = sbr.rel (%p1461) target = $region80
    $region79: #{_lambda_.3} parent=5 // pred_region
      %s1464 = ssub.s32 %s19, 2
      // Predicated region
      $region81: #{_lambda_.3} parent=79 // pred_check
        %p1465 = pneg %p373
      $region82: #{_lambda_.3} parent=79 // pred_check_branch
        %1467 = sbr.rel (%p1465) target = $region84
      $region83: #{_lambda_.3} parent=79 // pred_region
        %p1468 = scmp.lt.s32.totalorder %s30, 3
        %s1469 = scalar_select %p1468, %s30, 3
        %p1470 = scmp.lt.s32.totalorder %s31, 0
        %s1471 = scalar_select %p1470, %s31, 0
        %s1472 = sadd.s32 %s1471, %s1469
        %s1473 = smul.addr %s1472, 8
        %s1474 = scalar_lea.vmem %s13, %s1473
      $region84: #{_lambda_.3} parent=79 // pred_fallthru
        _
    $region80: #{_lambda_.3} parent=5 // pred_fallthru
      _
  $region6: #{_lambda_.3} parent=0 // loop_footer
    %s23 = sadd.s32 1, %s19
  $region7: #{_lambda_.3} parent=0 // loop_footer_branch
    %18 = sbr.rel target = $region3
  $region8: #{_lambda_.3} parent=0 // loop_exit
    _

// kernel: _lambda_.2
$region0: #{_lambda_.2}
  #allocation0 [shape = 'u32[]', space=smem, size = 0x4, offset = 0x4, fixed_abs, tag = 'smem constant byte address 0x4 - core index']
  #allocation1 [shape = 'u32[144,128]{1,0:T(1,128)}', space=vmem, size = 0x12000, scoped, tag = 'internal scratch']
  %s0 = inlined_call_operand.vmem [shape: f32[4,8,32], index: 0, kind: input, shape index: {}]
  %s1 = inlined_call_operand.vmem [shape: bf16[32,32], index: 1, kind: input, shape index: {}]
  %s2 = inlined_call_operand.vmem [shape: f32[1,32], index: 2, kind: input, shape index: {}]
  %s3 = inlined_call_operand.vmem [shape: bf16[32,64], index: 3, kind: input, shape index: {}]
  %s4 = inlined_call_operand.vmem [shape: f32[1,64], index: 4, kind: input, shape index: {}]
  %s5 = inlined_call_operand.vmem [shape: bf16[32,32], index: 5, kind: input, shape index: {}]
  %s6 = inlined_call_operand.vmem [shape: f32[1,32], index: 6, kind: input, shape index: {}]
  %s7 = inlined_call_operand.vmem [shape: bf16[32,64], index: 7, kind: input, shape index: {}]
  %s8 = inlined_call_operand.vmem [shape: bf16[32,64], index: 8, kind: input, shape index: {}]
  %s9 = inlined_call_operand.vmem [shape: f32[1,64], index: 9, kind: input, shape index: {}]
  %s10 = inlined_call_operand.vmem [shape: bf16[64,32], index: 10, kind: input, shape index: {}]
  %s11 = inlined_call_operand.vmem [shape: f32[1,32], index: 11, kind: input, shape index: {}]
  %s12 = inlined_call_operand.vmem [shape: f32[4,8,32], index: 12, kind: output, shape index: {}]
  %s13 = sld [smem:[#allocation0]]
  $region81: #{_lambda_.2} parent=0
    _
  %s15 = ssub.s32 1, %s13
  %s16 = scalar_select 0, %s15, %s13
  loop: start=0, step=1, limit=6
  $region2: #{_lambda_.2} parent=0 // loop_pre_header
    _
  $region3: #{_lambda_.2} parent=0 // loop_header
    %s18 = sphi 0, %s22
    %p19 = scmp.ge.s32.totalorder %s18, 6
    %s25 = sphi 0, %s37
    %s26 = sphi 0, %s33
    %s27 = sphi 0, %s25
    %s28 = sphi 0, %s26
    %s29 = sphi 0, %s27
    %s30 = sphi 0, %s28
    %s40 = sphi 0, %s42
    %s43 = sphi 0, %s40
    %s44 = sphi 0, %s43
    %s60 = sphi 0, %s44
    %s64 = sphi 0, %s64
    %s66 = sphi 0, %s64
    %s67 = sphi 0, %s66
    %s81 = sphi 0, %s67
    %s85 = sphi 0, %s85
    %s87 = sphi 0, %s85
    %s88 = sphi 0, %s87
    %s102 = sphi 0, %s88
    %s106 = sphi 0, %s106
    %s108 = sphi 0, %s106
    %s109 = sphi 0, %s108
    %s123 = sphi 0, %s109
    %s127 = sphi 0, %s127
    %s129 = sphi 0, %s127
    %s130 = sphi 0, %s129
    %s144 = sphi 0, %s130
    %s148 = sphi 0, %s148
    %s150 = sphi 0, %s148
    %s151 = sphi 0, %s150
    %s165 = sphi 0, %s151
    %s169 = sphi 0, %s169
    %s171 = sphi 0, %s169
    %s172 = sphi 0, %s171
    %s186 = sphi 0, %s172
    %s190 = sphi 0, %s190
    %s192 = sphi 0, %s190
    %s193 = sphi 0, %s192
    %s207 = sphi 0, %s193
    %s211 = sphi 0, %s211
    %s213 = sphi 0, %s211
    %s214 = sphi 0, %s213
    %s228 = sphi 0, %s214
    %s232 = sphi 0, %s232
    %s234 = sphi 0, %s232
    %s235 = sphi 0, %s234
    %s249 = sphi 0, %s235
    %s253 = sphi 0, %s253
    %s255 = sphi 0, %s253
    %s256 = sphi 0, %s255
    %s270 = sphi 0, %s256
    %s274 = sphi 0, %s274
    %s276 = sphi 0, %s274
    %s277 = sphi 0, %s276
    %s291 = sphi 0, %s277
    %s299 = sphi 0, %s301
    %s302 = sphi 0, %s299
    %s303 = sphi 0, %s302
    %s319 = sphi 0, %s303
  $region4: #{_lambda_.2} parent=0 // loop_header_branch
    %21 = sbr.rel (%p19) target = $region8
  $region5: #{_lambda_.2} parent=0 // loop_body
    %s23 = ssub.s32 %s18, 1
    %s24 = ssub.s32 %s18, 2
    %s31 = sadd.s32 1, %s26
    %p32 = scmp.ge.s32.totalorder %s31, 1
    %s33 = scalar_select %p32, 0, %s31
    %s34 = sadd.s32 1, %s25
    %s35 = scalar_select %p32, %s34, %s25
    %p36 = scmp.ge.s32.totalorder %s35, 4
    %s37 = scalar_select %p36, 0, %s35
    %s38 = ssub.s32 %s25, %s37
    %p39 = scmp.eq.s32.totalorder %s38, 0
    %s41 = sadd.s32 %s40, 1
    %s42 = scalar_select %p39, %s40, %s41
    %p45 = pneg %p39
    %p46 = scmp.eq.s32.totalorder %s18, 3
    %p47 = por %p45, %p46
    %p48 = scmp.ne.s32.totalorder %s40, %s43
    %p49 = scmp.eq.s32.totalorder %s18, 0
    %p50 = por %p48, %p49
    %p51 = scmp.ne.s32.totalorder %s40, %s43
    %p52 = scmp.eq.s32.totalorder %s23, 3
    %p53 = por %p51, %p52
    %p54 = scmp.ne.s32.totalorder %s43, %s44
    %p55 = scmp.eq.s32.totalorder %s23, 0
    %p56 = por %p54, %p55
    %p57 = scmp.ne.s32.totalorder %s43, %s44
    %p58 = scmp.eq.s32.totalorder %s24, 3
    %p59 = por %p57, %p58
    %p61 = scmp.ne.s32.totalorder %s44, %s60
    %p62 = scmp.eq.s32.totalorder %s24, 0
    %p63 = por %p61, %p62
    %s65 = sadd.s32 %s64, 1
    %p68 = scmp.eq.s32.totalorder %s18, 3
    %p69 = scmp.ne.s32.totalorder %s64, %s66
    %p70 = scmp.eq.s32.totalorder %s18, 0
    %p71 = por %p69, %p70
    %p72 = scmp.ne.s32.totalorder %s64, %s66
    %p73 = scmp.eq.s32.totalorder %s23, 3
    %p74 = por %p72, %p73
    %p75 = scmp.ne.s32.totalorder %s66, %s67
    %p76 = scmp.eq.s32.totalorder %s23, 0
    %p77 = por %p75, %p76
    %p78 = scmp.ne.s32.totalorder %s66, %s67
    %p79 = scmp.eq.s32.totalorder %s24, 3
    %p80 = por %p78, %p79
    %p82 = scmp.ne.s32.totalorder %s67, %s81
    %p83 = scmp.eq.s32.totalorder %s24, 0
    %p84 = por %p82, %p83
    %s86 = sadd.s32 %s85, 1
    %p89 = scmp.eq.s32.totalorder %s18, 3
    %p90 = scmp.ne.s32.totalorder %s85, %s87
    %p91 = scmp.eq.s32.totalorder %s18, 0
    %p92 = por %p90, %p91
    %p93 = scmp.ne.s32.totalorder %s85, %s87
    %p94 = scmp.eq.s32.totalorder %s23, 3
    %p95 = por %p93, %p94
    %p96 = scmp.ne.s32.totalorder %s87, %s88
    %p97 = scmp.eq.s32.totalorder %s23, 0
    %p98 = por %p96, %p97
    %p99 = scmp.ne.s32.totalorder %s87, %s88
    %p100 = scmp.eq.s32.totalorder %s24, 3
    %p101 = por %p99, %p100
    %p103 = scmp.ne.s32.totalorder %s88, %s102
    %p104 = scmp.eq.s32.totalorder %s24, 0
    %p105 = por %p103, %p104
    %s107 = sadd.s32 %s106, 1
    %p110 = scmp.eq.s32.totalorder %s18, 3
    %p111 = scmp.ne.s32.totalorder %s106, %s108
    %p112 = scmp.eq.s32.totalorder %s18, 0
    %p113 = por %p111, %p112
    %p114 = scmp.ne.s32.totalorder %s106, %s108
    %p115 = scmp.eq.s32.totalorder %s23, 3
    %p116 = por %p114, %p115
    %p117 = scmp.ne.s32.totalorder %s108, %s109
    %p118 = scmp.eq.s32.totalorder %s23, 0
    %p119 = por %p117, %p118
    %p120 = scmp.ne.s32.totalorder %s108, %s109
    %p121 = scmp.eq.s32.totalorder %s24, 3
    %p122 = por %p120, %p121
    %p124 = scmp.ne.s32.totalorder %s109, %s123
    %p125 = scmp.eq.s32.totalorder %s24, 0
    %p126 = por %p124, %p125
    %s128 = sadd.s32 %s127, 1
    %p131 = scmp.eq.s32.totalorder %s18, 3
    %p132 = scmp.ne.s32.totalorder %s127, %s129
    %p133 = scmp.eq.s32.totalorder %s18, 0
    %p134 = por %p132, %p133
    %p135 = scmp.ne.s32.totalorder %s127, %s129
    %p136 = scmp.eq.s32.totalorder %s23, 3
    %p137 = por %p135, %p136
    %p138 = scmp.ne.s32.totalorder %s129, %s130
    %p139 = scmp.eq.s32.totalorder %s23, 0
    %p140 = por %p138, %p139
    %p141 = scmp.ne.s32.totalorder %s129, %s130
    %p142 = scmp.eq.s32.totalorder %s24, 3
    %p143 = por %p141, %p142
    %p145 = scmp.ne.s32.totalorder %s130, %s144
    %p146 = scmp.eq.s32.totalorder %s24, 0
    %p147 = por %p145, %p146
    %s149 = sadd.s32 %s148, 1
    %p152 = scmp.eq.s32.totalorder %s18, 3
    %p153 = scmp.ne.s32.totalorder %s148, %s150
    %p154 = scmp.eq.s32.totalorder %s18, 0
    %p155 = por %p153, %p154
    %p156 = scmp.ne.s32.totalorder %s148, %s150
    %p157 = scmp.eq.s32.totalorder %s23, 3
    %p158 = por %p156, %p157
    %p159 = scmp.ne.s32.totalorder %s150, %s151
    %p160 = scmp.eq.s32.totalorder %s23, 0
    %p161 = por %p159, %p160
    %p162 = scmp.ne.s32.totalorder %s150, %s151
    %p163 = scmp.eq.s32.totalorder %s24, 3
    %p164 = por %p162, %p163
    %p166 = scmp.ne.s32.totalorder %s151, %s165
    %p167 = scmp.eq.s32.totalorder %s24, 0
    %p168 = por %p166, %p167
    %s170 = sadd.s32 %s169, 1
    %p173 = scmp.eq.s32.totalorder %s18, 3
    %p174 = scmp.ne.s32.totalorder %s169, %s171
    %p175 = scmp.eq.s32.totalorder %s18, 0
    %p176 = por %p174, %p175
    %p177 = scmp.ne.s32.totalorder %s169, %s171
    %p178 = scmp.eq.s32.totalorder %s23, 3
    %p179 = por %p177, %p178
    %p180 = scmp.ne.s32.totalorder %s171, %s172
    %p181 = scmp.eq.s32.totalorder %s23, 0
    %p182 = por %p180, %p181
    %p183 = scmp.ne.s32.totalorder %s171, %s172
    %p184 = scmp.eq.s32.totalorder %s24, 3
    %p185 = por %p183, %p184
    %p187 = scmp.ne.s32.totalorder %s172, %s186
    %p188 = scmp.eq.s32.totalorder %s24, 0
    %p189 = por %p187, %p188
    %s191 = sadd.s32 %s190, 1
    %p194 = scmp.eq.s32.totalorder %s18, 3
    %p195 = scmp.ne.s32.totalorder %s190, %s192
    %p196 = scmp.eq.s32.totalorder %s18, 0
    %p197 = por %p195, %p196
    %p198 = scmp.ne.s32.totalorder %s190, %s192
    %p199 = scmp.eq.s32.totalorder %s23, 3
    %p200 = por %p198, %p199
    %p201 = scmp.ne.s32.totalorder %s192, %s193
    %p202 = scmp.eq.s32.totalorder %s23, 0
    %p203 = por %p201, %p202
    %p204 = scmp.ne.s32.totalorder %s192, %s193
    %p205 = scmp.eq.s32.totalorder %s24, 3
    %p206 = por %p204, %p205
    %p208 = scmp.ne.s32.totalorder %s193, %s207
    %p209 = scmp.eq.s32.totalorder %s24, 0
    %p210 = por %p208, %p209
    %s212 = sadd.s32 %s211, 1
    %p215 = scmp.eq.s32.totalorder %s18, 3
    %p216 = scmp.ne.s32.totalorder %s211, %s213
    %p217 = scmp.eq.s32.totalorder %s18, 0
    %p218 = por %p216, %p217
    %p219 = scmp.ne.s32.totalorder %s211, %s213
    %p220 = scmp.eq.s32.totalorder %s23, 3
    %p221 = por %p219, %p220
    %p222 = scmp.ne.s32.totalorder %s213, %s214
    %p223 = scmp.eq.s32.totalorder %s23, 0
    %p224 = por %p222, %p223
    %p225 = scmp.ne.s32.totalorder %s213, %s214
    %p226 = scmp.eq.s32.totalorder %s24, 3
    %p227 = por %p225, %p226
    %p229 = scmp.ne.s32.totalorder %s214, %s228
    %p230 = scmp.eq.s32.totalorder %s24, 0
    %p231 = por %p229, %p230
    %s233 = sadd.s32 %s232, 1
    %p236 = scmp.eq.s32.totalorder %s18, 3
    %p237 = scmp.ne.s32.totalorder %s232, %s234
    %p238 = scmp.eq.s32.totalorder %s18, 0
    %p239 = por %p237, %p238
    %p240 = scmp.ne.s32.totalorder %s232, %s234
    %p241 = scmp.eq.s32.totalorder %s23, 3
    %p242 = por %p240, %p241
    %p243 = scmp.ne.s32.totalorder %s234, %s235
    %p244 = scmp.eq.s32.totalorder %s23, 0
    %p245 = por %p243, %p244
    %p246 = scmp.ne.s32.totalorder %s234, %s235
    %p247 = scmp.eq.s32.totalorder %s24, 3
    %p248 = por %p246, %p247
    %p250 = scmp.ne.s32.totalorder %s235, %s249
    %p251 = scmp.eq.s32.totalorder %s24, 0
    %p252 = por %p250, %p251
    %s254 = sadd.s32 %s253, 1
    %p257 = scmp.eq.s32.totalorder %s18, 3
    %p258 = scmp.ne.s32.totalorder %s253, %s255
    %p259 = scmp.eq.s32.totalorder %s18, 0
    %p260 = por %p258, %p259
    %p261 = scmp.ne.s32.totalorder %s253, %s255
    %p262 = scmp.eq.s32.totalorder %s23, 3
    %p263 = por %p261, %p262
    %p264 = scmp.ne.s32.totalorder %s255, %s256
    %p265 = scmp.eq.s32.totalorder %s23, 0
    %p266 = por %p264, %p265
    %p267 = scmp.ne.s32.totalorder %s255, %s256
    %p268 = scmp.eq.s32.totalorder %s24, 3
    %p269 = por %p267, %p268
    %p271 = scmp.ne.s32.totalorder %s256, %s270
    %p272 = scmp.eq.s32.totalorder %s24, 0
    %p273 = por %p271, %p272
    %s275 = sadd.s32 %s274, 1
    %p278 = scmp.eq.s32.totalorder %s18, 3
    %p279 = scmp.ne.s32.totalorder %s274, %s276
    %p280 = scmp.eq.s32.totalorder %s18, 0
    %p281 = por %p279, %p280
    %p282 = scmp.ne.s32.totalorder %s274, %s276
    %p283 = scmp.eq.s32.totalorder %s23, 3
    %p284 = por %p282, %p283
    %p285 = scmp.ne.s32.totalorder %s276, %s277
    %p286 = scmp.eq.s32.totalorder %s23, 0
    %p287 = por %p285, %p286
    %p288 = scmp.ne.s32.totalorder %s276, %s277
    %p289 = scmp.eq.s32.totalorder %s24, 3
    %p290 = por %p288, %p289
    %p292 = scmp.ne.s32.totalorder %s277, %s291
    %p293 = scmp.eq.s32.totalorder %s24, 0
    %p294 = por %p292, %p293
    %s295 = ssub.s32 %s25, %s37
    %s296 = ssub.s32 %s26, %s33
    %s297 = sor.u32 %s295, %s296
    %p298 = scmp.eq.s32.totalorder %s297, 0
    %s300 = sadd.s32 %s299, 1
    %s301 = scalar_select %p298, %s299, %s300
    %p304 = pneg %p298
    %p305 = scmp.eq.s32.totalorder %s18, 3
    %p306 = por %p304, %p305
    %p307 = scmp.ne.s32.totalorder %s299, %s302
    %p308 = scmp.eq.s32.totalorder %s18, 0
    %p309 = por %p307, %p308
    %p310 = scmp.ne.s32.totalorder %s299, %s302
    %p311 = scmp.eq.s32.totalorder %s23, 3
    %p312 = por %p310, %p311
    %p313 = scmp.ne.s32.totalorder %s302, %s303
    %p314 = scmp.eq.s32.totalorder %s23, 0
    %p315 = por %p313, %p314
    %p316 = scmp.ne.s32.totalorder %s302, %s303
    %p317 = scmp.eq.s32.totalorder %s24, 3
    %p318 = por %p316, %p317
    %p320 = scmp.ne.s32.totalorder %s303, %s319
    %p321 = scmp.eq.s32.totalorder %s24, 0
    %p322 = por %p320, %p321
    %p323 = scmp.le.s32.totalorder 1, %s18
    %p324 = scmp.lt.s32.totalorder %s18, 5
    %p325 = pnand %p323, %p324
    %p326 = pneg %p325
    // Predicated region
    $region9: #{_lambda_.2} parent=5 // pred_check
      _
    $region10: #{_lambda_.2} parent=5 // pred_check_branch
      %328 = sbr.rel (%p325) target = $region12
    $region11: #{_lambda_.2} parent=5 // pred_region
      %s329 = ssub.s32 %s18, 1
      // Predicated region
      $region13: #{_lambda_.2} parent=11 // pred_check
        %p330 = pneg %p77
      $region14: #{_lambda_.2} parent=11 // pred_check_branch
        %332 = sbr.rel (%p330) target = $region16
      $region15: #{_lambda_.2} parent=11 // pred_region
        _
      $region16: #{_lambda_.2} parent=11 // pred_fallthru
        _
      // Predicated region
      $region17: #{_lambda_.2} parent=11 // pred_check
        %p333 = pneg %p98
      $region18: #{_lambda_.2} parent=11 // pred_check_branch
        %335 = sbr.rel (%p333) target = $region20
      $region19: #{_lambda_.2} parent=11 // pred_region
        _
      $region20: #{_lambda_.2} parent=11 // pred_fallthru
        _
      // Predicated region
      $region21: #{_lambda_.2} parent=11 // pred_check
        %p336 = pneg %p119
      $region22: #{_lambda_.2} parent=11 // pred_check_branch
        %338 = sbr.rel (%p336) target = $region24
      $region23: #{_lambda_.2} parent=11 // pred_region
        _
      $region24: #{_lambda_.2} parent=11 // pred_fallthru
        _
      // Predicated region
      $region25: #{_lambda_.2} parent=11 // pred_check
        %p339 = pneg %p140
      $region26: #{_lambda_.2} parent=11 // pred_check_branch
        %341 = sbr.rel (%p339) target = $region28
      $region27: #{_lambda_.2} parent=11 // pred_region
        _
      $region28: #{_lambda_.2} parent=11 // pred_fallthru
        _
      // Predicated region
      $region29: #{_lambda_.2} parent=11 // pred_check
        %p342 = pneg %p161
      $region30: #{_lambda_.2} parent=11 // pred_check_branch
        %344 = sbr.rel (%p342) target = $region32
      $region31: #{_lambda_.2} parent=11 // pred_region
        _
      $region32: #{_lambda_.2} parent=11 // pred_fallthru
        _
      // Predicated region
      $region33: #{_lambda_.2} parent=11 // pred_check
        %p345 = pneg %p182
      $region34: #{_lambda_.2} parent=11 // pred_check_branch
        %347 = sbr.rel (%p345) target = $region36
      $region35: #{_lambda_.2} parent=11 // pred_region
        _
      $region36: #{_lambda_.2} parent=11 // pred_fallthru
        _
      // Predicated region
      $region37: #{_lambda_.2} parent=11 // pred_check
        %p348 = pneg %p203
      $region38: #{_lambda_.2} parent=11 // pred_check_branch
        %350 = sbr.rel (%p348) target = $region40
      $region39: #{_lambda_.2} parent=11 // pred_region
        _
      $region40: #{_lambda_.2} parent=11 // pred_fallthru
        _
      // Predicated region
      $region41: #{_lambda_.2} parent=11 // pred_check
        %p351 = pneg %p224
      $region42: #{_lambda_.2} parent=11 // pred_check_branch
        %353 = sbr.rel (%p351) target = $region44
      $region43: #{_lambda_.2} parent=11 // pred_region
        _
      $region44: #{_lambda_.2} parent=11 // pred_fallthru
        _
      // Predicated region
      $region45: #{_lambda_.2} parent=11 // pred_check
        %p354 = pneg %p245
      $region46: #{_lambda_.2} parent=11 // pred_check_branch
        %356 = sbr.rel (%p354) target = $region48
      $region47: #{_lambda_.2} parent=11 // pred_region
        _
      $region48: #{_lambda_.2} parent=11 // pred_fallthru
        _
      // Predicated region
      $region49: #{_lambda_.2} parent=11 // pred_check
        %p357 = pneg %p266
      $region50: #{_lambda_.2} parent=11 // pred_check_branch
        %359 = sbr.rel (%p357) target = $region52
      $region51: #{_lambda_.2} parent=11 // pred_region
        _
      $region52: #{_lambda_.2} parent=11 // pred_fallthru
        _
      // Predicated region
      $region53: #{_lambda_.2} parent=11 // pred_check
        %p360 = pneg %p287
      $region54: #{_lambda_.2} parent=11 // pred_check_branch
        %362 = sbr.rel (%p360) target = $region56
      $region55: #{_lambda_.2} parent=11 // pred_region
        _
      $region56: #{_lambda_.2} parent=11 // pred_fallthru
        _
    $region12: #{_lambda_.2} parent=5 // pred_fallthru
      _
    %p363 = scmp.lt.s32.totalorder %s18, 4
    // Predicated region
    $region57: #{_lambda_.2} parent=5 // pred_check
      %p364 = pneg %p363
    $region58: #{_lambda_.2} parent=5 // pred_check_branch
      %366 = sbr.rel (%p364) target = $region60
    $region59: #{_lambda_.2} parent=5 // pred_region
      // Predicated region
      $region61: #{_lambda_.2} parent=59 // pred_check
        %p367 = pneg %p50
      $region62: #{_lambda_.2} parent=59 // pred_check_branch
        %369 = sbr.rel (%p367) target = $region64
      $region63: #{_lambda_.2} parent=59 // pred_region
        %p370 = scmp.lt.s32.totalorder %s25, 3
        %s371 = scalar_select %p370, %s25, 3
        %s372 = smul.addr %s371, 8
        %s373 = scalar_lea.vmem %s0, %s372
      $region64: #{_lambda_.2} parent=59 // pred_fallthru
        _
    $region60: #{_lambda_.2} parent=5 // pred_fallthru
      _
    %p374 = scmp.le.s32.totalorder 1, %s18
    %p375 = scmp.lt.s32.totalorder %s18, 5
    %p376 = pnand %p374, %p375
    %p377 = pneg %p376
    // Predicated region
    $region65: #{_lambda_.2} parent=5 // pred_check
      _
    $region66: #{_lambda_.2} parent=5 // pred_check_branch
      %379 = sbr.rel (%p376) target = $region68
    $region67: #{_lambda_.2} parent=5 // pred_region
      %s380 = ssub.s32 %s18, 1
      %p381 = scmp.lt.s32.totalorder %s27, 3
      %s382 = scalar_select %p381, %s27, 3
      %s383 = smul.addr %s382, 8
      %s384 = scalar_lea.vmem %s0, %s383
      %p385 = pneg %p56
      %p386 = pneg %p53
      %p387 = pneg %p77
      %p388 = pneg %p74
      %p389 = pneg %p98
      %p390 = pneg %p95
      %p391 = pneg %p119
      %p392 = pneg %p116
      %p393 = pneg %p140
      %p394 = pneg %p137
      %p395 = pneg %p161
      %p396 = pneg %p158
      %p397 = pneg %p182
      %p398 = pneg %p179
      %p399 = pneg %p203
      %p400 = pneg %p200
      %p401 = pneg %p224
      %p402 = pneg %p221
      %p403 = pneg %p245
      %p404 = pneg %p242
      %p405 = pneg %p266
      %p406 = pneg %p263
      %p407 = pneg %p287
      %p408 = pneg %p284
      %p409 = pneg %p315
      %p410 = pneg %p312
      %p411 = scmp.lt.s32.totalorder %s27, 3
      %s412 = scalar_select %p411, %s27, 3
      %p413 = scmp.lt.s32.totalorder %s28, 0
      %s414 = scalar_select %p413, %s28, 0
      %s415 = sadd.s32 %s414, %s412
      %s416 = smul.addr %s415, 8
      %s417 = scalar_lea.vmem %s12, %s416
      %p418 = scmp.lt.s32.totalorder %s27, 3
      %s419 = scalar_select %p418, %s27, 3
      %s420 = smul.addr %s419, 8
      %s421 = scalar_lea.vmem %s0, %s420
      %p422 = scmp.lt.s32.totalorder %s27, 3
      %s423 = scalar_select %p422, %s27, 3
      %p424 = scmp.lt.s32.totalorder %s28, 0
      %s425 = scalar_select %p424, %s28, 0
      %s426 = sadd.s32 %s425, %s423
      %s427 = smul.addr %s426, 8
      %s428 = scalar_lea.vmem %s12, %s427
      %s430 = smul.u32 %s28, 8
      %s431 = scalar_lea.vmem %s421, %s430
      %v432 = vld [vmem:[%s431] sm:$0xff]
      %v433 = vld [vmem:[%s421] sm:$0xff]
      %v434 = vpack.c.bf16 %v432, %v432
      %v435 = vpack.c.bf16 %v433, %v433
      %v436 = vld [vmem:[%s1] sm:$0xf]
      %v437 = vld [vmem:[%s1 + $0x4] sm:$0xf]
      %v438 = vld [vmem:[%s1 + $0x8] sm:$0xf]
      %v439 = vld [vmem:[%s1 + $0xc] sm:$0xf]
      %v440 = vld [vmem:[%s2] sm:$0x1]
      %v442 = vlaneseq
      %v443 = vshrl.u32 %v442, 7
      %v444 = vsub.s32 0, %v443
      %v445 = vrot.slane %v440, %v444
      %v451 = vunpack.c.l.b16 %v436
      %v452 = vunpack.c.l.b16 %v437
      %v453 = vunpack.c.l.b16 %v438
      %v454 = vunpack.c.l.b16 %v439
      %v455 = vpack.c.b16 %v452, %v451
      %v456 = vpack.c.b16 %v454, %v453
      %vm459 = vcmask 261120
      %v461 = vsel %vm459, %v434, 0
      %463 = vmatprep.subr.bf16.mxu0 0
      %464 = vmatpush1.bf16.msra.mxu0 0
      %465 = vmatprep.subr.bf16.mxu0 0
      %466 = vmatpush1.bf16.msra.mxu0 0
      %467 = vmatprep.subr.bf16.mxu0 0
      %468 = vmatpush1.bf16.msra.mxu0 0
      %469 = vmatprep.subr.bf16.mxu0 0
      %470 = vmatpush1.bf16.msra.mxu0 0
      %471 = vmatprep.subr.bf16.mxu0 0
      %472 = vmatpush1.bf16.msra.mxu0 0
      %473 = vmatprep.subr.bf16.mxu0 0
      %474 = vmatpush1.bf16.msra.mxu0 0
      %475 = vmatprep.subr.bf16.mxu0 0
      %476 = vmatpush1.bf16.msra.mxu0 %v456
      %477 = vmatprep.subr.bf16.mxu0 0
      %478 = vmatpush1.bf16.msra.mxu0 %v455
      %479 = vmatprep.subr.bf16.mxu0 0
      %480 = vmatpush2.bf16.msra.mxu0 0
      %481 = vmatprep.subr.bf16.mxu0 0
      %482 = vmatpush2.bf16.msra.mxu0 0
      %483 = vmatprep.subr.bf16.mxu0 0
      %484 = vmatpush2.bf16.msra.mxu0 0
      %485 = vmatprep.subr.bf16.mxu0 0
      %486 = vmatpush2.bf16.msra.mxu0 0
      %487 = vmatprep.subr.bf16.mxu0 0
      %488 = vmatpush2.bf16.msra.mxu0 0
      %489 = vmatprep.subr.bf16.mxu0 0
      %490 = vmatpush2.bf16.msra.mxu0 0
      %491 = vmatprep.subr.bf16.mxu0 0
      %492 = vmatpush2.bf16.msra.mxu0 0
      %493 = vmatprep.subr.bf16.mxu0 0
      %494 = vmatpush2.bf16.msra.mxu0 0
      %495 = vmatprep.mubr.bf16.mxu0 0
      %496 = vmatmul.mubr.bf16.gmra.mxu0 %v461
      %v497 = vpop.f32.mrf.mxu0
      %v498 = vadd.f32 %v445, %v497
      %v499 = vpop.f32.mrf.mxu0
      %v500 = vpop.f32.mrf.mxu0
      %v501 = vpop.f32.mrf.mxu0
      %502 = vdwg.mxu0
      %v503 = vld [vmem:[%s3] sm:$0xf]
      %v504 = vld [vmem:[%s3 + $0x4] sm:$0xf]
      %v505 = vld [vmem:[%s3 + $0x8] sm:$0xf]
      %v506 = vld [vmem:[%s3 + $0xc] sm:$0xf]
      %v507 = vld [vmem:[%s4] sm:$0x1]
      %v509 = vlaneseq
      %v510 = vshrl.u32 %v509, 7
      %v511 = vsub.s32 0, %v510
      %v512 = vrot.slane %v507, %v511
      %v518 = vunpack.c.l.b16 %v503
      %v519 = vunpack.c.l.b16 %v504
      %v520 = vunpack.c.l.b16 %v505
      %v521 = vunpack.c.l.b16 %v506
      %v522 = vpack.c.b16 %v519, %v518
      %v523 = vpack.c.b16 %v521, %v520
      %v527 = vsel %vm459, %v435, 0
      %529 = vmatprep.subr.bf16.mxu0 0
      %530 = vmatpush1.bf16.msra.mxu0 0
      %531 = vmatprep.subr.bf16.mxu0 0
      %532 = vmatpush1.bf16.msra.mxu0 0
      %533 = vmatprep.subr.bf16.mxu0 0
      %534 = vmatpush1.bf16.msra.mxu0 0
      %535 = vmatprep.subr.bf16.mxu0 0
      %536 = vmatpush1.bf16.msra.mxu0 0
      %537 = vmatprep.subr.bf16.mxu0 0
      %538 = vmatpush1.bf16.msra.mxu0 0
      %539 = vmatprep.subr.bf16.mxu0 0
      %540 = vmatpush1.bf16.msra.mxu0 0
      %541 = vmatprep.subr.bf16.mxu0 0
      %542 = vmatpush1.bf16.msra.mxu0 %v523
      %543 = vmatprep.subr.bf16.mxu0 0
      %544 = vmatpush1.bf16.msra.mxu0 %v522
      %545 = vmatprep.subr.bf16.mxu0 0
      %546 = vmatpush2.bf16.msra.mxu0 0
      %547 = vmatprep.subr.bf16.mxu0 0
      %548 = vmatpush2.bf16.msra.mxu0 0
      %549 = vmatprep.subr.bf16.mxu0 0
      %550 = vmatpush2.bf16.msra.mxu0 0
      %551 = vmatprep.subr.bf16.mxu0 0
      %552 = vmatpush2.bf16.msra.mxu0 0
      %553 = vmatprep.subr.bf16.mxu0 0
      %554 = vmatpush2.bf16.msra.mxu0 0
      %555 = vmatprep.subr.bf16.mxu0 0
      %556 = vmatpush2.bf16.msra.mxu0 0
      %557 = vmatprep.subr.bf16.mxu0 0
      %558 = vmatpush2.bf16.msra.mxu0 0
      %559 = vmatprep.subr.bf16.mxu0 0
      %560 = vmatpush2.bf16.msra.mxu0 0
      %561 = vmatprep.mubr.bf16.mxu0 0
      %562 = vmatmul.mubr.bf16.gmra.mxu0 %v527
      %v563 = vpop.f32.mrf.mxu0
      %v564 = vadd.f32 %v512, %v563
      %v565 = vpop.f32.mrf.mxu0
      %v566 = vpop.f32.mrf.mxu0
      %v567 = vpop.f32.mrf.mxu0
      %568 = vdwg.mxu0
      %v569 = vpack.c.bf16 %v498, %v498
      %v570 = vpack.c.bf16 %v564, %v564
      %vm571 = vcmask 64512
      %v573 = vsel %vm571, %v569, 0
      %v576 = vsel %vm571, %v570, 0
      %578 = vmatprep.subr.bf16.mxu0 0
      %579 = vmatpush1.bf16.xpose.msra.mxu0 0
      %580 = vmatprep.subr.bf16.mxu0 0
      %581 = vmatpush1.bf16.xpose.msra.mxu0 0
      %582 = vmatprep.subr.bf16.mxu0 0
      %583 = vmatpush1.bf16.xpose.msra.mxu0 0
      %584 = vmatprep.subr.bf16.mxu0 0
      %585 = vmatpush1.bf16.xpose.msra.mxu0 0
      %586 = vmatprep.subr.bf16.mxu0 0
      %587 = vmatpush1.bf16.xpose.msra.mxu0 0
      %588 = vmatprep.subr.bf16.mxu0 0
      %589 = vmatpush1.bf16.xpose.msra.mxu0 0
      %590 = vmatprep.subr.bf16.mxu0 0
      %591 = vmatpush1.bf16.xpose.msra.mxu0 0
      %592 = vmatprep.subr.bf16.mxu0 0
      %593 = vmatpush1.bf16.xpose.msra.mxu0 %v576
      %594 = vmatprep.subr.bf16.mxu0 0
      %595 = vmatpush2.bf16.xpose.msra.mxu0 0
      %596 = vmatprep.subr.bf16.mxu0 0
      %597 = vmatpush2.bf16.xpose.msra.mxu0 0
      %598 = vmatprep.subr.bf16.mxu0 0
      %599 = vmatpush2.bf16.xpose.msra.mxu0 0
      %600 = vmatprep.subr.bf16.mxu0 0
      %601 = vmatpush2.bf16.xpose.msra.mxu0 0
      %602 = vmatprep.subr.bf16.mxu0 0
      %603 = vmatpush2.bf16.xpose.msra.mxu0 0
      %604 = vmatprep.subr.bf16.mxu0 0
      %605 = vmatpush2.bf16.xpose.msra.mxu0 0
      %606 = vmatprep.subr.bf16.mxu0 0
      %607 = vmatpush2.bf16.xpose.msra.mxu0 0
      %608 = vmatprep.subr.bf16.mxu0 0
      %609 = vmatpush2.bf16.xpose.msra.mxu0 0
      %610 = vmatprep.mubr.bf16.mxu0 0
      %611 = vmatmul.mubr.bf16.gmra.mxu0 %v573
      %v612 = vpop.f32.mrf.mxu0
      %v613 = vadd.f32 0.0, %v612
      %v614 = vpop.f32.mrf.mxu0
      %v615 = vpop.f32.mrf.mxu0
      %v616 = vpop.f32.mrf.mxu0
      %617 = vdwg.mxu0
      %v618 = vsel %vm571, %v613, -inf
      %619 = vmax.xlane.f32.xlu0 %v618
      %v620 = vpop.xlane.xlu0 %619
      %v621 = vsub.f32 %v613, %v620
      %v622 = vmul.f32 %v621, 1.442695
      %v623 = vpow.pop %v622
      %v624 = vpack.c.bf16 %v623, %v623
      %626 = vrot.lane.b32.xlu0 %v570, 96
      %v627 = vpop.permute.xlu0 %626
      %v629 = vsel %vm571, %v624, 0
      %vm631 = vcmask 1043456
      %v633 = vsel %vm631, %v627, 0
      %635 = vmatprep.subr.bf16.mxu0 0
      %636 = vmatpush1.bf16.msra.mxu0 0
      %637 = vmatprep.subr.bf16.mxu0 0
      %638 = vmatpush1.bf16.msra.mxu0 0
      %639 = vmatprep.subr.bf16.mxu0 0
      %640 = vmatpush1.bf16.msra.mxu0 0
      %641 = vmatprep.subr.bf16.mxu0 0
      %642 = vmatpush1.bf16.msra.mxu0 0
      %643 = vmatprep.subr.bf16.mxu0 0
      %644 = vmatpush1.bf16.msra.mxu0 0
      %645 = vmatprep.subr.bf16.mxu0 0
      %646 = vmatpush1.bf16.msra.mxu0 0
      %647 = vmatprep.subr.bf16.mxu0 0
      %648 = vmatpush1.bf16.msra.mxu0 0
      %649 = vmatprep.subr.bf16.mxu0 0
      %650 = vmatpush1.bf16.msra.mxu0 %v633
      %651 = vmatprep.subr.bf16.mxu0 0
      %652 = vmatpush2.bf16.msra.mxu0 0
      %653 = vmatprep.subr.bf16.mxu0 0
      %654 = vmatpush2.bf16.msra.mxu0 0
      %655 = vmatprep.subr.bf16.mxu0 0
      %656 = vmatpush2.bf16.msra.mxu0 0
      %657 = vmatprep.subr.bf16.mxu0 0
      %658 = vmatpush2.bf16.msra.mxu0 0
      %659 = vmatprep.subr.bf16.mxu0 0
      %660 = vmatpush2.bf16.msra.mxu0 0
      %661 = vmatprep.subr.bf16.mxu0 0
      %662 = vmatpush2.bf16.msra.mxu0 0
      %663 = vmatprep.subr.bf16.mxu0 0
      %664 = vmatpush2.bf16.msra.mxu0 0
      %665 = vmatprep.subr.bf16.mxu0 0
      %666 = vmatpush2.bf16.msra.mxu0 0
      %667 = vmatprep.mubr.bf16.mxu0 0
      %668 = vmatmul.mubr.bf16.gmra.mxu0 %v629
      %v669 = vpop.f32.mrf.mxu0
      %v670 = vadd.f32 0.0, %v669
      %v671 = vpop.f32.mrf.mxu0
      %v672 = vpop.f32.mrf.mxu0
      %v673 = vpop.f32.mrf.mxu0
      %674 = vdwg.mxu0
      %v675 = vsel %vm571, %v623, 0.0
      %676 = vadd.xlane.f32.xlu0 %v675
      %v677 = vpop.xlane.xlu0 %676
      %v678 = vrcp.pop %v677
      %v679 = vmul.f32 %v670, %v678
      %681 = vrot.lane.b32.xlu0 %v569, 120
      %v682 = vpop.permute.xlu0 %681
      %683 = vrot.lane.b32.xlu0 %v570, 120
      %v684 = vpop.permute.xlu0 %683
      %v686 = vsel %vm571, %v682, 0
      %v689 = vsel %vm571, %v684, 0
      %691 = vmatprep.subr.bf16.mxu0 0
      %692 = vmatpush1.bf16.xpose.msra.mxu0 0
      %693 = vmatprep.subr.bf16.mxu0 0
      %694 = vmatpush1.bf16.xpose.msra.mxu0 0
      %695 = vmatprep.subr.bf16.mxu0 0
      %696 = vmatpush1.bf16.xpose.msra.mxu0 0
      %697 = vmatprep.subr.bf16.mxu0 0
      %698 = vmatpush1.bf16.xpose.msra.mxu0 0
      %699 = vmatprep.subr.bf16.mxu0 0
      %700 = vmatpush1.bf16.xpose.msra.mxu0 0
      %701 = vmatprep.subr.bf16.mxu0 0
      %702 = vmatpush1.bf16.xpose.msra.mxu0 0
      %703 = vmatprep.subr.bf16.mxu0 0
      %704 = vmatpush1.bf16.xpose.msra.mxu0 0
      %705 = vmatprep.subr.bf16.mxu0 0
      %706 = vmatpush1.bf16.xpose.msra.mxu0 %v689
      %707 = vmatprep.subr.bf16.mxu0 0
      %708 = vmatpush2.bf16.xpose.msra.mxu0 0
      %709 = vmatprep.subr.bf16.mxu0 0
      %710 = vmatpush2.bf16.xpose.msra.mxu0 0
      %711 = vmatprep.subr.bf16.mxu0 0
      %712 = vmatpush2.bf16.xpose.msra.mxu0 0
      %713 = vmatprep.subr.bf16.mxu0 0
      %714 = vmatpush2.bf16.xpose.msra.mxu0 0
      %715 = vmatprep.subr.bf16.mxu0 0
      %716 = vmatpush2.bf16.xpose.msra.mxu0 0
      %717 = vmatprep.subr.bf16.mxu0 0
      %718 = vmatpush2.bf16.xpose.msra.mxu0 0
      %719 = vmatprep.subr.bf16.mxu0 0
      %720 = vmatpush2.bf16.xpose.msra.mxu0 0
      %721 = vmatprep.subr.bf16.mxu0 0
      %722 = vmatpush2.bf16.xpose.msra.mxu0 0
      %723 = vmatprep.mubr.bf16.mxu0 0
      %724 = vmatmul.mubr.bf16.gmra.mxu0 %v686
      %v725 = vpop.f32.mrf.mxu0
      %v726 = vadd.f32 0.0, %v725
      %v727 = vpop.f32.mrf.mxu0
      %v728 = vpop.f32.mrf.mxu0
      %v729 = vpop.f32.mrf.mxu0
      %730 = vdwg.mxu0
      %v731 = vsel %vm571, %v726, -inf
      %732 = vmax.xlane.f32.xlu0 %v731
      %v733 = vpop.xlane.xlu0 %732
      %v734 = vsub.f32 %v726, %v733
      %v735 = vmul.f32 %v734, 1.442695
      %v736 = vpow.pop %v735
      %v737 = vpack.c.bf16 %v736, %v736
      %738 = vrot.lane.b32.xlu0 %v570, 88
      %v739 = vpop.permute.xlu0 %738
      %v741 = vsel %vm571, %v737, 0
      %v744 = vsel %vm631, %v739, 0
      %746 = vmatprep.subr.bf16.mxu0 0
      %747 = vmatpush1.bf16.msra.mxu0 0
      %748 = vmatprep.subr.bf16.mxu0 0
      %749 = vmatpush1.bf16.msra.mxu0 0
      %750 = vmatprep.subr.bf16.mxu0 0
      %751 = vmatpush1.bf16.msra.mxu0 0
      %752 = vmatprep.subr.bf16.mxu0 0
      %753 = vmatpush1.bf16.msra.mxu0 0
      %754 = vmatprep.subr.bf16.mxu0 0
      %755 = vmatpush1.bf16.msra.mxu0 0
      %756 = vmatprep.subr.bf16.mxu0 0
      %757 = vmatpush1.bf16.msra.mxu0 0
      %758 = vmatprep.subr.bf16.mxu0 0
      %759 = vmatpush1.bf16.msra.mxu0 0
      %760 = vmatprep.subr.bf16.mxu0 0
      %761 = vmatpush1.bf16.msra.mxu0 %v744
      %762 = vmatprep.subr.bf16.mxu0 0
      %763 = vmatpush2.bf16.msra.mxu0 0
      %764 = vmatprep.subr.bf16.mxu0 0
      %765 = vmatpush2.bf16.msra.mxu0 0
      %766 = vmatprep.subr.bf16.mxu0 0
      %767 = vmatpush2.bf16.msra.mxu0 0
      %768 = vmatprep.subr.bf16.mxu0 0
      %769 = vmatpush2.bf16.msra.mxu0 0
      %770 = vmatprep.subr.bf16.mxu0 0
      %771 = vmatpush2.bf16.msra.mxu0 0
      %772 = vmatprep.subr.bf16.mxu0 0
      %773 = vmatpush2.bf16.msra.mxu0 0
      %774 = vmatprep.subr.bf16.mxu0 0
      %775 = vmatpush2.bf16.msra.mxu0 0
      %776 = vmatprep.subr.bf16.mxu0 0
      %777 = vmatpush2.bf16.msra.mxu0 0
      %778 = vmatprep.mubr.bf16.mxu0 0
      %779 = vmatmul.mubr.bf16.gmra.mxu0 %v741
      %v780 = vpop.f32.mrf.mxu0
      %v781 = vadd.f32 0.0, %v780
      %v782 = vpop.f32.mrf.mxu0
      %v783 = vpop.f32.mrf.mxu0
      %v784 = vpop.f32.mrf.mxu0
      %785 = vdwg.mxu0
      %v786 = vsel %vm571, %v736, 0.0
      %787 = vadd.xlane.f32.xlu0 %v786
      %v788 = vpop.xlane.xlu0 %787
      %v789 = vrcp.pop %v788
      %v790 = vmul.f32 %v781, %v789
      %791 = vrot.lane.b32.xlu0 %v569, 112
      %v792 = vpop.permute.xlu0 %791
      %793 = vrot.lane.b32.xlu0 %v570, 112
      %v794 = vpop.permute.xlu0 %793
      %v796 = vsel %vm571, %v792, 0
      %v799 = vsel %vm571, %v794, 0
      %801 = vmatprep.subr.bf16.mxu0 0
      %802 = vmatpush1.bf16.xpose.msra.mxu0 0
      %803 = vmatprep.subr.bf16.mxu0 0
      %804 = vmatpush1.bf16.xpose.msra.mxu0 0
      %805 = vmatprep.subr.bf16.mxu0 0
      %806 = vmatpush1.bf16.xpose.msra.mxu0 0
      %807 = vmatprep.subr.bf16.mxu0 0
      %808 = vmatpush1.bf16.xpose.msra.mxu0 0
      %809 = vmatprep.subr.bf16.mxu0 0
      %810 = vmatpush1.bf16.xpose.msra.mxu0 0
      %811 = vmatprep.subr.bf16.mxu0 0
      %812 = vmatpush1.bf16.xpose.msra.mxu0 0
      %813 = vmatprep.subr.bf16.mxu0 0
      %814 = vmatpush1.bf16.xpose.msra.mxu0 0
      %815 = vmatprep.subr.bf16.mxu0 0
      %816 = vmatpush1.bf16.xpose.msra.mxu0 %v799
      %817 = vmatprep.subr.bf16.mxu0 0
      %818 = vmatpush2.bf16.xpose.msra.mxu0 0
      %819 = vmatprep.subr.bf16.mxu0 0
      %820 = vmatpush2.bf16.xpose.msra.mxu0 0
      %821 = vmatprep.subr.bf16.mxu0 0
      %822 = vmatpush2.bf16.xpose.msra.mxu0 0
      %823 = vmatprep.subr.bf16.mxu0 0
      %824 = vmatpush2.bf16.xpose.msra.mxu0 0
      %825 = vmatprep.subr.bf16.mxu0 0
      %826 = vmatpush2.bf16.xpose.msra.mxu0 0
      %827 = vmatprep.subr.bf16.mxu0 0
      %828 = vmatpush2.bf16.xpose.msra.mxu0 0
      %829 = vmatprep.subr.bf16.mxu0 0
      %830 = vmatpush2.bf16.xpose.msra.mxu0 0
      %831 = vmatprep.subr.bf16.mxu0 0
      %832 = vmatpush2.bf16.xpose.msra.mxu0 0
      %833 = vmatprep.mubr.bf16.mxu0 0
      %834 = vmatmul.mubr.bf16.gmra.mxu0 %v796
      %v835 = vpop.f32.mrf.mxu0
      %v836 = vadd.f32 0.0, %v835
      %v837 = vpop.f32.mrf.mxu0
      %v838 = vpop.f32.mrf.mxu0
      %v839 = vpop.f32.mrf.mxu0
      %840 = vdwg.mxu0
      %v841 = vsel %vm571, %v836, -inf
      %842 = vmax.xlane.f32.xlu0 %v841
      %v843 = vpop.xlane.xlu0 %842
      %v844 = vsub.f32 %v836, %v843
      %v845 = vmul.f32 %v844, 1.442695
      %v846 = vpow.pop %v845
      %v847 = vpack.c.bf16 %v846, %v846
      %848 = vrot.lane.b32.xlu0 %v570, 80
      %v849 = vpop.permute.xlu0 %848
      %v851 = vsel %vm571, %v847, 0
      %v854 = vsel %vm631, %v849, 0
      %856 = vmatprep.subr.bf16.mxu0 0
      %857 = vmatpush1.bf16.msra.mxu0 0
      %858 = vmatprep.subr.bf16.mxu0 0
      %859 = vmatpush1.bf16.msra.mxu0 0
      %860 = vmatprep.subr.bf16.mxu0 0
      %861 = vmatpush1.bf16.msra.mxu0 0
      %862 = vmatprep.subr.bf16.mxu0 0
      %863 = vmatpush1.bf16.msra.mxu0 0
      %864 = vmatprep.subr.bf16.mxu0 0
      %865 = vmatpush1.bf16.msra.mxu0 0
      %866 = vmatprep.subr.bf16.mxu0 0
      %867 = vmatpush1.bf16.msra.mxu0 0
      %868 = vmatprep.subr.bf16.mxu0 0
      %869 = vmatpush1.bf16.msra.mxu0 0
      %870 = vmatprep.subr.bf16.mxu0 0
      %871 = vmatpush1.bf16.msra.mxu0 %v854
      %872 = vmatprep.subr.bf16.mxu0 0
      %873 = vmatpush2.bf16.msra.mxu0 0
      %874 = vmatprep.subr.bf16.mxu0 0
      %875 = vmatpush2.bf16.msra.mxu0 0
      %876 = vmatprep.subr.bf16.mxu0 0
      %877 = vmatpush2.bf16.msra.mxu0 0
      %878 = vmatprep.subr.bf16.mxu0 0
      %879 = vmatpush2.bf16.msra.mxu0 0
      %880 = vmatprep.subr.bf16.mxu0 0
      %881 = vmatpush2.bf16.msra.mxu0 0
      %882 = vmatprep.subr.bf16.mxu0 0
      %883 = vmatpush2.bf16.msra.mxu0 0
      %884 = vmatprep.subr.bf16.mxu0 0
      %885 = vmatpush2.bf16.msra.mxu0 0
      %886 = vmatprep.subr.bf16.mxu0 0
      %887 = vmatpush2.bf16.msra.mxu0 0
      %888 = vmatprep.mubr.bf16.mxu0 0
      %889 = vmatmul.mubr.bf16.gmra.mxu0 %v851
      %v890 = vpop.f32.mrf.mxu0
      %v891 = vadd.f32 0.0, %v890
      %v892 = vpop.f32.mrf.mxu0
      %v893 = vpop.f32.mrf.mxu0
      %v894 = vpop.f32.mrf.mxu0
      %895 = vdwg.mxu0
      %v896 = vsel %vm571, %v846, 0.0
      %897 = vadd.xlane.f32.xlu0 %v896
      %v898 = vpop.xlane.xlu0 %897
      %v899 = vrcp.pop %v898
      %v900 = vmul.f32 %v891, %v899
      %901 = vrot.lane.b32.xlu0 %v569, 104
      %v902 = vpop.permute.xlu0 %901
      %903 = vrot.lane.b32.xlu0 %v570, 104
      %v904 = vpop.permute.xlu0 %903
      %v906 = vsel %vm571, %v902, 0
      %v909 = vsel %vm571, %v904, 0
      %911 = vmatprep.subr.bf16.mxu0 0
      %912 = vmatpush1.bf16.xpose.msra.mxu0 0
      %913 = vmatprep.subr.bf16.mxu0 0
      %914 = vmatpush1.bf16.xpose.msra.mxu0 0
      %915 = vmatprep.subr.bf16.mxu0 0
      %916 = vmatpush1.bf16.xpose.msra.mxu0 0
      %917 = vmatprep.subr.bf16.mxu0 0
      %918 = vmatpush1.bf16.xpose.msra.mxu0 0
      %919 = vmatprep.subr.bf16.mxu0 0
      %920 = vmatpush1.bf16.xpose.msra.mxu0 0
      %921 = vmatprep.subr.bf16.mxu0 0
      %922 = vmatpush1.bf16.xpose.msra.mxu0 0
      %923 = vmatprep.subr.bf16.mxu0 0
      %924 = vmatpush1.bf16.xpose.msra.mxu0 0
      %925 = vmatprep.subr.bf16.mxu0 0
      %926 = vmatpush1.bf16.xpose.msra.mxu0 %v909
      %927 = vmatprep.subr.bf16.mxu0 0
      %928 = vmatpush2.bf16.xpose.msra.mxu0 0
      %929 = vmatprep.subr.bf16.mxu0 0
      %930 = vmatpush2.bf16.xpose.msra.mxu0 0
      %931 = vmatprep.subr.bf16.mxu0 0
      %932 = vmatpush2.bf16.xpose.msra.mxu0 0
      %933 = vmatprep.subr.bf16.mxu0 0
      %934 = vmatpush2.bf16.xpose.msra.mxu0 0
      %935 = vmatprep.subr.bf16.mxu0 0
      %936 = vmatpush2.bf16.xpose.msra.mxu0 0
      %937 = vmatprep.subr.bf16.mxu0 0
      %938 = vmatpush2.bf16.xpose.msra.mxu0 0
      %939 = vmatprep.subr.bf16.mxu0 0
      %940 = vmatpush2.bf16.xpose.msra.mxu0 0
      %941 = vmatprep.subr.bf16.mxu0 0
      %942 = vmatpush2.bf16.xpose.msra.mxu0 0
      %943 = vmatprep.mubr.bf16.mxu0 0
      %944 = vmatmul.mubr.bf16.gmra.mxu0 %v906
      %v945 = vpop.f32.mrf.mxu0
      %v946 = vadd.f32 0.0, %v945
      %v947 = vpop.f32.mrf.mxu0
      %v948 = vpop.f32.mrf.mxu0
      %v949 = vpop.f32.mrf.mxu0
      %950 = vdwg.mxu0
      %v951 = vsel %vm571, %v946, -inf
      %952 = vmax.xlane.f32.xlu0 %v951
      %v953 = vpop.xlane.xlu0 %952
      %v954 = vsub.f32 %v946, %v953
      %v955 = vmul.f32 %v954, 1.442695
      %v956 = vpow.pop %v955
      %v957 = vpack.c.bf16 %v956, %v956
      %958 = vrot.lane.b32.xlu0 %v570, 72
      %v959 = vpop.permute.xlu0 %958
      %v961 = vsel %vm571, %v957, 0
      %v964 = vsel %vm631, %v959, 0
      %966 = vmatprep.subr.bf16.mxu0 0
      %967 = vmatpush1.bf16.msra.mxu0 0
      %968 = vmatprep.subr.bf16.mxu0 0
      %969 = vmatpush1.bf16.msra.mxu0 0
      %970 = vmatprep.subr.bf16.mxu0 0
      %971 = vmatpush1.bf16.msra.mxu0 0
      %972 = vmatprep.subr.bf16.mxu0 0
      %973 = vmatpush1.bf16.msra.mxu0 0
      %974 = vmatprep.subr.bf16.mxu0 0
      %975 = vmatpush1.bf16.msra.mxu0 0
      %976 = vmatprep.subr.bf16.mxu0 0
      %977 = vmatpush1.bf16.msra.mxu0 0
      %978 = vmatprep.subr.bf16.mxu0 0
      %979 = vmatpush1.bf16.msra.mxu0 0
      %980 = vmatprep.subr.bf16.mxu0 0
      %981 = vmatpush1.bf16.msra.mxu0 %v964
      %982 = vmatprep.subr.bf16.mxu0 0
      %983 = vmatpush2.bf16.msra.mxu0 0
      %984 = vmatprep.subr.bf16.mxu0 0
      %985 = vmatpush2.bf16.msra.mxu0 0
      %986 = vmatprep.subr.bf16.mxu0 0
      %987 = vmatpush2.bf16.msra.mxu0 0
      %988 = vmatprep.subr.bf16.mxu0 0
      %989 = vmatpush2.bf16.msra.mxu0 0
      %990 = vmatprep.subr.bf16.mxu0 0
      %991 = vmatpush2.bf16.msra.mxu0 0
      %992 = vmatprep.subr.bf16.mxu0 0
      %993 = vmatpush2.bf16.msra.mxu0 0
      %994 = vmatprep.subr.bf16.mxu0 0
      %995 = vmatpush2.bf16.msra.mxu0 0
      %996 = vmatprep.subr.bf16.mxu0 0
      %997 = vmatpush2.bf16.msra.mxu0 0
      %998 = vmatprep.mubr.bf16.mxu0 0
      %999 = vmatmul.mubr.bf16.gmra.mxu0 %v961
      %v1000 = vpop.f32.mrf.mxu0
      %v1001 = vadd.f32 0.0, %v1000
      %v1002 = vpop.f32.mrf.mxu0
      %v1003 = vpop.f32.mrf.mxu0
      %v1004 = vpop.f32.mrf.mxu0
      %1005 = vdwg.mxu0
      %v1006 = vsel %vm571, %v956, 0.0
      %1007 = vadd.xlane.f32.xlu0 %v1006
      %v1008 = vpop.xlane.xlu0 %1007
      %v1009 = vrcp.pop %v1008
      %v1010 = vmul.f32 %v1001, %v1009
      %1012 = vrot.lane.b32.xlu0 %v790, 8
      %v1013 = vpop.permute.xlu0 %1012
      %1016 = vrot.lane.b32.xlu0 %v900, 16
      %v1017 = vpop.permute.xlu0 %1016
      %1020 = vrot.lane.b32.xlu0 %v1010, 24
      %v1021 = vpop.permute.xlu0 %1020
      %v1023 = vsel %vm571, %v679, %v1013
      %vm1024 = vcmask 130048
      %v1025 = vsel %vm1024, %v1023, %v1017
      %vm1026 = vcmask 195584
      %v1027 = vsel %vm1026, %v1025, %v1021
      %v1028 = vpack.c.bf16 %v1027, %v1027
      %v1029 = vld [vmem:[%s5] sm:$0xf]
      %v1030 = vld [vmem:[%s5 + $0x4] sm:$0xf]
      %v1031 = vld [vmem:[%s5 + $0x8] sm:$0xf]
      %v1032 = vld [vmem:[%s5 + $0xc] sm:$0xf]
      %v1033 = vld [vmem:[%s6] sm:$0x1]
      %v1035 = vlaneseq
      %v1036 = vshrl.u32 %v1035, 7
      %v1037 = vsub.s32 0, %v1036
      %v1038 = vrot.slane %v1033, %v1037
      %v1044 = vunpack.c.l.b16 %v1029
      %v1045 = vunpack.c.l.b16 %v1030
      %v1046 = vunpack.c.l.b16 %v1031
      %v1047 = vunpack.c.l.b16 %v1032
      %v1048 = vpack.c.b16 %v1045, %v1044
      %v1049 = vpack.c.b16 %v1047, %v1046
      %v1053 = vsel %vm459, %v1028, 0
      %1055 = vmatprep.subr.bf16.mxu0 0
      %1056 = vmatpush1.bf16.msra.mxu0 0
      %1057 = vmatprep.subr.bf16.mxu0 0
      %1058 = vmatpush1.bf16.msra.mxu0 0
      %1059 = vmatprep.subr.bf16.mxu0 0
      %1060 = vmatpush1.bf16.msra.mxu0 0
      %1061 = vmatprep.subr.bf16.mxu0 0
      %1062 = vmatpush1.bf16.msra.mxu0 0
      %1063 = vmatprep.subr.bf16.mxu0 0
      %1064 = vmatpush1.bf16.msra.mxu0 0
      %1065 = vmatprep.subr.bf16.mxu0 0
      %1066 = vmatpush1.bf16.msra.mxu0 0
      %1067 = vmatprep.subr.bf16.mxu0 0
      %1068 = vmatpush1.bf16.msra.mxu0 %v1049
      %1069 = vmatprep.subr.bf16.mxu0 0
      %1070 = vmatpush1.bf16.msra.mxu0 %v1048
      %1071 = vmatprep.subr.bf16.mxu0 0
      %1072 = vmatpush2.bf16.msra.mxu0 0
      %1073 = vmatprep.subr.bf16.mxu0 0
      %1074 = vmatpush2.bf16.msra.mxu0 0
      %1075 = vmatprep.subr.bf16.mxu0 0
      %1076 = vmatpush2.bf16.msra.mxu0 0
      %1077 = vmatprep.subr.bf16.mxu0 0
      %1078 = vmatpush2.bf16.msra.mxu0 0
      %1079 = vmatprep.subr.bf16.mxu0 0
      %1080 = vmatpush2.bf16.msra.mxu0 0
      %1081 = vmatprep.subr.bf16.mxu0 0
      %1082 = vmatpush2.bf16.msra.mxu0 0
      %1083 = vmatprep.subr.bf16.mxu0 0
      %1084 = vmatpush2.bf16.msra.mxu0 0
      %1085 = vmatprep.subr.bf16.mxu0 0
      %1086 = vmatpush2.bf16.msra.mxu0 0
      %1087 = vmatprep.mubr.bf16.mxu0 0
      %1088 = vmatmul.mubr.bf16.gmra.mxu0 %v1053
      %v1089 = vpop.f32.mrf.mxu0
      %v1090 = vadd.f32 %v1038, %v1089
      %v1091 = vpop.f32.mrf.mxu0
      %v1092 = vpop.f32.mrf.mxu0
      %v1093 = vpop.f32.mrf.mxu0
      %1094 = vdwg.mxu0
      %v1095 = vld [vmem:[%s7] sm:$0xf]
      %v1096 = vld [vmem:[%s7 + $0x4] sm:$0xf]
      %v1097 = vld [vmem:[%s7 + $0x8] sm:$0xf]
      %v1098 = vld [vmem:[%s7 + $0xc] sm:$0xf]
      %v1099 = vpack.c.bf16 %v1090, %v1090
      %v1100 = vld [vmem:[%s8] sm:$0xf]
      %v1101 = vld [vmem:[%s8 + $0x4] sm:$0xf]
      %v1102 = vld [vmem:[%s8 + $0x8] sm:$0xf]
      %v1103 = vld [vmem:[%s8 + $0xc] sm:$0xf]
      %v1108 = vunpack.c.l.b16 %v1100
      %v1109 = vunpack.c.l.b16 %v1101
      %v1110 = vunpack.c.l.b16 %v1102
      %v1111 = vunpack.c.l.b16 %v1103
      %v1112 = vpack.c.b16 %v1109, %v1108
      %v1113 = vpack.c.b16 %v1111, %v1110
      %v1117 = vsel %vm459, %v1099, 0
      %1119 = vmatprep.subr.bf16.mxu0 0
      %1120 = vmatpush1.bf16.msra.mxu0 0
      %1121 = vmatprep.subr.bf16.mxu0 0
      %1122 = vmatpush1.bf16.msra.mxu0 0
      %1123 = vmatprep.subr.bf16.mxu0 0
      %1124 = vmatpush1.bf16.msra.mxu0 0
      %1125 = vmatprep.subr.bf16.mxu0 0
      %1126 = vmatpush1.bf16.msra.mxu0 0
      %1127 = vmatprep.subr.bf16.mxu0 0
      %1128 = vmatpush1.bf16.msra.mxu0 0
      %1129 = vmatprep.subr.bf16.mxu0 0
      %1130 = vmatpush1.bf16.msra.mxu0 0
      %1131 = vmatprep.subr.bf16.mxu0 0
      %1132 = vmatpush1.bf16.msra.mxu0 %v1113
      %1133 = vmatprep.subr.bf16.mxu0 0
      %1134 = vmatpush1.bf16.msra.mxu0 %v1112
      %1135 = vmatprep.subr.bf16.mxu0 0
      %1136 = vmatpush2.bf16.msra.mxu0 0
      %1137 = vmatprep.subr.bf16.mxu0 0
      %1138 = vmatpush2.bf16.msra.mxu0 0
      %1139 = vmatprep.subr.bf16.mxu0 0
      %1140 = vmatpush2.bf16.msra.mxu0 0
      %1141 = vmatprep.subr.bf16.mxu0 0
      %1142 = vmatpush2.bf16.msra.mxu0 0
      %1143 = vmatprep.subr.bf16.mxu0 0
      %1144 = vmatpush2.bf16.msra.mxu0 0
      %1145 = vmatprep.subr.bf16.mxu0 0
      %1146 = vmatpush2.bf16.msra.mxu0 0
      %1147 = vmatprep.subr.bf16.mxu0 0
      %1148 = vmatpush2.bf16.msra.mxu0 0
      %1149 = vmatprep.subr.bf16.mxu0 0
      %1150 = vmatpush2.bf16.msra.mxu0 0
      %1151 = vmatprep.mubr.bf16.mxu0 0
      %1152 = vmatmul.mubr.bf16.gmra.mxu0 %v1117
      %v1153 = vpop.f32.mrf.mxu0
      %v1154 = vadd.f32 0.0, %v1153
      %v1155 = vpop.f32.mrf.mxu0
      %v1156 = vpop.f32.mrf.mxu0
      %v1157 = vpop.f32.mrf.mxu0
      %1158 = vdwg.mxu0
      %v1163 = vunpack.c.l.b16 %v1095
      %v1164 = vunpack.c.l.b16 %v1096
      %v1165 = vunpack.c.l.b16 %v1097
      %v1166 = vunpack.c.l.b16 %v1098
      %v1167 = vpack.c.b16 %v1164, %v1163
      %v1168 = vpack.c.b16 %v1166, %v1165
      %1171 = vmatprep.subr.bf16.mxu0 0
      %1172 = vmatpush1.bf16.msra.mxu0 0
      %1173 = vmatprep.subr.bf16.mxu0 0
      %1174 = vmatpush1.bf16.msra.mxu0 0
      %1175 = vmatprep.subr.bf16.mxu0 0
      %1176 = vmatpush1.bf16.msra.mxu0 0
      %1177 = vmatprep.subr.bf16.mxu0 0
      %1178 = vmatpush1.bf16.msra.mxu0 0
      %1179 = vmatprep.subr.bf16.mxu0 0
      %1180 = vmatpush1.bf16.msra.mxu0 0
      %1181 = vmatprep.subr.bf16.mxu0 0
      %1182 = vmatpush1.bf16.msra.mxu0 0
      %1183 = vmatprep.subr.bf16.mxu0 0
      %1184 = vmatpush1.bf16.msra.mxu0 %v1168
      %1185 = vmatprep.subr.bf16.mxu0 0
      %1186 = vmatpush1.bf16.msra.mxu0 %v1167
      %1187 = vmatprep.subr.bf16.mxu0 0
      %1188 = vmatpush2.bf16.msra.mxu0 0
      %1189 = vmatprep.subr.bf16.mxu0 0
      %1190 = vmatpush2.bf16.msra.mxu0 0
      %1191 = vmatprep.subr.bf16.mxu0 0
      %1192 = vmatpush2.bf16.msra.mxu0 0
      %1193 = vmatprep.subr.bf16.mxu0 0
      %1194 = vmatpush2.bf16.msra.mxu0 0
      %1195 = vmatprep.subr.bf16.mxu0 0
      %1196 = vmatpush2.bf16.msra.mxu0 0
      %1197 = vmatprep.subr.bf16.mxu0 0
      %1198 = vmatpush2.bf16.msra.mxu0 0
      %1199 = vmatprep.subr.bf16.mxu0 0
      %1200 = vmatpush2.bf16.msra.mxu0 0
      %1201 = vmatprep.subr.bf16.mxu0 0
      %1202 = vmatpush2.bf16.msra.mxu0 0
      %1203 = vmatprep.mubr.bf16.mxu0 0
      %1204 = vmatmul.mubr.bf16.gmra.mxu0 %v461
      %v1205 = vpop.f32.mrf.mxu0
      %v1206 = vadd.f32 %v1154, %v1205
      %v1207 = vpop.f32.mrf.mxu0
      %v1208 = vpop.f32.mrf.mxu0
      %v1209 = vpop.f32.mrf.mxu0
      %1210 = vdwg.mxu0
      %v1211 = vld [vmem:[%s9] sm:$0x1]
      %v1213 = vlaneseq
      %v1214 = vshrl.u32 %v1213, 7
      %v1215 = vsub.s32 0, %v1214
      %v1216 = vrot.slane %v1211, %v1215
      %v1218 = vadd.f32 %v1206, %v1216
      %v1219 = vmax.f32 %v1218, 0.0
      %v1220 = vpack.c.bf16 %v1219, %v1219
      %v1221 = vld [vmem:[%s10] sm:$0xf]
      %v1222 = vld [vmem:[%s10 + $0x4] sm:$0xf]
      %v1223 = vld [vmem:[%s10 + $0x8] sm:$0xf]
      %v1224 = vld [vmem:[%s10 + $0xc] sm:$0xf]
      %v1225 = vld [vmem:[%s10 + $0x10] sm:$0xf]
      %v1226 = vld [vmem:[%s10 + $0x14] sm:$0xf]
      %v1227 = vld [vmem:[%s10 + $0x18] sm:$0xf]
      %v1228 = vld [vmem:[%s10 + $0x1c] sm:$0xf]
      %v1229 = vld [vmem:[%s11] sm:$0x1]
      %v1231 = vlaneseq
      %v1232 = vshrl.u32 %v1231, 7
      %v1233 = vsub.s32 0, %v1232
      %v1234 = vrot.slane %v1229, %v1233
      %v1244 = vunpack.c.l.b16 %v1221
      %v1245 = vunpack.c.l.b16 %v1222
      %v1246 = vunpack.c.l.b16 %v1223
      %v1247 = vunpack.c.l.b16 %v1224
      %v1248 = vunpack.c.l.b16 %v1225
      %v1249 = vunpack.c.l.b16 %v1226
      %v1250 = vunpack.c.l.b16 %v1227
      %v1251 = vunpack.c.l.b16 %v1228
      %v1252 = vpack.c.b16 %v1245, %v1244
      %v1253 = vpack.c.b16 %v1247, %v1246
      %v1254 = vpack.c.b16 %v1249, %v1248
      %v1255 = vpack.c.b16 %v1251, %v1250
      %vm1260 = vcmask 523264
      %v1262 = vsel %vm1260, %v1220, 0
      %1264 = vmatprep.subr.bf16.mxu0 0
      %1265 = vmatpush1.bf16.msra.mxu0 0
      %1266 = vmatprep.subr.bf16.mxu0 0
      %1267 = vmatpush1.bf16.msra.mxu0 0
      %1268 = vmatprep.subr.bf16.mxu0 0
      %1269 = vmatpush1.bf16.msra.mxu0 0
      %1270 = vmatprep.subr.bf16.mxu0 0
      %1271 = vmatpush1.bf16.msra.mxu0 0
      %1272 = vmatprep.subr.bf16.mxu0 0
      %1273 = vmatpush1.bf16.msra.mxu0 %v1255
      %1274 = vmatprep.subr.bf16.mxu0 0
      %1275 = vmatpush1.bf16.msra.mxu0 %v1254
      %1276 = vmatprep.subr.bf16.mxu0 0
      %1277 = vmatpush1.bf16.msra.mxu0 %v1253
      %1278 = vmatprep.subr.bf16.mxu0 0
      %1279 = vmatpush1.bf16.msra.mxu0 %v1252
      %1280 = vmatprep.subr.bf16.mxu0 0
      %1281 = vmatpush2.bf16.msra.mxu0 0
      %1282 = vmatprep.subr.bf16.mxu0 0
      %1283 = vmatpush2.bf16.msra.mxu0 0
      %1284 = vmatprep.subr.bf16.mxu0 0
      %1285 = vmatpush2.bf16.msra.mxu0 0
      %1286 = vmatprep.subr.bf16.mxu0 0
      %1287 = vmatpush2.bf16.msra.mxu0 0
      %1288 = vmatprep.subr.bf16.mxu0 0
      %1289 = vmatpush2.bf16.msra.mxu0 0
      %1290 = vmatprep.subr.bf16.mxu0 0
      %1291 = vmatpush2.bf16.msra.mxu0 0
      %1292 = vmatprep.subr.bf16.mxu0 0
      %1293 = vmatpush2.bf16.msra.mxu0 0
      %1294 = vmatprep.subr.bf16.mxu0 0
      %1295 = vmatpush2.bf16.msra.mxu0 0
      %1296 = vmatprep.mubr.bf16.mxu0 0
      %1297 = vmatmul.mubr.bf16.gmra.mxu0 %v1262
      %v1298 = vpop.f32.mrf.mxu0
      %v1299 = vadd.f32 %v1234, %v1298
      %v1300 = vpop.f32.mrf.mxu0
      %v1301 = vpop.f32.mrf.mxu0
      %v1302 = vpop.f32.mrf.mxu0
      %1303 = vdwg.mxu0
      %v1304 = vadd.f32 %v432, %v1299
      %1305 = vst.msk [vmem:[%s428] sm:$0xff] %vm459, %v1304
      %p1306 = scmp.lt.s32.totalorder %s27, 3
      %s1307 = scalar_select %p1306, %s27, 3
      %p1308 = scmp.lt.s32.totalorder %s28, 0
      %s1309 = scalar_select %p1308, %s28, 0
      %s1310 = sadd.s32 %s1309, %s1307
      %s1311 = smul.addr %s1310, 8
      %s1312 = scalar_lea.vmem %s12, %s1311
      // Predicated region
      $region69: #{_lambda_.2} parent=67 // pred_check
        %p1313 = pneg %p312
      $region70: #{_lambda_.2} parent=67 // pred_check_branch
        %1315 = sbr.rel (%p1313) target = $region72
      $region71: #{_lambda_.2} parent=67 // pred_region
        _
      $region72: #{_lambda_.2} parent=67 // pred_fallthru
        _
    $region68: #{_lambda_.2} parent=5 // pred_fallthru
      _
    %p1316 = scmp.le.s32.totalorder 2, %s18
    // Predicated region
    $region73: #{_lambda_.2} parent=5 // pred_check
      %p1317 = pneg %p1316
    $region74: #{_lambda_.2} parent=5 // pred_check_branch
      %1319 = sbr.rel (%p1317) target = $region76
    $region75: #{_lambda_.2} parent=5 // pred_region
      %s1320 = ssub.s32 %s18, 2
      // Predicated region
      $region77: #{_lambda_.2} parent=75 // pred_check
        %p1321 = pneg %p318
      $region78: #{_lambda_.2} parent=75 // pred_check_branch
        %1323 = sbr.rel (%p1321) target = $region80
      $region79: #{_lambda_.2} parent=75 // pred_region
        %p1324 = scmp.lt.s32.totalorder %s29, 3
        %s1325 = scalar_select %p1324, %s29, 3
        %p1326 = scmp.lt.s32.totalorder %s30, 0
        %s1327 = scalar_select %p1326, %s30, 0
        %s1328 = sadd.s32 %s1327, %s1325
        %s1329 = smul.addr %s1328, 8
        %s1330 = scalar_lea.vmem %s12, %s1329
      $region80: #{_lambda_.2} parent=75 // pred_fallthru
        _
    $region76: #{_lambda_.2} parent=5 // pred_fallthru
      _
  $region6: #{_lambda_.2} parent=0 // loop_footer
    %s22 = sadd.s32 1, %s18
  $region7: #{_lambda_.2} parent=0 // loop_footer_branch
    %17 = sbr.rel target = $region3
  $region8: #{_lambda_.2} parent=0 // loop_exit
    _

</llo_original>
